<compile_context>
chip_gen: v7x
topology: tpu7x:2x2x1
jax: 0.10.0
libtpu: 0.0.40
codegen_flags: <defaults>
</compile_context>

<pallas_src>
import functools

import jax
import jax.numpy as jnp
import numpy as np
from jax.experimental import pallas as pl
from jax.experimental.pallas import tpu as pltpu

_MXU_DTYPE = jnp.bfloat16          # MXU input precision (accumulation is f32)
_EPS = 1e-5
_VMEM_LIMIT = 32 * 1024 * 1024     # safe on v5e/v6e/v7x


# ----------------------------------------------------------------------------
# small helpers
# ----------------------------------------------------------------------------
def _ceil_to(v, m):
    return ((v + m - 1) // m) * m


def _pad_last(a, target):
    pad = target - a.shape[-1]
    if pad == 0:
        return a
    cfg = [(0, 0)] * (a.ndim - 1) + [(0, pad)]
    return jnp.pad(a, cfg)


def _pick_tile(n, cap, mult):
    """Largest divisor of n that is a multiple of `mult` and <= cap (else n)."""
    if n <= cap:
        return n
    t = cap - (cap % mult)
    while t >= mult:
        if n % t == 0:
            return t
        t -= mult
    return n


def _bn_scale_shift(stats, count, gamma, beta, eps=_EPS):
    """stats: (blocks, 8, C) with row0=sum, row1=sumsq -> per-channel scale/shift."""
    tot = jnp.sum(stats, axis=0)
    mean = tot[0] / count
    var = jnp.maximum(tot[1] / count - mean * mean, 0.0)   # biased var (training BN)
    scale = gamma * jax.lax.rsqrt(var + eps)
    shift = beta - mean * scale
    return scale, shift


# ----------------------------------------------------------------------------
# fused 1x1 conv:  y = (optional relu(x*scale+shift)) @ W + b, + BN stats
# ----------------------------------------------------------------------------
def _conv1x1_kernel(x_ref, w_ref, b_ref, psc_ref, psh_ref, y_ref, st_ref,
                    acc_ref, *, apply_prologue):
    k = pl.program_id(2)
    nk = pl.num_programs(2)

    @pl.when(k == 0)
    def _():
        acc_ref[...] = jnp.zeros_like(acc_ref)

    xb = x_ref[...]
    if apply_prologue:                       # fused relu(bn_prev(.)) prologue
        xb = jnp.maximum(xb * psc_ref[...] + psh_ref[...], 0.0)
    acc_ref[...] += jnp.dot(xb.astype(_MXU_DTYPE), w_ref[...],
                            preferred_element_type=jnp.float32)

    @pl.when(k == nk - 1)
    def _():
        y = acc_ref[...] + b_ref[...]
        y_ref[...] = y
        s = jnp.sum(y, axis=0, keepdims=True)
        ss = jnp.sum(y * y, axis=0, keepdims=True)
        st_ref[0] = jnp.concatenate(
            [s, ss, jnp.zeros((6, y.shape[1]), jnp.float32)], axis=0)


def _fused_conv1x1(x2d, w, b, prologue_scale=None, prologue_shift=None,
                   tm_cap=256, tn_cap=512, tk_cap=512):
    m, cin = x2d.shape
    cout = w.shape[1]
    tm = _pick_tile(m, tm_cap, 8)
    tk = _pick_tile(cin, tk_cap, 128)
    tn = _pick_tile(cout, tn_cap, 128)
    gm, gn, gk = m // tm, cout // tn, cin // tk

    apply_prologue = prologue_scale is not None
    if prologue_scale is None:
        prologue_scale = jnp.ones((cin,), jnp.float32)
        prologue_shift = jnp.zeros((cin,), jnp.float32)

    grid_spec = pltpu.PrefetchScalarGridSpec(
        num_scalar_prefetch=0,
        grid=(gm, gn, gk),
        in_specs=[
            pl.BlockSpec((tm, tk), lambda i, j, k: (i, k)),
            pl.BlockSpec((tk, tn), lambda i, j, k: (k, j)),
            pl.BlockSpec((1, tn), lambda i, j, k: (0, j)),
            pl.BlockSpec((1, tk), lambda i, j, k: (0, k)),
            pl.BlockSpec((1, tk), lambda i, j, k: (0, k)),
        ],
        out_specs=[
            pl.BlockSpec((tm, tn), lambda i, j, k: (i, j)),
            pl.BlockSpec((1, 8, tn), lambda i, j, k: (i, 0, j)),
        ],
        scratch_shapes=[pltpu.VMEM((tm, tn), jnp.float32)],
    )
    y, st = pl.pallas_call(
        functools.partial(_conv1x1_kernel, apply_prologue=apply_prologue),
        out_shape=(jax.ShapeDtypeStruct((m, cout), jnp.float32),
                   jax.ShapeDtypeStruct((gm, 8, cout), jnp.float32)),
        grid_spec=grid_spec,
        compiler_params=pltpu.CompilerParams(
            dimension_semantics=("parallel", "parallel", "arbitrary"),
            vmem_limit_bytes=_VMEM_LIMIT),
    )(x2d, w.astype(_MXU_DTYPE), b.reshape(1, cout),
      prologue_scale.reshape(1, cin), prologue_shift.reshape(1, cin))
    return y, st


# ----------------------------------------------------------------------------
# fused 3x3 conv (pad=1): 9 shifted in-VMEM matmuls, bn1+relu prologue,
# BN-stats epilogue.  Grid = one image per step (no HBM im2col).
# ----------------------------------------------------------------------------
def _conv3x3_kernel(xp_ref, w_ref, b_ref, psc_ref, psh_ref, y_ref, st_ref,
                    a_scr, acc_ref, *, hin, win, stride):
    hp, wp, cin = xp_ref.shape[1], xp_ref.shape[2], xp_ref.shape[3]
    cout = w_ref.shape[2]
    ho = (hin - 1) // stride + 1
    wo = (win - 1) // stride + 1

    # prologue: relu(bn_prev(.)) applied to the raw padded slab; the halo of
    # the zero-padded raw input must stay exactly zero *after* the affine
    # transform, so mask it explicitly.
    xp = xp_ref[0]                                            # (hp, wp, cin) f32
    hi = jax.lax.broadcasted_iota(jnp.int32, (hp, wp, 1), 0)
    wi = jax.lax.broadcasted_iota(jnp.int32, (hp, wp, 1), 1)
    interior = (hi >= 1) & (hi <= hin) & (wi >= 1) & (wi <= win)
    act = jnp.maximum(xp * psc_ref[...][None] + psh_ref[...][None], 0.0)
    a_scr[...] = jnp.where(interior, act, 0.0).astype(_MXU_DTYPE)

    acc_ref[...] = jnp.zeros_like(acc_ref)
    for ky in range(3):
        for kx in range(3):
            if stride == 1:
                winv = a_scr[pl.ds(ky, ho), pl.ds(kx, wo), :]
            else:
                winv = a_scr[pl.ds(ky, ho, stride), pl.ds(kx, wo, stride), :]
            acc_ref[...] += jnp.dot(winv.reshape(ho * wo, cin),
                                    w_ref[ky * 3 + kx],
                                    preferred_element_type=jnp.float32)

    y = acc_ref[...] + b_ref[...]
    y_ref[0] = y
    s = jnp.sum(y, axis=0, keepdims=True)
    ss = jnp.sum(y * y, axis=0, keepdims=True)
    st_ref[0] = jnp.concatenate(
        [s, ss, jnp.zeros((6, cout), jnp.float32)], axis=0)


def _fused_conv3x3(xpad, w9, b, psc, psh, stride, hin, win):
    n, hp, wp, cin = xpad.shape
    cout = w9.shape[-1]
    ho = (hin - 1) // stride + 1
    wo = (win - 1) // stride + 1

    grid_spec = pltpu.PrefetchScalarGridSpec(
        num_scalar_prefetch=0,
        grid=(n,),
        in_specs=[
            pl.BlockSpec((1, hp, wp, cin), lambda i: (i, 0, 0, 0)),
            pl.BlockSpec((9, cin, cout), lambda i: (0, 0, 0)),
            pl.BlockSpec((1, cout), lambda i: (0, 0)),
            pl.BlockSpec((1, cin), lambda i: (0, 0)),
            pl.BlockSpec((1, cin), lambda i: (0, 0)),
        ],
        out_specs=[
            pl.BlockSpec((1, ho * wo, cout), lambda i: (i, 0, 0)),
            pl.BlockSpec((1, 8, cout), lambda i: (i, 0, 0)),
        ],
        scratch_shapes=[pltpu.VMEM((hp, wp, cin), _MXU_DTYPE),
                        pltpu.VMEM((ho * wo, cout), jnp.float32)],
    )
    y, st = pl.pallas_call(
        functools.partial(_conv3x3_kernel, hin=hin, win=win, stride=stride),
        out_shape=(jax.ShapeDtypeStruct((n, ho * wo, cout), jnp.float32),
                   jax.ShapeDtypeStruct((n, 8, cout), jnp.float32)),
        grid_spec=grid_spec,
        compiler_params=pltpu.CompilerParams(
            dimension_semantics=("parallel",),
            vmem_limit_bytes=_VMEM_LIMIT),
    )(xpad, w9.astype(_MXU_DTYPE), b.reshape(1, cout),
      psc.reshape(1, cin), psh.reshape(1, cin))
    return y, st


# ----------------------------------------------------------------------------
# fused tail: relu( bn3(y3) + bn_s(shortcut) )
# ----------------------------------------------------------------------------
def _bn_add_relu_kernel(y_ref, s_ref, sc_ref, sh_ref, scs_ref, shs_ref, o_ref):
    o_ref[...] = jnp.maximum(
        y_ref[...] * sc_ref[...] + sh_ref[...]
        + s_ref[...] * scs_ref[...] + shs_ref[...], 0.0)


def _bn_add_relu(y, s, sc, sh, scs, shs, tm_cap=256):
    m, c = y.shape
    tm = _pick_tile(m, tm_cap, 8)
    gm = m // tm
    grid_spec = pltpu.PrefetchScalarGridSpec(
        num_scalar_prefetch=0,
        grid=(gm,),
        in_specs=[pl.BlockSpec((tm, c), lambda i: (i, 0)),
                  pl.BlockSpec((tm, c), lambda i: (i, 0)),
                  pl.BlockSpec((1, c), lambda i: (0, 0)),
                  pl.BlockSpec((1, c), lambda i: (0, 0)),
                  pl.BlockSpec((1, c), lambda i: (0, 0)),
                  pl.BlockSpec((1, c), lambda i: (0, 0))],
        out_specs=pl.BlockSpec((tm, c), lambda i: (i, 0)),
    )
    return pl.pallas_call(
        _bn_add_relu_kernel,
        out_shape=jax.ShapeDtypeStruct((m, c), jnp.float32),
        grid_spec=grid_spec,
        compiler_params=pltpu.CompilerParams(
            dimension_semantics=("parallel",),
            vmem_limit_bytes=_VMEM_LIMIT),
    )(y, s, sc.reshape(1, c), sh.reshape(1, c),
      scs.reshape(1, c), shs.reshape(1, c))


# ----------------------------------------------------------------------------
# Bottleneck forward (NCHW in, NCHW out)
# ----------------------------------------------------------------------------
def bottleneck_forward(x_nchw, params, stride=1, eps=_EPS):
    x = jnp.transpose(x_nchw, (0, 2, 3, 1)).astype(jnp.float32)   # -> NHWC
    n, h, w, cin = x.shape
    planes = params["w1"].shape[1]
    outp = params["w3"].shape[1]
    cin_p = _ceil_to(cin, 128)
    pl_p = _ceil_to(planes, 128)
    out_p = _ceil_to(outp, 128)

    ho = (h - 1) // stride + 1
    wo = (w - 1) // stride + 1
    m1 = n * h * w
    m2 = n * ho * wo

    pad_v = lambda v, t: _pad_last(v.reshape(1, -1), t).reshape(-1)

    # ---- stage 1: conv1 (1x1) + BN stats --------------------------------
    x_flat = _pad_last(x, cin_p).reshape(m1, cin_p)
    w1 = jnp.pad(params["w1"], ((0, cin_p - cin), (0, pl_p - planes)))
    y1, st1 = _fused_conv1x1(x_flat, w1, pad_v(params["b1"], pl_p))
    sc1, sh1 = _bn_scale_shift(st1, m1, pad_v(params["g1"], pl_p),
                               pad_v(params["be1"], pl_p), eps)

    # ---- stage 2: conv2 (3x3, stride, pad=1) with fused relu(bn1) --------
    w2 = jnp.pad(params["w2"],
                 ((0, 0), (0, 0), (0, pl_p - planes), (0, pl_p - planes)))
    w2 = w2.reshape(9, pl_p, pl_p)
    y1_pad = jnp.pad(y1.reshape(n, h, w, pl_p), ((0, 0), (1, 1), (1, 1), (0, 0)))
    y2, st2 = _fused_conv3x3(y1_pad, w2, pad_v(params["b2"], pl_p),
                             sc1, sh1, stride, h, w)
    sc2, sh2 = _bn_scale_shift(st2, m2, pad_v(params["g2"], pl_p),
                               pad_v(params["be2"], pl_p), eps)

    # ---- stage 3: conv3 (1x1) with fused relu(bn2) -----------------------
    w3 = jnp.pad(params["w3"], ((0, pl_p - planes), (0, out_p - outp)))
    y3, st3 = _fused_conv1x1(y2.reshape(m2, pl_p), w3, pad_v(params["b3"], out_p),
                             prologue_scale=sc2, prologue_shift=sh2)
    sc3, sh3 = _bn_scale_shift(st3, m2, pad_v(params["g3"], out_p),
                               pad_v(params["be3"], out_p), eps)

    # ---- shortcut ---------------------------------------------------------
    if "ws" in params:
        xs = x[:, ::stride, ::stride, :] if stride != 1 else x
        # TODO(synk): fold the stride-2 subsampling into the BlockSpec index_map
        xs_flat = _pad_last(xs, cin_p).reshape(m2, cin_p)
        ws = jnp.pad(params["ws"], ((0, cin_p - cin), (0, out_p - outp)))
        ys, sts = _fused_conv1x1(xs_flat, ws, pad_v(params["bs"], out_p))
        scs, shs = _bn_scale_shift(sts, m2, pad_v(params["gs"], out_p),
                                   pad_v(params["bes"], out_p), eps)
        s_in = ys
    else:
        assert stride == 1 and cin == outp, (
            "identity shortcut requires stride==1 and in_planes == expansion*planes")
        s_in = _pad_last(x, out_p).reshape(m2, out_p)
        scs = jnp.ones((out_p,), jnp.float32)
        shs = jnp.zeros((out_p,), jnp.float32)

    out = _bn_add_relu(y3, s_in, sc3, sh3, scs, shs)
    out = out.reshape(n, ho, wo, out_p)[..., :outp]
    return jnp.transpose(out, (0, 3, 1, 2))   # -> NCHW


# ----------------------------------------------------------------------------
# Pure-JAX reference (mirrors the kernel's bf16-on-MXU policy so the check
# isolates implementation correctness; math is otherwise the f32 PyTorch
# training-mode Bottleneck: batch-stats BN, eps=1e-5).
# ----------------------------------------------------------------------------
def _reference_forward(x_nchw, params, stride=1):
    x = jnp.transpose(x_nchw, (0, 2, 3, 1)).astype(jnp.float32)

    def conv(x, w_hwio, b, stride, padding):
        y = jax.lax.conv_general_dilated(
            x.astype(_MXU_DTYPE), w_hwio.astype(_MXU_DTYPE),
            window_strides=(stride, stride),
            padding=[(padding, padding), (padding, padding)],
            dimension_numbers=("NHWC", "HWIO", "NHWC"),
            preferred_element_type=jnp.float32)
        return y + b

    def bn(x, g, b, eps=_EPS):
        mean = x.mean(axis=(0, 1, 2), keepdims=True)
        var = jnp.square(x - mean).mean(axis=(0, 1, 2), keepdims=True)
        return (x - mean) * jax.lax.rsqrt(var + eps) * g + b

    as11 = lambda w: w.reshape(1, 1, *w.shape)
    o = jax.nn.relu(bn(conv(x, as11(params["w1"]), params["b1"], 1, 0),
                       params["g1"], params["be1"]))
    o = jax.nn.relu(bn(conv(o, params["w2"], params["b2"], stride, 1),
                       params["g2"], params["be2"]))
    o = bn(conv(o, as11(params["w3"]), params["b3"], 1, 0),
           params["g3"], params["be3"])
    if "ws" in params:
        s = bn(conv(x, as11(params["ws"]), params["bs"], stride, 0),
               params["gs"], params["bes"])
    else:
        s = x
    return jnp.transpose(jax.nn.relu(o + s), (0, 3, 1, 2))


# ----------------------------------------------------------------------------
if __name__ == "__main__":
    key = jax.random.PRNGKey(0)
    N, in_planes, planes, H, W = 2, 4, 4, 16, 16
    stride = 1
    expansion = 4
    out_planes = expansion * planes

    keys = jax.random.split(key, 10)

    def rnd(k, shape, scale=0.1):
        return scale * jax.random.normal(k, shape, dtype=jnp.float32)

    params = dict(
        w1=rnd(keys[0], (in_planes, planes)),
        b1=rnd(keys[1], (planes,)),
        g1=jnp.ones((planes,), jnp.float32),
        be1=jnp.zeros((planes,), jnp.float32),
        w2=rnd(keys[2], (3, 3, planes, planes)),
        b2=rnd(keys[3], (planes,)),
        g2=jnp.ones((planes,), jnp.float32),
        be2=jnp.zeros((planes,), jnp.float32),
        w3=rnd(keys[4], (planes, out_planes)),
        b3=rnd(keys[5], (out_planes,)),
        g3=jnp.ones((out_planes,), jnp.float32),
        be3=jnp.zeros((out_planes,), jnp.float32),
    )
    if stride != 1 or in_planes != out_planes:
        params.update(
            ws=rnd(keys[6], (in_planes, out_planes)),
            bs=rnd(keys[7], (out_planes,)),
            gs=jnp.ones((out_planes,), jnp.float32),
            bes=jnp.zeros((out_planes,), jnp.float32),
        )

    x = jax.random.normal(keys[8], (N, in_planes, H, W), dtype=jnp.float32)

    fwd = jax.jit(functools.partial(bottleneck_forward, stride=stride))
    out = jax.block_until_ready(fwd(x, params))
    ref = jax.block_until_ready(_reference_forward(x, params, stride=stride))

    assert out.shape == (N, out_planes, H // stride, W // stride)
    np.testing.assert_allclose(np.asarray(out), np.asarray(ref),
                               rtol=1e-2, atol=1e-2)

    print("KERNEL_OK")
</pallas_src>

<mosaic_0001>
module attributes {stable_mosaic.version = 11 : i64} {
  func.func @_conv1x1_kernel(%arg0: i32, %arg1: i32, %arg2: i32, %arg3: memref<256x128xf32, #tpu.memory_space<vmem>>, %arg4: memref<128x128xbf16, #tpu.memory_space<vmem>>, %arg5: memref<1x128xf32, #tpu.memory_space<vmem>>, %arg6: memref<1x128xf32, #tpu.memory_space<vmem>>, %arg7: memref<1x128xf32, #tpu.memory_space<vmem>>, %arg8: memref<256x128xf32, #tpu.memory_space<vmem>>, %arg9: memref<1x8x128xf32, #tpu.memory_space<vmem>>, %arg10: memref<256x128xf32, #tpu.memory_space<vmem>>) attributes {dimension_semantics = [#tpu.dimension_semantics<parallel>, #tpu.dimension_semantics<parallel>, #tpu.dimension_semantics<arbitrary>], iteration_bounds = array<i64: 2, 1, 1>, scalar_prefetch = 0 : i64, scratch_operands = 1 : i64, tpu.core_type = #tpu.core_type<tc>, window_params = [{transform_indices = @transform_0, window_bounds = array<i64: 256, 128>}, {transform_indices = @transform_1, window_bounds = array<i64: 128, 128>}, {transform_indices = @transform_2, window_bounds = array<i64: 1, 128>}, {transform_indices = @transform_3, window_bounds = array<i64: 1, 128>}, {transform_indices = @transform_4, window_bounds = array<i64: 1, 128>}, {transform_indices = @transform_5, window_bounds = array<i64: 256, 128>}, {transform_indices = @transform_6, window_bounds = array<i64: 1, 8, 128>}]} {
    %c0_i32 = arith.constant 0 : i32
    %0 = arith.cmpi eq, %arg2, %c0_i32 : i32
    %1 = arith.extui %0 : i1 to i32
    %c0_i32_0 = arith.constant 0 : i32
    %2 = arith.cmpi ne, %1, %c0_i32_0 : i32
    scf.if %2 {
      %cst_10 = arith.constant 0.000000e+00 : f32
      %13 = vector.broadcast %cst_10 : f32 to vector<256x128xf32>
      %c0_11 = arith.constant 0 : index
      %c0_12 = arith.constant 0 : index
      %14 = vector.load %arg10[%c0_11, %c0_12] : memref<256x128xf32, #tpu.memory_space<vmem>>, vector<256x128xf32>
      tpu.vector_store %arg10[%c0_11, %c0_12], %13 {strides = array<i32>} : memref<256x128xf32, #tpu.memory_space<vmem>>, vector<256x128xf32>,
    } else {
    }
    %c0 = arith.constant 0 : index
    %c0_1 = arith.constant 0 : index
    %3 = vector.load %arg3[%c0, %c0_1] : memref<256x128xf32, #tpu.memory_space<vmem>>, vector<256x128xf32>
    %c0_2 = arith.constant 0 : index
    %c0_3 = arith.constant 0 : index
    %4 = vector.load %arg10[%c0_2, %c0_3] : memref<256x128xf32, #tpu.memory_space<vmem>>, vector<256x128xf32>
    %5 = arith.truncf %3 : vector<256x128xf32> to vector<256x128xbf16>
    %c0_4 = arith.constant 0 : index
    %c0_5 = arith.constant 0 : index
    %6 = vector.load %arg4[%c0_4, %c0_5] : memref<128x128xbf16, #tpu.memory_space<vmem>>, vector<128x128xbf16>
    %cst = arith.constant dense<0.000000e+00> : vector<256x128xf32>
    %7 = tpu.matmul %5, %6, %cst {dimension_numbers = #tpu.dot_dimension_numbers<[1], [0], [0], [1], [0, 0, 1, 1], [], []>} : vector<256x128xbf16>, vector<128x128xbf16>, vector<256x128xf32> -> vector<256x128xf32>
    %8 = arith.addf %4, %7 : vector<256x128xf32>
    %c0_6 = arith.constant 0 : index
    %c0_7 = arith.constant 0 : index
    %9 = vector.load %arg10[%c0_6, %c0_7] : memref<256x128xf32, #tpu.memory_space<vmem>>, vector<256x128xf32>
    tpu.vector_store %arg10[%c0_6, %c0_7], %8 {strides = array<i32>} : memref<256x128xf32, #tpu.memory_space<vmem>>, vector<256x128xf32>,
    %c0_i32_8 = arith.constant 0 : i32
    %10 = arith.cmpi eq, %arg2, %c0_i32_8 : i32
    %11 = arith.extui %10 : i1 to i32
    %c0_i32_9 = arith.constant 0 : i32
    %12 = arith.cmpi ne, %11, %c0_i32_9 : i32
    scf.if %12 {
      %c0_10 = arith.constant 0 : index
      %c0_11 = arith.constant 0 : index
      %13 = vector.load %arg10[%c0_10, %c0_11] : memref<256x128xf32, #tpu.memory_space<vmem>>, vector<256x128xf32>
      %c0_12 = arith.constant 0 : index
      %c0_13 = arith.constant 0 : index
      %14 = vector.load %arg5[%c0_12, %c0_13] : memref<1x128xf32, #tpu.memory_space<vmem>>, vector<1x128xf32>
      %15 = vector.broadcast %14 : vector<1x128xf32> to vector<256x128xf32>
      %16 = arith.addf %13, %15 : vector<256x128xf32>
      %c0_14 = arith.constant 0 : index
      %c0_15 = arith.constant 0 : index
      %17 = vector.load %arg8[%c0_14, %c0_15] : memref<256x128xf32, #tpu.memory_space<vmem>>, vector<256x128xf32>
      tpu.vector_store %arg8[%c0_14, %c0_15], %16 {strides = array<i32>} : memref<256x128xf32, #tpu.memory_space<vmem>>, vector<256x128xf32>,
      %cst_16 = arith.constant dense<0.000000e+00> : vector<128xf32>
      %18 = vector.multi_reduction <add>, %16, %cst_16 [0] : vector<256x128xf32> to vector<128xf32>
      %19 = vector.shape_cast %18 : vector<128xf32> to vector<1x128xf32>
      %20 = arith.mulf %16, %16 : vector<256x128xf32>
      %cst_17 = arith.constant dense<0.000000e+00> : vector<128xf32>
      %21 = vector.multi_reduction <add>, %20, %cst_17 [0] : vector<256x128xf32> to vector<128xf32>
      %22 = vector.shape_cast %21 : vector<128xf32> to vector<1x128xf32>
      %cst_18 = arith.constant 0.000000e+00 : f32
      %23 = vector.broadcast %cst_18 : f32 to vector<6x128xf32>
      %24 = tpu.concatenate %19, %22, %23 in 0 : vector<1x128xf32>, vector<1x128xf32>, vector<6x128xf32> -> vector<8x128xf32>
      %c0_19 = arith.constant 0 : index
      %c0_20 = arith.constant 0 : index
      %c0_21 = arith.constant 0 : index
      %25 = vector.load %arg9[%c0_19, %c0_20, %c0_21] : memref<1x8x128xf32, #tpu.memory_space<vmem>>, vector<1x8x128xf32>
      %26 = vector.shape_cast %25 : vector<1x8x128xf32> to vector<8x128xf32>
      %27 = vector.shape_cast %24 : vector<8x128xf32> to vector<1x8x128xf32>
      tpu.vector_store %arg9[%c0_19, %c0_20, %c0_21], %27 {strides = array<i32>} : memref<1x8x128xf32, #tpu.memory_space<vmem>>, vector<1x8x128xf32>,
    } else {
    }
    return
  }
  func.func @transform_0(%arg0: i32, %arg1: i32, %arg2: i32) -> (i32, i32) {
    %c0_i32 = arith.constant 0 : i32
    return %arg0, %arg2 : i32, i32
  }
  func.func @transform_1(%arg0: i32, %arg1: i32, %arg2: i32) -> (i32, i32) {
    %c0_i32 = arith.constant 0 : i32
    return %arg2, %arg1 : i32, i32
  }
  func.func @transform_2(%arg0: i32, %arg1: i32, %arg2: i32) -> (i32, i32) {
    %c0_i32 = arith.constant 0 : i32
    %c0_i32_0 = arith.constant 0 : i32
    return %c0_i32, %arg1 : i32, i32
  }
  func.func @transform_3(%arg0: i32, %arg1: i32, %arg2: i32) -> (i32, i32) {
    %c0_i32 = arith.constant 0 : i32
    %c0_i32_0 = arith.constant 0 : i32
    return %c0_i32, %arg2 : i32, i32
  }
  func.func @transform_4(%arg0: i32, %arg1: i32, %arg2: i32) -> (i32, i32) {
    %c0_i32 = arith.constant 0 : i32
    %c0_i32_0 = arith.constant 0 : i32
    return %c0_i32, %arg2 : i32, i32
  }
  func.func @transform_5(%arg0: i32, %arg1: i32, %arg2: i32) -> (i32, i32) {
    %c0_i32 = arith.constant 0 : i32
    return %arg0, %arg1 : i32, i32
  }
  func.func @transform_6(%arg0: i32, %arg1: i32, %arg2: i32) -> (i32, i32, i32) {
    %c0_i32 = arith.constant 0 : i32
    %c0_i32_0 = arith.constant 0 : i32
    return %arg0, %c0_i32, %arg1 : i32, i32, i32
  }
}

module attributes {stable_mosaic.version = 11 : i64} {
  func.func @_conv3x3_kernel(%arg0: i32, %arg1: memref<1x18x18x128xf32, #tpu.memory_space<vmem>>, %arg2: memref<9x128x128xbf16, #tpu.memory_space<vmem>>, %arg3: memref<1x128xf32, #tpu.memory_space<vmem>>, %arg4: memref<1x128xf32, #tpu.memory_space<vmem>>, %arg5: memref<1x128xf32, #tpu.memory_space<vmem>>, %arg6: memref<1x256x128xf32, #tpu.memory_space<vmem>>, %arg7: memref<1x8x128xf32, #tpu.memory_space<vmem>>, %arg8: memref<18x18x128xbf16, #tpu.memory_space<vmem>>, %arg9: memref<256x128xf32, #tpu.memory_space<vmem>>) attributes {dimension_semantics = [#tpu.dimension_semantics<parallel>], iteration_bounds = array<i64: 2>, scalar_prefetch = 0 : i64, scratch_operands = 2 : i64, tpu.core_type = #tpu.core_type<tc>, window_params = [{transform_indices = @transform_0, window_bounds = array<i64: 1, 18, 18, 128>}, {pipeline_mode = #tpu.pipeline_mode<synchronous>, transform_indices = @transform_1, window_bounds = array<i64: 9, 128, 128>}, {pipeline_mode = #tpu.pipeline_mode<synchronous>, transform_indices = @transform_2, window_bounds = array<i64: 1, 128>}, {pipeline_mode = #tpu.pipeline_mode<synchronous>, transform_indices = @transform_3, window_bounds = array<i64: 1, 128>}, {pipeline_mode = #tpu.pipeline_mode<synchronous>, transform_indices = @transform_4, window_bounds = array<i64: 1, 128>}, {transform_indices = @transform_5, window_bounds = array<i64: 1, 256, 128>}, {transform_indices = @transform_6, window_bounds = array<i64: 1, 8, 128>}]} {
    %c0 = arith.constant 0 : index
    %c0_0 = arith.constant 0 : index
    %c0_1 = arith.constant 0 : index
    %c0_2 = arith.constant 0 : index
    %0 = vector.load %arg1[%c0, %c0_0, %c0_1, %c0_2] : memref<1x18x18x128xf32, #tpu.memory_space<vmem>>, vector<1x18x18x128xf32>
    %1 = vector.shape_cast %0 : vector<1x18x18x128xf32> to vector<18x18x128xf32>
    %2 = tpu.iota {dimensions = array<i32: 0>} : vector<18x18x1xi32>
    %3 = tpu.iota {dimensions = array<i32: 1>} : vector<18x18x1xi32>
    %c1_i32 = arith.constant 1 : i32
    %4 = vector.broadcast %c1_i32 : i32 to vector<18x18x1xi32>
    %5 = arith.cmpi sge, %2, %4 : vector<18x18x1xi32>
    %c16_i32 = arith.constant 16 : i32
    %6 = vector.broadcast %c16_i32 : i32 to vector<18x18x1xi32>
    %7 = arith.cmpi sle, %2, %6 : vector<18x18x1xi32>
    %8 = arith.andi %5, %7 : vector<18x18x1xi1>
    %c1_i32_3 = arith.constant 1 : i32
    %9 = vector.broadcast %c1_i32_3 : i32 to vector<18x18x1xi32>
    %10 = arith.cmpi sge, %3, %9 : vector<18x18x1xi32>
    %11 = arith.andi %8, %10 : vector<18x18x1xi1>
    %c16_i32_4 = arith.constant 16 : i32
    %12 = vector.broadcast %c16_i32_4 : i32 to vector<18x18x1xi32>
    %13 = arith.cmpi sle, %3, %12 : vector<18x18x1xi32>
    %14 = arith.andi %11, %13 : vector<18x18x1xi1>
    %c0_5 = arith.constant 0 : index
    %c0_6 = arith.constant 0 : index
    %15 = vector.load %arg4[%c0_5, %c0_6] : memref<1x128xf32, #tpu.memory_space<vmem>>, vector<1x128xf32>
    %16 = vector.shape_cast %15 : vector<1x128xf32> to vector<1x1x128xf32>
    %17 = vector.broadcast %16 : vector<1x1x128xf32> to vector<18x18x128xf32>
    %18 = arith.mulf %1, %17 : vector<18x18x128xf32>
    %c0_7 = arith.constant 0 : index
    %c0_8 = arith.constant 0 : index
    %19 = vector.load %arg5[%c0_7, %c0_8] : memref<1x128xf32, #tpu.memory_space<vmem>>, vector<1x128xf32>
    %20 = vector.shape_cast %19 : vector<1x128xf32> to vector<1x1x128xf32>
    %21 = vector.broadcast %20 : vector<1x1x128xf32> to vector<18x18x128xf32>
    %22 = arith.addf %18, %21 : vector<18x18x128xf32>
    %cst = arith.constant 0.000000e+00 : f32
    %23 = vector.broadcast %cst : f32 to vector<18x18x128xf32>
    %24 = arith.maximumf %22, %23 : vector<18x18x128xf32>
    %cst_9 = arith.constant 0.000000e+00 : f32
    %25 = vector.shape_cast %14 : vector<18x18x1xi1> to vector<18x18x1xi1>
    %26 = vector.broadcast %25 : vector<18x18x1xi1> to vector<18x18x128xi1>
    %27 = vector.broadcast %cst_9 : f32 to vector<18x18x128xf32>
    %28 = arith.select %26, %24, %27 : vector<18x18x128xi1>, vector<18x18x128xf32>
    %29 = arith.truncf %28 : vector<18x18x128xf32> to vector<18x18x128xbf16>
    %c0_10 = arith.constant 0 : index
    %c0_11 = arith.constant 0 : index
    %c0_12 = arith.constant 0 : index
    %30 = vector.load %arg8[%c0_10, %c0_11, %c0_12] : memref<18x18x128xbf16, #tpu.memory_space<vmem>>, vector<18x18x128xbf16>
    tpu.vector_store %arg8[%c0_10, %c0_11, %c0_12], %29 {strides = array<i32>} : memref<18x18x128xbf16, #tpu.memory_space<vmem>>, vector<18x18x128xbf16>,
    %cst_13 = arith.constant 0.000000e+00 : f32
    %31 = vector.broadcast %cst_13 : f32 to vector<256x128xf32>
    %c0_14 = arith.constant 0 : index
    %c0_15 = arith.constant 0 : index
    %32 = vector.load %arg9[%c0_14, %c0_15] : memref<256x128xf32, #tpu.memory_space<vmem>>, vector<256x128xf32>
    tpu.vector_store %arg9[%c0_14, %c0_15], %31 {strides = array<i32>} : memref<256x128xf32, #tpu.memory_space<vmem>>, vector<256x128xf32>,
    %c0_16 = arith.constant 0 : index
    %c0_17 = arith.constant 0 : index
    %c0_18 = arith.constant 0 : index
    %33 = vector.load %arg8[%c0_16, %c0_17, %c0_18] : memref<18x18x128xbf16, #tpu.memory_space<vmem>>, vector<16x16x128xbf16>
    %c0_19 = arith.constant 0 : index
    %c0_20 = arith.constant 0 : index
    %34 = vector.load %arg9[%c0_19, %c0_20] : memref<256x128xf32, #tpu.memory_space<vmem>>, vector<256x128xf32>
    %35 = vector.shape_cast %33 : vector<16x16x128xbf16> to vector<256x128xbf16>
    %c0_21 = arith.constant 0 : index
    %c0_22 = arith.constant 0 : index
    %c0_23 = arith.constant 0 : index
    %36 = vector.load %arg2[%c0_21, %c0_22, %c0_23] : memref<9x128x128xbf16, #tpu.memory_space<vmem>>, vector<1x128x128xbf16>
    %37 = vector.shape_cast %36 : vector<1x128x128xbf16> to vector<128x128xbf16>
    %cst_24 = arith.constant dense<0.000000e+00> : vector<256x128xf32>
    %38 = tpu.matmul %35, %37, %cst_24 {dimension_numbers = #tpu.dot_dimension_numbers<[1], [0], [0], [1], [0, 0, 1, 1], [], []>} : vector<256x128xbf16>, vector<128x128xbf16>, vector<256x128xf32> -> vector<256x128xf32>
    %39 = arith.addf %34, %38 : vector<256x128xf32>
    %c0_25 = arith.constant 0 : index
    %c0_26 = arith.constant 0 : index
    %40 = vector.load %arg9[%c0_25, %c0_26] : memref<256x128xf32, #tpu.memory_space<vmem>>, vector<256x128xf32>
    tpu.vector_store %arg9[%c0_25, %c0_26], %39 {strides = array<i32>} : memref<256x128xf32, #tpu.memory_space<vmem>>, vector<256x128xf32>,
    %c0_27 = arith.constant 0 : index
    %c1 = arith.constant 1 : index
    %c0_28 = arith.constant 0 : index
    %41 = vector.load %arg8[%c0_27, %c1, %c0_28] : memref<18x18x128xbf16, #tpu.memory_space<vmem>>, vector<16x16x128xbf16>
    %c0_29 = arith.constant 0 : index
    %c0_30 = arith.constant 0 : index
    %42 = vector.load %arg9[%c0_29, %c0_30] : memref<256x128xf32, #tpu.memory_space<vmem>>, vector<256x128xf32>
    %43 = vector.shape_cast %41 : vector<16x16x128xbf16> to vector<256x128xbf16>
    %c1_31 = arith.constant 1 : index
    %c0_32 = arith.constant 0 : index
    %c0_33 = arith.constant 0 : index
    %44 = vector.load %arg2[%c1_31, %c0_32, %c0_33] : memref<9x128x128xbf16, #tpu.memory_space<vmem>>, vector<1x128x128xbf16>
    %45 = vector.shape_cast %44 : vector<1x128x128xbf16> to vector<128x128xbf16>
    %cst_34 = arith.constant dense<0.000000e+00> : vector<256x128xf32>
    %46 = tpu.matmul %43, %45, %cst_34 {dimension_numbers = #tpu.dot_dimension_numbers<[1], [0], [0], [1], [0, 0, 1, 1], [], []>} : vector<256x128xbf16>, vector<128x128xbf16>, vector<256x128xf32> -> vector<256x128xf32>
    %47 = arith.addf %42, %46 : vector<256x128xf32>
    %c0_35 = arith.constant 0 : index
    %c0_36 = arith.constant 0 : index
    %48 = vector.load %arg9[%c0_35, %c0_36] : memref<256x128xf32, #tpu.memory_space<vmem>>, vector<256x128xf32>
    tpu.vector_store %arg9[%c0_35, %c0_36], %47 {strides = array<i32>} : memref<256x128xf32, #tpu.memory_space<vmem>>, vector<256x128xf32>,
    %c0_37 = arith.constant 0 : index
    %c2 = arith.constant 2 : index
    %c0_38 = arith.constant 0 : index
    %49 = vector.load %arg8[%c0_37, %c2, %c0_38] : memref<18x18x128xbf16, #tpu.memory_space<vmem>>, vector<16x16x128xbf16>
    %c0_39 = arith.constant 0 : index
    %c0_40 = arith.constant 0 : index
    %50 = vector.load %arg9[%c0_39, %c0_40] : memref<256x128xf32, #tpu.memory_space<vmem>>, vector<256x128xf32>
    %51 = vector.shape_cast %49 : vector<16x16x128xbf16> to vector<256x128xbf16>
    %c2_41 = arith.constant 2 : index
    %c0_42 = arith.constant 0 : index
    %c0_43 = arith.constant 0 : index
    %52 = vector.load %arg2[%c2_41, %c0_42, %c0_43] : memref<9x128x128xbf16, #tpu.memory_space<vmem>>, vector<1x128x128xbf16>
    %53 = vector.shape_cast %52 : vector<1x128x128xbf16> to vector<128x128xbf16>
    %cst_44 = arith.constant dense<0.000000e+00> : vector<256x128xf32>
    %54 = tpu.matmul %51, %53, %cst_44 {dimension_numbers = #tpu.dot_dimension_numbers<[1], [0], [0], [1], [0, 0, 1, 1], [], []>} : vector<256x128xbf16>, vector<128x128xbf16>, vector<256x128xf32> -> vector<256x128xf32>
    %55 = arith.addf %50, %54 : vector<256x128xf32>
    %c0_45 = arith.constant 0 : index
    %c0_46 = arith.constant 0 : index
    %56 = vector.load %arg9[%c0_45, %c0_46] : memref<256x128xf32, #tpu.memory_space<vmem>>, vector<256x128xf32>
    tpu.vector_store %arg9[%c0_45, %c0_46], %55 {strides = array<i32>} : memref<256x128xf32, #tpu.memory_space<vmem>>, vector<256x128xf32>,
    %c1_47 = arith.constant 1 : index
    %c0_48 = arith.constant 0 : index
    %c0_49 = arith.constant 0 : index
    %57 = vector.load %arg8[%c1_47, %c0_48, %c0_49] : memref<18x18x128xbf16, #tpu.memory_space<vmem>>, vector<16x16x128xbf16>
    %c0_50 = arith.constant 0 : index
    %c0_51 = arith.constant 0 : index
    %58 = vector.load %arg9[%c0_50, %c0_51] : memref<256x128xf32, #tpu.memory_space<vmem>>, vector<256x128xf32>
    %59 = vector.shape_cast %57 : vector<16x16x128xbf16> to vector<256x128xbf16>
    %c3 = arith.constant 3 : index
    %c0_52 = arith.constant 0 : index
    %c0_53 = arith.constant 0 : index
    %60 = vector.load %arg2[%c3, %c0_52, %c0_53] : memref<9x128x128xbf16, #tpu.memory_space<vmem>>, vector<1x128x128xbf16>
    %61 = vector.shape_cast %60 : vector<1x128x128xbf16> to vector<128x128xbf16>
    %cst_54 = arith.constant dense<0.000000e+00> : vector<256x128xf32>
    %62 = tpu.matmul %59, %61, %cst_54 {dimension_numbers = #tpu.dot_dimension_numbers<[1], [0], [0], [1], [0, 0, 1, 1], [], []>} : vector<256x128xbf16>, vector<128x128xbf16>, vector<256x128xf32> -> vector<256x128xf32>
    %63 = arith.addf %58, %62 : vector<256x128xf32>
    %c0_55 = arith.constant 0 : index
    %c0_56 = arith.constant 0 : index
    %64 = vector.load %arg9[%c0_55, %c0_56] : memref<256x128xf32, #tpu.memory_space<vmem>>, vector<256x128xf32>
    tpu.vector_store %arg9[%c0_55, %c0_56], %63 {strides = array<i32>} : memref<256x128xf32, #tpu.memory_space<vmem>>, vector<256x128xf32>,
    %c1_57 = arith.constant 1 : index
    %c1_58 = arith.constant 1 : index
    %c0_59 = arith.constant 0 : index
    %65 = vector.load %arg8[%c1_57, %c1_58, %c0_59] : memref<18x18x128xbf16, #tpu.memory_space<vmem>>, vector<16x16x128xbf16>
    %c0_60 = arith.constant 0 : index
    %c0_61 = arith.constant 0 : index
    %66 = vector.load %arg9[%c0_60, %c0_61] : memref<256x128xf32, #tpu.memory_space<vmem>>, vector<256x128xf32>
    %67 = vector.shape_cast %65 : vector<16x16x128xbf16> to vector<256x128xbf16>
    %c4 = arith.constant 4 : index
    %c0_62 = arith.constant 0 : index
    %c0_63 = arith.constant 0 : index
    %68 = vector.load %arg2[%c4, %c0_62, %c0_63] : memref<9x128x128xbf16, #tpu.memory_space<vmem>>, vector<1x128x128xbf16>
    %69 = vector.shape_cast %68 : vector<1x128x128xbf16> to vector<128x128xbf16>
    %cst_64 = arith.constant dense<0.000000e+00> : vector<256x128xf32>
    %70 = tpu.matmul %67, %69, %cst_64 {dimension_numbers = #tpu.dot_dimension_numbers<[1], [0], [0], [1], [0, 0, 1, 1], [], []>} : vector<256x128xbf16>, vector<128x128xbf16>, vector<256x128xf32> -> vector<256x128xf32>
    %71 = arith.addf %66, %70 : vector<256x128xf32>
    %c0_65 = arith.constant 0 : index
    %c0_66 = arith.constant 0 : index
    %72 = vector.load %arg9[%c0_65, %c0_66] : memref<256x128xf32, #tpu.memory_space<vmem>>, vector<256x128xf32>
    tpu.vector_store %arg9[%c0_65, %c0_66], %71 {strides = array<i32>} : memref<256x128xf32, #tpu.memory_space<vmem>>, vector<256x128xf32>,
    %c1_67 = arith.constant 1 : index
    %c2_68 = arith.constant 2 : index
    %c0_69 = arith.constant 0 : index
    %73 = vector.load %arg8[%c1_67, %c2_68, %c0_69] : memref<18x18x128xbf16, #tpu.memory_space<vmem>>, vector<16x16x128xbf16>
    %c0_70 = arith.constant 0 : index
    %c0_71 = arith.constant 0 : index
    %74 = vector.load %arg9[%c0_70, %c0_71] : memref<256x128xf32, #tpu.memory_space<vmem>>, vector<256x128xf32>
    %75 = vector.shape_cast %73 : vector<16x16x128xbf16> to vector<256x128xbf16>
    %c5 = arith.constant 5 : index
    %c0_72 = arith.constant 0 : index
    %c0_73 = arith.constant 0 : index
    %76 = vector.load %arg2[%c5, %c0_72, %c0_73] : memref<9x128x128xbf16, #tpu.memory_space<vmem>>, vector<1x128x128xbf16>
    %77 = vector.shape_cast %76 : vector<1x128x128xbf16> to vector<128x128xbf16>
    %cst_74 = arith.constant dense<0.000000e+00> : vector<256x128xf32>
    %78 = tpu.matmul %75, %77, %cst_74 {dimension_numbers = #tpu.dot_dimension_numbers<[1], [0], [0], [1], [0, 0, 1, 1], [], []>} : vector<256x128xbf16>, vector<128x128xbf16>, vector<256x128xf32> -> vector<256x128xf32>
    %79 = arith.addf %74, %78 : vector<256x128xf32>
    %c0_75 = arith.constant 0 : index
    %c0_76 = arith.constant 0 : index
    %80 = vector.load %arg9[%c0_75, %c0_76] : memref<256x128xf32, #tpu.memory_space<vmem>>, vector<256x128xf32>
    tpu.vector_store %arg9[%c0_75, %c0_76], %79 {strides = array<i32>} : memref<256x128xf32, #tpu.memory_space<vmem>>, vector<256x128xf32>,
    %c2_77 = arith.constant 2 : index
    %c0_78 = arith.constant 0 : index
    %c0_79 = arith.constant 0 : index
    %81 = vector.load %arg8[%c2_77, %c0_78, %c0_79] : memref<18x18x128xbf16, #tpu.memory_space<vmem>>, vector<16x16x128xbf16>
    %c0_80 = arith.constant 0 : index
    %c0_81 = arith.constant 0 : index
    %82 = vector.load %arg9[%c0_80, %c0_81] : memref<256x128xf32, #tpu.memory_space<vmem>>, vector<256x128xf32>
    %83 = vector.shape_cast %81 : vector<16x16x128xbf16> to vector<256x128xbf16>
    %c6 = arith.constant 6 : index
    %c0_82 = arith.constant 0 : index
    %c0_83 = arith.constant 0 : index
    %84 = vector.load %arg2[%c6, %c0_82, %c0_83] : memref<9x128x128xbf16, #tpu.memory_space<vmem>>, vector<1x128x128xbf16>
    %85 = vector.shape_cast %84 : vector<1x128x128xbf16> to vector<128x128xbf16>
    %cst_84 = arith.constant dense<0.000000e+00> : vector<256x128xf32>
    %86 = tpu.matmul %83, %85, %cst_84 {dimension_numbers = #tpu.dot_dimension_numbers<[1], [0], [0], [1], [0, 0, 1, 1], [], []>} : vector<256x128xbf16>, vector<128x128xbf16>, vector<256x128xf32> -> vector<256x128xf32>
    %87 = arith.addf %82, %86 : vector<256x128xf32>
    %c0_85 = arith.constant 0 : index
    %c0_86 = arith.constant 0 : index
    %88 = vector.load %arg9[%c0_85, %c0_86] : memref<256x128xf32, #tpu.memory_space<vmem>>, vector<256x128xf32>
    tpu.vector_store %arg9[%c0_85, %c0_86], %87 {strides = array<i32>} : memref<256x128xf32, #tpu.memory_space<vmem>>, vector<256x128xf32>,
    %c2_87 = arith.constant 2 : index
    %c1_88 = arith.constant 1 : index
    %c0_89 = arith.constant 0 : index
    %89 = vector.load %arg8[%c2_87, %c1_88, %c0_89] : memref<18x18x128xbf16, #tpu.memory_space<vmem>>, vector<16x16x128xbf16>
    %c0_90 = arith.constant 0 : index
    %c0_91 = arith.constant 0 : index
    %90 = vector.load %arg9[%c0_90, %c0_91] : memref<256x128xf32, #tpu.memory_space<vmem>>, vector<256x128xf32>
    %91 = vector.shape_cast %89 : vector<16x16x128xbf16> to vector<256x128xbf16>
    %c7 = arith.constant 7 : index
    %c0_92 = arith.constant 0 : index
    %c0_93 = arith.constant 0 : index
    %92 = vector.load %arg2[%c7, %c0_92, %c0_93] : memref<9x128x128xbf16, #tpu.memory_space<vmem>>, vector<1x128x128xbf16>
    %93 = vector.shape_cast %92 : vector<1x128x128xbf16> to vector<128x128xbf16>
    %cst_94 = arith.constant dense<0.000000e+00> : vector<256x128xf32>
    %94 = tpu.matmul %91, %93, %cst_94 {dimension_numbers = #tpu.dot_dimension_numbers<[1], [0], [0], [1], [0, 0, 1, 1], [], []>} : vector<256x128xbf16>, vector<128x128xbf16>, vector<256x128xf32> -> vector<256x128xf32>
    %95 = arith.addf %90, %94 : vector<256x128xf32>
    %c0_95 = arith.constant 0 : index
    %c0_96 = arith.constant 0 : index
    %96 = vector.load %arg9[%c0_95, %c0_96] : memref<256x128xf32, #tpu.memory_space<vmem>>, vector<256x128xf32>
    tpu.vector_store %arg9[%c0_95, %c0_96], %95 {strides = array<i32>} : memref<256x128xf32, #tpu.memory_space<vmem>>, vector<256x128xf32>,
    %c2_97 = arith.constant 2 : index
    %c2_98 = arith.constant 2 : index
    %c0_99 = arith.constant 0 : index
    %97 = vector.load %arg8[%c2_97, %c2_98, %c0_99] : memref<18x18x128xbf16, #tpu.memory_space<vmem>>, vector<16x16x128xbf16>
    %c0_100 = arith.constant 0 : index
    %c0_101 = arith.constant 0 : index
    %98 = vector.load %arg9[%c0_100, %c0_101] : memref<256x128xf32, #tpu.memory_space<vmem>>, vector<256x128xf32>
    %99 = vector.shape_cast %97 : vector<16x16x128xbf16> to vector<256x128xbf16>
    %c8 = arith.constant 8 : index
    %c0_102 = arith.constant 0 : index
    %c0_103 = arith.constant 0 : index
    %100 = vector.load %arg2[%c8, %c0_102, %c0_103] : memref<9x128x128xbf16, #tpu.memory_space<vmem>>, vector<1x128x128xbf16>
    %101 = vector.shape_cast %100 : vector<1x128x128xbf16> to vector<128x128xbf16>
    %cst_104 = arith.constant dense<0.000000e+00> : vector<256x128xf32>
    %102 = tpu.matmul %99, %101, %cst_104 {dimension_numbers = #tpu.dot_dimension_numbers<[1], [0], [0], [1], [0, 0, 1, 1], [], []>} : vector<256x128xbf16>, vector<128x128xbf16>, vector<256x128xf32> -> vector<256x128xf32>
    %103 = arith.addf %98, %102 : vector<256x128xf32>
    %c0_105 = arith.constant 0 : index
    %c0_106 = arith.constant 0 : index
    %104 = vector.load %arg9[%c0_105, %c0_106] : memref<256x128xf32, #tpu.memory_space<vmem>>, vector<256x128xf32>
    tpu.vector_store %arg9[%c0_105, %c0_106], %103 {strides = array<i32>} : memref<256x128xf32, #tpu.memory_space<vmem>>, vector<256x128xf32>,
    %c0_107 = arith.constant 0 : index
    %c0_108 = arith.constant 0 : index
    %105 = vector.load %arg9[%c0_107, %c0_108] : memref<256x128xf32, #tpu.memory_space<vmem>>, vector<256x128xf32>
    %c0_109 = arith.constant 0 : index
    %c0_110 = arith.constant 0 : index
    %106 = vector.load %arg3[%c0_109, %c0_110] : memref<1x128xf32, #tpu.memory_space<vmem>>, vector<1x128xf32>
    %107 = vector.broadcast %106 : vector<1x128xf32> to vector<256x128xf32>
    %108 = arith.addf %105, %107 : vector<256x128xf32>
    %c0_111 = arith.constant 0 : index
    %c0_112 = arith.constant 0 : index
    %c0_113 = arith.constant 0 : index
    %109 = vector.load %arg6[%c0_111, %c0_112, %c0_113] : memref<1x256x128xf32, #tpu.memory_space<vmem>>, vector<1x256x128xf32>
    %110 = vector.shape_cast %109 : vector<1x256x128xf32> to vector<256x128xf32>
    %111 = vector.shape_cast %108 : vector<256x128xf32> to vector<1x256x128xf32>
    tpu.vector_store %arg6[%c0_111, %c0_112, %c0_113], %111 {strides = array<i32>} : memref<1x256x128xf32, #tpu.memory_space<vmem>>, vector<1x256x128xf32>,
    %cst_114 = arith.constant dense<0.000000e+00> : vector<128xf32>
    %112 = vector.multi_reduction <add>, %108, %cst_114 [0] : vector<256x128xf32> to vector<128xf32>
    %113 = vector.shape_cast %112 : vector<128xf32> to vector<1x128xf32>
    %114 = arith.mulf %108, %108 : vector<256x128xf32>
    %cst_115 = arith.constant dense<0.000000e+00> : vector<128xf32>
    %115 = vector.multi_reduction <add>, %114, %cst_115 [0] : vector<256x128xf32> to vector<128xf32>
    %116 = vector.shape_cast %115 : vector<128xf32> to vector<1x128xf32>
    %cst_116 = arith.constant 0.000000e+00 : f32
    %117 = vector.broadcast %cst_116 : f32 to vector<6x128xf32>
    %118 = tpu.concatenate %113, %116, %117 in 0 : vector<1x128xf32>, vector<1x128xf32>, vector<6x128xf32> -> vector<8x128xf32>
    %c0_117 = arith.constant 0 : index
    %c0_118 = arith.constant 0 : index
    %c0_119 = arith.constant 0 : index
    %119 = vector.load %arg7[%c0_117, %c0_118, %c0_119] : memref<1x8x128xf32, #tpu.memory_space<vmem>>, vector<1x8x128xf32>
    %120 = vector.shape_cast %119 : vector<1x8x128xf32> to vector<8x128xf32>
    %121 = vector.shape_cast %118 : vector<8x128xf32> to vector<1x8x128xf32>
    tpu.vector_store %arg7[%c0_117, %c0_118, %c0_119], %121 {strides = array<i32>} : memref<1x8x128xf32, #tpu.memory_space<vmem>>, vector<1x8x128xf32>,
    return
  }
  func.func @transform_0(%arg0: i32) -> (i32, i32, i32, i32) {
    %c0_i32 = arith.constant 0 : i32
    %c0_i32_0 = arith.constant 0 : i32
    %c0_i32_1 = arith.constant 0 : i32
    %c0_i32_2 = arith.constant 0 : i32
    return %arg0, %c0_i32, %c0_i32_0, %c0_i32_1 : i32, i32, i32, i32
  }
  func.func @transform_1(%arg0: i32) -> (i32, i32, i32) {
    %c0_i32 = arith.constant 0 : i32
    %c0_i32_0 = arith.constant 0 : i32
    %c0_i32_1 = arith.constant 0 : i32
    %c0_i32_2 = arith.constant 0 : i32
    return %c0_i32, %c0_i32_0, %c0_i32_1 : i32, i32, i32
  }
  func.func @transform_2(%arg0: i32) -> (i32, i32) {
    %c0_i32 = arith.constant 0 : i32
    %c0_i32_0 = arith.constant 0 : i32
    %c0_i32_1 = arith.constant 0 : i32
    return %c0_i32, %c0_i32_0 : i32, i32
  }
  func.func @transform_3(%arg0: i32) -> (i32, i32) {
    %c0_i32 = arith.constant 0 : i32
    %c0_i32_0 = arith.constant 0 : i32
    %c0_i32_1 = arith.constant 0 : i32
    return %c0_i32, %c0_i32_0 : i32, i32
  }
  func.func @transform_4(%arg0: i32) -> (i32, i32) {
    %c0_i32 = arith.constant 0 : i32
    %c0_i32_0 = arith.constant 0 : i32
    %c0_i32_1 = arith.constant 0 : i32
    return %c0_i32, %c0_i32_0 : i32, i32
  }
  func.func @transform_5(%arg0: i32) -> (i32, i32, i32) {
    %c0_i32 = arith.constant 0 : i32
    %c0_i32_0 = arith.constant 0 : i32
    %c0_i32_1 = arith.constant 0 : i32
    return %arg0, %c0_i32, %c0_i32_0 : i32, i32, i32
  }
  func.func @transform_6(%arg0: i32) -> (i32, i32, i32) {
    %c0_i32 = arith.constant 0 : i32
    %c0_i32_0 = arith.constant 0 : i32
    %c0_i32_1 = arith.constant 0 : i32
    return %arg0, %c0_i32, %c0_i32_0 : i32, i32, i32
  }
}

module attributes {stable_mosaic.version = 11 : i64} {
  func.func @_conv1x1_kernel(%arg0: i32, %arg1: i32, %arg2: i32, %arg3: memref<256x128xf32, #tpu.memory_space<vmem>>, %arg4: memref<128x128xbf16, #tpu.memory_space<vmem>>, %arg5: memref<1x128xf32, #tpu.memory_space<vmem>>, %arg6: memref<1x128xf32, #tpu.memory_space<vmem>>, %arg7: memref<1x128xf32, #tpu.memory_space<vmem>>, %arg8: memref<256x128xf32, #tpu.memory_space<vmem>>, %arg9: memref<1x8x128xf32, #tpu.memory_space<vmem>>, %arg10: memref<256x128xf32, #tpu.memory_space<vmem>>) attributes {dimension_semantics = [#tpu.dimension_semantics<parallel>, #tpu.dimension_semantics<parallel>, #tpu.dimension_semantics<arbitrary>], iteration_bounds = array<i64: 2, 1, 1>, scalar_prefetch = 0 : i64, scratch_operands = 1 : i64, tpu.core_type = #tpu.core_type<tc>, window_params = [{transform_indices = @transform_0, window_bounds = array<i64: 256, 128>}, {transform_indices = @transform_1, window_bounds = array<i64: 128, 128>}, {transform_indices = @transform_2, window_bounds = array<i64: 1, 128>}, {transform_indices = @transform_3, window_bounds = array<i64: 1, 128>}, {transform_indices = @transform_4, window_bounds = array<i64: 1, 128>}, {transform_indices = @transform_5, window_bounds = array<i64: 256, 128>}, {transform_indices = @transform_6, window_bounds = array<i64: 1, 8, 128>}]} {
    %c0_i32 = arith.constant 0 : i32
    %0 = arith.cmpi eq, %arg2, %c0_i32 : i32
    %1 = arith.extui %0 : i1 to i32
    %c0_i32_0 = arith.constant 0 : i32
    %2 = arith.cmpi ne, %1, %c0_i32_0 : i32
    scf.if %2 {
      %cst_15 = arith.constant 0.000000e+00 : f32
      %21 = vector.broadcast %cst_15 : f32 to vector<256x128xf32>
      %c0_16 = arith.constant 0 : index
      %c0_17 = arith.constant 0 : index
      %22 = vector.load %arg10[%c0_16, %c0_17] : memref<256x128xf32, #tpu.memory_space<vmem>>, vector<256x128xf32>
      tpu.vector_store %arg10[%c0_16, %c0_17], %21 {strides = array<i32>} : memref<256x128xf32, #tpu.memory_space<vmem>>, vector<256x128xf32>,
    } else {
    }
    %c0 = arith.constant 0 : index
    %c0_1 = arith.constant 0 : index
    %3 = vector.load %arg3[%c0, %c0_1] : memref<256x128xf32, #tpu.memory_space<vmem>>, vector<256x128xf32>
    %c0_2 = arith.constant 0 : index
    %c0_3 = arith.constant 0 : index
    %4 = vector.load %arg6[%c0_2, %c0_3] : memref<1x128xf32, #tpu.memory_space<vmem>>, vector<1x128xf32>
    %5 = vector.broadcast %4 : vector<1x128xf32> to vector<256x128xf32>
    %6 = arith.mulf %3, %5 : vector<256x128xf32>
    %c0_4 = arith.constant 0 : index
    %c0_5 = arith.constant 0 : index
    %7 = vector.load %arg7[%c0_4, %c0_5] : memref<1x128xf32, #tpu.memory_space<vmem>>, vector<1x128xf32>
    %8 = vector.broadcast %7 : vector<1x128xf32> to vector<256x128xf32>
    %9 = arith.addf %6, %8 : vector<256x128xf32>
    %cst = arith.constant 0.000000e+00 : f32
    %10 = vector.broadcast %cst : f32 to vector<256x128xf32>
    %11 = arith.maximumf %9, %10 : vector<256x128xf32>
    %c0_6 = arith.constant 0 : index
    %c0_7 = arith.constant 0 : index
    %12 = vector.load %arg10[%c0_6, %c0_7] : memref<256x128xf32, #tpu.memory_space<vmem>>, vector<256x128xf32>
    %13 = arith.truncf %11 : vector<256x128xf32> to vector<256x128xbf16>
    %c0_8 = arith.constant 0 : index
    %c0_9 = arith.constant 0 : index
    %14 = vector.load %arg4[%c0_8, %c0_9] : memref<128x128xbf16, #tpu.memory_space<vmem>>, vector<128x128xbf16>
    %cst_10 = arith.constant dense<0.000000e+00> : vector<256x128xf32>
    %15 = tpu.matmul %13, %14, %cst_10 {dimension_numbers = #tpu.dot_dimension_numbers<[1], [0], [0], [1], [0, 0, 1, 1], [], []>} : vector<256x128xbf16>, vector<128x128xbf16>, vector<256x128xf32> -> vector<256x128xf32>
    %16 = arith.addf %12, %15 : vector<256x128xf32>
    %c0_11 = arith.constant 0 : index
    %c0_12 = arith.constant 0 : index
    %17 = vector.load %arg10[%c0_11, %c0_12] : memref<256x128xf32, #tpu.memory_space<vmem>>, vector<256x128xf32>
    tpu.vector_store %arg10[%c0_11, %c0_12], %16 {strides = array<i32>} : memref<256x128xf32, #tpu.memory_space<vmem>>, vector<256x128xf32>,
    %c0_i32_13 = arith.constant 0 : i32
    %18 = arith.cmpi eq, %arg2, %c0_i32_13 : i32
    %19 = arith.extui %18 : i1 to i32
    %c0_i32_14 = arith.constant 0 : i32
    %20 = arith.cmpi ne, %19, %c0_i32_14 : i32
    scf.if %20 {
      %c0_15 = arith.constant 0 : index
      %c0_16 = arith.constant 0 : index
      %21 = vector.load %arg10[%c0_15, %c0_16] : memref<256x128xf32, #tpu.memory_space<vmem>>, vector<256x128xf32>
      %c0_17 = arith.constant 0 : index
      %c0_18 = arith.constant 0 : index
      %22 = vector.load %arg5[%c0_17, %c0_18] : memref<1x128xf32, #tpu.memory_space<vmem>>, vector<1x128xf32>
      %23 = vector.broadcast %22 : vector<1x128xf32> to vector<256x128xf32>
      %24 = arith.addf %21, %23 : vector<256x128xf32>
      %c0_19 = arith.constant 0 : index
      %c0_20 = arith.constant 0 : index
      %25 = vector.load %arg8[%c0_19, %c0_20] : memref<256x128xf32, #tpu.memory_space<vmem>>, vector<256x128xf32>
      tpu.vector_store %arg8[%c0_19, %c0_20], %24 {strides = array<i32>} : memref<256x128xf32, #tpu.memory_space<vmem>>, vector<256x128xf32>,
      %cst_21 = arith.constant dense<0.000000e+00> : vector<128xf32>
      %26 = vector.multi_reduction <add>, %24, %cst_21 [0] : vector<256x128xf32> to vector<128xf32>
      %27 = vector.shape_cast %26 : vector<128xf32> to vector<1x128xf32>
      %28 = arith.mulf %24, %24 : vector<256x128xf32>
      %cst_22 = arith.constant dense<0.000000e+00> : vector<128xf32>
      %29 = vector.multi_reduction <add>, %28, %cst_22 [0] : vector<256x128xf32> to vector<128xf32>
      %30 = vector.shape_cast %29 : vector<128xf32> to vector<1x128xf32>
      %cst_23 = arith.constant 0.000000e+00 : f32
      %31 = vector.broadcast %cst_23 : f32 to vector<6x128xf32>
      %32 = tpu.concatenate %27, %30, %31 in 0 : vector<1x128xf32>, vector<1x128xf32>, vector<6x128xf32> -> vector<8x128xf32>
      %c0_24 = arith.constant 0 : index
      %c0_25 = arith.constant 0 : index
      %c0_26 = arith.constant 0 : index
      %33 = vector.load %arg9[%c0_24, %c0_25, %c0_26] : memref<1x8x128xf32, #tpu.memory_space<vmem>>, vector<1x8x128xf32>
      %34 = vector.shape_cast %33 : vector<1x8x128xf32> to vector<8x128xf32>
      %35 = vector.shape_cast %32 : vector<8x128xf32> to vector<1x8x128xf32>
      tpu.vector_store %arg9[%c0_24, %c0_25, %c0_26], %35 {strides = array<i32>} : memref<1x8x128xf32, #tpu.memory_space<vmem>>, vector<1x8x128xf32>,
    } else {
    }
    return
  }
  func.func @transform_0(%arg0: i32, %arg1: i32, %arg2: i32) -> (i32, i32) {
    %c0_i32 = arith.constant 0 : i32
    return %arg0, %arg2 : i32, i32
  }
  func.func @transform_1(%arg0: i32, %arg1: i32, %arg2: i32) -> (i32, i32) {
    %c0_i32 = arith.constant 0 : i32
    return %arg2, %arg1 : i32, i32
  }
  func.func @transform_2(%arg0: i32, %arg1: i32, %arg2: i32) -> (i32, i32) {
    %c0_i32 = arith.constant 0 : i32
    %c0_i32_0 = arith.constant 0 : i32
    return %c0_i32, %arg1 : i32, i32
  }
  func.func @transform_3(%arg0: i32, %arg1: i32, %arg2: i32) -> (i32, i32) {
    %c0_i32 = arith.constant 0 : i32
    %c0_i32_0 = arith.constant 0 : i32
    return %c0_i32, %arg2 : i32, i32
  }
  func.func @transform_4(%arg0: i32, %arg1: i32, %arg2: i32) -> (i32, i32) {
    %c0_i32 = arith.constant 0 : i32
    %c0_i32_0 = arith.constant 0 : i32
    return %c0_i32, %arg2 : i32, i32
  }
  func.func @transform_5(%arg0: i32, %arg1: i32, %arg2: i32) -> (i32, i32) {
    %c0_i32 = arith.constant 0 : i32
    return %arg0, %arg1 : i32, i32
  }
  func.func @transform_6(%arg0: i32, %arg1: i32, %arg2: i32) -> (i32, i32, i32) {
    %c0_i32 = arith.constant 0 : i32
    %c0_i32_0 = arith.constant 0 : i32
    return %arg0, %c0_i32, %arg1 : i32, i32, i32
  }
}

module attributes {stable_mosaic.version = 11 : i64} {
  func.func @_bn_add_relu_kernel(%arg0: i32, %arg1: memref<256x128xf32, #tpu.memory_space<vmem>>, %arg2: memref<256x128xf32, #tpu.memory_space<vmem>>, %arg3: memref<1x128xf32, #tpu.memory_space<vmem>>, %arg4: memref<1x128xf32, #tpu.memory_space<vmem>>, %arg5: memref<1x128xf32, #tpu.memory_space<vmem>>, %arg6: memref<1x128xf32, #tpu.memory_space<vmem>>, %arg7: memref<256x128xf32, #tpu.memory_space<vmem>>) attributes {dimension_semantics = [#tpu.dimension_semantics<parallel>], iteration_bounds = array<i64: 2>, scalar_prefetch = 0 : i64, scratch_operands = 0 : i64, tpu.core_type = #tpu.core_type<tc>, window_params = [{transform_indices = @transform_0, window_bounds = array<i64: 256, 128>}, {transform_indices = @transform_1, window_bounds = array<i64: 256, 128>}, {pipeline_mode = #tpu.pipeline_mode<synchronous>, transform_indices = @transform_2, window_bounds = array<i64: 1, 128>}, {pipeline_mode = #tpu.pipeline_mode<synchronous>, transform_indices = @transform_3, window_bounds = array<i64: 1, 128>}, {pipeline_mode = #tpu.pipeline_mode<synchronous>, transform_indices = @transform_4, window_bounds = array<i64: 1, 128>}, {pipeline_mode = #tpu.pipeline_mode<synchronous>, transform_indices = @transform_5, window_bounds = array<i64: 1, 128>}, {transform_indices = @transform_6, window_bounds = array<i64: 256, 128>}]} {
    %c0 = arith.constant 0 : index
    %c0_0 = arith.constant 0 : index
    %0 = vector.load %arg1[%c0, %c0_0] : memref<256x128xf32, #tpu.memory_space<vmem>>, vector<256x128xf32>
    %c0_1 = arith.constant 0 : index
    %c0_2 = arith.constant 0 : index
    %1 = vector.load %arg3[%c0_1, %c0_2] : memref<1x128xf32, #tpu.memory_space<vmem>>, vector<1x128xf32>
    %2 = vector.broadcast %1 : vector<1x128xf32> to vector<256x128xf32>
    %3 = arith.mulf %0, %2 : vector<256x128xf32>
    %c0_3 = arith.constant 0 : index
    %c0_4 = arith.constant 0 : index
    %4 = vector.load %arg4[%c0_3, %c0_4] : memref<1x128xf32, #tpu.memory_space<vmem>>, vector<1x128xf32>
    %5 = vector.broadcast %4 : vector<1x128xf32> to vector<256x128xf32>
    %6 = arith.addf %3, %5 : vector<256x128xf32>
    %c0_5 = arith.constant 0 : index
    %c0_6 = arith.constant 0 : index
    %7 = vector.load %arg2[%c0_5, %c0_6] : memref<256x128xf32, #tpu.memory_space<vmem>>, vector<256x128xf32>
    %c0_7 = arith.constant 0 : index
    %c0_8 = arith.constant 0 : index
    %8 = vector.load %arg5[%c0_7, %c0_8] : memref<1x128xf32, #tpu.memory_space<vmem>>, vector<1x128xf32>
    %9 = vector.broadcast %8 : vector<1x128xf32> to vector<256x128xf32>
    %10 = arith.mulf %7, %9 : vector<256x128xf32>
    %11 = arith.addf %6, %10 : vector<256x128xf32>
    %c0_9 = arith.constant 0 : index
    %c0_10 = arith.constant 0 : index
    %12 = vector.load %arg6[%c0_9, %c0_10] : memref<1x128xf32, #tpu.memory_space<vmem>>, vector<1x128xf32>
    %13 = vector.broadcast %12 : vector<1x128xf32> to vector<256x128xf32>
    %14 = arith.addf %11, %13 : vector<256x128xf32>
    %cst = arith.constant 0.000000e+00 : f32
    %15 = vector.broadcast %cst : f32 to vector<256x128xf32>
    %16 = arith.maximumf %14, %15 : vector<256x128xf32>
    %c0_11 = arith.constant 0 : index
    %c0_12 = arith.constant 0 : index
    %17 = vector.load %arg7[%c0_11, %c0_12] : memref<256x128xf32, #tpu.memory_space<vmem>>, vector<256x128xf32>
    tpu.vector_store %arg7[%c0_11, %c0_12], %16 {strides = array<i32>} : memref<256x128xf32, #tpu.memory_space<vmem>>, vector<256x128xf32>,
    return
  }
  func.func @transform_0(%arg0: i32) -> (i32, i32) {
    %c0_i32 = arith.constant 0 : i32
    %c0_i32_0 = arith.constant 0 : i32
    return %arg0, %c0_i32 : i32, i32
  }
  func.func @transform_1(%arg0: i32) -> (i32, i32) {
    %c0_i32 = arith.constant 0 : i32
    %c0_i32_0 = arith.constant 0 : i32
    return %arg0, %c0_i32 : i32, i32
  }
  func.func @transform_2(%arg0: i32) -> (i32, i32) {
    %c0_i32 = arith.constant 0 : i32
    %c0_i32_0 = arith.constant 0 : i32
    %c0_i32_1 = arith.constant 0 : i32
    return %c0_i32, %c0_i32_0 : i32, i32
  }
  func.func @transform_3(%arg0: i32) -> (i32, i32) {
    %c0_i32 = arith.constant 0 : i32
    %c0_i32_0 = arith.constant 0 : i32
    %c0_i32_1 = arith.constant 0 : i32
    return %c0_i32, %c0_i32_0 : i32, i32
  }
  func.func @transform_4(%arg0: i32) -> (i32, i32) {
    %c0_i32 = arith.constant 0 : i32
    %c0_i32_0 = arith.constant 0 : i32
    %c0_i32_1 = arith.constant 0 : i32
    return %c0_i32, %c0_i32_0 : i32, i32
  }
  func.func @transform_5(%arg0: i32) -> (i32, i32) {
    %c0_i32 = arith.constant 0 : i32
    %c0_i32_0 = arith.constant 0 : i32
    %c0_i32_1 = arith.constant 0 : i32
    return %c0_i32, %c0_i32_0 : i32, i32
  }
  func.func @transform_6(%arg0: i32) -> (i32, i32) {
    %c0_i32 = arith.constant 0 : i32
    %c0_i32_0 = arith.constant 0 : i32
    return %arg0, %c0_i32 : i32, i32
  }
}

</mosaic_0001>

<llo_original>
// kernel: bottleneck_forward.9
$region0: #{bottleneck_forward.9}
  #allocation0 [shape = 'u32[]', space=smem, size = 0x4, offset = 0x4, fixed_abs, tag = 'smem constant byte address 0x4 - core index']
  #allocation1 [shape = 'u32[144,128]{1,0:T(1,128)}', space=vmem, size = 0x12000, scoped, tag = 'internal scratch']
  %s0 = inlined_call_operand.vmem [shape: f32[512,128], index: 0, kind: input, shape index: {}]
  %s1 = inlined_call_operand.vmem [shape: f32[512,128], index: 1, kind: input, shape index: {}]
  %s2 = inlined_call_operand.vmem [shape: f32[1,128], index: 2, kind: input, shape index: {}]
  %s3 = inlined_call_operand.vmem [shape: f32[1,128], index: 3, kind: input, shape index: {}]
  %s4 = inlined_call_operand.vmem [shape: f32[1,128], index: 4, kind: input, shape index: {}]
  %s5 = inlined_call_operand.vmem [shape: f32[1,128], index: 5, kind: input, shape index: {}]
  %s6 = inlined_call_operand.vmem [shape: f32[512,128], index: 6, kind: output, shape index: {}]
  %s7 = sld [smem:[#allocation0]]
  $region57: #{bottleneck_forward.9} parent=0
    _
  %s9 = ssub.s32 1, %s7
  %s10 = scalar_select 0, %s9, %s7
  loop: start=0, step=1, limit=4
  $region2: #{bottleneck_forward.9} parent=0 // loop_pre_header
    _
  $region3: #{bottleneck_forward.9} parent=0 // loop_header
    %s12 = sphi 0, %s16
    %p13 = scmp.ge.s32.totalorder %s12, 4
    %s22 = sphi 0, %s24
    %s25 = sphi 0, %s22
    %s26 = sphi 0, %s25
    %s42 = sphi 0, %s26
    %s48 = sphi 0, %s50
    %s51 = sphi 0, %s48
    %s52 = sphi 0, %s51
    %s68 = sphi 0, %s52
    %s72 = sphi 0, %s72
    %s74 = sphi 0, %s72
    %s75 = sphi 0, %s74
    %s89 = sphi 0, %s75
    %s93 = sphi 0, %s93
    %s95 = sphi 0, %s93
    %s96 = sphi 0, %s95
    %s110 = sphi 0, %s96
    %s114 = sphi 0, %s114
    %s116 = sphi 0, %s114
    %s117 = sphi 0, %s116
    %s131 = sphi 0, %s117
    %s135 = sphi 0, %s135
    %s137 = sphi 0, %s135
    %s138 = sphi 0, %s137
    %s152 = sphi 0, %s138
    %s158 = sphi 0, %s160
    %s161 = sphi 0, %s158
    %s162 = sphi 0, %s161
    %s178 = sphi 0, %s162
  $region4: #{bottleneck_forward.9} parent=0 // loop_header_branch
    %15 = sbr.rel (%p13) target = $region8
  $region5: #{bottleneck_forward.9} parent=0 // loop_body
    %s17 = ssub.s32 %s12, 1
    %s18 = ssub.s32 %s12, 2
    %s19 = sadd.s32 %s12, 1
    %s20 = ssub.s32 %s12, %s19
    %p21 = scmp.eq.s32.totalorder %s20, 0
    %s23 = sadd.s32 %s22, 1
    %s24 = scalar_select %p21, %s22, %s23
    %p27 = pneg %p21
    %p28 = scmp.eq.s32.totalorder %s12, 1
    %p29 = por %p27, %p28
    %p30 = scmp.ne.s32.totalorder %s22, %s25
    %p31 = scmp.eq.s32.totalorder %s12, 0
    %p32 = por %p30, %p31
    %p33 = scmp.ne.s32.totalorder %s22, %s25
    %p34 = scmp.eq.s32.totalorder %s17, 1
    %p35 = por %p33, %p34
    %p36 = scmp.ne.s32.totalorder %s25, %s26
    %p37 = scmp.eq.s32.totalorder %s17, 0
    %p38 = por %p36, %p37
    %p39 = scmp.ne.s32.totalorder %s25, %s26
    %p40 = scmp.eq.s32.totalorder %s18, 1
    %p41 = por %p39, %p40
    %p43 = scmp.ne.s32.totalorder %s26, %s42
    %p44 = scmp.eq.s32.totalorder %s18, 0
    %p45 = por %p43, %p44
    %s46 = ssub.s32 %s12, %s19
    %p47 = scmp.eq.s32.totalorder %s46, 0
    %s49 = sadd.s32 %s48, 1
    %s50 = scalar_select %p47, %s48, %s49
    %p53 = pneg %p47
    %p54 = scmp.eq.s32.totalorder %s12, 1
    %p55 = por %p53, %p54
    %p56 = scmp.ne.s32.totalorder %s48, %s51
    %p57 = scmp.eq.s32.totalorder %s12, 0
    %p58 = por %p56, %p57
    %p59 = scmp.ne.s32.totalorder %s48, %s51
    %p60 = scmp.eq.s32.totalorder %s17, 1
    %p61 = por %p59, %p60
    %p62 = scmp.ne.s32.totalorder %s51, %s52
    %p63 = scmp.eq.s32.totalorder %s17, 0
    %p64 = por %p62, %p63
    %p65 = scmp.ne.s32.totalorder %s51, %s52
    %p66 = scmp.eq.s32.totalorder %s18, 1
    %p67 = por %p65, %p66
    %p69 = scmp.ne.s32.totalorder %s52, %s68
    %p70 = scmp.eq.s32.totalorder %s18, 0
    %p71 = por %p69, %p70
    %s73 = sadd.s32 %s72, 1
    %p76 = scmp.eq.s32.totalorder %s12, 1
    %p77 = scmp.ne.s32.totalorder %s72, %s74
    %p78 = scmp.eq.s32.totalorder %s12, 0
    %p79 = por %p77, %p78
    %p80 = scmp.ne.s32.totalorder %s72, %s74
    %p81 = scmp.eq.s32.totalorder %s17, 1
    %p82 = por %p80, %p81
    %p83 = scmp.ne.s32.totalorder %s74, %s75
    %p84 = scmp.eq.s32.totalorder %s17, 0
    %p85 = por %p83, %p84
    %p86 = scmp.ne.s32.totalorder %s74, %s75
    %p87 = scmp.eq.s32.totalorder %s18, 1
    %p88 = por %p86, %p87
    %p90 = scmp.ne.s32.totalorder %s75, %s89
    %p91 = scmp.eq.s32.totalorder %s18, 0
    %p92 = por %p90, %p91
    %s94 = sadd.s32 %s93, 1
    %p97 = scmp.eq.s32.totalorder %s12, 1
    %p98 = scmp.ne.s32.totalorder %s93, %s95
    %p99 = scmp.eq.s32.totalorder %s12, 0
    %p100 = por %p98, %p99
    %p101 = scmp.ne.s32.totalorder %s93, %s95
    %p102 = scmp.eq.s32.totalorder %s17, 1
    %p103 = por %p101, %p102
    %p104 = scmp.ne.s32.totalorder %s95, %s96
    %p105 = scmp.eq.s32.totalorder %s17, 0
    %p106 = por %p104, %p105
    %p107 = scmp.ne.s32.totalorder %s95, %s96
    %p108 = scmp.eq.s32.totalorder %s18, 1
    %p109 = por %p107, %p108
    %p111 = scmp.ne.s32.totalorder %s96, %s110
    %p112 = scmp.eq.s32.totalorder %s18, 0
    %p113 = por %p111, %p112
    %s115 = sadd.s32 %s114, 1
    %p118 = scmp.eq.s32.totalorder %s12, 1
    %p119 = scmp.ne.s32.totalorder %s114, %s116
    %p120 = scmp.eq.s32.totalorder %s12, 0
    %p121 = por %p119, %p120
    %p122 = scmp.ne.s32.totalorder %s114, %s116
    %p123 = scmp.eq.s32.totalorder %s17, 1
    %p124 = por %p122, %p123
    %p125 = scmp.ne.s32.totalorder %s116, %s117
    %p126 = scmp.eq.s32.totalorder %s17, 0
    %p127 = por %p125, %p126
    %p128 = scmp.ne.s32.totalorder %s116, %s117
    %p129 = scmp.eq.s32.totalorder %s18, 1
    %p130 = por %p128, %p129
    %p132 = scmp.ne.s32.totalorder %s117, %s131
    %p133 = scmp.eq.s32.totalorder %s18, 0
    %p134 = por %p132, %p133
    %s136 = sadd.s32 %s135, 1
    %p139 = scmp.eq.s32.totalorder %s12, 1
    %p140 = scmp.ne.s32.totalorder %s135, %s137
    %p141 = scmp.eq.s32.totalorder %s12, 0
    %p142 = por %p140, %p141
    %p143 = scmp.ne.s32.totalorder %s135, %s137
    %p144 = scmp.eq.s32.totalorder %s17, 1
    %p145 = por %p143, %p144
    %p146 = scmp.ne.s32.totalorder %s137, %s138
    %p147 = scmp.eq.s32.totalorder %s17, 0
    %p148 = por %p146, %p147
    %p149 = scmp.ne.s32.totalorder %s137, %s138
    %p150 = scmp.eq.s32.totalorder %s18, 1
    %p151 = por %p149, %p150
    %p153 = scmp.ne.s32.totalorder %s138, %s152
    %p154 = scmp.eq.s32.totalorder %s18, 0
    %p155 = por %p153, %p154
    %s156 = ssub.s32 %s12, %s19
    %p157 = scmp.eq.s32.totalorder %s156, 0
    %s159 = sadd.s32 %s158, 1
    %s160 = scalar_select %p157, %s158, %s159
    %p163 = pneg %p157
    %p164 = scmp.eq.s32.totalorder %s12, 1
    %p165 = por %p163, %p164
    %p166 = scmp.ne.s32.totalorder %s158, %s161
    %p167 = scmp.eq.s32.totalorder %s12, 0
    %p168 = por %p166, %p167
    %p169 = scmp.ne.s32.totalorder %s158, %s161
    %p170 = scmp.eq.s32.totalorder %s17, 1
    %p171 = por %p169, %p170
    %p172 = scmp.ne.s32.totalorder %s161, %s162
    %p173 = scmp.eq.s32.totalorder %s17, 0
    %p174 = por %p172, %p173
    %p175 = scmp.ne.s32.totalorder %s161, %s162
    %p176 = scmp.eq.s32.totalorder %s18, 1
    %p177 = por %p175, %p176
    %p179 = scmp.ne.s32.totalorder %s162, %s178
    %p180 = scmp.eq.s32.totalorder %s18, 0
    %p181 = por %p179, %p180
    %p182 = scmp.le.s32.totalorder 1, %s12
    %p183 = scmp.lt.s32.totalorder %s12, 3
    %p184 = pnand %p182, %p183
    %p185 = pneg %p184
    // Predicated region
    $region9: #{bottleneck_forward.9} parent=5 // pred_check
      _
    $region10: #{bottleneck_forward.9} parent=5 // pred_check_branch
      %187 = sbr.rel (%p184) target = $region12
    $region11: #{bottleneck_forward.9} parent=5 // pred_region
      %s188 = ssub.s32 %s12, 1
      // Predicated region
      $region13: #{bottleneck_forward.9} parent=11 // pred_check
        %p189 = pneg %p85
      $region14: #{bottleneck_forward.9} parent=11 // pred_check_branch
        %191 = sbr.rel (%p189) target = $region16
      $region15: #{bottleneck_forward.9} parent=11 // pred_region
        _
      $region16: #{bottleneck_forward.9} parent=11 // pred_fallthru
        _
      // Predicated region
      $region17: #{bottleneck_forward.9} parent=11 // pred_check
        %p192 = pneg %p106
      $region18: #{bottleneck_forward.9} parent=11 // pred_check_branch
        %194 = sbr.rel (%p192) target = $region20
      $region19: #{bottleneck_forward.9} parent=11 // pred_region
        _
      $region20: #{bottleneck_forward.9} parent=11 // pred_fallthru
        _
      // Predicated region
      $region21: #{bottleneck_forward.9} parent=11 // pred_check
        %p195 = pneg %p127
      $region22: #{bottleneck_forward.9} parent=11 // pred_check_branch
        %197 = sbr.rel (%p195) target = $region24
      $region23: #{bottleneck_forward.9} parent=11 // pred_region
        _
      $region24: #{bottleneck_forward.9} parent=11 // pred_fallthru
        _
      // Predicated region
      $region25: #{bottleneck_forward.9} parent=11 // pred_check
        %p198 = pneg %p148
      $region26: #{bottleneck_forward.9} parent=11 // pred_check_branch
        %200 = sbr.rel (%p198) target = $region28
      $region27: #{bottleneck_forward.9} parent=11 // pred_region
        _
      $region28: #{bottleneck_forward.9} parent=11 // pred_fallthru
        _
    $region12: #{bottleneck_forward.9} parent=5 // pred_fallthru
      _
    %p201 = scmp.lt.s32.totalorder %s12, 2
    // Predicated region
    $region29: #{bottleneck_forward.9} parent=5 // pred_check
      %p202 = pneg %p201
    $region30: #{bottleneck_forward.9} parent=5 // pred_check_branch
      %204 = sbr.rel (%p202) target = $region32
    $region31: #{bottleneck_forward.9} parent=5 // pred_region
      // Predicated region
      $region33: #{bottleneck_forward.9} parent=31 // pred_check
        %p205 = pneg %p32
      $region34: #{bottleneck_forward.9} parent=31 // pred_check_branch
        %207 = sbr.rel (%p205) target = $region36
      $region35: #{bottleneck_forward.9} parent=31 // pred_region
        %s208 = smul.u32 32, %s12
        %p209 = scmp.lt.s32.totalorder %s208, 63
        %s210 = scalar_select %p209, %s208, 63
        %s211 = smul.addr %s210, 8
        %s212 = scalar_lea.vmem %s0, %s211
        %s213 = smul.u32 32, %s12
      $region36: #{bottleneck_forward.9} parent=31 // pred_fallthru
        _
      // Predicated region
      $region37: #{bottleneck_forward.9} parent=31 // pred_check
        %p214 = pneg %p58
      $region38: #{bottleneck_forward.9} parent=31 // pred_check_branch
        %216 = sbr.rel (%p214) target = $region40
      $region39: #{bottleneck_forward.9} parent=31 // pred_region
        %s217 = smul.u32 32, %s12
        %p218 = scmp.lt.s32.totalorder %s217, 63
        %s219 = scalar_select %p218, %s217, 63
        %s220 = smul.addr %s219, 8
        %s221 = scalar_lea.vmem %s1, %s220
        %s222 = smul.u32 32, %s12
      $region40: #{bottleneck_forward.9} parent=31 // pred_fallthru
        _
    $region32: #{bottleneck_forward.9} parent=5 // pred_fallthru
      _
    %p223 = scmp.le.s32.totalorder 1, %s12
    %p224 = scmp.lt.s32.totalorder %s12, 3
    %p225 = pnand %p223, %p224
    %p226 = pneg %p225
    // Predicated region
    $region41: #{bottleneck_forward.9} parent=5 // pred_check
      _
    $region42: #{bottleneck_forward.9} parent=5 // pred_check_branch
      %228 = sbr.rel (%p225) target = $region44
    $region43: #{bottleneck_forward.9} parent=5 // pred_region
      %s229 = ssub.s32 %s12, 1
      %s230 = smul.u32 32, %s17
      %p231 = scmp.lt.s32.totalorder %s230, 63
      %s232 = scalar_select %p231, %s230, 63
      %s233 = smul.addr %s232, 8
      %s234 = scalar_lea.vmem %s0, %s233
      %p235 = pneg %p38
      %p236 = pneg %p35
      %s237 = smul.u32 32, %s17
      %p238 = scmp.lt.s32.totalorder %s237, 63
      %s239 = scalar_select %p238, %s237, 63
      %s240 = smul.addr %s239, 8
      %s241 = scalar_lea.vmem %s1, %s240
      %p242 = pneg %p64
      %p243 = pneg %p61
      %p244 = pneg %p85
      %p245 = pneg %p82
      %p246 = pneg %p106
      %p247 = pneg %p103
      %p248 = pneg %p127
      %p249 = pneg %p124
      %p250 = pneg %p148
      %p251 = pneg %p145
      %p252 = pneg %p174
      %p253 = pneg %p171
      %s254 = smul.u32 32, %s17
      %p255 = scmp.lt.s32.totalorder %s254, 63
      %s256 = scalar_select %p255, %s254, 63
      %s257 = smul.addr %s256, 8
      %s258 = scalar_lea.vmem %s6, %s257
      %s259 = smul.u32 32, %s17
      %p260 = scmp.lt.s32.totalorder %s259, 63
      %s261 = scalar_select %p260, %s259, 63
      %s262 = smul.addr %s261, 8
      %s263 = scalar_lea.vmem %s0, %s262
      %s264 = smul.u32 32, %s17
      %s265 = smul.u32 32, %s17
      %p266 = scmp.lt.s32.totalorder %s265, 63
      %s267 = scalar_select %p266, %s265, 63
      %s268 = smul.addr %s267, 8
      %s269 = scalar_lea.vmem %s1, %s268
      %s270 = smul.u32 32, %s17
      %s271 = smul.u32 32, %s17
      %p272 = scmp.lt.s32.totalorder %s271, 63
      %s273 = scalar_select %p272, %s271, 63
      %s274 = smul.addr %s273, 8
      %s275 = scalar_lea.vmem %s6, %s274
      %s276 = smul.u32 32, %s17
      %v277 = vld [vmem:[%s263] sm:$0xff]
      %v278 = vld [vmem:[%s263 + $0x8] sm:$0xff]
      %v279 = vld [vmem:[%s263 + $0x10] sm:$0xff]
      %v280 = vld [vmem:[%s263 + $0x18] sm:$0xff]
      %v281 = vld [vmem:[%s263 + $0x20] sm:$0xff]
      %v282 = vld [vmem:[%s263 + $0x28] sm:$0xff]
      %v283 = vld [vmem:[%s263 + $0x30] sm:$0xff]
      %v284 = vld [vmem:[%s263 + $0x38] sm:$0xff]
      %v285 = vld [vmem:[%s263 + $0x40] sm:$0xff]
      %v286 = vld [vmem:[%s263 + $0x48] sm:$0xff]
      %v287 = vld [vmem:[%s263 + $0x50] sm:$0xff]
      %v288 = vld [vmem:[%s263 + $0x58] sm:$0xff]
      %v289 = vld [vmem:[%s263 + $0x60] sm:$0xff]
      %v290 = vld [vmem:[%s263 + $0x68] sm:$0xff]
      %v291 = vld [vmem:[%s263 + $0x70] sm:$0xff]
      %v292 = vld [vmem:[%s263 + $0x78] sm:$0xff]
      %v293 = vld [vmem:[%s263 + $0x80] sm:$0xff]
      %v294 = vld [vmem:[%s263 + $0x88] sm:$0xff]
      %v295 = vld [vmem:[%s263 + $0x90] sm:$0xff]
      %v296 = vld [vmem:[%s263 + $0x98] sm:$0xff]
      %v297 = vld [vmem:[%s263 + $0xa0] sm:$0xff]
      %v298 = vld [vmem:[%s263 + $0xa8] sm:$0xff]
      %v299 = vld [vmem:[%s263 + $0xb0] sm:$0xff]
      %v300 = vld [vmem:[%s263 + $0xb8] sm:$0xff]
      %v301 = vld [vmem:[%s263 + $0xc0] sm:$0xff]
      %v302 = vld [vmem:[%s263 + $0xc8] sm:$0xff]
      %v303 = vld [vmem:[%s263 + $0xd0] sm:$0xff]
      %v304 = vld [vmem:[%s263 + $0xd8] sm:$0xff]
      %v305 = vld [vmem:[%s263 + $0xe0] sm:$0xff]
      %v306 = vld [vmem:[%s263 + $0xe8] sm:$0xff]
      %v307 = vld [vmem:[%s263 + $0xf0] sm:$0xff]
      %v308 = vld [vmem:[%s263 + $0xf8] sm:$0xff]
      %v309 = vld [vmem:[%s2] sm:$0x1]
      %v311 = vlaneseq
      %v312 = vshrl.u32 %v311, 7
      %v313 = vsub.s32 0, %v312
      %v314 = vrot.slane %v309, %v313
      %v316 = vmul.f32 %v277, %v314
      %v317 = vmul.f32 %v278, %v314
      %v318 = vmul.f32 %v279, %v314
      %v319 = vmul.f32 %v280, %v314
      %v320 = vmul.f32 %v281, %v314
      %v321 = vmul.f32 %v282, %v314
      %v322 = vmul.f32 %v283, %v314
      %v323 = vmul.f32 %v284, %v314
      %v324 = vmul.f32 %v285, %v314
      %v325 = vmul.f32 %v286, %v314
      %v326 = vmul.f32 %v287, %v314
      %v327 = vmul.f32 %v288, %v314
      %v328 = vmul.f32 %v289, %v314
      %v329 = vmul.f32 %v290, %v314
      %v330 = vmul.f32 %v291, %v314
      %v331 = vmul.f32 %v292, %v314
      %v332 = vmul.f32 %v293, %v314
      %v333 = vmul.f32 %v294, %v314
      %v334 = vmul.f32 %v295, %v314
      %v335 = vmul.f32 %v296, %v314
      %v336 = vmul.f32 %v297, %v314
      %v337 = vmul.f32 %v298, %v314
      %v338 = vmul.f32 %v299, %v314
      %v339 = vmul.f32 %v300, %v314
      %v340 = vmul.f32 %v301, %v314
      %v341 = vmul.f32 %v302, %v314
      %v342 = vmul.f32 %v303, %v314
      %v343 = vmul.f32 %v304, %v314
      %v344 = vmul.f32 %v305, %v314
      %v345 = vmul.f32 %v306, %v314
      %v346 = vmul.f32 %v307, %v314
      %v347 = vmul.f32 %v308, %v314
      %v348 = vld [vmem:[%s3] sm:$0x1]
      %v350 = vlaneseq
      %v351 = vshrl.u32 %v350, 7
      %v352 = vsub.s32 0, %v351
      %v353 = vrot.slane %v348, %v352
      %v355 = vadd.f32 %v316, %v353
      %v356 = vadd.f32 %v317, %v353
      %v357 = vadd.f32 %v318, %v353
      %v358 = vadd.f32 %v319, %v353
      %v359 = vadd.f32 %v320, %v353
      %v360 = vadd.f32 %v321, %v353
      %v361 = vadd.f32 %v322, %v353
      %v362 = vadd.f32 %v323, %v353
      %v363 = vadd.f32 %v324, %v353
      %v364 = vadd.f32 %v325, %v353
      %v365 = vadd.f32 %v326, %v353
      %v366 = vadd.f32 %v327, %v353
      %v367 = vadd.f32 %v328, %v353
      %v368 = vadd.f32 %v329, %v353
      %v369 = vadd.f32 %v330, %v353
      %v370 = vadd.f32 %v331, %v353
      %v371 = vadd.f32 %v332, %v353
      %v372 = vadd.f32 %v333, %v353
      %v373 = vadd.f32 %v334, %v353
      %v374 = vadd.f32 %v335, %v353
      %v375 = vadd.f32 %v336, %v353
      %v376 = vadd.f32 %v337, %v353
      %v377 = vadd.f32 %v338, %v353
      %v378 = vadd.f32 %v339, %v353
      %v379 = vadd.f32 %v340, %v353
      %v380 = vadd.f32 %v341, %v353
      %v381 = vadd.f32 %v342, %v353
      %v382 = vadd.f32 %v343, %v353
      %v383 = vadd.f32 %v344, %v353
      %v384 = vadd.f32 %v345, %v353
      %v385 = vadd.f32 %v346, %v353
      %v386 = vadd.f32 %v347, %v353
      %v387 = vld [vmem:[%s269] sm:$0xff]
      %v388 = vld [vmem:[%s269 + $0x8] sm:$0xff]
      %v389 = vld [vmem:[%s269 + $0x10] sm:$0xff]
      %v390 = vld [vmem:[%s269 + $0x18] sm:$0xff]
      %v391 = vld [vmem:[%s269 + $0x20] sm:$0xff]
      %v392 = vld [vmem:[%s269 + $0x28] sm:$0xff]
      %v393 = vld [vmem:[%s269 + $0x30] sm:$0xff]
      %v394 = vld [vmem:[%s269 + $0x38] sm:$0xff]
      %v395 = vld [vmem:[%s269 + $0x40] sm:$0xff]
      %v396 = vld [vmem:[%s269 + $0x48] sm:$0xff]
      %v397 = vld [vmem:[%s269 + $0x50] sm:$0xff]
      %v398 = vld [vmem:[%s269 + $0x58] sm:$0xff]
      %v399 = vld [vmem:[%s269 + $0x60] sm:$0xff]
      %v400 = vld [vmem:[%s269 + $0x68] sm:$0xff]
      %v401 = vld [vmem:[%s269 + $0x70] sm:$0xff]
      %v402 = vld [vmem:[%s269 + $0x78] sm:$0xff]
      %v403 = vld [vmem:[%s269 + $0x80] sm:$0xff]
      %v404 = vld [vmem:[%s269 + $0x88] sm:$0xff]
      %v405 = vld [vmem:[%s269 + $0x90] sm:$0xff]
      %v406 = vld [vmem:[%s269 + $0x98] sm:$0xff]
      %v407 = vld [vmem:[%s269 + $0xa0] sm:$0xff]
      %v408 = vld [vmem:[%s269 + $0xa8] sm:$0xff]
      %v409 = vld [vmem:[%s269 + $0xb0] sm:$0xff]
      %v410 = vld [vmem:[%s269 + $0xb8] sm:$0xff]
      %v411 = vld [vmem:[%s269 + $0xc0] sm:$0xff]
      %v412 = vld [vmem:[%s269 + $0xc8] sm:$0xff]
      %v413 = vld [vmem:[%s269 + $0xd0] sm:$0xff]
      %v414 = vld [vmem:[%s269 + $0xd8] sm:$0xff]
      %v415 = vld [vmem:[%s269 + $0xe0] sm:$0xff]
      %v416 = vld [vmem:[%s269 + $0xe8] sm:$0xff]
      %v417 = vld [vmem:[%s269 + $0xf0] sm:$0xff]
      %v418 = vld [vmem:[%s269 + $0xf8] sm:$0xff]
      %v419 = vld [vmem:[%s4] sm:$0x1]
      %v421 = vlaneseq
      %v422 = vshrl.u32 %v421, 7
      %v423 = vsub.s32 0, %v422
      %v424 = vrot.slane %v419, %v423
      %v426 = vmul.f32 %v387, %v424
      %v427 = vmul.f32 %v388, %v424
      %v428 = vmul.f32 %v389, %v424
      %v429 = vmul.f32 %v390, %v424
      %v430 = vmul.f32 %v391, %v424
      %v431 = vmul.f32 %v392, %v424
      %v432 = vmul.f32 %v393, %v424
      %v433 = vmul.f32 %v394, %v424
      %v434 = vmul.f32 %v395, %v424
      %v435 = vmul.f32 %v396, %v424
      %v436 = vmul.f32 %v397, %v424
      %v437 = vmul.f32 %v398, %v424
      %v438 = vmul.f32 %v399, %v424
      %v439 = vmul.f32 %v400, %v424
      %v440 = vmul.f32 %v401, %v424
      %v441 = vmul.f32 %v402, %v424
      %v442 = vmul.f32 %v403, %v424
      %v443 = vmul.f32 %v404, %v424
      %v444 = vmul.f32 %v405, %v424
      %v445 = vmul.f32 %v406, %v424
      %v446 = vmul.f32 %v407, %v424
      %v447 = vmul.f32 %v408, %v424
      %v448 = vmul.f32 %v409, %v424
      %v449 = vmul.f32 %v410, %v424
      %v450 = vmul.f32 %v411, %v424
      %v451 = vmul.f32 %v412, %v424
      %v452 = vmul.f32 %v413, %v424
      %v453 = vmul.f32 %v414, %v424
      %v454 = vmul.f32 %v415, %v424
      %v455 = vmul.f32 %v416, %v424
      %v456 = vmul.f32 %v417, %v424
      %v457 = vmul.f32 %v418, %v424
      %v458 = vadd.f32 %v355, %v426
      %v459 = vadd.f32 %v356, %v427
      %v460 = vadd.f32 %v357, %v428
      %v461 = vadd.f32 %v358, %v429
      %v462 = vadd.f32 %v359, %v430
      %v463 = vadd.f32 %v360, %v431
      %v464 = vadd.f32 %v361, %v432
      %v465 = vadd.f32 %v362, %v433
      %v466 = vadd.f32 %v363, %v434
      %v467 = vadd.f32 %v364, %v435
      %v468 = vadd.f32 %v365, %v436
      %v469 = vadd.f32 %v366, %v437
      %v470 = vadd.f32 %v367, %v438
      %v471 = vadd.f32 %v368, %v439
      %v472 = vadd.f32 %v369, %v440
      %v473 = vadd.f32 %v370, %v441
      %v474 = vadd.f32 %v371, %v442
      %v475 = vadd.f32 %v372, %v443
      %v476 = vadd.f32 %v373, %v444
      %v477 = vadd.f32 %v374, %v445
      %v478 = vadd.f32 %v375, %v446
      %v479 = vadd.f32 %v376, %v447
      %v480 = vadd.f32 %v377, %v448
      %v481 = vadd.f32 %v378, %v449
      %v482 = vadd.f32 %v379, %v450
      %v483 = vadd.f32 %v380, %v451
      %v484 = vadd.f32 %v381, %v452
      %v485 = vadd.f32 %v382, %v453
      %v486 = vadd.f32 %v383, %v454
      %v487 = vadd.f32 %v384, %v455
      %v488 = vadd.f32 %v385, %v456
      %v489 = vadd.f32 %v386, %v457
      %v490 = vld [vmem:[%s5] sm:$0x1]
      %v492 = vlaneseq
      %v493 = vshrl.u32 %v492, 7
      %v494 = vsub.s32 0, %v493
      %v495 = vrot.slane %v490, %v494
      %v497 = vadd.f32 %v458, %v495
      %v498 = vadd.f32 %v459, %v495
      %v499 = vadd.f32 %v460, %v495
      %v500 = vadd.f32 %v461, %v495
      %v501 = vadd.f32 %v462, %v495
      %v502 = vadd.f32 %v463, %v495
      %v503 = vadd.f32 %v464, %v495
      %v504 = vadd.f32 %v465, %v495
      %v505 = vadd.f32 %v466, %v495
      %v506 = vadd.f32 %v467, %v495
      %v507 = vadd.f32 %v468, %v495
      %v508 = vadd.f32 %v469, %v495
      %v509 = vadd.f32 %v470, %v495
      %v510 = vadd.f32 %v471, %v495
      %v511 = vadd.f32 %v472, %v495
      %v512 = vadd.f32 %v473, %v495
      %v513 = vadd.f32 %v474, %v495
      %v514 = vadd.f32 %v475, %v495
      %v515 = vadd.f32 %v476, %v495
      %v516 = vadd.f32 %v477, %v495
      %v517 = vadd.f32 %v478, %v495
      %v518 = vadd.f32 %v479, %v495
      %v519 = vadd.f32 %v480, %v495
      %v520 = vadd.f32 %v481, %v495
      %v521 = vadd.f32 %v482, %v495
      %v522 = vadd.f32 %v483, %v495
      %v523 = vadd.f32 %v484, %v495
      %v524 = vadd.f32 %v485, %v495
      %v525 = vadd.f32 %v486, %v495
      %v526 = vadd.f32 %v487, %v495
      %v527 = vadd.f32 %v488, %v495
      %v528 = vadd.f32 %v489, %v495
      %v529 = vmax.f32 %v497, 0.0
      %v530 = vmax.f32 %v498, 0.0
      %v531 = vmax.f32 %v499, 0.0
      %v532 = vmax.f32 %v500, 0.0
      %v533 = vmax.f32 %v501, 0.0
      %v534 = vmax.f32 %v502, 0.0
      %v535 = vmax.f32 %v503, 0.0
      %v536 = vmax.f32 %v504, 0.0
      %v537 = vmax.f32 %v505, 0.0
      %v538 = vmax.f32 %v506, 0.0
      %v539 = vmax.f32 %v507, 0.0
      %v540 = vmax.f32 %v508, 0.0
      %v541 = vmax.f32 %v509, 0.0
      %v542 = vmax.f32 %v510, 0.0
      %v543 = vmax.f32 %v511, 0.0
      %v544 = vmax.f32 %v512, 0.0
      %v545 = vmax.f32 %v513, 0.0
      %v546 = vmax.f32 %v514, 0.0
      %v547 = vmax.f32 %v515, 0.0
      %v548 = vmax.f32 %v516, 0.0
      %v549 = vmax.f32 %v517, 0.0
      %v550 = vmax.f32 %v518, 0.0
      %v551 = vmax.f32 %v519, 0.0
      %v552 = vmax.f32 %v520, 0.0
      %v553 = vmax.f32 %v521, 0.0
      %v554 = vmax.f32 %v522, 0.0
      %v555 = vmax.f32 %v523, 0.0
      %v556 = vmax.f32 %v524, 0.0
      %v557 = vmax.f32 %v525, 0.0
      %v558 = vmax.f32 %v526, 0.0
      %v559 = vmax.f32 %v527, 0.0
      %v560 = vmax.f32 %v528, 0.0
      %561 = vst [vmem:[%s275] sm:$0xff] %v529
      %562 = vst [vmem:[%s275 + $0x8] sm:$0xff] %v530
      %563 = vst [vmem:[%s275 + $0x10] sm:$0xff] %v531
      %564 = vst [vmem:[%s275 + $0x18] sm:$0xff] %v532
      %565 = vst [vmem:[%s275 + $0x20] sm:$0xff] %v533
      %566 = vst [vmem:[%s275 + $0x28] sm:$0xff] %v534
      %567 = vst [vmem:[%s275 + $0x30] sm:$0xff] %v535
      %568 = vst [vmem:[%s275 + $0x38] sm:$0xff] %v536
      %569 = vst [vmem:[%s275 + $0x40] sm:$0xff] %v537
      %570 = vst [vmem:[%s275 + $0x48] sm:$0xff] %v538
      %571 = vst [vmem:[%s275 + $0x50] sm:$0xff] %v539
      %572 = vst [vmem:[%s275 + $0x58] sm:$0xff] %v540
      %573 = vst [vmem:[%s275 + $0x60] sm:$0xff] %v541
      %574 = vst [vmem:[%s275 + $0x68] sm:$0xff] %v542
      %575 = vst [vmem:[%s275 + $0x70] sm:$0xff] %v543
      %576 = vst [vmem:[%s275 + $0x78] sm:$0xff] %v544
      %577 = vst [vmem:[%s275 + $0x80] sm:$0xff] %v545
      %578 = vst [vmem:[%s275 + $0x88] sm:$0xff] %v546
      %579 = vst [vmem:[%s275 + $0x90] sm:$0xff] %v547
      %580 = vst [vmem:[%s275 + $0x98] sm:$0xff] %v548
      %581 = vst [vmem:[%s275 + $0xa0] sm:$0xff] %v549
      %582 = vst [vmem:[%s275 + $0xa8] sm:$0xff] %v550
      %583 = vst [vmem:[%s275 + $0xb0] sm:$0xff] %v551
      %584 = vst [vmem:[%s275 + $0xb8] sm:$0xff] %v552
      %585 = vst [vmem:[%s275 + $0xc0] sm:$0xff] %v553
      %586 = vst [vmem:[%s275 + $0xc8] sm:$0xff] %v554
      %587 = vst [vmem:[%s275 + $0xd0] sm:$0xff] %v555
      %588 = vst [vmem:[%s275 + $0xd8] sm:$0xff] %v556
      %589 = vst [vmem:[%s275 + $0xe0] sm:$0xff] %v557
      %590 = vst [vmem:[%s275 + $0xe8] sm:$0xff] %v558
      %591 = vst [vmem:[%s275 + $0xf0] sm:$0xff] %v559
      %592 = vst [vmem:[%s275 + $0xf8] sm:$0xff] %v560
      %s593 = smul.u32 32, %s17
      %p594 = scmp.lt.s32.totalorder %s593, 63
      %s595 = scalar_select %p594, %s593, 63
      %s596 = smul.addr %s595, 8
      %s597 = scalar_lea.vmem %s6, %s596
      // Predicated region
      $region45: #{bottleneck_forward.9} parent=43 // pred_check
        %p598 = pneg %p171
      $region46: #{bottleneck_forward.9} parent=43 // pred_check_branch
        %600 = sbr.rel (%p598) target = $region48
      $region47: #{bottleneck_forward.9} parent=43 // pred_region
        %s601 = smul.u32 32, %s17
      $region48: #{bottleneck_forward.9} parent=43 // pred_fallthru
        _
    $region44: #{bottleneck_forward.9} parent=5 // pred_fallthru
      _
    %p602 = scmp.le.s32.totalorder 2, %s12
    // Predicated region
    $region49: #{bottleneck_forward.9} parent=5 // pred_check
      %p603 = pneg %p602
    $region50: #{bottleneck_forward.9} parent=5 // pred_check_branch
      %605 = sbr.rel (%p603) target = $region52
    $region51: #{bottleneck_forward.9} parent=5 // pred_region
      %s606 = ssub.s32 %s12, 2
      // Predicated region
      $region53: #{bottleneck_forward.9} parent=51 // pred_check
        %p607 = pneg %p177
      $region54: #{bottleneck_forward.9} parent=51 // pred_check_branch
        %609 = sbr.rel (%p607) target = $region56
      $region55: #{bottleneck_forward.9} parent=51 // pred_region
        %s610 = smul.u32 32, %s18
        %p611 = scmp.lt.s32.totalorder %s610, 63
        %s612 = scalar_select %p611, %s610, 63
        %s613 = smul.addr %s612, 8
        %s614 = scalar_lea.vmem %s6, %s613
      $region56: #{bottleneck_forward.9} parent=51 // pred_fallthru
        _
    $region52: #{bottleneck_forward.9} parent=5 // pred_fallthru
      _
  $region6: #{bottleneck_forward.9} parent=0 // loop_footer
    %s16 = sadd.s32 1, %s12
  $region7: #{bottleneck_forward.9} parent=0 // loop_footer_branch
    %11 = sbr.rel target = $region3
  $region8: #{bottleneck_forward.9} parent=0 // loop_exit
    _

// kernel: bottleneck_forward.5
$region0: #{bottleneck_forward.5}
  #allocation0 [shape = 'u32[]', space=smem, size = 0x4, offset = 0x4, fixed_abs, tag = 'smem constant byte address 0x4 - core index']
  #allocation1 [shape = 'u32[144,128]{1,0:T(1,128)}', space=vmem, size = 0x12000, scoped, tag = 'internal scratch']
  #allocation2 [shape = 'f32[256,128]{1,0:T(8,128)}', space=vmem, size = 0x20000, scoped, tag = 'scratch operand']
  %s0 = inlined_call_operand.vmem [shape: f32[512,128], index: 0, kind: input, shape index: {}]
  %s1 = inlined_call_operand.vmem [shape: bf16[128,128], index: 1, kind: input, shape index: {}]
  %s2 = inlined_call_operand.vmem [shape: f32[1,128], index: 2, kind: input, shape index: {}]
  %s3 = inlined_call_operand.vmem [shape: f32[1,128], index: 3, kind: input, shape index: {}]
  %s4 = inlined_call_operand.vmem [shape: f32[1,128], index: 4, kind: input, shape index: {}]
  %s5 = inlined_call_operand.vmem [shape: f32[512,128], index: 5, kind: output, shape index: {0}]
  %s6 = inlined_call_operand.vmem [shape: f32[2,8,128], index: 6, kind: output, shape index: {1}]
  %7 = xla_tuple %s5, %s6
  %s8 = sld [smem:[#allocation0]]
  $region69: #{bottleneck_forward.5} parent=0
    _
  %s10 = ssub.s32 1, %s8
  %s11 = scalar_select 0, %s10, %s8
  loop: start=0, step=1, limit=4
  $region2: #{bottleneck_forward.5} parent=0 // loop_pre_header
    _
  $region3: #{bottleneck_forward.5} parent=0 // loop_header
    %s13 = sphi 0, %s17
    %p14 = scmp.ge.s32.totalorder %s13, 4
    %s20 = sphi 0, %s39
    %s21 = sphi 0, %s35
    %s22 = sphi 0, %s31
    %s23 = sphi 0, %s20
    %s24 = sphi 0, %s21
    %s25 = sphi 0, %s22
    %s26 = sphi 0, %s23
    %s27 = sphi 0, %s24
    %s28 = sphi 0, %s25
    %s44 = sphi 0, %s46
    %s47 = sphi 0, %s44
    %s48 = sphi 0, %s47
    %s64 = sphi 0, %s48
    %s72 = sphi 0, %s74
    %s75 = sphi 0, %s72
    %s76 = sphi 0, %s75
    %s92 = sphi 0, %s76
    %s98 = sphi 0, %s100
    %s101 = sphi 0, %s98
    %s102 = sphi 0, %s101
    %s118 = sphi 0, %s102
    %s124 = sphi 0, %s126
    %s127 = sphi 0, %s124
    %s128 = sphi 0, %s127
    %s144 = sphi 0, %s128
    %s150 = sphi 0, %s152
    %s153 = sphi 0, %s150
    %s154 = sphi 0, %s153
    %s170 = sphi 0, %s154
    %s178 = sphi 0, %s180
    %s181 = sphi 0, %s178
    %s182 = sphi 0, %s181
    %s198 = sphi 0, %s182
    %s206 = sphi 0, %s208
    %s209 = sphi 0, %s206
    %s210 = sphi 0, %s209
    %s226 = sphi 0, %s210
  $region4: #{bottleneck_forward.5} parent=0 // loop_header_branch
    %16 = sbr.rel (%p14) target = $region8
  $region5: #{bottleneck_forward.5} parent=0 // loop_body
    %s18 = ssub.s32 %s13, 1
    %s19 = ssub.s32 %s13, 2
    %s29 = sadd.s32 1, %s22
    %p30 = scmp.ge.s32.totalorder %s29, 1
    %s31 = scalar_select %p30, 0, %s29
    %s32 = sadd.s32 1, %s21
    %s33 = scalar_select %p30, %s32, %s21
    %p34 = scmp.ge.s32.totalorder %s33, 1
    %s35 = scalar_select %p34, 0, %s33
    %s36 = sadd.s32 1, %s20
    %s37 = scalar_select %p34, %s36, %s20
    %p38 = scmp.ge.s32.totalorder %s37, 2
    %s39 = scalar_select %p38, 0, %s37
    %s40 = ssub.s32 %s20, %s39
    %s41 = ssub.s32 %s22, %s31
    %s42 = sor.u32 %s40, %s41
    %p43 = scmp.eq.s32.totalorder %s42, 0
    %s45 = sadd.s32 %s44, 1
    %s46 = scalar_select %p43, %s44, %s45
    %p49 = pneg %p43
    %p50 = scmp.eq.s32.totalorder %s13, 1
    %p51 = por %p49, %p50
    %p52 = scmp.ne.s32.totalorder %s44, %s47
    %p53 = scmp.eq.s32.totalorder %s13, 0
    %p54 = por %p52, %p53
    %p55 = scmp.ne.s32.totalorder %s44, %s47
    %p56 = scmp.eq.s32.totalorder %s18, 1
    %p57 = por %p55, %p56
    %p58 = scmp.ne.s32.totalorder %s47, %s48
    %p59 = scmp.eq.s32.totalorder %s18, 0
    %p60 = por %p58, %p59
    %p61 = scmp.ne.s32.totalorder %s47, %s48
    %p62 = scmp.eq.s32.totalorder %s19, 1
    %p63 = por %p61, %p62
    %p65 = scmp.ne.s32.totalorder %s48, %s64
    %p66 = scmp.eq.s32.totalorder %s19, 0
    %p67 = por %p65, %p66
    %s68 = ssub.s32 %s22, %s31
    %s69 = ssub.s32 %s21, %s35
    %s70 = sor.u32 %s68, %s69
    %p71 = scmp.eq.s32.totalorder %s70, 0
    %s73 = sadd.s32 %s72, 1
    %s74 = scalar_select %p71, %s72, %s73
    %p77 = pneg %p71
    %p78 = scmp.eq.s32.totalorder %s13, 1
    %p79 = por %p77, %p78
    %p80 = scmp.ne.s32.totalorder %s72, %s75
    %p81 = scmp.eq.s32.totalorder %s13, 0
    %p82 = por %p80, %p81
    %p83 = scmp.ne.s32.totalorder %s72, %s75
    %p84 = scmp.eq.s32.totalorder %s18, 1
    %p85 = por %p83, %p84
    %p86 = scmp.ne.s32.totalorder %s75, %s76
    %p87 = scmp.eq.s32.totalorder %s18, 0
    %p88 = por %p86, %p87
    %p89 = scmp.ne.s32.totalorder %s75, %s76
    %p90 = scmp.eq.s32.totalorder %s19, 1
    %p91 = por %p89, %p90
    %p93 = scmp.ne.s32.totalorder %s76, %s92
    %p94 = scmp.eq.s32.totalorder %s19, 0
    %p95 = por %p93, %p94
    %s96 = ssub.s32 %s21, %s35
    %p97 = scmp.eq.s32.totalorder %s96, 0
    %s99 = sadd.s32 %s98, 1
    %s100 = scalar_select %p97, %s98, %s99
    %p103 = pneg %p97
    %p104 = scmp.eq.s32.totalorder %s13, 1
    %p105 = por %p103, %p104
    %p106 = scmp.ne.s32.totalorder %s98, %s101
    %p107 = scmp.eq.s32.totalorder %s13, 0
    %p108 = por %p106, %p107
    %p109 = scmp.ne.s32.totalorder %s98, %s101
    %p110 = scmp.eq.s32.totalorder %s18, 1
    %p111 = por %p109, %p110
    %p112 = scmp.ne.s32.totalorder %s101, %s102
    %p113 = scmp.eq.s32.totalorder %s18, 0
    %p114 = por %p112, %p113
    %p115 = scmp.ne.s32.totalorder %s101, %s102
    %p116 = scmp.eq.s32.totalorder %s19, 1
    %p117 = por %p115, %p116
    %p119 = scmp.ne.s32.totalorder %s102, %s118
    %p120 = scmp.eq.s32.totalorder %s19, 0
    %p121 = por %p119, %p120
    %s122 = ssub.s32 %s22, %s31
    %p123 = scmp.eq.s32.totalorder %s122, 0
    %s125 = sadd.s32 %s124, 1
    %s126 = scalar_select %p123, %s124, %s125
    %p129 = pneg %p123
    %p130 = scmp.eq.s32.totalorder %s13, 1
    %p131 = por %p129, %p130
    %p132 = scmp.ne.s32.totalorder %s124, %s127
    %p133 = scmp.eq.s32.totalorder %s13, 0
    %p134 = por %p132, %p133
    %p135 = scmp.ne.s32.totalorder %s124, %s127
    %p136 = scmp.eq.s32.totalorder %s18, 1
    %p137 = por %p135, %p136
    %p138 = scmp.ne.s32.totalorder %s127, %s128
    %p139 = scmp.eq.s32.totalorder %s18, 0
    %p140 = por %p138, %p139
    %p141 = scmp.ne.s32.totalorder %s127, %s128
    %p142 = scmp.eq.s32.totalorder %s19, 1
    %p143 = por %p141, %p142
    %p145 = scmp.ne.s32.totalorder %s128, %s144
    %p146 = scmp.eq.s32.totalorder %s19, 0
    %p147 = por %p145, %p146
    %s148 = ssub.s32 %s22, %s31
    %p149 = scmp.eq.s32.totalorder %s148, 0
    %s151 = sadd.s32 %s150, 1
    %s152 = scalar_select %p149, %s150, %s151
    %p155 = pneg %p149
    %p156 = scmp.eq.s32.totalorder %s13, 1
    %p157 = por %p155, %p156
    %p158 = scmp.ne.s32.totalorder %s150, %s153
    %p159 = scmp.eq.s32.totalorder %s13, 0
    %p160 = por %p158, %p159
    %p161 = scmp.ne.s32.totalorder %s150, %s153
    %p162 = scmp.eq.s32.totalorder %s18, 1
    %p163 = por %p161, %p162
    %p164 = scmp.ne.s32.totalorder %s153, %s154
    %p165 = scmp.eq.s32.totalorder %s18, 0
    %p166 = por %p164, %p165
    %p167 = scmp.ne.s32.totalorder %s153, %s154
    %p168 = scmp.eq.s32.totalorder %s19, 1
    %p169 = por %p167, %p168
    %p171 = scmp.ne.s32.totalorder %s154, %s170
    %p172 = scmp.eq.s32.totalorder %s19, 0
    %p173 = por %p171, %p172
    %s174 = ssub.s32 %s20, %s39
    %s175 = ssub.s32 %s21, %s35
    %s176 = sor.u32 %s174, %s175
    %p177 = scmp.eq.s32.totalorder %s176, 0
    %s179 = sadd.s32 %s178, 1
    %s180 = scalar_select %p177, %s178, %s179
    %p183 = pneg %p177
    %p184 = scmp.eq.s32.totalorder %s13, 1
    %p185 = por %p183, %p184
    %p186 = scmp.ne.s32.totalorder %s178, %s181
    %p187 = scmp.eq.s32.totalorder %s13, 0
    %p188 = por %p186, %p187
    %p189 = scmp.ne.s32.totalorder %s178, %s181
    %p190 = scmp.eq.s32.totalorder %s18, 1
    %p191 = por %p189, %p190
    %p192 = scmp.ne.s32.totalorder %s181, %s182
    %p193 = scmp.eq.s32.totalorder %s18, 0
    %p194 = por %p192, %p193
    %p195 = scmp.ne.s32.totalorder %s181, %s182
    %p196 = scmp.eq.s32.totalorder %s19, 1
    %p197 = por %p195, %p196
    %p199 = scmp.ne.s32.totalorder %s182, %s198
    %p200 = scmp.eq.s32.totalorder %s19, 0
    %p201 = por %p199, %p200
    %s202 = ssub.s32 %s20, %s39
    %s203 = ssub.s32 %s21, %s35
    %s204 = sor.u32 %s202, %s203
    %p205 = scmp.eq.s32.totalorder %s204, 0
    %s207 = sadd.s32 %s206, 1
    %s208 = scalar_select %p205, %s206, %s207
    %p211 = pneg %p205
    %p212 = scmp.eq.s32.totalorder %s13, 1
    %p213 = por %p211, %p212
    %p214 = scmp.ne.s32.totalorder %s206, %s209
    %p215 = scmp.eq.s32.totalorder %s13, 0
    %p216 = por %p214, %p215
    %p217 = scmp.ne.s32.totalorder %s206, %s209
    %p218 = scmp.eq.s32.totalorder %s18, 1
    %p219 = por %p217, %p218
    %p220 = scmp.ne.s32.totalorder %s209, %s210
    %p221 = scmp.eq.s32.totalorder %s18, 0
    %p222 = por %p220, %p221
    %p223 = scmp.ne.s32.totalorder %s209, %s210
    %p224 = scmp.eq.s32.totalorder %s19, 1
    %p225 = por %p223, %p224
    %p227 = scmp.ne.s32.totalorder %s210, %s226
    %p228 = scmp.eq.s32.totalorder %s19, 0
    %p229 = por %p227, %p228
    %p230 = scmp.le.s32.totalorder 1, %s13
    %p231 = scmp.lt.s32.totalorder %s13, 3
    %p232 = pnand %p230, %p231
    %p233 = pneg %p232
    // Predicated region
    $region9: #{bottleneck_forward.5} parent=5 // pred_check
      _
    $region10: #{bottleneck_forward.5} parent=5 // pred_check_branch
      %235 = sbr.rel (%p232) target = $region12
    $region11: #{bottleneck_forward.5} parent=5 // pred_region
      %s236 = ssub.s32 %s13, 1
      // Predicated region
      $region13: #{bottleneck_forward.5} parent=11 // pred_check
        %p237 = pneg %p88
      $region14: #{bottleneck_forward.5} parent=11 // pred_check_branch
        %239 = sbr.rel (%p237) target = $region16
      $region15: #{bottleneck_forward.5} parent=11 // pred_region
        %s240 = smul.u32 16, %s25
        %p241 = scmp.lt.s32.totalorder %s240, 15
        %s242 = scalar_select %p241, %s240, 15
        %p243 = scmp.lt.s32.totalorder %s24, 0
        %s244 = scalar_select %p243, %s24, 0
        %s245 = sadd.s32 %s244, %s242
        %s246 = smul.addr %s245, 4
        %s247 = scalar_lea.vmem %s1, %s246
        %s248 = smul.u32 16, %s25
      $region16: #{bottleneck_forward.5} parent=11 // pred_fallthru
        _
      // Predicated region
      $region17: #{bottleneck_forward.5} parent=11 // pred_check
        %p249 = pneg %p114
      $region18: #{bottleneck_forward.5} parent=11 // pred_check_branch
        %251 = sbr.rel (%p249) target = $region20
      $region19: #{bottleneck_forward.5} parent=11 // pred_region
        %p252 = scmp.lt.s32.totalorder %s24, 0
        %s253 = scalar_select %p252, %s24, 0
        %s254 = scalar_lea.vmem %s2, %s253
      $region20: #{bottleneck_forward.5} parent=11 // pred_fallthru
        _
      // Predicated region
      $region21: #{bottleneck_forward.5} parent=11 // pred_check
        %p255 = pneg %p140
      $region22: #{bottleneck_forward.5} parent=11 // pred_check_branch
        %257 = sbr.rel (%p255) target = $region24
      $region23: #{bottleneck_forward.5} parent=11 // pred_region
        %p258 = scmp.lt.s32.totalorder %s25, 0
        %s259 = scalar_select %p258, %s25, 0
        %s260 = scalar_lea.vmem %s3, %s259
      $region24: #{bottleneck_forward.5} parent=11 // pred_fallthru
        _
      // Predicated region
      $region25: #{bottleneck_forward.5} parent=11 // pred_check
        %p261 = pneg %p166
      $region26: #{bottleneck_forward.5} parent=11 // pred_check_branch
        %263 = sbr.rel (%p261) target = $region28
      $region27: #{bottleneck_forward.5} parent=11 // pred_region
        %p264 = scmp.lt.s32.totalorder %s25, 0
        %s265 = scalar_select %p264, %s25, 0
        %s266 = scalar_lea.vmem %s4, %s265
      $region28: #{bottleneck_forward.5} parent=11 // pred_fallthru
        _
    $region12: #{bottleneck_forward.5} parent=5 // pred_fallthru
      _
    %p267 = scmp.lt.s32.totalorder %s13, 2
    // Predicated region
    $region29: #{bottleneck_forward.5} parent=5 // pred_check
      %p268 = pneg %p267
    $region30: #{bottleneck_forward.5} parent=5 // pred_check_branch
      %270 = sbr.rel (%p268) target = $region32
    $region31: #{bottleneck_forward.5} parent=5 // pred_region
      // Predicated region
      $region33: #{bottleneck_forward.5} parent=31 // pred_check
        %p271 = pneg %p54
      $region34: #{bottleneck_forward.5} parent=31 // pred_check_branch
        %273 = sbr.rel (%p271) target = $region36
      $region35: #{bottleneck_forward.5} parent=31 // pred_region
        %s274 = smul.u32 32, %s20
        %p275 = scmp.lt.s32.totalorder %s274, 63
        %s276 = scalar_select %p275, %s274, 63
        %p277 = scmp.lt.s32.totalorder %s22, 0
        %s278 = scalar_select %p277, %s22, 0
        %s279 = sadd.s32 %s278, %s276
        %s280 = smul.addr %s279, 8
        %s281 = scalar_lea.vmem %s0, %s280
        %s282 = smul.u32 32, %s20
      $region36: #{bottleneck_forward.5} parent=31 // pred_fallthru
        _
    $region32: #{bottleneck_forward.5} parent=5 // pred_fallthru
      _
    %p283 = scmp.le.s32.totalorder 1, %s13
    %p284 = scmp.lt.s32.totalorder %s13, 3
    %p285 = pnand %p283, %p284
    %p286 = pneg %p285
    // Predicated region
    $region37: #{bottleneck_forward.5} parent=5 // pred_check
      _
    $region38: #{bottleneck_forward.5} parent=5 // pred_check_branch
      %288 = sbr.rel (%p285) target = $region40
    $region39: #{bottleneck_forward.5} parent=5 // pred_region
      %s289 = ssub.s32 %s13, 1
      %s290 = smul.u32 32, %s23
      %p291 = scmp.lt.s32.totalorder %s290, 63
      %s292 = scalar_select %p291, %s290, 63
      %p293 = scmp.lt.s32.totalorder %s25, 0
      %s294 = scalar_select %p293, %s25, 0
      %s295 = sadd.s32 %s294, %s292
      %s296 = smul.addr %s295, 8
      %s297 = scalar_lea.vmem %s0, %s296
      %p298 = pneg %p60
      %p299 = pneg %p57
      %s300 = smul.u32 16, %s25
      %p301 = scmp.lt.s32.totalorder %s300, 15
      %s302 = scalar_select %p301, %s300, 15
      %p303 = scmp.lt.s32.totalorder %s24, 0
      %s304 = scalar_select %p303, %s24, 0
      %s305 = sadd.s32 %s304, %s302
      %s306 = smul.addr %s305, 4
      %s307 = scalar_lea.vmem %s1, %s306
      %p308 = pneg %p88
      %p309 = pneg %p85
      %p310 = scmp.lt.s32.totalorder %s24, 0
      %s311 = scalar_select %p310, %s24, 0
      %s312 = scalar_lea.vmem %s2, %s311
      %p313 = pneg %p114
      %p314 = pneg %p111
      %p315 = scmp.lt.s32.totalorder %s25, 0
      %s316 = scalar_select %p315, %s25, 0
      %s317 = scalar_lea.vmem %s3, %s316
      %p318 = pneg %p140
      %p319 = pneg %p137
      %p320 = scmp.lt.s32.totalorder %s25, 0
      %s321 = scalar_select %p320, %s25, 0
      %s322 = scalar_lea.vmem %s4, %s321
      %p323 = pneg %p166
      %p324 = pneg %p163
      %p325 = pneg %p194
      %p326 = pneg %p191
      %s327 = smul.u32 32, %s23
      %p328 = scmp.lt.s32.totalorder %s327, 63
      %s329 = scalar_select %p328, %s327, 63
      %p330 = scmp.lt.s32.totalorder %s24, 0
      %s331 = scalar_select %p330, %s24, 0
      %s332 = sadd.s32 %s331, %s329
      %s333 = smul.addr %s332, 8
      %s334 = scalar_lea.vmem %s5, %s333
      %p335 = pneg %p222
      %p336 = pneg %p219
      %p337 = scmp.lt.s32.totalorder %s23, 1
      %s338 = scalar_select %p337, %s23, 1
      %p339 = scmp.lt.s32.totalorder %s24, 0
      %s340 = scalar_select %p339, %s24, 0
      %s341 = sadd.s32 %s340, %s338
      %s342 = smul.addr %s341, 8
      %s343 = scalar_lea.vmem %s6, %s342
      %s344 = smul.u32 32, %s23
      %p345 = scmp.lt.s32.totalorder %s344, 63
      %s346 = scalar_select %p345, %s344, 63
      %p347 = scmp.lt.s32.totalorder %s25, 0
      %s348 = scalar_select %p347, %s25, 0
      %s349 = sadd.s32 %s348, %s346
      %s350 = smul.addr %s349, 8
      %s351 = scalar_lea.vmem %s0, %s350
      %s352 = smul.u32 32, %s23
      %s353 = smul.u32 16, %s25
      %p354 = scmp.lt.s32.totalorder %s353, 15
      %s355 = scalar_select %p354, %s353, 15
      %p356 = scmp.lt.s32.totalorder %s24, 0
      %s357 = scalar_select %p356, %s24, 0
      %s358 = sadd.s32 %s357, %s355
      %s359 = smul.addr %s358, 4
      %s360 = scalar_lea.vmem %s1, %s359
      %s361 = smul.u32 16, %s25
      %p362 = scmp.lt.s32.totalorder %s24, 0
      %s363 = scalar_select %p362, %s24, 0
      %s364 = scalar_lea.vmem %s2, %s363
      %p365 = scmp.lt.s32.totalorder %s25, 0
      %s366 = scalar_select %p365, %s25, 0
      %s367 = scalar_lea.vmem %s3, %s366
      %p368 = scmp.lt.s32.totalorder %s25, 0
      %s369 = scalar_select %p368, %s25, 0
      %s370 = scalar_lea.vmem %s4, %s369
      %s371 = smul.u32 32, %s23
      %p372 = scmp.lt.s32.totalorder %s371, 63
      %s373 = scalar_select %p372, %s371, 63
      %p374 = scmp.lt.s32.totalorder %s24, 0
      %s375 = scalar_select %p374, %s24, 0
      %s376 = sadd.s32 %s375, %s373
      %s377 = smul.addr %s376, 8
      %s378 = scalar_lea.vmem %s5, %s377
      %s379 = smul.u32 32, %s23
      %p380 = scmp.lt.s32.totalorder %s23, 1
      %s381 = scalar_select %p380, %s23, 1
      %p382 = scmp.lt.s32.totalorder %s24, 0
      %s383 = scalar_select %p382, %s24, 0
      %s384 = sadd.s32 %s383, %s381
      %s385 = smul.addr %s384, 8
      %s386 = scalar_lea.vmem %s6, %s385
      %p388 = scmp.eq.s32.totalorder %s25, 0
      // Predicated region
      $region41: #{bottleneck_forward.5} parent=39 // pred_check
        %p389 = pneg %p388
      $region42: #{bottleneck_forward.5} parent=39 // pred_check_branch
        %391 = sbr.rel (%p389) target = $region44
      $region43: #{bottleneck_forward.5} parent=39 // pred_region
        %392 = vst [vmem:[#allocation2] sm:$0xff] 0.0
        %393 = vst [vmem:[#allocation2 + $0x8] sm:$0xff] 0.0
        %394 = vst [vmem:[#allocation2 + $0x10] sm:$0xff] 0.0
        %395 = vst [vmem:[#allocation2 + $0x18] sm:$0xff] 0.0
        %396 = vst [vmem:[#allocation2 + $0x20] sm:$0xff] 0.0
        %397 = vst [vmem:[#allocation2 + $0x28] sm:$0xff] 0.0
        %398 = vst [vmem:[#allocation2 + $0x30] sm:$0xff] 0.0
        %399 = vst [vmem:[#allocation2 + $0x38] sm:$0xff] 0.0
        %400 = vst [vmem:[#allocation2 + $0x40] sm:$0xff] 0.0
        %401 = vst [vmem:[#allocation2 + $0x48] sm:$0xff] 0.0
        %402 = vst [vmem:[#allocation2 + $0x50] sm:$0xff] 0.0
        %403 = vst [vmem:[#allocation2 + $0x58] sm:$0xff] 0.0
        %404 = vst [vmem:[#allocation2 + $0x60] sm:$0xff] 0.0
        %405 = vst [vmem:[#allocation2 + $0x68] sm:$0xff] 0.0
        %406 = vst [vmem:[#allocation2 + $0x70] sm:$0xff] 0.0
        %407 = vst [vmem:[#allocation2 + $0x78] sm:$0xff] 0.0
        %408 = vst [vmem:[#allocation2 + $0x80] sm:$0xff] 0.0
        %409 = vst [vmem:[#allocation2 + $0x88] sm:$0xff] 0.0
        %410 = vst [vmem:[#allocation2 + $0x90] sm:$0xff] 0.0
        %411 = vst [vmem:[#allocation2 + $0x98] sm:$0xff] 0.0
        %412 = vst [vmem:[#allocation2 + $0xa0] sm:$0xff] 0.0
        %413 = vst [vmem:[#allocation2 + $0xa8] sm:$0xff] 0.0
        %414 = vst [vmem:[#allocation2 + $0xb0] sm:$0xff] 0.0
        %415 = vst [vmem:[#allocation2 + $0xb8] sm:$0xff] 0.0
        %416 = vst [vmem:[#allocation2 + $0xc0] sm:$0xff] 0.0
        %417 = vst [vmem:[#allocation2 + $0xc8] sm:$0xff] 0.0
        %418 = vst [vmem:[#allocation2 + $0xd0] sm:$0xff] 0.0
        %419 = vst [vmem:[#allocation2 + $0xd8] sm:$0xff] 0.0
        %420 = vst [vmem:[#allocation2 + $0xe0] sm:$0xff] 0.0
        %421 = vst [vmem:[#allocation2 + $0xe8] sm:$0xff] 0.0
        %422 = vst [vmem:[#allocation2 + $0xf0] sm:$0xff] 0.0
        %423 = vst [vmem:[#allocation2 + $0xf8] sm:$0xff] 0.0
      $region44: #{bottleneck_forward.5} parent=39 // pred_fallthru
        _
      %v424 = vld [vmem:[%s351] sm:$0xff]
      %v425 = vld [vmem:[%s351 + $0x8] sm:$0xff]
      %v426 = vld [vmem:[%s351 + $0x10] sm:$0xff]
      %v427 = vld [vmem:[%s351 + $0x18] sm:$0xff]
      %v428 = vld [vmem:[%s351 + $0x20] sm:$0xff]
      %v429 = vld [vmem:[%s351 + $0x28] sm:$0xff]
      %v430 = vld [vmem:[%s351 + $0x30] sm:$0xff]
      %v431 = vld [vmem:[%s351 + $0x38] sm:$0xff]
      %v432 = vld [vmem:[%s351 + $0x40] sm:$0xff]
      %v433 = vld [vmem:[%s351 + $0x48] sm:$0xff]
      %v434 = vld [vmem:[%s351 + $0x50] sm:$0xff]
      %v435 = vld [vmem:[%s351 + $0x58] sm:$0xff]
      %v436 = vld [vmem:[%s351 + $0x60] sm:$0xff]
      %v437 = vld [vmem:[%s351 + $0x68] sm:$0xff]
      %v438 = vld [vmem:[%s351 + $0x70] sm:$0xff]
      %v439 = vld [vmem:[%s351 + $0x78] sm:$0xff]
      %v440 = vld [vmem:[%s351 + $0x80] sm:$0xff]
      %v441 = vld [vmem:[%s351 + $0x88] sm:$0xff]
      %v442 = vld [vmem:[%s351 + $0x90] sm:$0xff]
      %v443 = vld [vmem:[%s351 + $0x98] sm:$0xff]
      %v444 = vld [vmem:[%s351 + $0xa0] sm:$0xff]
      %v445 = vld [vmem:[%s351 + $0xa8] sm:$0xff]
      %v446 = vld [vmem:[%s351 + $0xb0] sm:$0xff]
      %v447 = vld [vmem:[%s351 + $0xb8] sm:$0xff]
      %v448 = vld [vmem:[%s351 + $0xc0] sm:$0xff]
      %v449 = vld [vmem:[%s351 + $0xc8] sm:$0xff]
      %v450 = vld [vmem:[%s351 + $0xd0] sm:$0xff]
      %v451 = vld [vmem:[%s351 + $0xd8] sm:$0xff]
      %v452 = vld [vmem:[%s351 + $0xe0] sm:$0xff]
      %v453 = vld [vmem:[%s351 + $0xe8] sm:$0xff]
      %v454 = vld [vmem:[%s351 + $0xf0] sm:$0xff]
      %v455 = vld [vmem:[%s351 + $0xf8] sm:$0xff]
      %v456 = vld [vmem:[#allocation2] sm:$0xff]
      %v457 = vld [vmem:[#allocation2 + $0x8] sm:$0xff]
      %v458 = vld [vmem:[#allocation2 + $0x10] sm:$0xff]
      %v459 = vld [vmem:[#allocation2 + $0x18] sm:$0xff]
      %v460 = vld [vmem:[#allocation2 + $0x20] sm:$0xff]
      %v461 = vld [vmem:[#allocation2 + $0x28] sm:$0xff]
      %v462 = vld [vmem:[#allocation2 + $0x30] sm:$0xff]
      %v463 = vld [vmem:[#allocation2 + $0x38] sm:$0xff]
      %v464 = vld [vmem:[#allocation2 + $0x40] sm:$0xff]
      %v465 = vld [vmem:[#allocation2 + $0x48] sm:$0xff]
      %v466 = vld [vmem:[#allocation2 + $0x50] sm:$0xff]
      %v467 = vld [vmem:[#allocation2 + $0x58] sm:$0xff]
      %v468 = vld [vmem:[#allocation2 + $0x60] sm:$0xff]
      %v469 = vld [vmem:[#allocation2 + $0x68] sm:$0xff]
      %v470 = vld [vmem:[#allocation2 + $0x70] sm:$0xff]
      %v471 = vld [vmem:[#allocation2 + $0x78] sm:$0xff]
      %v472 = vld [vmem:[#allocation2 + $0x80] sm:$0xff]
      %v473 = vld [vmem:[#allocation2 + $0x88] sm:$0xff]
      %v474 = vld [vmem:[#allocation2 + $0x90] sm:$0xff]
      %v475 = vld [vmem:[#allocation2 + $0x98] sm:$0xff]
      %v476 = vld [vmem:[#allocation2 + $0xa0] sm:$0xff]
      %v477 = vld [vmem:[#allocation2 + $0xa8] sm:$0xff]
      %v478 = vld [vmem:[#allocation2 + $0xb0] sm:$0xff]
      %v479 = vld [vmem:[#allocation2 + $0xb8] sm:$0xff]
      %v480 = vld [vmem:[#allocation2 + $0xc0] sm:$0xff]
      %v481 = vld [vmem:[#allocation2 + $0xc8] sm:$0xff]
      %v482 = vld [vmem:[#allocation2 + $0xd0] sm:$0xff]
      %v483 = vld [vmem:[#allocation2 + $0xd8] sm:$0xff]
      %v484 = vld [vmem:[#allocation2 + $0xe0] sm:$0xff]
      %v485 = vld [vmem:[#allocation2 + $0xe8] sm:$0xff]
      %v486 = vld [vmem:[#allocation2 + $0xf0] sm:$0xff]
      %v487 = vld [vmem:[#allocation2 + $0xf8] sm:$0xff]
      %v488 = vpack.c.bf16 %v425, %v424
      %v489 = vpack.c.bf16 %v427, %v426
      %v490 = vpack.c.bf16 %v429, %v428
      %v491 = vpack.c.bf16 %v431, %v430
      %v492 = vpack.c.bf16 %v433, %v432
      %v493 = vpack.c.bf16 %v435, %v434
      %v494 = vpack.c.bf16 %v437, %v436
      %v495 = vpack.c.bf16 %v439, %v438
      %v496 = vpack.c.bf16 %v441, %v440
      %v497 = vpack.c.bf16 %v443, %v442
      %v498 = vpack.c.bf16 %v445, %v444
      %v499 = vpack.c.bf16 %v447, %v446
      %v500 = vpack.c.bf16 %v449, %v448
      %v501 = vpack.c.bf16 %v451, %v450
      %v502 = vpack.c.bf16 %v453, %v452
      %v503 = vpack.c.bf16 %v455, %v454
      %v504 = vld [vmem:[%s360] sm:$0xf]
      %v505 = vld [vmem:[%s360 + $0x4] sm:$0xf]
      %v506 = vld [vmem:[%s360 + $0x8] sm:$0xf]
      %v507 = vld [vmem:[%s360 + $0xc] sm:$0xf]
      %v508 = vld [vmem:[%s360 + $0x10] sm:$0xf]
      %v509 = vld [vmem:[%s360 + $0x14] sm:$0xf]
      %v510 = vld [vmem:[%s360 + $0x18] sm:$0xf]
      %v511 = vld [vmem:[%s360 + $0x1c] sm:$0xf]
      %v512 = vld [vmem:[%s360 + $0x20] sm:$0xf]
      %v513 = vld [vmem:[%s360 + $0x24] sm:$0xf]
      %v514 = vld [vmem:[%s360 + $0x28] sm:$0xf]
      %v515 = vld [vmem:[%s360 + $0x2c] sm:$0xf]
      %v516 = vld [vmem:[%s360 + $0x30] sm:$0xf]
      %v517 = vld [vmem:[%s360 + $0x34] sm:$0xf]
      %v518 = vld [vmem:[%s360 + $0x38] sm:$0xf]
      %v519 = vld [vmem:[%s360 + $0x3c] sm:$0xf]
      %v536 = vunpack.c.l.b16 %v504
      %v537 = vunpack.c.l.b16 %v505
      %v538 = vunpack.c.l.b16 %v506
      %v539 = vunpack.c.l.b16 %v507
      %v540 = vunpack.c.l.b16 %v508
      %v541 = vunpack.c.l.b16 %v509
      %v542 = vunpack.c.l.b16 %v510
      %v543 = vunpack.c.l.b16 %v511
      %v544 = vunpack.c.l.b16 %v512
      %v545 = vunpack.c.l.b16 %v513
      %v546 = vunpack.c.l.b16 %v514
      %v547 = vunpack.c.l.b16 %v515
      %v548 = vunpack.c.l.b16 %v516
      %v549 = vunpack.c.l.b16 %v517
      %v550 = vunpack.c.l.b16 %v518
      %v551 = vunpack.c.l.b16 %v519
      %v552 = vpack.c.b16 %v537, %v536
      %v553 = vpack.c.b16 %v539, %v538
      %v554 = vpack.c.b16 %v541, %v540
      %v555 = vpack.c.b16 %v543, %v542
      %v556 = vpack.c.b16 %v545, %v544
      %v557 = vpack.c.b16 %v547, %v546
      %v558 = vpack.c.b16 %v549, %v548
      %v559 = vpack.c.b16 %v551, %v550
      %568 = vmatprep.subr.bf16.mxu0 0
      %569 = vmatpush1.bf16.msra.mxu0 %v552
      %570 = vmatprep.subr.bf16.mxu0 0
      %571 = vmatpush1.bf16.msra.mxu0 %v553
      %572 = vmatprep.subr.bf16.mxu0 0
      %573 = vmatpush1.bf16.msra.mxu0 %v554
      %574 = vmatprep.subr.bf16.mxu0 0
      %575 = vmatpush1.bf16.msra.mxu0 %v555
      %576 = vmatprep.subr.bf16.mxu0 0
      %577 = vmatpush1.bf16.msra.mxu0 %v556
      %578 = vmatprep.subr.bf16.mxu0 0
      %579 = vmatpush1.bf16.msra.mxu0 %v557
      %580 = vmatprep.subr.bf16.mxu0 0
      %581 = vmatpush1.bf16.msra.mxu0 %v558
      %582 = vmatprep.subr.bf16.mxu0 0
      %583 = vmatpush1.bf16.msra.mxu0 %v559
      %584 = vmatprep.subr.bf16.mxu0 0
      %585 = vmatpush1.bf16.msra.mxu0 0
      %586 = vmatprep.subr.bf16.mxu0 0
      %587 = vmatpush1.bf16.msra.mxu0 0
      %588 = vmatprep.subr.bf16.mxu0 0
      %589 = vmatpush1.bf16.msra.mxu0 0
      %590 = vmatprep.subr.bf16.mxu0 0
      %591 = vmatpush1.bf16.msra.mxu0 0
      %592 = vmatprep.subr.bf16.mxu0 0
      %593 = vmatpush1.bf16.msra.mxu0 0
      %594 = vmatprep.subr.bf16.mxu0 0
      %595 = vmatpush1.bf16.msra.mxu0 0
      %596 = vmatprep.subr.bf16.mxu0 0
      %597 = vmatpush1.bf16.msra.mxu0 0
      %598 = vmatprep.subr.bf16.mxu0 0
      %599 = vmatpush1.bf16.msra.mxu0 0
      %600 = vmatprep.mubr.bf16.mxu0 0
      %601 = vmatmul.mubr.bf16.gmra.mrb[0].mxu0 %v488
      %v602 = vpop.f32.mrb[0].mxu0
      %v603 = vadd.f32 0.0, %v602
      %v604 = vpop.f32.mrb[0].mxu0
      %v605 = vpop.f32.mrb[0].mxu0
      %v606 = vadd.f32 0.0, %v605
      %v607 = vpop.f32.mrb[0].mxu0
      %608 = vmatprep.mubr.bf16.mxu0 0
      %609 = vmatmul.mubr.bf16.gmra.mrb[0].mxu0 %v489
      %v610 = vpop.f32.mrb[0].mxu0
      %v611 = vadd.f32 0.0, %v610
      %v612 = vpop.f32.mrb[0].mxu0
      %v613 = vpop.f32.mrb[0].mxu0
      %v614 = vadd.f32 0.0, %v613
      %v615 = vpop.f32.mrb[0].mxu0
      %616 = vmatprep.mubr.bf16.mxu0 0
      %617 = vmatmul.mubr.bf16.gmra.mrb[0].mxu0 %v490
      %v618 = vpop.f32.mrb[0].mxu0
      %v619 = vadd.f32 0.0, %v618
      %v620 = vpop.f32.mrb[0].mxu0
      %v621 = vpop.f32.mrb[0].mxu0
      %v622 = vadd.f32 0.0, %v621
      %v623 = vpop.f32.mrb[0].mxu0
      %624 = vmatprep.mubr.bf16.mxu0 0
      %625 = vmatmul.mubr.bf16.gmra.mrb[0].mxu0 %v491
      %v626 = vpop.f32.mrb[0].mxu0
      %v627 = vadd.f32 0.0, %v626
      %v628 = vpop.f32.mrb[0].mxu0
      %v629 = vpop.f32.mrb[0].mxu0
      %v630 = vadd.f32 0.0, %v629
      %v631 = vpop.f32.mrb[0].mxu0
      %632 = vmatprep.mubr.bf16.mxu0 0
      %633 = vmatmul.mubr.bf16.gmra.mrb[0].mxu0 %v492
      %v634 = vpop.f32.mrb[0].mxu0
      %v635 = vadd.f32 0.0, %v634
      %v636 = vpop.f32.mrb[0].mxu0
      %v637 = vpop.f32.mrb[0].mxu0
      %v638 = vadd.f32 0.0, %v637
      %v639 = vpop.f32.mrb[0].mxu0
      %640 = vmatprep.mubr.bf16.mxu0 0
      %641 = vmatmul.mubr.bf16.gmra.mrb[0].mxu0 %v493
      %v642 = vpop.f32.mrb[0].mxu0
      %v643 = vadd.f32 0.0, %v642
      %v644 = vpop.f32.mrb[0].mxu0
      %v645 = vpop.f32.mrb[0].mxu0
      %v646 = vadd.f32 0.0, %v645
      %v647 = vpop.f32.mrb[0].mxu0
      %648 = vmatprep.mubr.bf16.mxu0 0
      %649 = vmatmul.mubr.bf16.gmra.mrb[0].mxu0 %v494
      %v650 = vpop.f32.mrb[0].mxu0
      %v651 = vadd.f32 0.0, %v650
      %v652 = vpop.f32.mrb[0].mxu0
      %v653 = vpop.f32.mrb[0].mxu0
      %v654 = vadd.f32 0.0, %v653
      %v655 = vpop.f32.mrb[0].mxu0
      %656 = vmatprep.mubr.bf16.mxu0 0
      %657 = vmatmul.mubr.bf16.gmra.mrb[0].mxu0 %v495
      %v658 = vpop.f32.mrb[0].mxu0
      %v659 = vadd.f32 0.0, %v658
      %v660 = vpop.f32.mrb[0].mxu0
      %v661 = vpop.f32.mrb[0].mxu0
      %v662 = vadd.f32 0.0, %v661
      %v663 = vpop.f32.mrb[0].mxu0
      %664 = vmatprep.mubr.bf16.mxu0 0
      %665 = vmatmul.mubr.bf16.gmra.mrb[0].mxu0 %v496
      %v666 = vpop.f32.mrb[0].mxu0
      %v667 = vadd.f32 0.0, %v666
      %v668 = vpop.f32.mrb[0].mxu0
      %v669 = vpop.f32.mrb[0].mxu0
      %v670 = vadd.f32 0.0, %v669
      %v671 = vpop.f32.mrb[0].mxu0
      %672 = vmatprep.mubr.bf16.mxu0 0
      %673 = vmatmul.mubr.bf16.gmra.mrb[0].mxu0 %v497
      %v674 = vpop.f32.mrb[0].mxu0
      %v675 = vadd.f32 0.0, %v674
      %v676 = vpop.f32.mrb[0].mxu0
      %v677 = vpop.f32.mrb[0].mxu0
      %v678 = vadd.f32 0.0, %v677
      %v679 = vpop.f32.mrb[0].mxu0
      %680 = vmatprep.mubr.bf16.mxu0 0
      %681 = vmatmul.mubr.bf16.gmra.mrb[0].mxu0 %v498
      %v682 = vpop.f32.mrb[0].mxu0
      %v683 = vadd.f32 0.0, %v682
      %v684 = vpop.f32.mrb[0].mxu0
      %v685 = vpop.f32.mrb[0].mxu0
      %v686 = vadd.f32 0.0, %v685
      %v687 = vpop.f32.mrb[0].mxu0
      %688 = vmatprep.mubr.bf16.mxu0 0
      %689 = vmatmul.mubr.bf16.gmra.mrb[0].mxu0 %v499
      %v690 = vpop.f32.mrb[0].mxu0
      %v691 = vadd.f32 0.0, %v690
      %v692 = vpop.f32.mrb[0].mxu0
      %v693 = vpop.f32.mrb[0].mxu0
      %v694 = vadd.f32 0.0, %v693
      %v695 = vpop.f32.mrb[0].mxu0
      %696 = vmatprep.mubr.bf16.mxu0 0
      %697 = vmatmul.mubr.bf16.gmra.mrb[0].mxu0 %v500
      %v698 = vpop.f32.mrb[0].mxu0
      %v699 = vadd.f32 0.0, %v698
      %v700 = vpop.f32.mrb[0].mxu0
      %v701 = vpop.f32.mrb[0].mxu0
      %v702 = vadd.f32 0.0, %v701
      %v703 = vpop.f32.mrb[0].mxu0
      %704 = vmatprep.mubr.bf16.mxu0 0
      %705 = vmatmul.mubr.bf16.gmra.mrb[0].mxu0 %v501
      %v706 = vpop.f32.mrb[0].mxu0
      %v707 = vadd.f32 0.0, %v706
      %v708 = vpop.f32.mrb[0].mxu0
      %v709 = vpop.f32.mrb[0].mxu0
      %v710 = vadd.f32 0.0, %v709
      %v711 = vpop.f32.mrb[0].mxu0
      %712 = vmatprep.mubr.bf16.mxu0 0
      %713 = vmatmul.mubr.bf16.gmra.mrb[0].mxu0 %v502
      %v714 = vpop.f32.mrb[0].mxu0
      %v715 = vadd.f32 0.0, %v714
      %v716 = vpop.f32.mrb[0].mxu0
      %v717 = vpop.f32.mrb[0].mxu0
      %v718 = vadd.f32 0.0, %v717
      %v719 = vpop.f32.mrb[0].mxu0
      %720 = vmatprep.mubr.bf16.mxu0 0
      %721 = vmatmul.mubr.bf16.gmra.mrb[0].mxu0 %v503
      %v722 = vpop.f32.mrb[0].mxu0
      %v723 = vadd.f32 0.0, %v722
      %v724 = vpop.f32.mrb[0].mxu0
      %v725 = vpop.f32.mrb[0].mxu0
      %v726 = vadd.f32 0.0, %v725
      %v727 = vpop.f32.mrb[0].mxu0
      %728 = vdwg.mxu0
      %v729 = vadd.f32 %v456, %v603
      %v730 = vadd.f32 %v457, %v606
      %v731 = vadd.f32 %v458, %v611
      %v732 = vadd.f32 %v459, %v614
      %v733 = vadd.f32 %v460, %v619
      %v734 = vadd.f32 %v461, %v622
      %v735 = vadd.f32 %v462, %v627
      %v736 = vadd.f32 %v463, %v630
      %v737 = vadd.f32 %v464, %v635
      %v738 = vadd.f32 %v465, %v638
      %v739 = vadd.f32 %v466, %v643
      %v740 = vadd.f32 %v467, %v646
      %v741 = vadd.f32 %v468, %v651
      %v742 = vadd.f32 %v469, %v654
      %v743 = vadd.f32 %v470, %v659
      %v744 = vadd.f32 %v471, %v662
      %v745 = vadd.f32 %v472, %v667
      %v746 = vadd.f32 %v473, %v670
      %v747 = vadd.f32 %v474, %v675
      %v748 = vadd.f32 %v475, %v678
      %v749 = vadd.f32 %v476, %v683
      %v750 = vadd.f32 %v477, %v686
      %v751 = vadd.f32 %v478, %v691
      %v752 = vadd.f32 %v479, %v694
      %v753 = vadd.f32 %v480, %v699
      %v754 = vadd.f32 %v481, %v702
      %v755 = vadd.f32 %v482, %v707
      %v756 = vadd.f32 %v483, %v710
      %v757 = vadd.f32 %v484, %v715
      %v758 = vadd.f32 %v485, %v718
      %v759 = vadd.f32 %v486, %v723
      %v760 = vadd.f32 %v487, %v726
      %761 = vst [vmem:[#allocation2] sm:$0xff] %v729
      %762 = vst [vmem:[#allocation2 + $0x8] sm:$0xff] %v730
      %763 = vst [vmem:[#allocation2 + $0x10] sm:$0xff] %v731
      %764 = vst [vmem:[#allocation2 + $0x18] sm:$0xff] %v732
      %765 = vst [vmem:[#allocation2 + $0x20] sm:$0xff] %v733
      %766 = vst [vmem:[#allocation2 + $0x28] sm:$0xff] %v734
      %767 = vst [vmem:[#allocation2 + $0x30] sm:$0xff] %v735
      %768 = vst [vmem:[#allocation2 + $0x38] sm:$0xff] %v736
      %769 = vst [vmem:[#allocation2 + $0x40] sm:$0xff] %v737
      %770 = vst [vmem:[#allocation2 + $0x48] sm:$0xff] %v738
      %771 = vst [vmem:[#allocation2 + $0x50] sm:$0xff] %v739
      %772 = vst [vmem:[#allocation2 + $0x58] sm:$0xff] %v740
      %773 = vst [vmem:[#allocation2 + $0x60] sm:$0xff] %v741
      %774 = vst [vmem:[#allocation2 + $0x68] sm:$0xff] %v742
      %775 = vst [vmem:[#allocation2 + $0x70] sm:$0xff] %v743
      %776 = vst [vmem:[#allocation2 + $0x78] sm:$0xff] %v744
      %777 = vst [vmem:[#allocation2 + $0x80] sm:$0xff] %v745
      %778 = vst [vmem:[#allocation2 + $0x88] sm:$0xff] %v746
      %779 = vst [vmem:[#allocation2 + $0x90] sm:$0xff] %v747
      %780 = vst [vmem:[#allocation2 + $0x98] sm:$0xff] %v748
      %781 = vst [vmem:[#allocation2 + $0xa0] sm:$0xff] %v749
      %782 = vst [vmem:[#allocation2 + $0xa8] sm:$0xff] %v750
      %783 = vst [vmem:[#allocation2 + $0xb0] sm:$0xff] %v751
      %784 = vst [vmem:[#allocation2 + $0xb8] sm:$0xff] %v752
      %785 = vst [vmem:[#allocation2 + $0xc0] sm:$0xff] %v753
      %786 = vst [vmem:[#allocation2 + $0xc8] sm:$0xff] %v754
      %787 = vst [vmem:[#allocation2 + $0xd0] sm:$0xff] %v755
      %788 = vst [vmem:[#allocation2 + $0xd8] sm:$0xff] %v756
      %789 = vst [vmem:[#allocation2 + $0xe0] sm:$0xff] %v757
      %790 = vst [vmem:[#allocation2 + $0xe8] sm:$0xff] %v758
      %791 = vst [vmem:[#allocation2 + $0xf0] sm:$0xff] %v759
      %792 = vst [vmem:[#allocation2 + $0xf8] sm:$0xff] %v760
      // Predicated region
      $region45: #{bottleneck_forward.5} parent=39 // pred_check
        %p793 = pneg %p388
      $region46: #{bottleneck_forward.5} parent=39 // pred_check_branch
        %795 = sbr.rel (%p793) target = $region48
      $region47: #{bottleneck_forward.5} parent=39 // pred_region
        %v796 = vld [vmem:[#allocation2] sm:$0xff]
        %v797 = vld [vmem:[#allocation2 + $0x8] sm:$0xff]
        %v798 = vld [vmem:[#allocation2 + $0x10] sm:$0xff]
        %v799 = vld [vmem:[#allocation2 + $0x18] sm:$0xff]
        %v800 = vld [vmem:[#allocation2 + $0x20] sm:$0xff]
        %v801 = vld [vmem:[#allocation2 + $0x28] sm:$0xff]
        %v802 = vld [vmem:[#allocation2 + $0x30] sm:$0xff]
        %v803 = vld [vmem:[#allocation2 + $0x38] sm:$0xff]
        %v804 = vld [vmem:[#allocation2 + $0x40] sm:$0xff]
        %v805 = vld [vmem:[#allocation2 + $0x48] sm:$0xff]
        %v806 = vld [vmem:[#allocation2 + $0x50] sm:$0xff]
        %v807 = vld [vmem:[#allocation2 + $0x58] sm:$0xff]
        %v808 = vld [vmem:[#allocation2 + $0x60] sm:$0xff]
        %v809 = vld [vmem:[#allocation2 + $0x68] sm:$0xff]
        %v810 = vld [vmem:[#allocation2 + $0x70] sm:$0xff]
        %v811 = vld [vmem:[#allocation2 + $0x78] sm:$0xff]
        %v812 = vld [vmem:[#allocation2 + $0x80] sm:$0xff]
        %v813 = vld [vmem:[#allocation2 + $0x88] sm:$0xff]
        %v814 = vld [vmem:[#allocation2 + $0x90] sm:$0xff]
        %v815 = vld [vmem:[#allocation2 + $0x98] sm:$0xff]
        %v816 = vld [vmem:[#allocation2 + $0xa0] sm:$0xff]
        %v817 = vld [vmem:[#allocation2 + $0xa8] sm:$0xff]
        %v818 = vld [vmem:[#allocation2 + $0xb0] sm:$0xff]
        %v819 = vld [vmem:[#allocation2 + $0xb8] sm:$0xff]
        %v820 = vld [vmem:[#allocation2 + $0xc0] sm:$0xff]
        %v821 = vld [vmem:[#allocation2 + $0xc8] sm:$0xff]
        %v822 = vld [vmem:[#allocation2 + $0xd0] sm:$0xff]
        %v823 = vld [vmem:[#allocation2 + $0xd8] sm:$0xff]
        %v824 = vld [vmem:[#allocation2 + $0xe0] sm:$0xff]
        %v825 = vld [vmem:[#allocation2 + $0xe8] sm:$0xff]
        %v826 = vld [vmem:[#allocation2 + $0xf0] sm:$0xff]
        %v827 = vld [vmem:[#allocation2 + $0xf8] sm:$0xff]
        %v828 = vld [vmem:[%s364] sm:$0x1]
        %v830 = vlaneseq
        %v831 = vshrl.u32 %v830, 7
        %v832 = vsub.s32 0, %v831
        %v833 = vrot.slane %v828, %v832
        %v835 = vadd.f32 %v796, %v833
        %v836 = vadd.f32 %v797, %v833
        %v837 = vadd.f32 %v798, %v833
        %v838 = vadd.f32 %v799, %v833
        %v839 = vadd.f32 %v800, %v833
        %v840 = vadd.f32 %v801, %v833
        %v841 = vadd.f32 %v802, %v833
        %v842 = vadd.f32 %v803, %v833
        %v843 = vadd.f32 %v804, %v833
        %v844 = vadd.f32 %v805, %v833
        %v845 = vadd.f32 %v806, %v833
        %v846 = vadd.f32 %v807, %v833
        %v847 = vadd.f32 %v808, %v833
        %v848 = vadd.f32 %v809, %v833
        %v849 = vadd.f32 %v810, %v833
        %v850 = vadd.f32 %v811, %v833
        %v851 = vadd.f32 %v812, %v833
        %v852 = vadd.f32 %v813, %v833
        %v853 = vadd.f32 %v814, %v833
        %v854 = vadd.f32 %v815, %v833
        %v855 = vadd.f32 %v816, %v833
        %v856 = vadd.f32 %v817, %v833
        %v857 = vadd.f32 %v818, %v833
        %v858 = vadd.f32 %v819, %v833
        %v859 = vadd.f32 %v820, %v833
        %v860 = vadd.f32 %v821, %v833
        %v861 = vadd.f32 %v822, %v833
        %v862 = vadd.f32 %v823, %v833
        %v863 = vadd.f32 %v824, %v833
        %v864 = vadd.f32 %v825, %v833
        %v865 = vadd.f32 %v826, %v833
        %v866 = vadd.f32 %v827, %v833
        %867 = vst [vmem:[%s378] sm:$0xff] %v835
        %868 = vst [vmem:[%s378 + $0x8] sm:$0xff] %v836
        %869 = vst [vmem:[%s378 + $0x10] sm:$0xff] %v837
        %870 = vst [vmem:[%s378 + $0x18] sm:$0xff] %v838
        %871 = vst [vmem:[%s378 + $0x20] sm:$0xff] %v839
        %872 = vst [vmem:[%s378 + $0x28] sm:$0xff] %v840
        %873 = vst [vmem:[%s378 + $0x30] sm:$0xff] %v841
        %874 = vst [vmem:[%s378 + $0x38] sm:$0xff] %v842
        %875 = vst [vmem:[%s378 + $0x40] sm:$0xff] %v843
        %876 = vst [vmem:[%s378 + $0x48] sm:$0xff] %v844
        %877 = vst [vmem:[%s378 + $0x50] sm:$0xff] %v845
        %878 = vst [vmem:[%s378 + $0x58] sm:$0xff] %v846
        %879 = vst [vmem:[%s378 + $0x60] sm:$0xff] %v847
        %880 = vst [vmem:[%s378 + $0x68] sm:$0xff] %v848
        %881 = vst [vmem:[%s378 + $0x70] sm:$0xff] %v849
        %882 = vst [vmem:[%s378 + $0x78] sm:$0xff] %v850
        %883 = vst [vmem:[%s378 + $0x80] sm:$0xff] %v851
        %884 = vst [vmem:[%s378 + $0x88] sm:$0xff] %v852
        %885 = vst [vmem:[%s378 + $0x90] sm:$0xff] %v853
        %886 = vst [vmem:[%s378 + $0x98] sm:$0xff] %v854
        %887 = vst [vmem:[%s378 + $0xa0] sm:$0xff] %v855
        %888 = vst [vmem:[%s378 + $0xa8] sm:$0xff] %v856
        %889 = vst [vmem:[%s378 + $0xb0] sm:$0xff] %v857
        %890 = vst [vmem:[%s378 + $0xb8] sm:$0xff] %v858
        %891 = vst [vmem:[%s378 + $0xc0] sm:$0xff] %v859
        %892 = vst [vmem:[%s378 + $0xc8] sm:$0xff] %v860
        %893 = vst [vmem:[%s378 + $0xd0] sm:$0xff] %v861
        %894 = vst [vmem:[%s378 + $0xd8] sm:$0xff] %v862
        %895 = vst [vmem:[%s378 + $0xe0] sm:$0xff] %v863
        %896 = vst [vmem:[%s378 + $0xe8] sm:$0xff] %v864
        %897 = vst [vmem:[%s378 + $0xf0] sm:$0xff] %v865
        %898 = vst [vmem:[%s378 + $0xf8] sm:$0xff] %v866
        %v899 = vadd.f32 %v835, %v836
        %v900 = vadd.f32 %v899, %v837
        %v901 = vadd.f32 %v900, %v838
        %v902 = vadd.f32 %v901, %v839
        %v903 = vadd.f32 %v902, %v840
        %v904 = vadd.f32 %v903, %v841
        %v905 = vadd.f32 %v904, %v842
        %v906 = vadd.f32 %v905, %v843
        %v907 = vadd.f32 %v906, %v844
        %v908 = vadd.f32 %v907, %v845
        %v909 = vadd.f32 %v908, %v846
        %v910 = vadd.f32 %v909, %v847
        %v911 = vadd.f32 %v910, %v848
        %v912 = vadd.f32 %v911, %v849
        %v913 = vadd.f32 %v912, %v850
        %v914 = vadd.f32 %v913, %v851
        %v915 = vadd.f32 %v914, %v852
        %v916 = vadd.f32 %v915, %v853
        %v917 = vadd.f32 %v916, %v854
        %v918 = vadd.f32 %v917, %v855
        %v919 = vadd.f32 %v918, %v856
        %v920 = vadd.f32 %v919, %v857
        %v921 = vadd.f32 %v920, %v858
        %v922 = vadd.f32 %v921, %v859
        %v923 = vadd.f32 %v922, %v860
        %v924 = vadd.f32 %v923, %v861
        %v925 = vadd.f32 %v924, %v862
        %v926 = vadd.f32 %v925, %v863
        %v927 = vadd.f32 %v926, %v864
        %v928 = vadd.f32 %v927, %v865
        %v929 = vadd.f32 %v928, %v866
        %v930 = vrot.slane %v929, 4
        %v931 = vadd.f32 %v929, %v930
        %v932 = vrot.slane %v931, 2
        %v933 = vadd.f32 %v931, %v932
        %v934 = vrot.slane %v933, 1
        %v935 = vadd.f32 %v933, %v934
        %v936 = vmul.f32 %v835, %v835
        %v937 = vmul.f32 %v836, %v836
        %v938 = vmul.f32 %v837, %v837
        %v939 = vmul.f32 %v838, %v838
        %v940 = vmul.f32 %v839, %v839
        %v941 = vmul.f32 %v840, %v840
        %v942 = vmul.f32 %v841, %v841
        %v943 = vmul.f32 %v842, %v842
        %v944 = vmul.f32 %v843, %v843
        %v945 = vmul.f32 %v844, %v844
        %v946 = vmul.f32 %v845, %v845
        %v947 = vmul.f32 %v846, %v846
        %v948 = vmul.f32 %v847, %v847
        %v949 = vmul.f32 %v848, %v848
        %v950 = vmul.f32 %v849, %v849
        %v951 = vmul.f32 %v850, %v850
        %v952 = vmul.f32 %v851, %v851
        %v953 = vmul.f32 %v852, %v852
        %v954 = vmul.f32 %v853, %v853
        %v955 = vmul.f32 %v854, %v854
        %v956 = vmul.f32 %v855, %v855
        %v957 = vmul.f32 %v856, %v856
        %v958 = vmul.f32 %v857, %v857
        %v959 = vmul.f32 %v858, %v858
        %v960 = vmul.f32 %v859, %v859
        %v961 = vmul.f32 %v860, %v860
        %v962 = vmul.f32 %v861, %v861
        %v963 = vmul.f32 %v862, %v862
        %v964 = vmul.f32 %v863, %v863
        %v965 = vmul.f32 %v864, %v864
        %v966 = vmul.f32 %v865, %v865
        %v967 = vmul.f32 %v866, %v866
        %v968 = vadd.f32 %v936, %v937
        %v969 = vadd.f32 %v968, %v938
        %v970 = vadd.f32 %v969, %v939
        %v971 = vadd.f32 %v970, %v940
        %v972 = vadd.f32 %v971, %v941
        %v973 = vadd.f32 %v972, %v942
        %v974 = vadd.f32 %v973, %v943
        %v975 = vadd.f32 %v974, %v944
        %v976 = vadd.f32 %v975, %v945
        %v977 = vadd.f32 %v976, %v946
        %v978 = vadd.f32 %v977, %v947
        %v979 = vadd.f32 %v978, %v948
        %v980 = vadd.f32 %v979, %v949
        %v981 = vadd.f32 %v980, %v950
        %v982 = vadd.f32 %v981, %v951
        %v983 = vadd.f32 %v982, %v952
        %v984 = vadd.f32 %v983, %v953
        %v985 = vadd.f32 %v984, %v954
        %v986 = vadd.f32 %v985, %v955
        %v987 = vadd.f32 %v986, %v956
        %v988 = vadd.f32 %v987, %v957
        %v989 = vadd.f32 %v988, %v958
        %v990 = vadd.f32 %v989, %v959
        %v991 = vadd.f32 %v990, %v960
        %v992 = vadd.f32 %v991, %v961
        %v993 = vadd.f32 %v992, %v962
        %v994 = vadd.f32 %v993, %v963
        %v995 = vadd.f32 %v994, %v964
        %v996 = vadd.f32 %v995, %v965
        %v997 = vadd.f32 %v996, %v966
        %v998 = vadd.f32 %v997, %v967
        %v999 = vrot.slane %v998, 4
        %v1000 = vadd.f32 %v998, %v999
        %v1001 = vrot.slane %v1000, 2
        %v1002 = vadd.f32 %v1000, %v1001
        %v1003 = vrot.slane %v1002, 1
        %v1004 = vadd.f32 %v1002, %v1003
        %vm1005 = vcmask 1040384
        %v1006 = vsel %vm1005, %v935, %v1004
        %vm1007 = vcmask 1041408
        %v1008 = vsel %vm1007, %v1006, 0.0
        %1009 = vst [vmem:[%s386] sm:$0xff] %v1008
      $region48: #{bottleneck_forward.5} parent=39 // pred_fallthru
        _
      %s1010 = smul.u32 32, %s23
      %p1011 = scmp.lt.s32.totalorder %s1010, 63
      %s1012 = scalar_select %p1011, %s1010, 63
      %p1013 = scmp.lt.s32.totalorder %s24, 0
      %s1014 = scalar_select %p1013, %s24, 0
      %s1015 = sadd.s32 %s1014, %s1012
      %s1016 = smul.addr %s1015, 8
      %s1017 = scalar_lea.vmem %s5, %s1016
      %p1018 = scmp.lt.s32.totalorder %s23, 1
      %s1019 = scalar_select %p1018, %s23, 1
      %p1020 = scmp.lt.s32.totalorder %s24, 0
      %s1021 = scalar_select %p1020, %s24, 0
      %s1022 = sadd.s32 %s1021, %s1019
      %s1023 = smul.addr %s1022, 8
      %s1024 = scalar_lea.vmem %s6, %s1023
      // Predicated region
      $region49: #{bottleneck_forward.5} parent=39 // pred_check
        %p1025 = pneg %p191
      $region50: #{bottleneck_forward.5} parent=39 // pred_check_branch
        %1027 = sbr.rel (%p1025) target = $region52
      $region51: #{bottleneck_forward.5} parent=39 // pred_region
        %s1028 = smul.u32 32, %s23
      $region52: #{bottleneck_forward.5} parent=39 // pred_fallthru
        _
      // Predicated region
      $region53: #{bottleneck_forward.5} parent=39 // pred_check
        %p1029 = pneg %p219
      $region54: #{bottleneck_forward.5} parent=39 // pred_check_branch
        %1031 = sbr.rel (%p1029) target = $region56
      $region55: #{bottleneck_forward.5} parent=39 // pred_region
        _
      $region56: #{bottleneck_forward.5} parent=39 // pred_fallthru
        _
    $region40: #{bottleneck_forward.5} parent=5 // pred_fallthru
      _
    %p1032 = scmp.le.s32.totalorder 2, %s13
    // Predicated region
    $region57: #{bottleneck_forward.5} parent=5 // pred_check
      %p1033 = pneg %p1032
    $region58: #{bottleneck_forward.5} parent=5 // pred_check_branch
      %1035 = sbr.rel (%p1033) target = $region60
    $region59: #{bottleneck_forward.5} parent=5 // pred_region
      %s1036 = ssub.s32 %s13, 2
      // Predicated region
      $region61: #{bottleneck_forward.5} parent=59 // pred_check
        %p1037 = pneg %p197
      $region62: #{bottleneck_forward.5} parent=59 // pred_check_branch
        %1039 = sbr.rel (%p1037) target = $region64
      $region63: #{bottleneck_forward.5} parent=59 // pred_region
        %s1040 = smul.u32 32, %s26
        %p1041 = scmp.lt.s32.totalorder %s1040, 63
        %s1042 = scalar_select %p1041, %s1040, 63
        %p1043 = scmp.lt.s32.totalorder %s27, 0
        %s1044 = scalar_select %p1043, %s27, 0
        %s1045 = sadd.s32 %s1044, %s1042
        %s1046 = smul.addr %s1045, 8
        %s1047 = scalar_lea.vmem %s5, %s1046
      $region64: #{bottleneck_forward.5} parent=59 // pred_fallthru
        _
      // Predicated region
      $region65: #{bottleneck_forward.5} parent=59 // pred_check
        %p1048 = pneg %p225
      $region66: #{bottleneck_forward.5} parent=59 // pred_check_branch
        %1050 = sbr.rel (%p1048) target = $region68
      $region67: #{bottleneck_forward.5} parent=59 // pred_region
        %p1051 = scmp.lt.s32.totalorder %s26, 1
        %s1052 = scalar_select %p1051, %s26, 1
        %p1053 = scmp.lt.s32.totalorder %s27, 0
        %s1054 = scalar_select %p1053, %s27, 0
        %s1055 = sadd.s32 %s1054, %s1052
        %s1056 = smul.addr %s1055, 8
        %s1057 = scalar_lea.vmem %s6, %s1056
      $region68: #{bottleneck_forward.5} parent=59 // pred_fallthru
        _
    $region60: #{bottleneck_forward.5} parent=5 // pred_fallthru
      _
  $region6: #{bottleneck_forward.5} parent=0 // loop_footer
    %s17 = sadd.s32 1, %s13
  $region7: #{bottleneck_forward.5} parent=0 // loop_footer_branch
    %12 = sbr.rel target = $region3
  $region8: #{bottleneck_forward.5} parent=0 // loop_exit
    _

// kernel: bottleneck_forward.7
$region0: #{bottleneck_forward.7}
  #allocation0 [shape = 'u32[]', space=smem, size = 0x4, offset = 0x4, fixed_abs, tag = 'smem constant byte address 0x4 - core index']
  #allocation1 [shape = 'u32[144,128]{1,0:T(1,128)}', space=vmem, size = 0x12000, scoped, tag = 'internal scratch']
  #allocation2 [shape = 'f32[256,128]{1,0:T(8,128)}', space=vmem, size = 0x20000, scoped, tag = 'scratch operand']
  %s0 = inlined_call_operand.vmem [shape: f32[512,128], index: 0, kind: input, shape index: {}]
  %s1 = inlined_call_operand.vmem [shape: bf16[128,128], index: 1, kind: input, shape index: {}]
  %s2 = inlined_call_operand.vmem [shape: f32[1,128], index: 2, kind: input, shape index: {}]
  %s3 = inlined_call_operand.vmem [shape: f32[1,128], index: 3, kind: input, shape index: {}]
  %s4 = inlined_call_operand.vmem [shape: f32[1,128], index: 4, kind: input, shape index: {}]
  %s5 = inlined_call_operand.vmem [shape: f32[512,128], index: 5, kind: output, shape index: {0}]
  %s6 = inlined_call_operand.vmem [shape: f32[2,8,128], index: 6, kind: output, shape index: {1}]
  %7 = xla_tuple %s5, %s6
  %s8 = sld [smem:[#allocation0]]
  $region69: #{bottleneck_forward.7} parent=0
    _
  %s10 = ssub.s32 1, %s8
  %s11 = scalar_select 0, %s10, %s8
  loop: start=0, step=1, limit=4
  $region2: #{bottleneck_forward.7} parent=0 // loop_pre_header
    _
  $region3: #{bottleneck_forward.7} parent=0 // loop_header
    %s13 = sphi 0, %s17
    %p14 = scmp.ge.s32.totalorder %s13, 4
    %s20 = sphi 0, %s39
    %s21 = sphi 0, %s35
    %s22 = sphi 0, %s31
    %s23 = sphi 0, %s20
    %s24 = sphi 0, %s21
    %s25 = sphi 0, %s22
    %s26 = sphi 0, %s23
    %s27 = sphi 0, %s24
    %s28 = sphi 0, %s25
    %s44 = sphi 0, %s46
    %s47 = sphi 0, %s44
    %s48 = sphi 0, %s47
    %s64 = sphi 0, %s48
    %s72 = sphi 0, %s74
    %s75 = sphi 0, %s72
    %s76 = sphi 0, %s75
    %s92 = sphi 0, %s76
    %s98 = sphi 0, %s100
    %s101 = sphi 0, %s98
    %s102 = sphi 0, %s101
    %s118 = sphi 0, %s102
    %s124 = sphi 0, %s126
    %s127 = sphi 0, %s124
    %s128 = sphi 0, %s127
    %s144 = sphi 0, %s128
    %s150 = sphi 0, %s152
    %s153 = sphi 0, %s150
    %s154 = sphi 0, %s153
    %s170 = sphi 0, %s154
    %s178 = sphi 0, %s180
    %s181 = sphi 0, %s178
    %s182 = sphi 0, %s181
    %s198 = sphi 0, %s182
    %s206 = sphi 0, %s208
    %s209 = sphi 0, %s206
    %s210 = sphi 0, %s209
    %s226 = sphi 0, %s210
  $region4: #{bottleneck_forward.7} parent=0 // loop_header_branch
    %16 = sbr.rel (%p14) target = $region8
  $region5: #{bottleneck_forward.7} parent=0 // loop_body
    %s18 = ssub.s32 %s13, 1
    %s19 = ssub.s32 %s13, 2
    %s29 = sadd.s32 1, %s22
    %p30 = scmp.ge.s32.totalorder %s29, 1
    %s31 = scalar_select %p30, 0, %s29
    %s32 = sadd.s32 1, %s21
    %s33 = scalar_select %p30, %s32, %s21
    %p34 = scmp.ge.s32.totalorder %s33, 1
    %s35 = scalar_select %p34, 0, %s33
    %s36 = sadd.s32 1, %s20
    %s37 = scalar_select %p34, %s36, %s20
    %p38 = scmp.ge.s32.totalorder %s37, 2
    %s39 = scalar_select %p38, 0, %s37
    %s40 = ssub.s32 %s20, %s39
    %s41 = ssub.s32 %s22, %s31
    %s42 = sor.u32 %s40, %s41
    %p43 = scmp.eq.s32.totalorder %s42, 0
    %s45 = sadd.s32 %s44, 1
    %s46 = scalar_select %p43, %s44, %s45
    %p49 = pneg %p43
    %p50 = scmp.eq.s32.totalorder %s13, 1
    %p51 = por %p49, %p50
    %p52 = scmp.ne.s32.totalorder %s44, %s47
    %p53 = scmp.eq.s32.totalorder %s13, 0
    %p54 = por %p52, %p53
    %p55 = scmp.ne.s32.totalorder %s44, %s47
    %p56 = scmp.eq.s32.totalorder %s18, 1
    %p57 = por %p55, %p56
    %p58 = scmp.ne.s32.totalorder %s47, %s48
    %p59 = scmp.eq.s32.totalorder %s18, 0
    %p60 = por %p58, %p59
    %p61 = scmp.ne.s32.totalorder %s47, %s48
    %p62 = scmp.eq.s32.totalorder %s19, 1
    %p63 = por %p61, %p62
    %p65 = scmp.ne.s32.totalorder %s48, %s64
    %p66 = scmp.eq.s32.totalorder %s19, 0
    %p67 = por %p65, %p66
    %s68 = ssub.s32 %s22, %s31
    %s69 = ssub.s32 %s21, %s35
    %s70 = sor.u32 %s68, %s69
    %p71 = scmp.eq.s32.totalorder %s70, 0
    %s73 = sadd.s32 %s72, 1
    %s74 = scalar_select %p71, %s72, %s73
    %p77 = pneg %p71
    %p78 = scmp.eq.s32.totalorder %s13, 1
    %p79 = por %p77, %p78
    %p80 = scmp.ne.s32.totalorder %s72, %s75
    %p81 = scmp.eq.s32.totalorder %s13, 0
    %p82 = por %p80, %p81
    %p83 = scmp.ne.s32.totalorder %s72, %s75
    %p84 = scmp.eq.s32.totalorder %s18, 1
    %p85 = por %p83, %p84
    %p86 = scmp.ne.s32.totalorder %s75, %s76
    %p87 = scmp.eq.s32.totalorder %s18, 0
    %p88 = por %p86, %p87
    %p89 = scmp.ne.s32.totalorder %s75, %s76
    %p90 = scmp.eq.s32.totalorder %s19, 1
    %p91 = por %p89, %p90
    %p93 = scmp.ne.s32.totalorder %s76, %s92
    %p94 = scmp.eq.s32.totalorder %s19, 0
    %p95 = por %p93, %p94
    %s96 = ssub.s32 %s21, %s35
    %p97 = scmp.eq.s32.totalorder %s96, 0
    %s99 = sadd.s32 %s98, 1
    %s100 = scalar_select %p97, %s98, %s99
    %p103 = pneg %p97
    %p104 = scmp.eq.s32.totalorder %s13, 1
    %p105 = por %p103, %p104
    %p106 = scmp.ne.s32.totalorder %s98, %s101
    %p107 = scmp.eq.s32.totalorder %s13, 0
    %p108 = por %p106, %p107
    %p109 = scmp.ne.s32.totalorder %s98, %s101
    %p110 = scmp.eq.s32.totalorder %s18, 1
    %p111 = por %p109, %p110
    %p112 = scmp.ne.s32.totalorder %s101, %s102
    %p113 = scmp.eq.s32.totalorder %s18, 0
    %p114 = por %p112, %p113
    %p115 = scmp.ne.s32.totalorder %s101, %s102
    %p116 = scmp.eq.s32.totalorder %s19, 1
    %p117 = por %p115, %p116
    %p119 = scmp.ne.s32.totalorder %s102, %s118
    %p120 = scmp.eq.s32.totalorder %s19, 0
    %p121 = por %p119, %p120
    %s122 = ssub.s32 %s22, %s31
    %p123 = scmp.eq.s32.totalorder %s122, 0
    %s125 = sadd.s32 %s124, 1
    %s126 = scalar_select %p123, %s124, %s125
    %p129 = pneg %p123
    %p130 = scmp.eq.s32.totalorder %s13, 1
    %p131 = por %p129, %p130
    %p132 = scmp.ne.s32.totalorder %s124, %s127
    %p133 = scmp.eq.s32.totalorder %s13, 0
    %p134 = por %p132, %p133
    %p135 = scmp.ne.s32.totalorder %s124, %s127
    %p136 = scmp.eq.s32.totalorder %s18, 1
    %p137 = por %p135, %p136
    %p138 = scmp.ne.s32.totalorder %s127, %s128
    %p139 = scmp.eq.s32.totalorder %s18, 0
    %p140 = por %p138, %p139
    %p141 = scmp.ne.s32.totalorder %s127, %s128
    %p142 = scmp.eq.s32.totalorder %s19, 1
    %p143 = por %p141, %p142
    %p145 = scmp.ne.s32.totalorder %s128, %s144
    %p146 = scmp.eq.s32.totalorder %s19, 0
    %p147 = por %p145, %p146
    %s148 = ssub.s32 %s22, %s31
    %p149 = scmp.eq.s32.totalorder %s148, 0
    %s151 = sadd.s32 %s150, 1
    %s152 = scalar_select %p149, %s150, %s151
    %p155 = pneg %p149
    %p156 = scmp.eq.s32.totalorder %s13, 1
    %p157 = por %p155, %p156
    %p158 = scmp.ne.s32.totalorder %s150, %s153
    %p159 = scmp.eq.s32.totalorder %s13, 0
    %p160 = por %p158, %p159
    %p161 = scmp.ne.s32.totalorder %s150, %s153
    %p162 = scmp.eq.s32.totalorder %s18, 1
    %p163 = por %p161, %p162
    %p164 = scmp.ne.s32.totalorder %s153, %s154
    %p165 = scmp.eq.s32.totalorder %s18, 0
    %p166 = por %p164, %p165
    %p167 = scmp.ne.s32.totalorder %s153, %s154
    %p168 = scmp.eq.s32.totalorder %s19, 1
    %p169 = por %p167, %p168
    %p171 = scmp.ne.s32.totalorder %s154, %s170
    %p172 = scmp.eq.s32.totalorder %s19, 0
    %p173 = por %p171, %p172
    %s174 = ssub.s32 %s20, %s39
    %s175 = ssub.s32 %s21, %s35
    %s176 = sor.u32 %s174, %s175
    %p177 = scmp.eq.s32.totalorder %s176, 0
    %s179 = sadd.s32 %s178, 1
    %s180 = scalar_select %p177, %s178, %s179
    %p183 = pneg %p177
    %p184 = scmp.eq.s32.totalorder %s13, 1
    %p185 = por %p183, %p184
    %p186 = scmp.ne.s32.totalorder %s178, %s181
    %p187 = scmp.eq.s32.totalorder %s13, 0
    %p188 = por %p186, %p187
    %p189 = scmp.ne.s32.totalorder %s178, %s181
    %p190 = scmp.eq.s32.totalorder %s18, 1
    %p191 = por %p189, %p190
    %p192 = scmp.ne.s32.totalorder %s181, %s182
    %p193 = scmp.eq.s32.totalorder %s18, 0
    %p194 = por %p192, %p193
    %p195 = scmp.ne.s32.totalorder %s181, %s182
    %p196 = scmp.eq.s32.totalorder %s19, 1
    %p197 = por %p195, %p196
    %p199 = scmp.ne.s32.totalorder %s182, %s198
    %p200 = scmp.eq.s32.totalorder %s19, 0
    %p201 = por %p199, %p200
    %s202 = ssub.s32 %s20, %s39
    %s203 = ssub.s32 %s21, %s35
    %s204 = sor.u32 %s202, %s203
    %p205 = scmp.eq.s32.totalorder %s204, 0
    %s207 = sadd.s32 %s206, 1
    %s208 = scalar_select %p205, %s206, %s207
    %p211 = pneg %p205
    %p212 = scmp.eq.s32.totalorder %s13, 1
    %p213 = por %p211, %p212
    %p214 = scmp.ne.s32.totalorder %s206, %s209
    %p215 = scmp.eq.s32.totalorder %s13, 0
    %p216 = por %p214, %p215
    %p217 = scmp.ne.s32.totalorder %s206, %s209
    %p218 = scmp.eq.s32.totalorder %s18, 1
    %p219 = por %p217, %p218
    %p220 = scmp.ne.s32.totalorder %s209, %s210
    %p221 = scmp.eq.s32.totalorder %s18, 0
    %p222 = por %p220, %p221
    %p223 = scmp.ne.s32.totalorder %s209, %s210
    %p224 = scmp.eq.s32.totalorder %s19, 1
    %p225 = por %p223, %p224
    %p227 = scmp.ne.s32.totalorder %s210, %s226
    %p228 = scmp.eq.s32.totalorder %s19, 0
    %p229 = por %p227, %p228
    %p230 = scmp.le.s32.totalorder 1, %s13
    %p231 = scmp.lt.s32.totalorder %s13, 3
    %p232 = pnand %p230, %p231
    %p233 = pneg %p232
    // Predicated region
    $region9: #{bottleneck_forward.7} parent=5 // pred_check
      _
    $region10: #{bottleneck_forward.7} parent=5 // pred_check_branch
      %235 = sbr.rel (%p232) target = $region12
    $region11: #{bottleneck_forward.7} parent=5 // pred_region
      %s236 = ssub.s32 %s13, 1
      // Predicated region
      $region13: #{bottleneck_forward.7} parent=11 // pred_check
        %p237 = pneg %p88
      $region14: #{bottleneck_forward.7} parent=11 // pred_check_branch
        %239 = sbr.rel (%p237) target = $region16
      $region15: #{bottleneck_forward.7} parent=11 // pred_region
        %s240 = smul.u32 16, %s25
        %p241 = scmp.lt.s32.totalorder %s240, 15
        %s242 = scalar_select %p241, %s240, 15
        %p243 = scmp.lt.s32.totalorder %s24, 0
        %s244 = scalar_select %p243, %s24, 0
        %s245 = sadd.s32 %s244, %s242
        %s246 = smul.addr %s245, 4
        %s247 = scalar_lea.vmem %s1, %s246
        %s248 = smul.u32 16, %s25
      $region16: #{bottleneck_forward.7} parent=11 // pred_fallthru
        _
      // Predicated region
      $region17: #{bottleneck_forward.7} parent=11 // pred_check
        %p249 = pneg %p114
      $region18: #{bottleneck_forward.7} parent=11 // pred_check_branch
        %251 = sbr.rel (%p249) target = $region20
      $region19: #{bottleneck_forward.7} parent=11 // pred_region
        %p252 = scmp.lt.s32.totalorder %s24, 0
        %s253 = scalar_select %p252, %s24, 0
        %s254 = scalar_lea.vmem %s2, %s253
      $region20: #{bottleneck_forward.7} parent=11 // pred_fallthru
        _
      // Predicated region
      $region21: #{bottleneck_forward.7} parent=11 // pred_check
        %p255 = pneg %p140
      $region22: #{bottleneck_forward.7} parent=11 // pred_check_branch
        %257 = sbr.rel (%p255) target = $region24
      $region23: #{bottleneck_forward.7} parent=11 // pred_region
        %p258 = scmp.lt.s32.totalorder %s25, 0
        %s259 = scalar_select %p258, %s25, 0
        %s260 = scalar_lea.vmem %s3, %s259
      $region24: #{bottleneck_forward.7} parent=11 // pred_fallthru
        _
      // Predicated region
      $region25: #{bottleneck_forward.7} parent=11 // pred_check
        %p261 = pneg %p166
      $region26: #{bottleneck_forward.7} parent=11 // pred_check_branch
        %263 = sbr.rel (%p261) target = $region28
      $region27: #{bottleneck_forward.7} parent=11 // pred_region
        %p264 = scmp.lt.s32.totalorder %s25, 0
        %s265 = scalar_select %p264, %s25, 0
        %s266 = scalar_lea.vmem %s4, %s265
      $region28: #{bottleneck_forward.7} parent=11 // pred_fallthru
        _
    $region12: #{bottleneck_forward.7} parent=5 // pred_fallthru
      _
    %p267 = scmp.lt.s32.totalorder %s13, 2
    // Predicated region
    $region29: #{bottleneck_forward.7} parent=5 // pred_check
      %p268 = pneg %p267
    $region30: #{bottleneck_forward.7} parent=5 // pred_check_branch
      %270 = sbr.rel (%p268) target = $region32
    $region31: #{bottleneck_forward.7} parent=5 // pred_region
      // Predicated region
      $region33: #{bottleneck_forward.7} parent=31 // pred_check
        %p271 = pneg %p54
      $region34: #{bottleneck_forward.7} parent=31 // pred_check_branch
        %273 = sbr.rel (%p271) target = $region36
      $region35: #{bottleneck_forward.7} parent=31 // pred_region
        %s274 = smul.u32 32, %s20
        %p275 = scmp.lt.s32.totalorder %s274, 63
        %s276 = scalar_select %p275, %s274, 63
        %p277 = scmp.lt.s32.totalorder %s22, 0
        %s278 = scalar_select %p277, %s22, 0
        %s279 = sadd.s32 %s278, %s276
        %s280 = smul.addr %s279, 8
        %s281 = scalar_lea.vmem %s0, %s280
        %s282 = smul.u32 32, %s20
      $region36: #{bottleneck_forward.7} parent=31 // pred_fallthru
        _
    $region32: #{bottleneck_forward.7} parent=5 // pred_fallthru
      _
    %p283 = scmp.le.s32.totalorder 1, %s13
    %p284 = scmp.lt.s32.totalorder %s13, 3
    %p285 = pnand %p283, %p284
    %p286 = pneg %p285
    // Predicated region
    $region37: #{bottleneck_forward.7} parent=5 // pred_check
      _
    $region38: #{bottleneck_forward.7} parent=5 // pred_check_branch
      %288 = sbr.rel (%p285) target = $region40
    $region39: #{bottleneck_forward.7} parent=5 // pred_region
      %s289 = ssub.s32 %s13, 1
      %s290 = smul.u32 32, %s23
      %p291 = scmp.lt.s32.totalorder %s290, 63
      %s292 = scalar_select %p291, %s290, 63
      %p293 = scmp.lt.s32.totalorder %s25, 0
      %s294 = scalar_select %p293, %s25, 0
      %s295 = sadd.s32 %s294, %s292
      %s296 = smul.addr %s295, 8
      %s297 = scalar_lea.vmem %s0, %s296
      %p298 = pneg %p60
      %p299 = pneg %p57
      %s300 = smul.u32 16, %s25
      %p301 = scmp.lt.s32.totalorder %s300, 15
      %s302 = scalar_select %p301, %s300, 15
      %p303 = scmp.lt.s32.totalorder %s24, 0
      %s304 = scalar_select %p303, %s24, 0
      %s305 = sadd.s32 %s304, %s302
      %s306 = smul.addr %s305, 4
      %s307 = scalar_lea.vmem %s1, %s306
      %p308 = pneg %p88
      %p309 = pneg %p85
      %p310 = scmp.lt.s32.totalorder %s24, 0
      %s311 = scalar_select %p310, %s24, 0
      %s312 = scalar_lea.vmem %s2, %s311
      %p313 = pneg %p114
      %p314 = pneg %p111
      %p315 = scmp.lt.s32.totalorder %s25, 0
      %s316 = scalar_select %p315, %s25, 0
      %s317 = scalar_lea.vmem %s3, %s316
      %p318 = pneg %p140
      %p319 = pneg %p137
      %p320 = scmp.lt.s32.totalorder %s25, 0
      %s321 = scalar_select %p320, %s25, 0
      %s322 = scalar_lea.vmem %s4, %s321
      %p323 = pneg %p166
      %p324 = pneg %p163
      %p325 = pneg %p194
      %p326 = pneg %p191
      %s327 = smul.u32 32, %s23
      %p328 = scmp.lt.s32.totalorder %s327, 63
      %s329 = scalar_select %p328, %s327, 63
      %p330 = scmp.lt.s32.totalorder %s24, 0
      %s331 = scalar_select %p330, %s24, 0
      %s332 = sadd.s32 %s331, %s329
      %s333 = smul.addr %s332, 8
      %s334 = scalar_lea.vmem %s5, %s333
      %p335 = pneg %p222
      %p336 = pneg %p219
      %p337 = scmp.lt.s32.totalorder %s23, 1
      %s338 = scalar_select %p337, %s23, 1
      %p339 = scmp.lt.s32.totalorder %s24, 0
      %s340 = scalar_select %p339, %s24, 0
      %s341 = sadd.s32 %s340, %s338
      %s342 = smul.addr %s341, 8
      %s343 = scalar_lea.vmem %s6, %s342
      %s344 = smul.u32 32, %s23
      %p345 = scmp.lt.s32.totalorder %s344, 63
      %s346 = scalar_select %p345, %s344, 63
      %p347 = scmp.lt.s32.totalorder %s25, 0
      %s348 = scalar_select %p347, %s25, 0
      %s349 = sadd.s32 %s348, %s346
      %s350 = smul.addr %s349, 8
      %s351 = scalar_lea.vmem %s0, %s350
      %s352 = smul.u32 32, %s23
      %s353 = smul.u32 16, %s25
      %p354 = scmp.lt.s32.totalorder %s353, 15
      %s355 = scalar_select %p354, %s353, 15
      %p356 = scmp.lt.s32.totalorder %s24, 0
      %s357 = scalar_select %p356, %s24, 0
      %s358 = sadd.s32 %s357, %s355
      %s359 = smul.addr %s358, 4
      %s360 = scalar_lea.vmem %s1, %s359
      %s361 = smul.u32 16, %s25
      %p362 = scmp.lt.s32.totalorder %s24, 0
      %s363 = scalar_select %p362, %s24, 0
      %s364 = scalar_lea.vmem %s2, %s363
      %p365 = scmp.lt.s32.totalorder %s25, 0
      %s366 = scalar_select %p365, %s25, 0
      %s367 = scalar_lea.vmem %s3, %s366
      %p368 = scmp.lt.s32.totalorder %s25, 0
      %s369 = scalar_select %p368, %s25, 0
      %s370 = scalar_lea.vmem %s4, %s369
      %s371 = smul.u32 32, %s23
      %p372 = scmp.lt.s32.totalorder %s371, 63
      %s373 = scalar_select %p372, %s371, 63
      %p374 = scmp.lt.s32.totalorder %s24, 0
      %s375 = scalar_select %p374, %s24, 0
      %s376 = sadd.s32 %s375, %s373
      %s377 = smul.addr %s376, 8
      %s378 = scalar_lea.vmem %s5, %s377
      %s379 = smul.u32 32, %s23
      %p380 = scmp.lt.s32.totalorder %s23, 1
      %s381 = scalar_select %p380, %s23, 1
      %p382 = scmp.lt.s32.totalorder %s24, 0
      %s383 = scalar_select %p382, %s24, 0
      %s384 = sadd.s32 %s383, %s381
      %s385 = smul.addr %s384, 8
      %s386 = scalar_lea.vmem %s6, %s385
      %p388 = scmp.eq.s32.totalorder %s25, 0
      // Predicated region
      $region41: #{bottleneck_forward.7} parent=39 // pred_check
        %p389 = pneg %p388
      $region42: #{bottleneck_forward.7} parent=39 // pred_check_branch
        %391 = sbr.rel (%p389) target = $region44
      $region43: #{bottleneck_forward.7} parent=39 // pred_region
        %392 = vst [vmem:[#allocation2] sm:$0xff] 0.0
        %393 = vst [vmem:[#allocation2 + $0x8] sm:$0xff] 0.0
        %394 = vst [vmem:[#allocation2 + $0x10] sm:$0xff] 0.0
        %395 = vst [vmem:[#allocation2 + $0x18] sm:$0xff] 0.0
        %396 = vst [vmem:[#allocation2 + $0x20] sm:$0xff] 0.0
        %397 = vst [vmem:[#allocation2 + $0x28] sm:$0xff] 0.0
        %398 = vst [vmem:[#allocation2 + $0x30] sm:$0xff] 0.0
        %399 = vst [vmem:[#allocation2 + $0x38] sm:$0xff] 0.0
        %400 = vst [vmem:[#allocation2 + $0x40] sm:$0xff] 0.0
        %401 = vst [vmem:[#allocation2 + $0x48] sm:$0xff] 0.0
        %402 = vst [vmem:[#allocation2 + $0x50] sm:$0xff] 0.0
        %403 = vst [vmem:[#allocation2 + $0x58] sm:$0xff] 0.0
        %404 = vst [vmem:[#allocation2 + $0x60] sm:$0xff] 0.0
        %405 = vst [vmem:[#allocation2 + $0x68] sm:$0xff] 0.0
        %406 = vst [vmem:[#allocation2 + $0x70] sm:$0xff] 0.0
        %407 = vst [vmem:[#allocation2 + $0x78] sm:$0xff] 0.0
        %408 = vst [vmem:[#allocation2 + $0x80] sm:$0xff] 0.0
        %409 = vst [vmem:[#allocation2 + $0x88] sm:$0xff] 0.0
        %410 = vst [vmem:[#allocation2 + $0x90] sm:$0xff] 0.0
        %411 = vst [vmem:[#allocation2 + $0x98] sm:$0xff] 0.0
        %412 = vst [vmem:[#allocation2 + $0xa0] sm:$0xff] 0.0
        %413 = vst [vmem:[#allocation2 + $0xa8] sm:$0xff] 0.0
        %414 = vst [vmem:[#allocation2 + $0xb0] sm:$0xff] 0.0
        %415 = vst [vmem:[#allocation2 + $0xb8] sm:$0xff] 0.0
        %416 = vst [vmem:[#allocation2 + $0xc0] sm:$0xff] 0.0
        %417 = vst [vmem:[#allocation2 + $0xc8] sm:$0xff] 0.0
        %418 = vst [vmem:[#allocation2 + $0xd0] sm:$0xff] 0.0
        %419 = vst [vmem:[#allocation2 + $0xd8] sm:$0xff] 0.0
        %420 = vst [vmem:[#allocation2 + $0xe0] sm:$0xff] 0.0
        %421 = vst [vmem:[#allocation2 + $0xe8] sm:$0xff] 0.0
        %422 = vst [vmem:[#allocation2 + $0xf0] sm:$0xff] 0.0
        %423 = vst [vmem:[#allocation2 + $0xf8] sm:$0xff] 0.0
      $region44: #{bottleneck_forward.7} parent=39 // pred_fallthru
        _
      %v424 = vld [vmem:[%s351] sm:$0xff]
      %v425 = vld [vmem:[%s351 + $0x8] sm:$0xff]
      %v426 = vld [vmem:[%s351 + $0x10] sm:$0xff]
      %v427 = vld [vmem:[%s351 + $0x18] sm:$0xff]
      %v428 = vld [vmem:[%s351 + $0x20] sm:$0xff]
      %v429 = vld [vmem:[%s351 + $0x28] sm:$0xff]
      %v430 = vld [vmem:[%s351 + $0x30] sm:$0xff]
      %v431 = vld [vmem:[%s351 + $0x38] sm:$0xff]
      %v432 = vld [vmem:[%s351 + $0x40] sm:$0xff]
      %v433 = vld [vmem:[%s351 + $0x48] sm:$0xff]
      %v434 = vld [vmem:[%s351 + $0x50] sm:$0xff]
      %v435 = vld [vmem:[%s351 + $0x58] sm:$0xff]
      %v436 = vld [vmem:[%s351 + $0x60] sm:$0xff]
      %v437 = vld [vmem:[%s351 + $0x68] sm:$0xff]
      %v438 = vld [vmem:[%s351 + $0x70] sm:$0xff]
      %v439 = vld [vmem:[%s351 + $0x78] sm:$0xff]
      %v440 = vld [vmem:[%s351 + $0x80] sm:$0xff]
      %v441 = vld [vmem:[%s351 + $0x88] sm:$0xff]
      %v442 = vld [vmem:[%s351 + $0x90] sm:$0xff]
      %v443 = vld [vmem:[%s351 + $0x98] sm:$0xff]
      %v444 = vld [vmem:[%s351 + $0xa0] sm:$0xff]
      %v445 = vld [vmem:[%s351 + $0xa8] sm:$0xff]
      %v446 = vld [vmem:[%s351 + $0xb0] sm:$0xff]
      %v447 = vld [vmem:[%s351 + $0xb8] sm:$0xff]
      %v448 = vld [vmem:[%s351 + $0xc0] sm:$0xff]
      %v449 = vld [vmem:[%s351 + $0xc8] sm:$0xff]
      %v450 = vld [vmem:[%s351 + $0xd0] sm:$0xff]
      %v451 = vld [vmem:[%s351 + $0xd8] sm:$0xff]
      %v452 = vld [vmem:[%s351 + $0xe0] sm:$0xff]
      %v453 = vld [vmem:[%s351 + $0xe8] sm:$0xff]
      %v454 = vld [vmem:[%s351 + $0xf0] sm:$0xff]
      %v455 = vld [vmem:[%s351 + $0xf8] sm:$0xff]
      %v456 = vld [vmem:[%s367] sm:$0x1]
      %v458 = vlaneseq
      %v459 = vshrl.u32 %v458, 7
      %v460 = vsub.s32 0, %v459
      %v461 = vrot.slane %v456, %v460
      %v463 = vmul.f32 %v424, %v461
      %v464 = vmul.f32 %v425, %v461
      %v465 = vmul.f32 %v426, %v461
      %v466 = vmul.f32 %v427, %v461
      %v467 = vmul.f32 %v428, %v461
      %v468 = vmul.f32 %v429, %v461
      %v469 = vmul.f32 %v430, %v461
      %v470 = vmul.f32 %v431, %v461
      %v471 = vmul.f32 %v432, %v461
      %v472 = vmul.f32 %v433, %v461
      %v473 = vmul.f32 %v434, %v461
      %v474 = vmul.f32 %v435, %v461
      %v475 = vmul.f32 %v436, %v461
      %v476 = vmul.f32 %v437, %v461
      %v477 = vmul.f32 %v438, %v461
      %v478 = vmul.f32 %v439, %v461
      %v479 = vmul.f32 %v440, %v461
      %v480 = vmul.f32 %v441, %v461
      %v481 = vmul.f32 %v442, %v461
      %v482 = vmul.f32 %v443, %v461
      %v483 = vmul.f32 %v444, %v461
      %v484 = vmul.f32 %v445, %v461
      %v485 = vmul.f32 %v446, %v461
      %v486 = vmul.f32 %v447, %v461
      %v487 = vmul.f32 %v448, %v461
      %v488 = vmul.f32 %v449, %v461
      %v489 = vmul.f32 %v450, %v461
      %v490 = vmul.f32 %v451, %v461
      %v491 = vmul.f32 %v452, %v461
      %v492 = vmul.f32 %v453, %v461
      %v493 = vmul.f32 %v454, %v461
      %v494 = vmul.f32 %v455, %v461
      %v495 = vld [vmem:[%s370] sm:$0x1]
      %v497 = vlaneseq
      %v498 = vshrl.u32 %v497, 7
      %v499 = vsub.s32 0, %v498
      %v500 = vrot.slane %v495, %v499
      %v502 = vadd.f32 %v463, %v500
      %v503 = vadd.f32 %v464, %v500
      %v504 = vadd.f32 %v465, %v500
      %v505 = vadd.f32 %v466, %v500
      %v506 = vadd.f32 %v467, %v500
      %v507 = vadd.f32 %v468, %v500
      %v508 = vadd.f32 %v469, %v500
      %v509 = vadd.f32 %v470, %v500
      %v510 = vadd.f32 %v471, %v500
      %v511 = vadd.f32 %v472, %v500
      %v512 = vadd.f32 %v473, %v500
      %v513 = vadd.f32 %v474, %v500
      %v514 = vadd.f32 %v475, %v500
      %v515 = vadd.f32 %v476, %v500
      %v516 = vadd.f32 %v477, %v500
      %v517 = vadd.f32 %v478, %v500
      %v518 = vadd.f32 %v479, %v500
      %v519 = vadd.f32 %v480, %v500
      %v520 = vadd.f32 %v481, %v500
      %v521 = vadd.f32 %v482, %v500
      %v522 = vadd.f32 %v483, %v500
      %v523 = vadd.f32 %v484, %v500
      %v524 = vadd.f32 %v485, %v500
      %v525 = vadd.f32 %v486, %v500
      %v526 = vadd.f32 %v487, %v500
      %v527 = vadd.f32 %v488, %v500
      %v528 = vadd.f32 %v489, %v500
      %v529 = vadd.f32 %v490, %v500
      %v530 = vadd.f32 %v491, %v500
      %v531 = vadd.f32 %v492, %v500
      %v532 = vadd.f32 %v493, %v500
      %v533 = vadd.f32 %v494, %v500
      %v534 = vmax.f32 %v502, 0.0
      %v535 = vmax.f32 %v503, 0.0
      %v536 = vmax.f32 %v504, 0.0
      %v537 = vmax.f32 %v505, 0.0
      %v538 = vmax.f32 %v506, 0.0
      %v539 = vmax.f32 %v507, 0.0
      %v540 = vmax.f32 %v508, 0.0
      %v541 = vmax.f32 %v509, 0.0
      %v542 = vmax.f32 %v510, 0.0
      %v543 = vmax.f32 %v511, 0.0
      %v544 = vmax.f32 %v512, 0.0
      %v545 = vmax.f32 %v513, 0.0
      %v546 = vmax.f32 %v514, 0.0
      %v547 = vmax.f32 %v515, 0.0
      %v548 = vmax.f32 %v516, 0.0
      %v549 = vmax.f32 %v517, 0.0
      %v550 = vmax.f32 %v518, 0.0
      %v551 = vmax.f32 %v519, 0.0
      %v552 = vmax.f32 %v520, 0.0
      %v553 = vmax.f32 %v521, 0.0
      %v554 = vmax.f32 %v522, 0.0
      %v555 = vmax.f32 %v523, 0.0
      %v556 = vmax.f32 %v524, 0.0
      %v557 = vmax.f32 %v525, 0.0
      %v558 = vmax.f32 %v526, 0.0
      %v559 = vmax.f32 %v527, 0.0
      %v560 = vmax.f32 %v528, 0.0
      %v561 = vmax.f32 %v529, 0.0
      %v562 = vmax.f32 %v530, 0.0
      %v563 = vmax.f32 %v531, 0.0
      %v564 = vmax.f32 %v532, 0.0
      %v565 = vmax.f32 %v533, 0.0
      %v566 = vld [vmem:[#allocation2] sm:$0xff]
      %v567 = vld [vmem:[#allocation2 + $0x8] sm:$0xff]
      %v568 = vld [vmem:[#allocation2 + $0x10] sm:$0xff]
      %v569 = vld [vmem:[#allocation2 + $0x18] sm:$0xff]
      %v570 = vld [vmem:[#allocation2 + $0x20] sm:$0xff]
      %v571 = vld [vmem:[#allocation2 + $0x28] sm:$0xff]
      %v572 = vld [vmem:[#allocation2 + $0x30] sm:$0xff]
      %v573 = vld [vmem:[#allocation2 + $0x38] sm:$0xff]
      %v574 = vld [vmem:[#allocation2 + $0x40] sm:$0xff]
      %v575 = vld [vmem:[#allocation2 + $0x48] sm:$0xff]
      %v576 = vld [vmem:[#allocation2 + $0x50] sm:$0xff]
      %v577 = vld [vmem:[#allocation2 + $0x58] sm:$0xff]
      %v578 = vld [vmem:[#allocation2 + $0x60] sm:$0xff]
      %v579 = vld [vmem:[#allocation2 + $0x68] sm:$0xff]
      %v580 = vld [vmem:[#allocation2 + $0x70] sm:$0xff]
      %v581 = vld [vmem:[#allocation2 + $0x78] sm:$0xff]
      %v582 = vld [vmem:[#allocation2 + $0x80] sm:$0xff]
      %v583 = vld [vmem:[#allocation2 + $0x88] sm:$0xff]
      %v584 = vld [vmem:[#allocation2 + $0x90] sm:$0xff]
      %v585 = vld [vmem:[#allocation2 + $0x98] sm:$0xff]
      %v586 = vld [vmem:[#allocation2 + $0xa0] sm:$0xff]
      %v587 = vld [vmem:[#allocation2 + $0xa8] sm:$0xff]
      %v588 = vld [vmem:[#allocation2 + $0xb0] sm:$0xff]
      %v589 = vld [vmem:[#allocation2 + $0xb8] sm:$0xff]
      %v590 = vld [vmem:[#allocation2 + $0xc0] sm:$0xff]
      %v591 = vld [vmem:[#allocation2 + $0xc8] sm:$0xff]
      %v592 = vld [vmem:[#allocation2 + $0xd0] sm:$0xff]
      %v593 = vld [vmem:[#allocation2 + $0xd8] sm:$0xff]
      %v594 = vld [vmem:[#allocation2 + $0xe0] sm:$0xff]
      %v595 = vld [vmem:[#allocation2 + $0xe8] sm:$0xff]
      %v596 = vld [vmem:[#allocation2 + $0xf0] sm:$0xff]
      %v597 = vld [vmem:[#allocation2 + $0xf8] sm:$0xff]
      %v598 = vpack.c.bf16 %v535, %v534
      %v599 = vpack.c.bf16 %v537, %v536
      %v600 = vpack.c.bf16 %v539, %v538
      %v601 = vpack.c.bf16 %v541, %v540
      %v602 = vpack.c.bf16 %v543, %v542
      %v603 = vpack.c.bf16 %v545, %v544
      %v604 = vpack.c.bf16 %v547, %v546
      %v605 = vpack.c.bf16 %v549, %v548
      %v606 = vpack.c.bf16 %v551, %v550
      %v607 = vpack.c.bf16 %v553, %v552
      %v608 = vpack.c.bf16 %v555, %v554
      %v609 = vpack.c.bf16 %v557, %v556
      %v610 = vpack.c.bf16 %v559, %v558
      %v611 = vpack.c.bf16 %v561, %v560
      %v612 = vpack.c.bf16 %v563, %v562
      %v613 = vpack.c.bf16 %v565, %v564
      %v614 = vld [vmem:[%s360] sm:$0xf]
      %v615 = vld [vmem:[%s360 + $0x4] sm:$0xf]
      %v616 = vld [vmem:[%s360 + $0x8] sm:$0xf]
      %v617 = vld [vmem:[%s360 + $0xc] sm:$0xf]
      %v618 = vld [vmem:[%s360 + $0x10] sm:$0xf]
      %v619 = vld [vmem:[%s360 + $0x14] sm:$0xf]
      %v620 = vld [vmem:[%s360 + $0x18] sm:$0xf]
      %v621 = vld [vmem:[%s360 + $0x1c] sm:$0xf]
      %v622 = vld [vmem:[%s360 + $0x20] sm:$0xf]
      %v623 = vld [vmem:[%s360 + $0x24] sm:$0xf]
      %v624 = vld [vmem:[%s360 + $0x28] sm:$0xf]
      %v625 = vld [vmem:[%s360 + $0x2c] sm:$0xf]
      %v626 = vld [vmem:[%s360 + $0x30] sm:$0xf]
      %v627 = vld [vmem:[%s360 + $0x34] sm:$0xf]
      %v628 = vld [vmem:[%s360 + $0x38] sm:$0xf]
      %v629 = vld [vmem:[%s360 + $0x3c] sm:$0xf]
      %v646 = vunpack.c.l.b16 %v614
      %v647 = vunpack.c.l.b16 %v615
      %v648 = vunpack.c.l.b16 %v616
      %v649 = vunpack.c.l.b16 %v617
      %v650 = vunpack.c.l.b16 %v618
      %v651 = vunpack.c.l.b16 %v619
      %v652 = vunpack.c.l.b16 %v620
      %v653 = vunpack.c.l.b16 %v621
      %v654 = vunpack.c.l.b16 %v622
      %v655 = vunpack.c.l.b16 %v623
      %v656 = vunpack.c.l.b16 %v624
      %v657 = vunpack.c.l.b16 %v625
      %v658 = vunpack.c.l.b16 %v626
      %v659 = vunpack.c.l.b16 %v627
      %v660 = vunpack.c.l.b16 %v628
      %v661 = vunpack.c.l.b16 %v629
      %v662 = vpack.c.b16 %v647, %v646
      %v663 = vpack.c.b16 %v649, %v648
      %v664 = vpack.c.b16 %v651, %v650
      %v665 = vpack.c.b16 %v653, %v652
      %v666 = vpack.c.b16 %v655, %v654
      %v667 = vpack.c.b16 %v657, %v656
      %v668 = vpack.c.b16 %v659, %v658
      %v669 = vpack.c.b16 %v661, %v660
      %678 = vmatprep.subr.bf16.mxu0 0
      %679 = vmatpush1.bf16.msra.mxu0 %v662
      %680 = vmatprep.subr.bf16.mxu0 0
      %681 = vmatpush1.bf16.msra.mxu0 %v663
      %682 = vmatprep.subr.bf16.mxu0 0
      %683 = vmatpush1.bf16.msra.mxu0 %v664
      %684 = vmatprep.subr.bf16.mxu0 0
      %685 = vmatpush1.bf16.msra.mxu0 %v665
      %686 = vmatprep.subr.bf16.mxu0 0
      %687 = vmatpush1.bf16.msra.mxu0 %v666
      %688 = vmatprep.subr.bf16.mxu0 0
      %689 = vmatpush1.bf16.msra.mxu0 %v667
      %690 = vmatprep.subr.bf16.mxu0 0
      %691 = vmatpush1.bf16.msra.mxu0 %v668
      %692 = vmatprep.subr.bf16.mxu0 0
      %693 = vmatpush1.bf16.msra.mxu0 %v669
      %694 = vmatprep.subr.bf16.mxu0 0
      %695 = vmatpush1.bf16.msra.mxu0 0
      %696 = vmatprep.subr.bf16.mxu0 0
      %697 = vmatpush1.bf16.msra.mxu0 0
      %698 = vmatprep.subr.bf16.mxu0 0
      %699 = vmatpush1.bf16.msra.mxu0 0
      %700 = vmatprep.subr.bf16.mxu0 0
      %701 = vmatpush1.bf16.msra.mxu0 0
      %702 = vmatprep.subr.bf16.mxu0 0
      %703 = vmatpush1.bf16.msra.mxu0 0
      %704 = vmatprep.subr.bf16.mxu0 0
      %705 = vmatpush1.bf16.msra.mxu0 0
      %706 = vmatprep.subr.bf16.mxu0 0
      %707 = vmatpush1.bf16.msra.mxu0 0
      %708 = vmatprep.subr.bf16.mxu0 0
      %709 = vmatpush1.bf16.msra.mxu0 0
      %710 = vmatprep.mubr.bf16.mxu0 0
      %711 = vmatmul.mubr.bf16.gmra.mrb[0].mxu0 %v598
      %v712 = vpop.f32.mrb[0].mxu0
      %v713 = vadd.f32 0.0, %v712
      %v714 = vpop.f32.mrb[0].mxu0
      %v715 = vpop.f32.mrb[0].mxu0
      %v716 = vadd.f32 0.0, %v715
      %v717 = vpop.f32.mrb[0].mxu0
      %718 = vmatprep.mubr.bf16.mxu0 0
      %719 = vmatmul.mubr.bf16.gmra.mrb[0].mxu0 %v599
      %v720 = vpop.f32.mrb[0].mxu0
      %v721 = vadd.f32 0.0, %v720
      %v722 = vpop.f32.mrb[0].mxu0
      %v723 = vpop.f32.mrb[0].mxu0
      %v724 = vadd.f32 0.0, %v723
      %v725 = vpop.f32.mrb[0].mxu0
      %726 = vmatprep.mubr.bf16.mxu0 0
      %727 = vmatmul.mubr.bf16.gmra.mrb[0].mxu0 %v600
      %v728 = vpop.f32.mrb[0].mxu0
      %v729 = vadd.f32 0.0, %v728
      %v730 = vpop.f32.mrb[0].mxu0
      %v731 = vpop.f32.mrb[0].mxu0
      %v732 = vadd.f32 0.0, %v731
      %v733 = vpop.f32.mrb[0].mxu0
      %734 = vmatprep.mubr.bf16.mxu0 0
      %735 = vmatmul.mubr.bf16.gmra.mrb[0].mxu0 %v601
      %v736 = vpop.f32.mrb[0].mxu0
      %v737 = vadd.f32 0.0, %v736
      %v738 = vpop.f32.mrb[0].mxu0
      %v739 = vpop.f32.mrb[0].mxu0
      %v740 = vadd.f32 0.0, %v739
      %v741 = vpop.f32.mrb[0].mxu0
      %742 = vmatprep.mubr.bf16.mxu0 0
      %743 = vmatmul.mubr.bf16.gmra.mrb[0].mxu0 %v602
      %v744 = vpop.f32.mrb[0].mxu0
      %v745 = vadd.f32 0.0, %v744
      %v746 = vpop.f32.mrb[0].mxu0
      %v747 = vpop.f32.mrb[0].mxu0
      %v748 = vadd.f32 0.0, %v747
      %v749 = vpop.f32.mrb[0].mxu0
      %750 = vmatprep.mubr.bf16.mxu0 0
      %751 = vmatmul.mubr.bf16.gmra.mrb[0].mxu0 %v603
      %v752 = vpop.f32.mrb[0].mxu0
      %v753 = vadd.f32 0.0, %v752
      %v754 = vpop.f32.mrb[0].mxu0
      %v755 = vpop.f32.mrb[0].mxu0
      %v756 = vadd.f32 0.0, %v755
      %v757 = vpop.f32.mrb[0].mxu0
      %758 = vmatprep.mubr.bf16.mxu0 0
      %759 = vmatmul.mubr.bf16.gmra.mrb[0].mxu0 %v604
      %v760 = vpop.f32.mrb[0].mxu0
      %v761 = vadd.f32 0.0, %v760
      %v762 = vpop.f32.mrb[0].mxu0
      %v763 = vpop.f32.mrb[0].mxu0
      %v764 = vadd.f32 0.0, %v763
      %v765 = vpop.f32.mrb[0].mxu0
      %766 = vmatprep.mubr.bf16.mxu0 0
      %767 = vmatmul.mubr.bf16.gmra.mrb[0].mxu0 %v605
      %v768 = vpop.f32.mrb[0].mxu0
      %v769 = vadd.f32 0.0, %v768
      %v770 = vpop.f32.mrb[0].mxu0
      %v771 = vpop.f32.mrb[0].mxu0
      %v772 = vadd.f32 0.0, %v771
      %v773 = vpop.f32.mrb[0].mxu0
      %774 = vmatprep.mubr.bf16.mxu0 0
      %775 = vmatmul.mubr.bf16.gmra.mrb[0].mxu0 %v606
      %v776 = vpop.f32.mrb[0].mxu0
      %v777 = vadd.f32 0.0, %v776
      %v778 = vpop.f32.mrb[0].mxu0
      %v779 = vpop.f32.mrb[0].mxu0
      %v780 = vadd.f32 0.0, %v779
      %v781 = vpop.f32.mrb[0].mxu0
      %782 = vmatprep.mubr.bf16.mxu0 0
      %783 = vmatmul.mubr.bf16.gmra.mrb[0].mxu0 %v607
      %v784 = vpop.f32.mrb[0].mxu0
      %v785 = vadd.f32 0.0, %v784
      %v786 = vpop.f32.mrb[0].mxu0
      %v787 = vpop.f32.mrb[0].mxu0
      %v788 = vadd.f32 0.0, %v787
      %v789 = vpop.f32.mrb[0].mxu0
      %790 = vmatprep.mubr.bf16.mxu0 0
      %791 = vmatmul.mubr.bf16.gmra.mrb[0].mxu0 %v608
      %v792 = vpop.f32.mrb[0].mxu0
      %v793 = vadd.f32 0.0, %v792
      %v794 = vpop.f32.mrb[0].mxu0
      %v795 = vpop.f32.mrb[0].mxu0
      %v796 = vadd.f32 0.0, %v795
      %v797 = vpop.f32.mrb[0].mxu0
      %798 = vmatprep.mubr.bf16.mxu0 0
      %799 = vmatmul.mubr.bf16.gmra.mrb[0].mxu0 %v609
      %v800 = vpop.f32.mrb[0].mxu0
      %v801 = vadd.f32 0.0, %v800
      %v802 = vpop.f32.mrb[0].mxu0
      %v803 = vpop.f32.mrb[0].mxu0
      %v804 = vadd.f32 0.0, %v803
      %v805 = vpop.f32.mrb[0].mxu0
      %806 = vmatprep.mubr.bf16.mxu0 0
      %807 = vmatmul.mubr.bf16.gmra.mrb[0].mxu0 %v610
      %v808 = vpop.f32.mrb[0].mxu0
      %v809 = vadd.f32 0.0, %v808
      %v810 = vpop.f32.mrb[0].mxu0
      %v811 = vpop.f32.mrb[0].mxu0
      %v812 = vadd.f32 0.0, %v811
      %v813 = vpop.f32.mrb[0].mxu0
      %814 = vmatprep.mubr.bf16.mxu0 0
      %815 = vmatmul.mubr.bf16.gmra.mrb[0].mxu0 %v611
      %v816 = vpop.f32.mrb[0].mxu0
      %v817 = vadd.f32 0.0, %v816
      %v818 = vpop.f32.mrb[0].mxu0
      %v819 = vpop.f32.mrb[0].mxu0
      %v820 = vadd.f32 0.0, %v819
      %v821 = vpop.f32.mrb[0].mxu0
      %822 = vmatprep.mubr.bf16.mxu0 0
      %823 = vmatmul.mubr.bf16.gmra.mrb[0].mxu0 %v612
      %v824 = vpop.f32.mrb[0].mxu0
      %v825 = vadd.f32 0.0, %v824
      %v826 = vpop.f32.mrb[0].mxu0
      %v827 = vpop.f32.mrb[0].mxu0
      %v828 = vadd.f32 0.0, %v827
      %v829 = vpop.f32.mrb[0].mxu0
      %830 = vmatprep.mubr.bf16.mxu0 0
      %831 = vmatmul.mubr.bf16.gmra.mrb[0].mxu0 %v613
      %v832 = vpop.f32.mrb[0].mxu0
      %v833 = vadd.f32 0.0, %v832
      %v834 = vpop.f32.mrb[0].mxu0
      %v835 = vpop.f32.mrb[0].mxu0
      %v836 = vadd.f32 0.0, %v835
      %v837 = vpop.f32.mrb[0].mxu0
      %838 = vdwg.mxu0
      %v839 = vadd.f32 %v566, %v713
      %v840 = vadd.f32 %v567, %v716
      %v841 = vadd.f32 %v568, %v721
      %v842 = vadd.f32 %v569, %v724
      %v843 = vadd.f32 %v570, %v729
      %v844 = vadd.f32 %v571, %v732
      %v845 = vadd.f32 %v572, %v737
      %v846 = vadd.f32 %v573, %v740
      %v847 = vadd.f32 %v574, %v745
      %v848 = vadd.f32 %v575, %v748
      %v849 = vadd.f32 %v576, %v753
      %v850 = vadd.f32 %v577, %v756
      %v851 = vadd.f32 %v578, %v761
      %v852 = vadd.f32 %v579, %v764
      %v853 = vadd.f32 %v580, %v769
      %v854 = vadd.f32 %v581, %v772
      %v855 = vadd.f32 %v582, %v777
      %v856 = vadd.f32 %v583, %v780
      %v857 = vadd.f32 %v584, %v785
      %v858 = vadd.f32 %v585, %v788
      %v859 = vadd.f32 %v586, %v793
      %v860 = vadd.f32 %v587, %v796
      %v861 = vadd.f32 %v588, %v801
      %v862 = vadd.f32 %v589, %v804
      %v863 = vadd.f32 %v590, %v809
      %v864 = vadd.f32 %v591, %v812
      %v865 = vadd.f32 %v592, %v817
      %v866 = vadd.f32 %v593, %v820
      %v867 = vadd.f32 %v594, %v825
      %v868 = vadd.f32 %v595, %v828
      %v869 = vadd.f32 %v596, %v833
      %v870 = vadd.f32 %v597, %v836
      %871 = vst [vmem:[#allocation2] sm:$0xff] %v839
      %872 = vst [vmem:[#allocation2 + $0x8] sm:$0xff] %v840
      %873 = vst [vmem:[#allocation2 + $0x10] sm:$0xff] %v841
      %874 = vst [vmem:[#allocation2 + $0x18] sm:$0xff] %v842
      %875 = vst [vmem:[#allocation2 + $0x20] sm:$0xff] %v843
      %876 = vst [vmem:[#allocation2 + $0x28] sm:$0xff] %v844
      %877 = vst [vmem:[#allocation2 + $0x30] sm:$0xff] %v845
      %878 = vst [vmem:[#allocation2 + $0x38] sm:$0xff] %v846
      %879 = vst [vmem:[#allocation2 + $0x40] sm:$0xff] %v847
      %880 = vst [vmem:[#allocation2 + $0x48] sm:$0xff] %v848
      %881 = vst [vmem:[#allocation2 + $0x50] sm:$0xff] %v849
      %882 = vst [vmem:[#allocation2 + $0x58] sm:$0xff] %v850
      %883 = vst [vmem:[#allocation2 + $0x60] sm:$0xff] %v851
      %884 = vst [vmem:[#allocation2 + $0x68] sm:$0xff] %v852
      %885 = vst [vmem:[#allocation2 + $0x70] sm:$0xff] %v853
      %886 = vst [vmem:[#allocation2 + $0x78] sm:$0xff] %v854
      %887 = vst [vmem:[#allocation2 + $0x80] sm:$0xff] %v855
      %888 = vst [vmem:[#allocation2 + $0x88] sm:$0xff] %v856
      %889 = vst [vmem:[#allocation2 + $0x90] sm:$0xff] %v857
      %890 = vst [vmem:[#allocation2 + $0x98] sm:$0xff] %v858
      %891 = vst [vmem:[#allocation2 + $0xa0] sm:$0xff] %v859
      %892 = vst [vmem:[#allocation2 + $0xa8] sm:$0xff] %v860
      %893 = vst [vmem:[#allocation2 + $0xb0] sm:$0xff] %v861
      %894 = vst [vmem:[#allocation2 + $0xb8] sm:$0xff] %v862
      %895 = vst [vmem:[#allocation2 + $0xc0] sm:$0xff] %v863
      %896 = vst [vmem:[#allocation2 + $0xc8] sm:$0xff] %v864
      %897 = vst [vmem:[#allocation2 + $0xd0] sm:$0xff] %v865
      %898 = vst [vmem:[#allocation2 + $0xd8] sm:$0xff] %v866
      %899 = vst [vmem:[#allocation2 + $0xe0] sm:$0xff] %v867
      %900 = vst [vmem:[#allocation2 + $0xe8] sm:$0xff] %v868
      %901 = vst [vmem:[#allocation2 + $0xf0] sm:$0xff] %v869
      %902 = vst [vmem:[#allocation2 + $0xf8] sm:$0xff] %v870
      // Predicated region
      $region45: #{bottleneck_forward.7} parent=39 // pred_check
        %p903 = pneg %p388
      $region46: #{bottleneck_forward.7} parent=39 // pred_check_branch
        %905 = sbr.rel (%p903) target = $region48
      $region47: #{bottleneck_forward.7} parent=39 // pred_region
        %v906 = vld [vmem:[#allocation2] sm:$0xff]
        %v907 = vld [vmem:[#allocation2 + $0x8] sm:$0xff]
        %v908 = vld [vmem:[#allocation2 + $0x10] sm:$0xff]
        %v909 = vld [vmem:[#allocation2 + $0x18] sm:$0xff]
        %v910 = vld [vmem:[#allocation2 + $0x20] sm:$0xff]
        %v911 = vld [vmem:[#allocation2 + $0x28] sm:$0xff]
        %v912 = vld [vmem:[#allocation2 + $0x30] sm:$0xff]
        %v913 = vld [vmem:[#allocation2 + $0x38] sm:$0xff]
        %v914 = vld [vmem:[#allocation2 + $0x40] sm:$0xff]
        %v915 = vld [vmem:[#allocation2 + $0x48] sm:$0xff]
        %v916 = vld [vmem:[#allocation2 + $0x50] sm:$0xff]
        %v917 = vld [vmem:[#allocation2 + $0x58] sm:$0xff]
        %v918 = vld [vmem:[#allocation2 + $0x60] sm:$0xff]
        %v919 = vld [vmem:[#allocation2 + $0x68] sm:$0xff]
        %v920 = vld [vmem:[#allocation2 + $0x70] sm:$0xff]
        %v921 = vld [vmem:[#allocation2 + $0x78] sm:$0xff]
        %v922 = vld [vmem:[#allocation2 + $0x80] sm:$0xff]
        %v923 = vld [vmem:[#allocation2 + $0x88] sm:$0xff]
        %v924 = vld [vmem:[#allocation2 + $0x90] sm:$0xff]
        %v925 = vld [vmem:[#allocation2 + $0x98] sm:$0xff]
        %v926 = vld [vmem:[#allocation2 + $0xa0] sm:$0xff]
        %v927 = vld [vmem:[#allocation2 + $0xa8] sm:$0xff]
        %v928 = vld [vmem:[#allocation2 + $0xb0] sm:$0xff]
        %v929 = vld [vmem:[#allocation2 + $0xb8] sm:$0xff]
        %v930 = vld [vmem:[#allocation2 + $0xc0] sm:$0xff]
        %v931 = vld [vmem:[#allocation2 + $0xc8] sm:$0xff]
        %v932 = vld [vmem:[#allocation2 + $0xd0] sm:$0xff]
        %v933 = vld [vmem:[#allocation2 + $0xd8] sm:$0xff]
        %v934 = vld [vmem:[#allocation2 + $0xe0] sm:$0xff]
        %v935 = vld [vmem:[#allocation2 + $0xe8] sm:$0xff]
        %v936 = vld [vmem:[#allocation2 + $0xf0] sm:$0xff]
        %v937 = vld [vmem:[#allocation2 + $0xf8] sm:$0xff]
        %v938 = vld [vmem:[%s364] sm:$0x1]
        %v940 = vlaneseq
        %v941 = vshrl.u32 %v940, 7
        %v942 = vsub.s32 0, %v941
        %v943 = vrot.slane %v938, %v942
        %v945 = vadd.f32 %v906, %v943
        %v946 = vadd.f32 %v907, %v943
        %v947 = vadd.f32 %v908, %v943
        %v948 = vadd.f32 %v909, %v943
        %v949 = vadd.f32 %v910, %v943
        %v950 = vadd.f32 %v911, %v943
        %v951 = vadd.f32 %v912, %v943
        %v952 = vadd.f32 %v913, %v943
        %v953 = vadd.f32 %v914, %v943
        %v954 = vadd.f32 %v915, %v943
        %v955 = vadd.f32 %v916, %v943
        %v956 = vadd.f32 %v917, %v943
        %v957 = vadd.f32 %v918, %v943
        %v958 = vadd.f32 %v919, %v943
        %v959 = vadd.f32 %v920, %v943
        %v960 = vadd.f32 %v921, %v943
        %v961 = vadd.f32 %v922, %v943
        %v962 = vadd.f32 %v923, %v943
        %v963 = vadd.f32 %v924, %v943
        %v964 = vadd.f32 %v925, %v943
        %v965 = vadd.f32 %v926, %v943
        %v966 = vadd.f32 %v927, %v943
        %v967 = vadd.f32 %v928, %v943
        %v968 = vadd.f32 %v929, %v943
        %v969 = vadd.f32 %v930, %v943
        %v970 = vadd.f32 %v931, %v943
        %v971 = vadd.f32 %v932, %v943
        %v972 = vadd.f32 %v933, %v943
        %v973 = vadd.f32 %v934, %v943
        %v974 = vadd.f32 %v935, %v943
        %v975 = vadd.f32 %v936, %v943
        %v976 = vadd.f32 %v937, %v943
        %977 = vst [vmem:[%s378] sm:$0xff] %v945
        %978 = vst [vmem:[%s378 + $0x8] sm:$0xff] %v946
        %979 = vst [vmem:[%s378 + $0x10] sm:$0xff] %v947
        %980 = vst [vmem:[%s378 + $0x18] sm:$0xff] %v948
        %981 = vst [vmem:[%s378 + $0x20] sm:$0xff] %v949
        %982 = vst [vmem:[%s378 + $0x28] sm:$0xff] %v950
        %983 = vst [vmem:[%s378 + $0x30] sm:$0xff] %v951
        %984 = vst [vmem:[%s378 + $0x38] sm:$0xff] %v952
        %985 = vst [vmem:[%s378 + $0x40] sm:$0xff] %v953
        %986 = vst [vmem:[%s378 + $0x48] sm:$0xff] %v954
        %987 = vst [vmem:[%s378 + $0x50] sm:$0xff] %v955
        %988 = vst [vmem:[%s378 + $0x58] sm:$0xff] %v956
        %989 = vst [vmem:[%s378 + $0x60] sm:$0xff] %v957
        %990 = vst [vmem:[%s378 + $0x68] sm:$0xff] %v958
        %991 = vst [vmem:[%s378 + $0x70] sm:$0xff] %v959
        %992 = vst [vmem:[%s378 + $0x78] sm:$0xff] %v960
        %993 = vst [vmem:[%s378 + $0x80] sm:$0xff] %v961
        %994 = vst [vmem:[%s378 + $0x88] sm:$0xff] %v962
        %995 = vst [vmem:[%s378 + $0x90] sm:$0xff] %v963
        %996 = vst [vmem:[%s378 + $0x98] sm:$0xff] %v964
        %997 = vst [vmem:[%s378 + $0xa0] sm:$0xff] %v965
        %998 = vst [vmem:[%s378 + $0xa8] sm:$0xff] %v966
        %999 = vst [vmem:[%s378 + $0xb0] sm:$0xff] %v967
        %1000 = vst [vmem:[%s378 + $0xb8] sm:$0xff] %v968
        %1001 = vst [vmem:[%s378 + $0xc0] sm:$0xff] %v969
        %1002 = vst [vmem:[%s378 + $0xc8] sm:$0xff] %v970
        %1003 = vst [vmem:[%s378 + $0xd0] sm:$0xff] %v971
        %1004 = vst [vmem:[%s378 + $0xd8] sm:$0xff] %v972
        %1005 = vst [vmem:[%s378 + $0xe0] sm:$0xff] %v973
        %1006 = vst [vmem:[%s378 + $0xe8] sm:$0xff] %v974
        %1007 = vst [vmem:[%s378 + $0xf0] sm:$0xff] %v975
        %1008 = vst [vmem:[%s378 + $0xf8] sm:$0xff] %v976
        %v1009 = vadd.f32 %v945, %v946
        %v1010 = vadd.f32 %v1009, %v947
        %v1011 = vadd.f32 %v1010, %v948
        %v1012 = vadd.f32 %v1011, %v949
        %v1013 = vadd.f32 %v1012, %v950
        %v1014 = vadd.f32 %v1013, %v951
        %v1015 = vadd.f32 %v1014, %v952
        %v1016 = vadd.f32 %v1015, %v953
        %v1017 = vadd.f32 %v1016, %v954
        %v1018 = vadd.f32 %v1017, %v955
        %v1019 = vadd.f32 %v1018, %v956
        %v1020 = vadd.f32 %v1019, %v957
        %v1021 = vadd.f32 %v1020, %v958
        %v1022 = vadd.f32 %v1021, %v959
        %v1023 = vadd.f32 %v1022, %v960
        %v1024 = vadd.f32 %v1023, %v961
        %v1025 = vadd.f32 %v1024, %v962
        %v1026 = vadd.f32 %v1025, %v963
        %v1027 = vadd.f32 %v1026, %v964
        %v1028 = vadd.f32 %v1027, %v965
        %v1029 = vadd.f32 %v1028, %v966
        %v1030 = vadd.f32 %v1029, %v967
        %v1031 = vadd.f32 %v1030, %v968
        %v1032 = vadd.f32 %v1031, %v969
        %v1033 = vadd.f32 %v1032, %v970
        %v1034 = vadd.f32 %v1033, %v971
        %v1035 = vadd.f32 %v1034, %v972
        %v1036 = vadd.f32 %v1035, %v973
        %v1037 = vadd.f32 %v1036, %v974
        %v1038 = vadd.f32 %v1037, %v975
        %v1039 = vadd.f32 %v1038, %v976
        %v1040 = vrot.slane %v1039, 4
        %v1041 = vadd.f32 %v1039, %v1040
        %v1042 = vrot.slane %v1041, 2
        %v1043 = vadd.f32 %v1041, %v1042
        %v1044 = vrot.slane %v1043, 1
        %v1045 = vadd.f32 %v1043, %v1044
        %v1046 = vmul.f32 %v945, %v945
        %v1047 = vmul.f32 %v946, %v946
        %v1048 = vmul.f32 %v947, %v947
        %v1049 = vmul.f32 %v948, %v948
        %v1050 = vmul.f32 %v949, %v949
        %v1051 = vmul.f32 %v950, %v950
        %v1052 = vmul.f32 %v951, %v951
        %v1053 = vmul.f32 %v952, %v952
        %v1054 = vmul.f32 %v953, %v953
        %v1055 = vmul.f32 %v954, %v954
        %v1056 = vmul.f32 %v955, %v955
        %v1057 = vmul.f32 %v956, %v956
        %v1058 = vmul.f32 %v957, %v957
        %v1059 = vmul.f32 %v958, %v958
        %v1060 = vmul.f32 %v959, %v959
        %v1061 = vmul.f32 %v960, %v960
        %v1062 = vmul.f32 %v961, %v961
        %v1063 = vmul.f32 %v962, %v962
        %v1064 = vmul.f32 %v963, %v963
        %v1065 = vmul.f32 %v964, %v964
        %v1066 = vmul.f32 %v965, %v965
        %v1067 = vmul.f32 %v966, %v966
        %v1068 = vmul.f32 %v967, %v967
        %v1069 = vmul.f32 %v968, %v968
        %v1070 = vmul.f32 %v969, %v969
        %v1071 = vmul.f32 %v970, %v970
        %v1072 = vmul.f32 %v971, %v971
        %v1073 = vmul.f32 %v972, %v972
        %v1074 = vmul.f32 %v973, %v973
        %v1075 = vmul.f32 %v974, %v974
        %v1076 = vmul.f32 %v975, %v975
        %v1077 = vmul.f32 %v976, %v976
        %v1078 = vadd.f32 %v1046, %v1047
        %v1079 = vadd.f32 %v1078, %v1048
        %v1080 = vadd.f32 %v1079, %v1049
        %v1081 = vadd.f32 %v1080, %v1050
        %v1082 = vadd.f32 %v1081, %v1051
        %v1083 = vadd.f32 %v1082, %v1052
        %v1084 = vadd.f32 %v1083, %v1053
        %v1085 = vadd.f32 %v1084, %v1054
        %v1086 = vadd.f32 %v1085, %v1055
        %v1087 = vadd.f32 %v1086, %v1056
        %v1088 = vadd.f32 %v1087, %v1057
        %v1089 = vadd.f32 %v1088, %v1058
        %v1090 = vadd.f32 %v1089, %v1059
        %v1091 = vadd.f32 %v1090, %v1060
        %v1092 = vadd.f32 %v1091, %v1061
        %v1093 = vadd.f32 %v1092, %v1062
        %v1094 = vadd.f32 %v1093, %v1063
        %v1095 = vadd.f32 %v1094, %v1064
        %v1096 = vadd.f32 %v1095, %v1065
        %v1097 = vadd.f32 %v1096, %v1066
        %v1098 = vadd.f32 %v1097, %v1067
        %v1099 = vadd.f32 %v1098, %v1068
        %v1100 = vadd.f32 %v1099, %v1069
        %v1101 = vadd.f32 %v1100, %v1070
        %v1102 = vadd.f32 %v1101, %v1071
        %v1103 = vadd.f32 %v1102, %v1072
        %v1104 = vadd.f32 %v1103, %v1073
        %v1105 = vadd.f32 %v1104, %v1074
        %v1106 = vadd.f32 %v1105, %v1075
        %v1107 = vadd.f32 %v1106, %v1076
        %v1108 = vadd.f32 %v1107, %v1077
        %v1109 = vrot.slane %v1108, 4
        %v1110 = vadd.f32 %v1108, %v1109
        %v1111 = vrot.slane %v1110, 2
        %v1112 = vadd.f32 %v1110, %v1111
        %v1113 = vrot.slane %v1112, 1
        %v1114 = vadd.f32 %v1112, %v1113
        %vm1115 = vcmask 1040384
        %v1116 = vsel %vm1115, %v1045, %v1114
        %vm1117 = vcmask 1041408
        %v1118 = vsel %vm1117, %v1116, 0.0
        %1119 = vst [vmem:[%s386] sm:$0xff] %v1118
      $region48: #{bottleneck_forward.7} parent=39 // pred_fallthru
        _
      %s1120 = smul.u32 32, %s23
      %p1121 = scmp.lt.s32.totalorder %s1120, 63
      %s1122 = scalar_select %p1121, %s1120, 63
      %p1123 = scmp.lt.s32.totalorder %s24, 0
      %s1124 = scalar_select %p1123, %s24, 0
      %s1125 = sadd.s32 %s1124, %s1122
      %s1126 = smul.addr %s1125, 8
      %s1127 = scalar_lea.vmem %s5, %s1126
      %p1128 = scmp.lt.s32.totalorder %s23, 1
      %s1129 = scalar_select %p1128, %s23, 1
      %p1130 = scmp.lt.s32.totalorder %s24, 0
      %s1131 = scalar_select %p1130, %s24, 0
      %s1132 = sadd.s32 %s1131, %s1129
      %s1133 = smul.addr %s1132, 8
      %s1134 = scalar_lea.vmem %s6, %s1133
      // Predicated region
      $region49: #{bottleneck_forward.7} parent=39 // pred_check
        %p1135 = pneg %p191
      $region50: #{bottleneck_forward.7} parent=39 // pred_check_branch
        %1137 = sbr.rel (%p1135) target = $region52
      $region51: #{bottleneck_forward.7} parent=39 // pred_region
        %s1138 = smul.u32 32, %s23
      $region52: #{bottleneck_forward.7} parent=39 // pred_fallthru
        _
      // Predicated region
      $region53: #{bottleneck_forward.7} parent=39 // pred_check
        %p1139 = pneg %p219
      $region54: #{bottleneck_forward.7} parent=39 // pred_check_branch
        %1141 = sbr.rel (%p1139) target = $region56
      $region55: #{bottleneck_forward.7} parent=39 // pred_region
        _
      $region56: #{bottleneck_forward.7} parent=39 // pred_fallthru
        _
    $region40: #{bottleneck_forward.7} parent=5 // pred_fallthru
      _
    %p1142 = scmp.le.s32.totalorder 2, %s13
    // Predicated region
    $region57: #{bottleneck_forward.7} parent=5 // pred_check
      %p1143 = pneg %p1142
    $region58: #{bottleneck_forward.7} parent=5 // pred_check_branch
      %1145 = sbr.rel (%p1143) target = $region60
    $region59: #{bottleneck_forward.7} parent=5 // pred_region
      %s1146 = ssub.s32 %s13, 2
      // Predicated region
      $region61: #{bottleneck_forward.7} parent=59 // pred_check
        %p1147 = pneg %p197
      $region62: #{bottleneck_forward.7} parent=59 // pred_check_branch
        %1149 = sbr.rel (%p1147) target = $region64
      $region63: #{bottleneck_forward.7} parent=59 // pred_region
        %s1150 = smul.u32 32, %s26
        %p1151 = scmp.lt.s32.totalorder %s1150, 63
        %s1152 = scalar_select %p1151, %s1150, 63
        %p1153 = scmp.lt.s32.totalorder %s27, 0
        %s1154 = scalar_select %p1153, %s27, 0
        %s1155 = sadd.s32 %s1154, %s1152
        %s1156 = smul.addr %s1155, 8
        %s1157 = scalar_lea.vmem %s5, %s1156
      $region64: #{bottleneck_forward.7} parent=59 // pred_fallthru
        _
      // Predicated region
      $region65: #{bottleneck_forward.7} parent=59 // pred_check
        %p1158 = pneg %p225
      $region66: #{bottleneck_forward.7} parent=59 // pred_check_branch
        %1160 = sbr.rel (%p1158) target = $region68
      $region67: #{bottleneck_forward.7} parent=59 // pred_region
        %p1161 = scmp.lt.s32.totalorder %s26, 1
        %s1162 = scalar_select %p1161, %s26, 1
        %p1163 = scmp.lt.s32.totalorder %s27, 0
        %s1164 = scalar_select %p1163, %s27, 0
        %s1165 = sadd.s32 %s1164, %s1162
        %s1166 = smul.addr %s1165, 8
        %s1167 = scalar_lea.vmem %s6, %s1166
      $region68: #{bottleneck_forward.7} parent=59 // pred_fallthru
        _
    $region60: #{bottleneck_forward.7} parent=5 // pred_fallthru
      _
  $region6: #{bottleneck_forward.7} parent=0 // loop_footer
    %s17 = sadd.s32 1, %s13
  $region7: #{bottleneck_forward.7} parent=0 // loop_footer_branch
    %12 = sbr.rel target = $region3
  $region8: #{bottleneck_forward.7} parent=0 // loop_exit
    _

// kernel: bottleneck_forward.6
$region0: #{bottleneck_forward.6}
  #allocation0 [shape = 'u32[]', space=smem, size = 0x4, offset = 0x4, fixed_abs, tag = 'smem constant byte address 0x4 - core index']
  #allocation1 [shape = 'u32[144,128]{1,0:T(1,128)}', space=vmem, size = 0x12000, scoped, tag = 'internal scratch']
  #allocation2 [shape = 'bf16[18,18,128]{2,1,0:T(8,128)(2,1)}', space=vmem, size = 0x1b000, scoped, tag = 'scratch operand']
  #allocation3 [shape = 'f32[256,128]{1,0:T(8,128)}', space=vmem, size = 0x20000, scoped, tag = 'scratch operand']
  %s0 = inlined_call_operand.vmem [shape: f32[2,18,18,128], index: 0, kind: input, shape index: {}]
  %s1 = inlined_call_operand.vmem [shape: bf16[9,128,128], index: 1, kind: input, shape index: {}]
  %s2 = inlined_call_operand.vmem [shape: f32[1,128], index: 2, kind: input, shape index: {}]
  %s3 = inlined_call_operand.vmem [shape: f32[1,128], index: 3, kind: input, shape index: {}]
  %s4 = inlined_call_operand.vmem [shape: f32[1,128], index: 4, kind: input, shape index: {}]
  %s5 = inlined_call_operand.vmem [shape: f32[2,256,128], index: 5, kind: output, shape index: {0}]
  %s6 = inlined_call_operand.vmem [shape: f32[2,8,128], index: 6, kind: output, shape index: {1}]
  %7 = xla_tuple %s5, %s6
  %s8 = sld [smem:[#allocation0]]
  $region61: #{bottleneck_forward.6} parent=0
    _
  %s10 = ssub.s32 1, %s8
  %s11 = scalar_select 0, %s10, %s8
  loop: start=0, step=1, limit=4
  $region2: #{bottleneck_forward.6} parent=0 // loop_pre_header
    _
  $region3: #{bottleneck_forward.6} parent=0 // loop_header
    %s13 = sphi 0, %s17
    %p14 = scmp.ge.s32.totalorder %s13, 4
    %s23 = sphi 0, %s25
    %s26 = sphi 0, %s23
    %s27 = sphi 0, %s26
    %s43 = sphi 0, %s27
    %s47 = sphi 0, %s47
    %s49 = sphi 0, %s47
    %s50 = sphi 0, %s49
    %s64 = sphi 0, %s50
    %s68 = sphi 0, %s68
    %s70 = sphi 0, %s68
    %s71 = sphi 0, %s70
    %s85 = sphi 0, %s71
    %s89 = sphi 0, %s89
    %s91 = sphi 0, %s89
    %s92 = sphi 0, %s91
    %s106 = sphi 0, %s92
    %s110 = sphi 0, %s110
    %s112 = sphi 0, %s110
    %s113 = sphi 0, %s112
    %s127 = sphi 0, %s113
    %s133 = sphi 0, %s135
    %s136 = sphi 0, %s133
    %s137 = sphi 0, %s136
    %s153 = sphi 0, %s137
    %s159 = sphi 0, %s161
    %s162 = sphi 0, %s159
    %s163 = sphi 0, %s162
    %s179 = sphi 0, %s163
  $region4: #{bottleneck_forward.6} parent=0 // loop_header_branch
    %16 = sbr.rel (%p14) target = $region8
  $region5: #{bottleneck_forward.6} parent=0 // loop_body
    %s18 = ssub.s32 %s13, 1
    %s19 = ssub.s32 %s13, 2
    %s20 = sadd.s32 %s13, 1
    %s21 = ssub.s32 %s13, %s20
    %p22 = scmp.eq.s32.totalorder %s21, 0
    %s24 = sadd.s32 %s23, 1
    %s25 = scalar_select %p22, %s23, %s24
    %p28 = pneg %p22
    %p29 = scmp.eq.s32.totalorder %s13, 1
    %p30 = por %p28, %p29
    %p31 = scmp.ne.s32.totalorder %s23, %s26
    %p32 = scmp.eq.s32.totalorder %s13, 0
    %p33 = por %p31, %p32
    %p34 = scmp.ne.s32.totalorder %s23, %s26
    %p35 = scmp.eq.s32.totalorder %s18, 1
    %p36 = por %p34, %p35
    %p37 = scmp.ne.s32.totalorder %s26, %s27
    %p38 = scmp.eq.s32.totalorder %s18, 0
    %p39 = por %p37, %p38
    %p40 = scmp.ne.s32.totalorder %s26, %s27
    %p41 = scmp.eq.s32.totalorder %s19, 1
    %p42 = por %p40, %p41
    %p44 = scmp.ne.s32.totalorder %s27, %s43
    %p45 = scmp.eq.s32.totalorder %s19, 0
    %p46 = por %p44, %p45
    %s48 = sadd.s32 %s47, 1
    %p51 = scmp.eq.s32.totalorder %s13, 1
    %p52 = scmp.ne.s32.totalorder %s47, %s49
    %p53 = scmp.eq.s32.totalorder %s13, 0
    %p54 = por %p52, %p53
    %p55 = scmp.ne.s32.totalorder %s47, %s49
    %p56 = scmp.eq.s32.totalorder %s18, 1
    %p57 = por %p55, %p56
    %p58 = scmp.ne.s32.totalorder %s49, %s50
    %p59 = scmp.eq.s32.totalorder %s18, 0
    %p60 = por %p58, %p59
    %p61 = scmp.ne.s32.totalorder %s49, %s50
    %p62 = scmp.eq.s32.totalorder %s19, 1
    %p63 = por %p61, %p62
    %p65 = scmp.ne.s32.totalorder %s50, %s64
    %p66 = scmp.eq.s32.totalorder %s19, 0
    %p67 = por %p65, %p66
    %s69 = sadd.s32 %s68, 1
    %p72 = scmp.eq.s32.totalorder %s13, 1
    %p73 = scmp.ne.s32.totalorder %s68, %s70
    %p74 = scmp.eq.s32.totalorder %s13, 0
    %p75 = por %p73, %p74
    %p76 = scmp.ne.s32.totalorder %s68, %s70
    %p77 = scmp.eq.s32.totalorder %s18, 1
    %p78 = por %p76, %p77
    %p79 = scmp.ne.s32.totalorder %s70, %s71
    %p80 = scmp.eq.s32.totalorder %s18, 0
    %p81 = por %p79, %p80
    %p82 = scmp.ne.s32.totalorder %s70, %s71
    %p83 = scmp.eq.s32.totalorder %s19, 1
    %p84 = por %p82, %p83
    %p86 = scmp.ne.s32.totalorder %s71, %s85
    %p87 = scmp.eq.s32.totalorder %s19, 0
    %p88 = por %p86, %p87
    %s90 = sadd.s32 %s89, 1
    %p93 = scmp.eq.s32.totalorder %s13, 1
    %p94 = scmp.ne.s32.totalorder %s89, %s91
    %p95 = scmp.eq.s32.totalorder %s13, 0
    %p96 = por %p94, %p95
    %p97 = scmp.ne.s32.totalorder %s89, %s91
    %p98 = scmp.eq.s32.totalorder %s18, 1
    %p99 = por %p97, %p98
    %p100 = scmp.ne.s32.totalorder %s91, %s92
    %p101 = scmp.eq.s32.totalorder %s18, 0
    %p102 = por %p100, %p101
    %p103 = scmp.ne.s32.totalorder %s91, %s92
    %p104 = scmp.eq.s32.totalorder %s19, 1
    %p105 = por %p103, %p104
    %p107 = scmp.ne.s32.totalorder %s92, %s106
    %p108 = scmp.eq.s32.totalorder %s19, 0
    %p109 = por %p107, %p108
    %s111 = sadd.s32 %s110, 1
    %p114 = scmp.eq.s32.totalorder %s13, 1
    %p115 = scmp.ne.s32.totalorder %s110, %s112
    %p116 = scmp.eq.s32.totalorder %s13, 0
    %p117 = por %p115, %p116
    %p118 = scmp.ne.s32.totalorder %s110, %s112
    %p119 = scmp.eq.s32.totalorder %s18, 1
    %p120 = por %p118, %p119
    %p121 = scmp.ne.s32.totalorder %s112, %s113
    %p122 = scmp.eq.s32.totalorder %s18, 0
    %p123 = por %p121, %p122
    %p124 = scmp.ne.s32.totalorder %s112, %s113
    %p125 = scmp.eq.s32.totalorder %s19, 1
    %p126 = por %p124, %p125
    %p128 = scmp.ne.s32.totalorder %s113, %s127
    %p129 = scmp.eq.s32.totalorder %s19, 0
    %p130 = por %p128, %p129
    %s131 = ssub.s32 %s13, %s20
    %p132 = scmp.eq.s32.totalorder %s131, 0
    %s134 = sadd.s32 %s133, 1
    %s135 = scalar_select %p132, %s133, %s134
    %p138 = pneg %p132
    %p139 = scmp.eq.s32.totalorder %s13, 1
    %p140 = por %p138, %p139
    %p141 = scmp.ne.s32.totalorder %s133, %s136
    %p142 = scmp.eq.s32.totalorder %s13, 0
    %p143 = por %p141, %p142
    %p144 = scmp.ne.s32.totalorder %s133, %s136
    %p145 = scmp.eq.s32.totalorder %s18, 1
    %p146 = por %p144, %p145
    %p147 = scmp.ne.s32.totalorder %s136, %s137
    %p148 = scmp.eq.s32.totalorder %s18, 0
    %p149 = por %p147, %p148
    %p150 = scmp.ne.s32.totalorder %s136, %s137
    %p151 = scmp.eq.s32.totalorder %s19, 1
    %p152 = por %p150, %p151
    %p154 = scmp.ne.s32.totalorder %s137, %s153
    %p155 = scmp.eq.s32.totalorder %s19, 0
    %p156 = por %p154, %p155
    %s157 = ssub.s32 %s13, %s20
    %p158 = scmp.eq.s32.totalorder %s157, 0
    %s160 = sadd.s32 %s159, 1
    %s161 = scalar_select %p158, %s159, %s160
    %p164 = pneg %p158
    %p165 = scmp.eq.s32.totalorder %s13, 1
    %p166 = por %p164, %p165
    %p167 = scmp.ne.s32.totalorder %s159, %s162
    %p168 = scmp.eq.s32.totalorder %s13, 0
    %p169 = por %p167, %p168
    %p170 = scmp.ne.s32.totalorder %s159, %s162
    %p171 = scmp.eq.s32.totalorder %s18, 1
    %p172 = por %p170, %p171
    %p173 = scmp.ne.s32.totalorder %s162, %s163
    %p174 = scmp.eq.s32.totalorder %s18, 0
    %p175 = por %p173, %p174
    %p176 = scmp.ne.s32.totalorder %s162, %s163
    %p177 = scmp.eq.s32.totalorder %s19, 1
    %p178 = por %p176, %p177
    %p180 = scmp.ne.s32.totalorder %s163, %s179
    %p181 = scmp.eq.s32.totalorder %s19, 0
    %p182 = por %p180, %p181
    %p183 = scmp.le.s32.totalorder 1, %s13
    %p184 = scmp.lt.s32.totalorder %s13, 3
    %p185 = pnand %p183, %p184
    %p186 = pneg %p185
    // Predicated region
    $region9: #{bottleneck_forward.6} parent=5 // pred_check
      _
    $region10: #{bottleneck_forward.6} parent=5 // pred_check_branch
      %188 = sbr.rel (%p185) target = $region12
    $region11: #{bottleneck_forward.6} parent=5 // pred_region
      %s189 = ssub.s32 %s13, 1
      // Predicated region
      $region13: #{bottleneck_forward.6} parent=11 // pred_check
        %p190 = pneg %p60
      $region14: #{bottleneck_forward.6} parent=11 // pred_check_branch
        %192 = sbr.rel (%p190) target = $region16
      $region15: #{bottleneck_forward.6} parent=11 // pred_region
        _
      $region16: #{bottleneck_forward.6} parent=11 // pred_fallthru
        _
      // Predicated region
      $region17: #{bottleneck_forward.6} parent=11 // pred_check
        %p193 = pneg %p81
      $region18: #{bottleneck_forward.6} parent=11 // pred_check_branch
        %195 = sbr.rel (%p193) target = $region20
      $region19: #{bottleneck_forward.6} parent=11 // pred_region
        _
      $region20: #{bottleneck_forward.6} parent=11 // pred_fallthru
        _
      // Predicated region
      $region21: #{bottleneck_forward.6} parent=11 // pred_check
        %p196 = pneg %p102
      $region22: #{bottleneck_forward.6} parent=11 // pred_check_branch
        %198 = sbr.rel (%p196) target = $region24
      $region23: #{bottleneck_forward.6} parent=11 // pred_region
        _
      $region24: #{bottleneck_forward.6} parent=11 // pred_fallthru
        _
      // Predicated region
      $region25: #{bottleneck_forward.6} parent=11 // pred_check
        %p199 = pneg %p123
      $region26: #{bottleneck_forward.6} parent=11 // pred_check_branch
        %201 = sbr.rel (%p199) target = $region28
      $region27: #{bottleneck_forward.6} parent=11 // pred_region
        _
      $region28: #{bottleneck_forward.6} parent=11 // pred_fallthru
        _
    $region12: #{bottleneck_forward.6} parent=5 // pred_fallthru
      _
    %p202 = scmp.lt.s32.totalorder %s13, 2
    // Predicated region
    $region29: #{bottleneck_forward.6} parent=5 // pred_check
      %p203 = pneg %p202
    $region30: #{bottleneck_forward.6} parent=5 // pred_check_branch
      %205 = sbr.rel (%p203) target = $region32
    $region31: #{bottleneck_forward.6} parent=5 // pred_region
      // Predicated region
      $region33: #{bottleneck_forward.6} parent=31 // pred_check
        %p206 = pneg %p33
      $region34: #{bottleneck_forward.6} parent=31 // pred_check_branch
        %208 = sbr.rel (%p206) target = $region36
      $region35: #{bottleneck_forward.6} parent=31 // pred_region
        %p209 = scmp.lt.s32.totalorder %s13, 1
        %s210 = scalar_select %p209, %s13, 1
        %s211 = smul.addr %s210, 54
        %s212 = smul.addr %s211, 8
        %s213 = scalar_lea.vmem %s0, %s212
      $region36: #{bottleneck_forward.6} parent=31 // pred_fallthru
        _
    $region32: #{bottleneck_forward.6} parent=5 // pred_fallthru
      _
    %p214 = scmp.le.s32.totalorder 1, %s13
    %p215 = scmp.lt.s32.totalorder %s13, 3
    %p216 = pnand %p214, %p215
    %p217 = pneg %p216
    // Predicated region
    $region37: #{bottleneck_forward.6} parent=5 // pred_check
      _
    $region38: #{bottleneck_forward.6} parent=5 // pred_check_branch
      %219 = sbr.rel (%p216) target = $region40
    $region39: #{bottleneck_forward.6} parent=5 // pred_region
      %s220 = ssub.s32 %s13, 1
      %p221 = scmp.lt.s32.totalorder %s18, 1
      %s222 = scalar_select %p221, %s18, 1
      %s223 = smul.addr %s222, 54
      %s224 = smul.addr %s223, 8
      %s225 = scalar_lea.vmem %s0, %s224
      %p226 = pneg %p39
      %p227 = pneg %p36
      %p228 = pneg %p60
      %p229 = pneg %p57
      %p230 = pneg %p81
      %p231 = pneg %p78
      %p232 = pneg %p102
      %p233 = pneg %p99
      %p234 = pneg %p123
      %p235 = pneg %p120
      %p236 = pneg %p149
      %p237 = pneg %p146
      %p238 = scmp.lt.s32.totalorder %s18, 1
      %s239 = scalar_select %p238, %s18, 1
      %s240 = smul.addr %s239, 32
      %s241 = smul.addr %s240, 8
      %s242 = scalar_lea.vmem %s5, %s241
      %p243 = pneg %p175
      %p244 = pneg %p172
      %p245 = scmp.lt.s32.totalorder %s18, 1
      %s246 = scalar_select %p245, %s18, 1
      %s247 = smul.addr %s246, 8
      %s248 = scalar_lea.vmem %s6, %s247
      %p249 = scmp.lt.s32.totalorder %s18, 1
      %s250 = scalar_select %p249, %s18, 1
      %s251 = smul.addr %s250, 54
      %s252 = smul.addr %s251, 8
      %s253 = scalar_lea.vmem %s0, %s252
      %p254 = scmp.lt.s32.totalorder %s18, 1
      %s255 = scalar_select %p254, %s18, 1
      %s256 = smul.addr %s255, 32
      %s257 = smul.addr %s256, 8
      %s258 = scalar_lea.vmem %s5, %s257
      %p259 = scmp.lt.s32.totalorder %s18, 1
      %s260 = scalar_select %p259, %s18, 1
      %s261 = smul.addr %s260, 8
      %s262 = scalar_lea.vmem %s6, %s261
      %v264 = vld [vmem:[%s253] sm:$0xff]
      %v265 = vld [vmem:[%s253 + $0x8] sm:$0xff]
      %v266 = vld [vmem:[%s253 + $0x10] sm:$0x3]
      %v267 = vld [vmem:[%s253 + $0x18] sm:$0xff]
      %v268 = vld [vmem:[%s253 + $0x20] sm:$0xff]
      %v269 = vld [vmem:[%s253 + $0x28] sm:$0x3]
      %v270 = vld [vmem:[%s253 + $0x30] sm:$0xff]
      %v271 = vld [vmem:[%s253 + $0x38] sm:$0xff]
      %v272 = vld [vmem:[%s253 + $0x40] sm:$0x3]
      %v273 = vld [vmem:[%s253 + $0x48] sm:$0xff]
      %v274 = vld [vmem:[%s253 + $0x50] sm:$0xff]
      %v275 = vld [vmem:[%s253 + $0x58] sm:$0x3]
      %v276 = vld [vmem:[%s253 + $0x60] sm:$0xff]
      %v277 = vld [vmem:[%s253 + $0x68] sm:$0xff]
      %v278 = vld [vmem:[%s253 + $0x70] sm:$0x3]
      %v279 = vld [vmem:[%s253 + $0x78] sm:$0xff]
      %v280 = vld [vmem:[%s253 + $0x80] sm:$0xff]
      %v281 = vld [vmem:[%s253 + $0x88] sm:$0x3]
      %v282 = vld [vmem:[%s253 + $0x90] sm:$0xff]
      %v283 = vld [vmem:[%s253 + $0x98] sm:$0xff]
      %v284 = vld [vmem:[%s253 + $0xa0] sm:$0x3]
      %v285 = vld [vmem:[%s253 + $0xa8] sm:$0xff]
      %v286 = vld [vmem:[%s253 + $0xb0] sm:$0xff]
      %v287 = vld [vmem:[%s253 + $0xb8] sm:$0x3]
      %v288 = vld [vmem:[%s253 + $0xc0] sm:$0xff]
      %v289 = vld [vmem:[%s253 + $0xc8] sm:$0xff]
      %v290 = vld [vmem:[%s253 + $0xd0] sm:$0x3]
      %v291 = vld [vmem:[%s253 + $0xd8] sm:$0xff]
      %v292 = vld [vmem:[%s253 + $0xe0] sm:$0xff]
      %v293 = vld [vmem:[%s253 + $0xe8] sm:$0x3]
      %v294 = vld [vmem:[%s253 + $0xf0] sm:$0xff]
      %v295 = vld [vmem:[%s253 + $0xf8] sm:$0xff]
      %v296 = vld [vmem:[%s253 + $0x100] sm:$0x3]
      %v297 = vld [vmem:[%s253 + $0x108] sm:$0xff]
      %v298 = vld [vmem:[%s253 + $0x110] sm:$0xff]
      %v299 = vld [vmem:[%s253 + $0x118] sm:$0x3]
      %v300 = vld [vmem:[%s253 + $0x120] sm:$0xff]
      %v301 = vld [vmem:[%s253 + $0x128] sm:$0xff]
      %v302 = vld [vmem:[%s253 + $0x130] sm:$0x3]
      %v303 = vld [vmem:[%s253 + $0x138] sm:$0xff]
      %v304 = vld [vmem:[%s253 + $0x140] sm:$0xff]
      %v305 = vld [vmem:[%s253 + $0x148] sm:$0x3]
      %v306 = vld [vmem:[%s253 + $0x150] sm:$0xff]
      %v307 = vld [vmem:[%s253 + $0x158] sm:$0xff]
      %v308 = vld [vmem:[%s253 + $0x160] sm:$0x3]
      %v309 = vld [vmem:[%s253 + $0x168] sm:$0xff]
      %v310 = vld [vmem:[%s253 + $0x170] sm:$0xff]
      %v311 = vld [vmem:[%s253 + $0x178] sm:$0x3]
      %v312 = vld [vmem:[%s253 + $0x180] sm:$0xff]
      %v313 = vld [vmem:[%s253 + $0x188] sm:$0xff]
      %v314 = vld [vmem:[%s253 + $0x190] sm:$0x3]
      %v315 = vld [vmem:[%s253 + $0x198] sm:$0xff]
      %v316 = vld [vmem:[%s253 + $0x1a0] sm:$0xff]
      %v317 = vld [vmem:[%s253 + $0x1a8] sm:$0x3]
      %v318 = vlaneseq
      %v319 = vshrl.u32 %v318, 7
      %v320 = vadd.s32 %v319, 8
      %v321 = vadd.s32 %v319, 16
      %vm322 = vcmp.ge.s32.totalorder %v319, 1
      %vm323 = vcmp.ge.s32.totalorder %v320, 1
      %vm324 = vcmp.ge.s32.totalorder %v321, 1
      %vm325 = vmand 0, %vm322
      %vm326 = vmand 0, %vm323
      %vm327 = vmand 0, %vm324
      %vm328 = vmand 1, %vm322
      %vm329 = vmand 1, %vm323
      %vm330 = vmand 1, %vm324
      %vm331 = vcmp.le.s32.totalorder %v319, 16
      %vm332 = vcmp.le.s32.totalorder %v320, 16
      %vm333 = vcmp.le.s32.totalorder %v321, 16
      %vm334 = vmand %vm325, %vm331
      %vm335 = vmand %vm326, %vm332
      %vm336 = vmand %vm327, %vm333
      %vm337 = vmand %vm328, %vm331
      %vm338 = vmand %vm329, %vm332
      %vm339 = vmand %vm330, %vm333
      %v340 = vld [vmem:[%s3] sm:$0x1]
      %v342 = vlaneseq
      %v343 = vshrl.u32 %v342, 7
      %v344 = vsub.s32 0, %v343
      %v345 = vrot.slane %v340, %v344
      %v347 = vmul.f32 %v264, %v345
      %v348 = vmul.f32 %v265, %v345
      %v349 = vmul.f32 %v266, %v345
      %v350 = vmul.f32 %v267, %v345
      %v351 = vmul.f32 %v268, %v345
      %v352 = vmul.f32 %v269, %v345
      %v353 = vmul.f32 %v270, %v345
      %v354 = vmul.f32 %v271, %v345
      %v355 = vmul.f32 %v272, %v345
      %v356 = vmul.f32 %v273, %v345
      %v357 = vmul.f32 %v274, %v345
      %v358 = vmul.f32 %v275, %v345
      %v359 = vmul.f32 %v276, %v345
      %v360 = vmul.f32 %v277, %v345
      %v361 = vmul.f32 %v278, %v345
      %v362 = vmul.f32 %v279, %v345
      %v363 = vmul.f32 %v280, %v345
      %v364 = vmul.f32 %v281, %v345
      %v365 = vmul.f32 %v282, %v345
      %v366 = vmul.f32 %v283, %v345
      %v367 = vmul.f32 %v284, %v345
      %v368 = vmul.f32 %v285, %v345
      %v369 = vmul.f32 %v286, %v345
      %v370 = vmul.f32 %v287, %v345
      %v371 = vmul.f32 %v288, %v345
      %v372 = vmul.f32 %v289, %v345
      %v373 = vmul.f32 %v290, %v345
      %v374 = vmul.f32 %v291, %v345
      %v375 = vmul.f32 %v292, %v345
      %v376 = vmul.f32 %v293, %v345
      %v377 = vmul.f32 %v294, %v345
      %v378 = vmul.f32 %v295, %v345
      %v379 = vmul.f32 %v296, %v345
      %v380 = vmul.f32 %v297, %v345
      %v381 = vmul.f32 %v298, %v345
      %v382 = vmul.f32 %v299, %v345
      %v383 = vmul.f32 %v300, %v345
      %v384 = vmul.f32 %v301, %v345
      %v385 = vmul.f32 %v302, %v345
      %v386 = vmul.f32 %v303, %v345
      %v387 = vmul.f32 %v304, %v345
      %v388 = vmul.f32 %v305, %v345
      %v389 = vmul.f32 %v306, %v345
      %v390 = vmul.f32 %v307, %v345
      %v391 = vmul.f32 %v308, %v345
      %v392 = vmul.f32 %v309, %v345
      %v393 = vmul.f32 %v310, %v345
      %v394 = vmul.f32 %v311, %v345
      %v395 = vmul.f32 %v312, %v345
      %v396 = vmul.f32 %v313, %v345
      %v397 = vmul.f32 %v314, %v345
      %v398 = vmul.f32 %v315, %v345
      %v399 = vmul.f32 %v316, %v345
      %v400 = vmul.f32 %v317, %v345
      %v401 = vld [vmem:[%s4] sm:$0x1]
      %v403 = vlaneseq
      %v404 = vshrl.u32 %v403, 7
      %v405 = vsub.s32 0, %v404
      %v406 = vrot.slane %v401, %v405
      %v408 = vadd.f32 %v347, %v406
      %v409 = vadd.f32 %v348, %v406
      %v410 = vadd.f32 %v349, %v406
      %v411 = vadd.f32 %v350, %v406
      %v412 = vadd.f32 %v351, %v406
      %v413 = vadd.f32 %v352, %v406
      %v414 = vadd.f32 %v353, %v406
      %v415 = vadd.f32 %v354, %v406
      %v416 = vadd.f32 %v355, %v406
      %v417 = vadd.f32 %v356, %v406
      %v418 = vadd.f32 %v357, %v406
      %v419 = vadd.f32 %v358, %v406
      %v420 = vadd.f32 %v359, %v406
      %v421 = vadd.f32 %v360, %v406
      %v422 = vadd.f32 %v361, %v406
      %v423 = vadd.f32 %v362, %v406
      %v424 = vadd.f32 %v363, %v406
      %v425 = vadd.f32 %v364, %v406
      %v426 = vadd.f32 %v365, %v406
      %v427 = vadd.f32 %v366, %v406
      %v428 = vadd.f32 %v367, %v406
      %v429 = vadd.f32 %v368, %v406
      %v430 = vadd.f32 %v369, %v406
      %v431 = vadd.f32 %v370, %v406
      %v432 = vadd.f32 %v371, %v406
      %v433 = vadd.f32 %v372, %v406
      %v434 = vadd.f32 %v373, %v406
      %v435 = vadd.f32 %v374, %v406
      %v436 = vadd.f32 %v375, %v406
      %v437 = vadd.f32 %v376, %v406
      %v438 = vadd.f32 %v377, %v406
      %v439 = vadd.f32 %v378, %v406
      %v440 = vadd.f32 %v379, %v406
      %v441 = vadd.f32 %v380, %v406
      %v442 = vadd.f32 %v381, %v406
      %v443 = vadd.f32 %v382, %v406
      %v444 = vadd.f32 %v383, %v406
      %v445 = vadd.f32 %v384, %v406
      %v446 = vadd.f32 %v385, %v406
      %v447 = vadd.f32 %v386, %v406
      %v448 = vadd.f32 %v387, %v406
      %v449 = vadd.f32 %v388, %v406
      %v450 = vadd.f32 %v389, %v406
      %v451 = vadd.f32 %v390, %v406
      %v452 = vadd.f32 %v391, %v406
      %v453 = vadd.f32 %v392, %v406
      %v454 = vadd.f32 %v393, %v406
      %v455 = vadd.f32 %v394, %v406
      %v456 = vadd.f32 %v395, %v406
      %v457 = vadd.f32 %v396, %v406
      %v458 = vadd.f32 %v397, %v406
      %v459 = vadd.f32 %v398, %v406
      %v460 = vadd.f32 %v399, %v406
      %v461 = vadd.f32 %v400, %v406
      %v462 = vmax.f32 %v408, 0.0
      %v463 = vmax.f32 %v409, 0.0
      %v464 = vmax.f32 %v410, 0.0
      %v465 = vmax.f32 %v411, 0.0
      %v466 = vmax.f32 %v412, 0.0
      %v467 = vmax.f32 %v413, 0.0
      %v468 = vmax.f32 %v414, 0.0
      %v469 = vmax.f32 %v415, 0.0
      %v470 = vmax.f32 %v416, 0.0
      %v471 = vmax.f32 %v417, 0.0
      %v472 = vmax.f32 %v418, 0.0
      %v473 = vmax.f32 %v419, 0.0
      %v474 = vmax.f32 %v420, 0.0
      %v475 = vmax.f32 %v421, 0.0
      %v476 = vmax.f32 %v422, 0.0
      %v477 = vmax.f32 %v423, 0.0
      %v478 = vmax.f32 %v424, 0.0
      %v479 = vmax.f32 %v425, 0.0
      %v480 = vmax.f32 %v426, 0.0
      %v481 = vmax.f32 %v427, 0.0
      %v482 = vmax.f32 %v428, 0.0
      %v483 = vmax.f32 %v429, 0.0
      %v484 = vmax.f32 %v430, 0.0
      %v485 = vmax.f32 %v431, 0.0
      %v486 = vmax.f32 %v432, 0.0
      %v487 = vmax.f32 %v433, 0.0
      %v488 = vmax.f32 %v434, 0.0
      %v489 = vmax.f32 %v435, 0.0
      %v490 = vmax.f32 %v436, 0.0
      %v491 = vmax.f32 %v437, 0.0
      %v492 = vmax.f32 %v438, 0.0
      %v493 = vmax.f32 %v439, 0.0
      %v494 = vmax.f32 %v440, 0.0
      %v495 = vmax.f32 %v441, 0.0
      %v496 = vmax.f32 %v442, 0.0
      %v497 = vmax.f32 %v443, 0.0
      %v498 = vmax.f32 %v444, 0.0
      %v499 = vmax.f32 %v445, 0.0
      %v500 = vmax.f32 %v446, 0.0
      %v501 = vmax.f32 %v447, 0.0
      %v502 = vmax.f32 %v448, 0.0
      %v503 = vmax.f32 %v449, 0.0
      %v504 = vmax.f32 %v450, 0.0
      %v505 = vmax.f32 %v451, 0.0
      %v506 = vmax.f32 %v452, 0.0
      %v507 = vmax.f32 %v453, 0.0
      %v508 = vmax.f32 %v454, 0.0
      %v509 = vmax.f32 %v455, 0.0
      %v510 = vmax.f32 %v456, 0.0
      %v511 = vmax.f32 %v457, 0.0
      %v512 = vmax.f32 %v458, 0.0
      %v513 = vmax.f32 %v459, 0.0
      %v514 = vmax.f32 %v460, 0.0
      %v515 = vmax.f32 %v461, 0.0
      %v516 = vsel %vm334, 1, 0
      %v517 = vsel %vm335, 1, 0
      %v518 = vsel %vm336, 1, 0
      %v519 = vsel %vm337, 1, 0
      %v520 = vsel %vm338, 1, 0
      %v521 = vsel %vm339, 1, 0
      %vm522 = vcmp.eq.s32.totalorder %v516, 1
      %vm523 = vcmp.eq.s32.totalorder %v517, 1
      %vm524 = vcmp.eq.s32.totalorder %v518, 1
      %vm525 = vcmp.eq.s32.totalorder %v519, 1
      %vm526 = vcmp.eq.s32.totalorder %v520, 1
      %vm527 = vcmp.eq.s32.totalorder %v521, 1
      %v528 = vsel %vm522, %v462, 0.0
      %v529 = vsel %vm523, %v463, 0.0
      %v530 = vsel %vm524, %v464, 0.0
      %v531 = vsel %vm525, %v465, 0.0
      %v532 = vsel %vm526, %v466, 0.0
      %v533 = vsel %vm527, %v467, 0.0
      %v534 = vsel %vm525, %v468, 0.0
      %v535 = vsel %vm526, %v469, 0.0
      %v536 = vsel %vm527, %v470, 0.0
      %v537 = vsel %vm525, %v471, 0.0
      %v538 = vsel %vm526, %v472, 0.0
      %v539 = vsel %vm527, %v473, 0.0
      %v540 = vsel %vm525, %v474, 0.0
      %v541 = vsel %vm526, %v475, 0.0
      %v542 = vsel %vm527, %v476, 0.0
      %v543 = vsel %vm525, %v477, 0.0
      %v544 = vsel %vm526, %v478, 0.0
      %v545 = vsel %vm527, %v479, 0.0
      %v546 = vsel %vm525, %v480, 0.0
      %v547 = vsel %vm526, %v481, 0.0
      %v548 = vsel %vm527, %v482, 0.0
      %v549 = vsel %vm525, %v483, 0.0
      %v550 = vsel %vm526, %v484, 0.0
      %v551 = vsel %vm527, %v485, 0.0
      %v552 = vsel %vm525, %v486, 0.0
      %v553 = vsel %vm526, %v487, 0.0
      %v554 = vsel %vm527, %v488, 0.0
      %v555 = vsel %vm525, %v489, 0.0
      %v556 = vsel %vm526, %v490, 0.0
      %v557 = vsel %vm527, %v491, 0.0
      %v558 = vsel %vm525, %v492, 0.0
      %v559 = vsel %vm526, %v493, 0.0
      %v560 = vsel %vm527, %v494, 0.0
      %v561 = vsel %vm525, %v495, 0.0
      %v562 = vsel %vm526, %v496, 0.0
      %v563 = vsel %vm527, %v497, 0.0
      %v564 = vsel %vm525, %v498, 0.0
      %v565 = vsel %vm526, %v499, 0.0
      %v566 = vsel %vm527, %v500, 0.0
      %v567 = vsel %vm525, %v501, 0.0
      %v568 = vsel %vm526, %v502, 0.0
      %v569 = vsel %vm527, %v503, 0.0
      %v570 = vsel %vm525, %v504, 0.0
      %v571 = vsel %vm526, %v505, 0.0
      %v572 = vsel %vm527, %v506, 0.0
      %v573 = vsel %vm525, %v507, 0.0
      %v574 = vsel %vm526, %v508, 0.0
      %v575 = vsel %vm527, %v509, 0.0
      %v576 = vsel %vm525, %v510, 0.0
      %v577 = vsel %vm526, %v511, 0.0
      %v578 = vsel %vm527, %v512, 0.0
      %v579 = vsel %vm522, %v513, 0.0
      %v580 = vsel %vm523, %v514, 0.0
      %v581 = vsel %vm524, %v515, 0.0
      %v582 = vpack.c.bf16 %v529, %v528
      %v583 = vpack.c.bf16 %v530, %v530
      %v584 = vpack.c.bf16 %v532, %v531
      %v585 = vpack.c.bf16 %v533, %v533
      %v586 = vpack.c.bf16 %v535, %v534
      %v587 = vpack.c.bf16 %v536, %v536
      %v588 = vpack.c.bf16 %v538, %v537
      %v589 = vpack.c.bf16 %v539, %v539
      %v590 = vpack.c.bf16 %v541, %v540
      %v591 = vpack.c.bf16 %v542, %v542
      %v592 = vpack.c.bf16 %v544, %v543
      %v593 = vpack.c.bf16 %v545, %v545
      %v594 = vpack.c.bf16 %v547, %v546
      %v595 = vpack.c.bf16 %v548, %v548
      %v596 = vpack.c.bf16 %v550, %v549
      %v597 = vpack.c.bf16 %v551, %v551
      %v598 = vpack.c.bf16 %v553, %v552
      %v599 = vpack.c.bf16 %v554, %v554
      %v600 = vpack.c.bf16 %v556, %v555
      %v601 = vpack.c.bf16 %v557, %v557
      %v602 = vpack.c.bf16 %v559, %v558
      %v603 = vpack.c.bf16 %v560, %v560
      %v604 = vpack.c.bf16 %v562, %v561
      %v605 = vpack.c.bf16 %v563, %v563
      %v606 = vpack.c.bf16 %v565, %v564
      %v607 = vpack.c.bf16 %v566, %v566
      %v608 = vpack.c.bf16 %v568, %v567
      %v609 = vpack.c.bf16 %v569, %v569
      %v610 = vpack.c.bf16 %v571, %v570
      %v611 = vpack.c.bf16 %v572, %v572
      %v612 = vpack.c.bf16 %v574, %v573
      %v613 = vpack.c.bf16 %v575, %v575
      %v614 = vpack.c.bf16 %v577, %v576
      %v615 = vpack.c.bf16 %v578, %v578
      %v616 = vpack.c.bf16 %v580, %v579
      %v617 = vpack.c.bf16 %v581, %v581
      %v654 = vunpack.c.l.b16 %v582
      %v655 = vunpack.c.h.b16 %v582
      %v656 = vunpack.c.l.b16 %v583
      %v657 = vunpack.c.l.b16 %v584
      %v658 = vunpack.c.h.b16 %v584
      %v659 = vunpack.c.l.b16 %v585
      %v660 = vunpack.c.l.b16 %v586
      %v661 = vunpack.c.h.b16 %v586
      %v662 = vunpack.c.l.b16 %v587
      %v663 = vunpack.c.l.b16 %v588
      %v664 = vunpack.c.h.b16 %v588
      %v665 = vunpack.c.l.b16 %v589
      %v666 = vunpack.c.l.b16 %v590
      %v667 = vunpack.c.h.b16 %v590
      %v668 = vunpack.c.l.b16 %v591
      %v669 = vunpack.c.l.b16 %v592
      %v670 = vunpack.c.h.b16 %v592
      %v671 = vunpack.c.l.b16 %v593
      %v672 = vunpack.c.l.b16 %v594
      %v673 = vunpack.c.h.b16 %v594
      %v674 = vunpack.c.l.b16 %v595
      %v675 = vunpack.c.l.b16 %v596
      %v676 = vunpack.c.h.b16 %v596
      %v677 = vunpack.c.l.b16 %v597
      %v678 = vunpack.c.l.b16 %v598
      %v679 = vunpack.c.h.b16 %v598
      %v680 = vunpack.c.l.b16 %v599
      %v681 = vunpack.c.l.b16 %v600
      %v682 = vunpack.c.h.b16 %v600
      %v683 = vunpack.c.l.b16 %v601
      %v684 = vunpack.c.l.b16 %v602
      %v685 = vunpack.c.h.b16 %v602
      %v686 = vunpack.c.l.b16 %v603
      %v687 = vunpack.c.l.b16 %v604
      %v688 = vunpack.c.h.b16 %v604
      %v689 = vunpack.c.l.b16 %v605
      %v690 = vunpack.c.l.b16 %v606
      %v691 = vunpack.c.h.b16 %v606
      %v692 = vunpack.c.l.b16 %v607
      %v693 = vunpack.c.l.b16 %v608
      %v694 = vunpack.c.h.b16 %v608
      %v695 = vunpack.c.l.b16 %v609
      %v696 = vunpack.c.l.b16 %v610
      %v697 = vunpack.c.h.b16 %v610
      %v698 = vunpack.c.l.b16 %v611
      %v699 = vunpack.c.l.b16 %v612
      %v700 = vunpack.c.h.b16 %v612
      %v701 = vunpack.c.l.b16 %v613
      %v702 = vunpack.c.l.b16 %v614
      %v703 = vunpack.c.h.b16 %v614
      %v704 = vunpack.c.l.b16 %v615
      %v705 = vunpack.c.l.b16 %v616
      %v706 = vunpack.c.h.b16 %v616
      %v707 = vunpack.c.l.b16 %v617
      %v708 = vpack.c.b16 %v654, %v654
      %v709 = vpack.c.b16 %v655, %v655
      %v710 = vpack.c.b16 %v656, %v656
      %v711 = vpack.c.b16 %v657, %v657
      %v712 = vpack.c.b16 %v658, %v658
      %v713 = vpack.c.b16 %v659, %v659
      %v714 = vpack.c.b16 %v660, %v660
      %v715 = vpack.c.b16 %v661, %v661
      %v716 = vpack.c.b16 %v662, %v662
      %v717 = vpack.c.b16 %v663, %v663
      %v718 = vpack.c.b16 %v664, %v664
      %v719 = vpack.c.b16 %v665, %v665
      %v720 = vpack.c.b16 %v666, %v666
      %v721 = vpack.c.b16 %v667, %v667
      %v722 = vpack.c.b16 %v668, %v668
      %v723 = vpack.c.b16 %v669, %v669
      %v724 = vpack.c.b16 %v670, %v670
      %v725 = vpack.c.b16 %v671, %v671
      %v726 = vpack.c.b16 %v672, %v672
      %v727 = vpack.c.b16 %v673, %v673
      %v728 = vpack.c.b16 %v674, %v674
      %v729 = vpack.c.b16 %v675, %v675
      %v730 = vpack.c.b16 %v676, %v676
      %v731 = vpack.c.b16 %v677, %v677
      %v732 = vpack.c.b16 %v678, %v678
      %v733 = vpack.c.b16 %v679, %v679
      %v734 = vpack.c.b16 %v680, %v680
      %v735 = vpack.c.b16 %v681, %v681
      %v736 = vpack.c.b16 %v682, %v682
      %v737 = vpack.c.b16 %v683, %v683
      %v738 = vpack.c.b16 %v684, %v684
      %v739 = vpack.c.b16 %v685, %v685
      %v740 = vpack.c.b16 %v686, %v686
      %v741 = vpack.c.b16 %v687, %v687
      %v742 = vpack.c.b16 %v688, %v688
      %v743 = vpack.c.b16 %v689, %v689
      %v744 = vpack.c.b16 %v690, %v690
      %v745 = vpack.c.b16 %v691, %v691
      %v746 = vpack.c.b16 %v692, %v692
      %v747 = vpack.c.b16 %v693, %v693
      %v748 = vpack.c.b16 %v694, %v694
      %v749 = vpack.c.b16 %v695, %v695
      %v750 = vpack.c.b16 %v696, %v696
      %v751 = vpack.c.b16 %v697, %v697
      %v752 = vpack.c.b16 %v698, %v698
      %v753 = vpack.c.b16 %v699, %v699
      %v754 = vpack.c.b16 %v700, %v700
      %v755 = vpack.c.b16 %v701, %v701
      %v756 = vpack.c.b16 %v702, %v702
      %v757 = vpack.c.b16 %v703, %v703
      %v758 = vpack.c.b16 %v704, %v704
      %v759 = vpack.c.b16 %v705, %v705
      %v760 = vpack.c.b16 %v706, %v706
      %v761 = vpack.c.b16 %v707, %v707
      %816 = vst [vmem:[#allocation2] sm:$0xf] %v708
      %817 = vst [vmem:[#allocation2 + $0x4] sm:$0xf] %v709
      %818 = vst [vmem:[#allocation2 + $0x8] sm:$0x1] %v710
      %819 = vst [vmem:[#allocation2 + $0xc] sm:$0xf] %v711
      %820 = vst [vmem:[#allocation2 + $0x10] sm:$0xf] %v712
      %821 = vst [vmem:[#allocation2 + $0x14] sm:$0x1] %v713
      %822 = vst [vmem:[#allocation2 + $0x18] sm:$0xf] %v714
      %823 = vst [vmem:[#allocation2 + $0x1c] sm:$0xf] %v715
      %824 = vst [vmem:[#allocation2 + $0x20] sm:$0x1] %v716
      %825 = vst [vmem:[#allocation2 + $0x24] sm:$0xf] %v717
      %826 = vst [vmem:[#allocation2 + $0x28] sm:$0xf] %v718
      %827 = vst [vmem:[#allocation2 + $0x2c] sm:$0x1] %v719
      %828 = vst [vmem:[#allocation2 + $0x30] sm:$0xf] %v720
      %829 = vst [vmem:[#allocation2 + $0x34] sm:$0xf] %v721
      %830 = vst [vmem:[#allocation2 + $0x38] sm:$0x1] %v722
      %831 = vst [vmem:[#allocation2 + $0x3c] sm:$0xf] %v723
      %832 = vst [vmem:[#allocation2 + $0x40] sm:$0xf] %v724
      %833 = vst [vmem:[#allocation2 + $0x44] sm:$0x1] %v725
      %834 = vst [vmem:[#allocation2 + $0x48] sm:$0xf] %v726
      %835 = vst [vmem:[#allocation2 + $0x4c] sm:$0xf] %v727
      %836 = vst [vmem:[#allocation2 + $0x50] sm:$0x1] %v728
      %837 = vst [vmem:[#allocation2 + $0x54] sm:$0xf] %v729
      %838 = vst [vmem:[#allocation2 + $0x58] sm:$0xf] %v730
      %839 = vst [vmem:[#allocation2 + $0x5c] sm:$0x1] %v731
      %840 = vst [vmem:[#allocation2 + $0x60] sm:$0xf] %v732
      %841 = vst [vmem:[#allocation2 + $0x64] sm:$0xf] %v733
      %842 = vst [vmem:[#allocation2 + $0x68] sm:$0x1] %v734
      %843 = vst [vmem:[#allocation2 + $0x6c] sm:$0xf] %v735
      %844 = vst [vmem:[#allocation2 + $0x70] sm:$0xf] %v736
      %845 = vst [vmem:[#allocation2 + $0x74] sm:$0x1] %v737
      %846 = vst [vmem:[#allocation2 + $0x78] sm:$0xf] %v738
      %847 = vst [vmem:[#allocation2 + $0x7c] sm:$0xf] %v739
      %848 = vst [vmem:[#allocation2 + $0x80] sm:$0x1] %v740
      %849 = vst [vmem:[#allocation2 + $0x84] sm:$0xf] %v741
      %850 = vst [vmem:[#allocation2 + $0x88] sm:$0xf] %v742
      %851 = vst [vmem:[#allocation2 + $0x8c] sm:$0x1] %v743
      %852 = vst [vmem:[#allocation2 + $0x90] sm:$0xf] %v744
      %853 = vst [vmem:[#allocation2 + $0x94] sm:$0xf] %v745
      %854 = vst [vmem:[#allocation2 + $0x98] sm:$0x1] %v746
      %855 = vst [vmem:[#allocation2 + $0x9c] sm:$0xf] %v747
      %856 = vst [vmem:[#allocation2 + $0xa0] sm:$0xf] %v748
      %857 = vst [vmem:[#allocation2 + $0xa4] sm:$0x1] %v749
      %858 = vst [vmem:[#allocation2 + $0xa8] sm:$0xf] %v750
      %859 = vst [vmem:[#allocation2 + $0xac] sm:$0xf] %v751
      %860 = vst [vmem:[#allocation2 + $0xb0] sm:$0x1] %v752
      %861 = vst [vmem:[#allocation2 + $0xb4] sm:$0xf] %v753
      %862 = vst [vmem:[#allocation2 + $0xb8] sm:$0xf] %v754
      %863 = vst [vmem:[#allocation2 + $0xbc] sm:$0x1] %v755
      %864 = vst [vmem:[#allocation2 + $0xc0] sm:$0xf] %v756
      %865 = vst [vmem:[#allocation2 + $0xc4] sm:$0xf] %v757
      %866 = vst [vmem:[#allocation2 + $0xc8] sm:$0x1] %v758
      %867 = vst [vmem:[#allocation2 + $0xcc] sm:$0xf] %v759
      %868 = vst [vmem:[#allocation2 + $0xd0] sm:$0xf] %v760
      %869 = vst [vmem:[#allocation2 + $0xd4] sm:$0x1] %v761
      %870 = vst [vmem:[#allocation3] sm:$0xff] 0.0
      %871 = vst [vmem:[#allocation3 + $0x8] sm:$0xff] 0.0
      %872 = vst [vmem:[#allocation3 + $0x10] sm:$0xff] 0.0
      %873 = vst [vmem:[#allocation3 + $0x18] sm:$0xff] 0.0
      %874 = vst [vmem:[#allocation3 + $0x20] sm:$0xff] 0.0
      %875 = vst [vmem:[#allocation3 + $0x28] sm:$0xff] 0.0
      %876 = vst [vmem:[#allocation3 + $0x30] sm:$0xff] 0.0
      %877 = vst [vmem:[#allocation3 + $0x38] sm:$0xff] 0.0
      %878 = vst [vmem:[#allocation3 + $0x40] sm:$0xff] 0.0
      %879 = vst [vmem:[#allocation3 + $0x48] sm:$0xff] 0.0
      %880 = vst [vmem:[#allocation3 + $0x50] sm:$0xff] 0.0
      %881 = vst [vmem:[#allocation3 + $0x58] sm:$0xff] 0.0
      %882 = vst [vmem:[#allocation3 + $0x60] sm:$0xff] 0.0
      %883 = vst [vmem:[#allocation3 + $0x68] sm:$0xff] 0.0
      %884 = vst [vmem:[#allocation3 + $0x70] sm:$0xff] 0.0
      %885 = vst [vmem:[#allocation3 + $0x78] sm:$0xff] 0.0
      %886 = vst [vmem:[#allocation3 + $0x80] sm:$0xff] 0.0
      %887 = vst [vmem:[#allocation3 + $0x88] sm:$0xff] 0.0
      %888 = vst [vmem:[#allocation3 + $0x90] sm:$0xff] 0.0
      %889 = vst [vmem:[#allocation3 + $0x98] sm:$0xff] 0.0
      %890 = vst [vmem:[#allocation3 + $0xa0] sm:$0xff] 0.0
      %891 = vst [vmem:[#allocation3 + $0xa8] sm:$0xff] 0.0
      %892 = vst [vmem:[#allocation3 + $0xb0] sm:$0xff] 0.0
      %893 = vst [vmem:[#allocation3 + $0xb8] sm:$0xff] 0.0
      %894 = vst [vmem:[#allocation3 + $0xc0] sm:$0xff] 0.0
      %895 = vst [vmem:[#allocation3 + $0xc8] sm:$0xff] 0.0
      %896 = vst [vmem:[#allocation3 + $0xd0] sm:$0xff] 0.0
      %897 = vst [vmem:[#allocation3 + $0xd8] sm:$0xff] 0.0
      %898 = vst [vmem:[#allocation3 + $0xe0] sm:$0xff] 0.0
      %899 = vst [vmem:[#allocation3 + $0xe8] sm:$0xff] 0.0
      %900 = vst [vmem:[#allocation3 + $0xf0] sm:$0xff] 0.0
      %901 = vst [vmem:[#allocation3 + $0xf8] sm:$0xff] 0.0
      %v902 = vld [vmem:[#allocation2] sm:$0xf]
      %v903 = vld [vmem:[#allocation2 + $0x4] sm:$0xf]
      %v904 = vld [vmem:[#allocation2 + $0xc] sm:$0xf]
      %v905 = vld [vmem:[#allocation2 + $0x10] sm:$0xf]
      %v906 = vld [vmem:[#allocation2 + $0x18] sm:$0xf]
      %v907 = vld [vmem:[#allocation2 + $0x1c] sm:$0xf]
      %v908 = vld [vmem:[#allocation2 + $0x24] sm:$0xf]
      %v909 = vld [vmem:[#allocation2 + $0x28] sm:$0xf]
      %v910 = vld [vmem:[#allocation2 + $0x30] sm:$0xf]
      %v911 = vld [vmem:[#allocation2 + $0x34] sm:$0xf]
      %v912 = vld [vmem:[#allocation2 + $0x3c] sm:$0xf]
      %v913 = vld [vmem:[#allocation2 + $0x40] sm:$0xf]
      %v914 = vld [vmem:[#allocation2 + $0x48] sm:$0xf]
      %v915 = vld [vmem:[#allocation2 + $0x4c] sm:$0xf]
      %v916 = vld [vmem:[#allocation2 + $0x54] sm:$0xf]
      %v917 = vld [vmem:[#allocation2 + $0x58] sm:$0xf]
      %v918 = vld [vmem:[#allocation2 + $0x60] sm:$0xf]
      %v919 = vld [vmem:[#allocation2 + $0x64] sm:$0xf]
      %v920 = vld [vmem:[#allocation2 + $0x6c] sm:$0xf]
      %v921 = vld [vmem:[#allocation2 + $0x70] sm:$0xf]
      %v922 = vld [vmem:[#allocation2 + $0x78] sm:$0xf]
      %v923 = vld [vmem:[#allocation2 + $0x7c] sm:$0xf]
      %v924 = vld [vmem:[#allocation2 + $0x84] sm:$0xf]
      %v925 = vld [vmem:[#allocation2 + $0x88] sm:$0xf]
      %v926 = vld [vmem:[#allocation2 + $0x90] sm:$0xf]
      %v927 = vld [vmem:[#allocation2 + $0x94] sm:$0xf]
      %v928 = vld [vmem:[#allocation2 + $0x9c] sm:$0xf]
      %v929 = vld [vmem:[#allocation2 + $0xa0] sm:$0xf]
      %v930 = vld [vmem:[#allocation2 + $0xa8] sm:$0xf]
      %v931 = vld [vmem:[#allocation2 + $0xac] sm:$0xf]
      %v932 = vld [vmem:[#allocation2 + $0xb4] sm:$0xf]
      %v933 = vld [vmem:[#allocation2 + $0xb8] sm:$0xf]
      %v934 = vld [vmem:[#allocation3] sm:$0xff]
      %v935 = vld [vmem:[#allocation3 + $0x8] sm:$0xff]
      %v936 = vld [vmem:[#allocation3 + $0x10] sm:$0xff]
      %v937 = vld [vmem:[#allocation3 + $0x18] sm:$0xff]
      %v938 = vld [vmem:[#allocation3 + $0x20] sm:$0xff]
      %v939 = vld [vmem:[#allocation3 + $0x28] sm:$0xff]
      %v940 = vld [vmem:[#allocation3 + $0x30] sm:$0xff]
      %v941 = vld [vmem:[#allocation3 + $0x38] sm:$0xff]
      %v942 = vld [vmem:[#allocation3 + $0x40] sm:$0xff]
      %v943 = vld [vmem:[#allocation3 + $0x48] sm:$0xff]
      %v944 = vld [vmem:[#allocation3 + $0x50] sm:$0xff]
      %v945 = vld [vmem:[#allocation3 + $0x58] sm:$0xff]
      %v946 = vld [vmem:[#allocation3 + $0x60] sm:$0xff]
      %v947 = vld [vmem:[#allocation3 + $0x68] sm:$0xff]
      %v948 = vld [vmem:[#allocation3 + $0x70] sm:$0xff]
      %v949 = vld [vmem:[#allocation3 + $0x78] sm:$0xff]
      %v950 = vld [vmem:[#allocation3 + $0x80] sm:$0xff]
      %v951 = vld [vmem:[#allocation3 + $0x88] sm:$0xff]
      %v952 = vld [vmem:[#allocation3 + $0x90] sm:$0xff]
      %v953 = vld [vmem:[#allocation3 + $0x98] sm:$0xff]
      %v954 = vld [vmem:[#allocation3 + $0xa0] sm:$0xff]
      %v955 = vld [vmem:[#allocation3 + $0xa8] sm:$0xff]
      %v956 = vld [vmem:[#allocation3 + $0xb0] sm:$0xff]
      %v957 = vld [vmem:[#allocation3 + $0xb8] sm:$0xff]
      %v958 = vld [vmem:[#allocation3 + $0xc0] sm:$0xff]
      %v959 = vld [vmem:[#allocation3 + $0xc8] sm:$0xff]
      %v960 = vld [vmem:[#allocation3 + $0xd0] sm:$0xff]
      %v961 = vld [vmem:[#allocation3 + $0xd8] sm:$0xff]
      %v962 = vld [vmem:[#allocation3 + $0xe0] sm:$0xff]
      %v963 = vld [vmem:[#allocation3 + $0xe8] sm:$0xff]
      %v964 = vld [vmem:[#allocation3 + $0xf0] sm:$0xff]
      %v965 = vld [vmem:[#allocation3 + $0xf8] sm:$0xff]
      %v966 = vld [vmem:[%s1] sm:$0xf]
      %v967 = vld [vmem:[%s1 + $0x4] sm:$0xf]
      %v968 = vld [vmem:[%s1 + $0x8] sm:$0xf]
      %v969 = vld [vmem:[%s1 + $0xc] sm:$0xf]
      %v970 = vld [vmem:[%s1 + $0x10] sm:$0xf]
      %v971 = vld [vmem:[%s1 + $0x14] sm:$0xf]
      %v972 = vld [vmem:[%s1 + $0x18] sm:$0xf]
      %v973 = vld [vmem:[%s1 + $0x1c] sm:$0xf]
      %v974 = vld [vmem:[%s1 + $0x20] sm:$0xf]
      %v975 = vld [vmem:[%s1 + $0x24] sm:$0xf]
      %v976 = vld [vmem:[%s1 + $0x28] sm:$0xf]
      %v977 = vld [vmem:[%s1 + $0x2c] sm:$0xf]
      %v978 = vld [vmem:[%s1 + $0x30] sm:$0xf]
      %v979 = vld [vmem:[%s1 + $0x34] sm:$0xf]
      %v980 = vld [vmem:[%s1 + $0x38] sm:$0xf]
      %v981 = vld [vmem:[%s1 + $0x3c] sm:$0xf]
      %v1014 = vunpack.c.l.b16 %v902
      %v1015 = vunpack.c.l.b16 %v903
      %v1016 = vunpack.c.l.b16 %v904
      %v1017 = vunpack.c.l.b16 %v905
      %v1018 = vunpack.c.l.b16 %v906
      %v1019 = vunpack.c.l.b16 %v907
      %v1020 = vunpack.c.l.b16 %v908
      %v1021 = vunpack.c.l.b16 %v909
      %v1022 = vunpack.c.l.b16 %v910
      %v1023 = vunpack.c.l.b16 %v911
      %v1024 = vunpack.c.l.b16 %v912
      %v1025 = vunpack.c.l.b16 %v913
      %v1026 = vunpack.c.l.b16 %v914
      %v1027 = vunpack.c.l.b16 %v915
      %v1028 = vunpack.c.l.b16 %v916
      %v1029 = vunpack.c.l.b16 %v917
      %v1030 = vunpack.c.l.b16 %v918
      %v1031 = vunpack.c.l.b16 %v919
      %v1032 = vunpack.c.l.b16 %v920
      %v1033 = vunpack.c.l.b16 %v921
      %v1034 = vunpack.c.l.b16 %v922
      %v1035 = vunpack.c.l.b16 %v923
      %v1036 = vunpack.c.l.b16 %v924
      %v1037 = vunpack.c.l.b16 %v925
      %v1038 = vunpack.c.l.b16 %v926
      %v1039 = vunpack.c.l.b16 %v927
      %v1040 = vunpack.c.l.b16 %v928
      %v1041 = vunpack.c.l.b16 %v929
      %v1042 = vunpack.c.l.b16 %v930
      %v1043 = vunpack.c.l.b16 %v931
      %v1044 = vunpack.c.l.b16 %v932
      %v1045 = vunpack.c.l.b16 %v933
      %v1046 = vpack.c.b16 %v1015, %v1014
      %v1047 = vpack.c.b16 %v1017, %v1016
      %v1048 = vpack.c.b16 %v1019, %v1018
      %v1049 = vpack.c.b16 %v1021, %v1020
      %v1050 = vpack.c.b16 %v1023, %v1022
      %v1051 = vpack.c.b16 %v1025, %v1024
      %v1052 = vpack.c.b16 %v1027, %v1026
      %v1053 = vpack.c.b16 %v1029, %v1028
      %v1054 = vpack.c.b16 %v1031, %v1030
      %v1055 = vpack.c.b16 %v1033, %v1032
      %v1056 = vpack.c.b16 %v1035, %v1034
      %v1057 = vpack.c.b16 %v1037, %v1036
      %v1058 = vpack.c.b16 %v1039, %v1038
      %v1059 = vpack.c.b16 %v1041, %v1040
      %v1060 = vpack.c.b16 %v1043, %v1042
      %v1061 = vpack.c.b16 %v1045, %v1044
      %v1094 = vunpack.c.l.b16 %v966
      %v1095 = vunpack.c.l.b16 %v967
      %v1096 = vunpack.c.l.b16 %v968
      %v1097 = vunpack.c.l.b16 %v969
      %v1098 = vunpack.c.l.b16 %v970
      %v1099 = vunpack.c.l.b16 %v971
      %v1100 = vunpack.c.l.b16 %v972
      %v1101 = vunpack.c.l.b16 %v973
      %v1102 = vunpack.c.l.b16 %v974
      %v1103 = vunpack.c.l.b16 %v975
      %v1104 = vunpack.c.l.b16 %v976
      %v1105 = vunpack.c.l.b16 %v977
      %v1106 = vunpack.c.l.b16 %v978
      %v1107 = vunpack.c.l.b16 %v979
      %v1108 = vunpack.c.l.b16 %v980
      %v1109 = vunpack.c.l.b16 %v981
      %v1110 = vpack.c.b16 %v1095, %v1094
      %v1111 = vpack.c.b16 %v1097, %v1096
      %v1112 = vpack.c.b16 %v1099, %v1098
      %v1113 = vpack.c.b16 %v1101, %v1100
      %v1114 = vpack.c.b16 %v1103, %v1102
      %v1115 = vpack.c.b16 %v1105, %v1104
      %v1116 = vpack.c.b16 %v1107, %v1106
      %v1117 = vpack.c.b16 %v1109, %v1108
      %1126 = vmatprep.subr.bf16.mxu0 0
      %1127 = vmatpush1.bf16.msra.mxu0 %v1110
      %1128 = vmatprep.subr.bf16.mxu0 0
      %1129 = vmatpush1.bf16.msra.mxu0 %v1111
      %1130 = vmatprep.subr.bf16.mxu0 0
      %1131 = vmatpush1.bf16.msra.mxu0 %v1112
      %1132 = vmatprep.subr.bf16.mxu0 0
      %1133 = vmatpush1.bf16.msra.mxu0 %v1113
      %1134 = vmatprep.subr.bf16.mxu0 0
      %1135 = vmatpush1.bf16.msra.mxu0 %v1114
      %1136 = vmatprep.subr.bf16.mxu0 0
      %1137 = vmatpush1.bf16.msra.mxu0 %v1115
      %1138 = vmatprep.subr.bf16.mxu0 0
      %1139 = vmatpush1.bf16.msra.mxu0 %v1116
      %1140 = vmatprep.subr.bf16.mxu0 0
      %1141 = vmatpush1.bf16.msra.mxu0 %v1117
      %1142 = vmatprep.subr.bf16.mxu0 0
      %1143 = vmatpush1.bf16.msra.mxu0 0
      %1144 = vmatprep.subr.bf16.mxu0 0
      %1145 = vmatpush1.bf16.msra.mxu0 0
      %1146 = vmatprep.subr.bf16.mxu0 0
      %1147 = vmatpush1.bf16.msra.mxu0 0
      %1148 = vmatprep.subr.bf16.mxu0 0
      %1149 = vmatpush1.bf16.msra.mxu0 0
      %1150 = vmatprep.subr.bf16.mxu0 0
      %1151 = vmatpush1.bf16.msra.mxu0 0
      %1152 = vmatprep.subr.bf16.mxu0 0
      %1153 = vmatpush1.bf16.msra.mxu0 0
      %1154 = vmatprep.subr.bf16.mxu0 0
      %1155 = vmatpush1.bf16.msra.mxu0 0
      %1156 = vmatprep.subr.bf16.mxu0 0
      %1157 = vmatpush1.bf16.msra.mxu0 0
      %1158 = vmatprep.mubr.bf16.mxu0 0
      %1159 = vmatmul.mubr.bf16.gmra.mrb[0].mxu0 %v1046
      %v1160 = vpop.f32.mrb[0].mxu0
      %v1161 = vadd.f32 0.0, %v1160
      %v1162 = vpop.f32.mrb[0].mxu0
      %v1163 = vpop.f32.mrb[0].mxu0
      %v1164 = vadd.f32 0.0, %v1163
      %v1165 = vpop.f32.mrb[0].mxu0
      %1166 = vmatprep.mubr.bf16.mxu0 0
      %1167 = vmatmul.mubr.bf16.gmra.mrb[0].mxu0 %v1047
      %v1168 = vpop.f32.mrb[0].mxu0
      %v1169 = vadd.f32 0.0, %v1168
      %v1170 = vpop.f32.mrb[0].mxu0
      %v1171 = vpop.f32.mrb[0].mxu0
      %v1172 = vadd.f32 0.0, %v1171
      %v1173 = vpop.f32.mrb[0].mxu0
      %1174 = vmatprep.mubr.bf16.mxu0 0
      %1175 = vmatmul.mubr.bf16.gmra.mrb[0].mxu0 %v1048
      %v1176 = vpop.f32.mrb[0].mxu0
      %v1177 = vadd.f32 0.0, %v1176
      %v1178 = vpop.f32.mrb[0].mxu0
      %v1179 = vpop.f32.mrb[0].mxu0
      %v1180 = vadd.f32 0.0, %v1179
      %v1181 = vpop.f32.mrb[0].mxu0
      %1182 = vmatprep.mubr.bf16.mxu0 0
      %1183 = vmatmul.mubr.bf16.gmra.mrb[0].mxu0 %v1049
      %v1184 = vpop.f32.mrb[0].mxu0
      %v1185 = vadd.f32 0.0, %v1184
      %v1186 = vpop.f32.mrb[0].mxu0
      %v1187 = vpop.f32.mrb[0].mxu0
      %v1188 = vadd.f32 0.0, %v1187
      %v1189 = vpop.f32.mrb[0].mxu0
      %1190 = vmatprep.mubr.bf16.mxu0 0
      %1191 = vmatmul.mubr.bf16.gmra.mrb[0].mxu0 %v1050
      %v1192 = vpop.f32.mrb[0].mxu0
      %v1193 = vadd.f32 0.0, %v1192
      %v1194 = vpop.f32.mrb[0].mxu0
      %v1195 = vpop.f32.mrb[0].mxu0
      %v1196 = vadd.f32 0.0, %v1195
      %v1197 = vpop.f32.mrb[0].mxu0
      %1198 = vmatprep.mubr.bf16.mxu0 0
      %1199 = vmatmul.mubr.bf16.gmra.mrb[0].mxu0 %v1051
      %v1200 = vpop.f32.mrb[0].mxu0
      %v1201 = vadd.f32 0.0, %v1200
      %v1202 = vpop.f32.mrb[0].mxu0
      %v1203 = vpop.f32.mrb[0].mxu0
      %v1204 = vadd.f32 0.0, %v1203
      %v1205 = vpop.f32.mrb[0].mxu0
      %1206 = vmatprep.mubr.bf16.mxu0 0
      %1207 = vmatmul.mubr.bf16.gmra.mrb[0].mxu0 %v1052
      %v1208 = vpop.f32.mrb[0].mxu0
      %v1209 = vadd.f32 0.0, %v1208
      %v1210 = vpop.f32.mrb[0].mxu0
      %v1211 = vpop.f32.mrb[0].mxu0
      %v1212 = vadd.f32 0.0, %v1211
      %v1213 = vpop.f32.mrb[0].mxu0
      %1214 = vmatprep.mubr.bf16.mxu0 0
      %1215 = vmatmul.mubr.bf16.gmra.mrb[0].mxu0 %v1053
      %v1216 = vpop.f32.mrb[0].mxu0
      %v1217 = vadd.f32 0.0, %v1216
      %v1218 = vpop.f32.mrb[0].mxu0
      %v1219 = vpop.f32.mrb[0].mxu0
      %v1220 = vadd.f32 0.0, %v1219
      %v1221 = vpop.f32.mrb[0].mxu0
      %1222 = vmatprep.mubr.bf16.mxu0 0
      %1223 = vmatmul.mubr.bf16.gmra.mrb[0].mxu0 %v1054
      %v1224 = vpop.f32.mrb[0].mxu0
      %v1225 = vadd.f32 0.0, %v1224
      %v1226 = vpop.f32.mrb[0].mxu0
      %v1227 = vpop.f32.mrb[0].mxu0
      %v1228 = vadd.f32 0.0, %v1227
      %v1229 = vpop.f32.mrb[0].mxu0
      %1230 = vmatprep.mubr.bf16.mxu0 0
      %1231 = vmatmul.mubr.bf16.gmra.mrb[0].mxu0 %v1055
      %v1232 = vpop.f32.mrb[0].mxu0
      %v1233 = vadd.f32 0.0, %v1232
      %v1234 = vpop.f32.mrb[0].mxu0
      %v1235 = vpop.f32.mrb[0].mxu0
      %v1236 = vadd.f32 0.0, %v1235
      %v1237 = vpop.f32.mrb[0].mxu0
      %1238 = vmatprep.mubr.bf16.mxu0 0
      %1239 = vmatmul.mubr.bf16.gmra.mrb[0].mxu0 %v1056
      %v1240 = vpop.f32.mrb[0].mxu0
      %v1241 = vadd.f32 0.0, %v1240
      %v1242 = vpop.f32.mrb[0].mxu0
      %v1243 = vpop.f32.mrb[0].mxu0
      %v1244 = vadd.f32 0.0, %v1243
      %v1245 = vpop.f32.mrb[0].mxu0
      %1246 = vmatprep.mubr.bf16.mxu0 0
      %1247 = vmatmul.mubr.bf16.gmra.mrb[0].mxu0 %v1057
      %v1248 = vpop.f32.mrb[0].mxu0
      %v1249 = vadd.f32 0.0, %v1248
      %v1250 = vpop.f32.mrb[0].mxu0
      %v1251 = vpop.f32.mrb[0].mxu0
      %v1252 = vadd.f32 0.0, %v1251
      %v1253 = vpop.f32.mrb[0].mxu0
      %1254 = vmatprep.mubr.bf16.mxu0 0
      %1255 = vmatmul.mubr.bf16.gmra.mrb[0].mxu0 %v1058
      %v1256 = vpop.f32.mrb[0].mxu0
      %v1257 = vadd.f32 0.0, %v1256
      %v1258 = vpop.f32.mrb[0].mxu0
      %v1259 = vpop.f32.mrb[0].mxu0
      %v1260 = vadd.f32 0.0, %v1259
      %v1261 = vpop.f32.mrb[0].mxu0
      %1262 = vmatprep.mubr.bf16.mxu0 0
      %1263 = vmatmul.mubr.bf16.gmra.mrb[0].mxu0 %v1059
      %v1264 = vpop.f32.mrb[0].mxu0
      %v1265 = vadd.f32 0.0, %v1264
      %v1266 = vpop.f32.mrb[0].mxu0
      %v1267 = vpop.f32.mrb[0].mxu0
      %v1268 = vadd.f32 0.0, %v1267
      %v1269 = vpop.f32.mrb[0].mxu0
      %1270 = vmatprep.mubr.bf16.mxu0 0
      %1271 = vmatmul.mubr.bf16.gmra.mrb[0].mxu0 %v1060
      %v1272 = vpop.f32.mrb[0].mxu0
      %v1273 = vadd.f32 0.0, %v1272
      %v1274 = vpop.f32.mrb[0].mxu0
      %v1275 = vpop.f32.mrb[0].mxu0
      %v1276 = vadd.f32 0.0, %v1275
      %v1277 = vpop.f32.mrb[0].mxu0
      %1278 = vmatprep.mubr.bf16.mxu0 0
      %1279 = vmatmul.mubr.bf16.gmra.mrb[0].mxu0 %v1061
      %v1280 = vpop.f32.mrb[0].mxu0
      %v1281 = vadd.f32 0.0, %v1280
      %v1282 = vpop.f32.mrb[0].mxu0
      %v1283 = vpop.f32.mrb[0].mxu0
      %v1284 = vadd.f32 0.0, %v1283
      %v1285 = vpop.f32.mrb[0].mxu0
      %1286 = vdwg.mxu0
      %v1287 = vadd.f32 %v934, %v1161
      %v1288 = vadd.f32 %v935, %v1164
      %v1289 = vadd.f32 %v936, %v1169
      %v1290 = vadd.f32 %v937, %v1172
      %v1291 = vadd.f32 %v938, %v1177
      %v1292 = vadd.f32 %v939, %v1180
      %v1293 = vadd.f32 %v940, %v1185
      %v1294 = vadd.f32 %v941, %v1188
      %v1295 = vadd.f32 %v942, %v1193
      %v1296 = vadd.f32 %v943, %v1196
      %v1297 = vadd.f32 %v944, %v1201
      %v1298 = vadd.f32 %v945, %v1204
      %v1299 = vadd.f32 %v946, %v1209
      %v1300 = vadd.f32 %v947, %v1212
      %v1301 = vadd.f32 %v948, %v1217
      %v1302 = vadd.f32 %v949, %v1220
      %v1303 = vadd.f32 %v950, %v1225
      %v1304 = vadd.f32 %v951, %v1228
      %v1305 = vadd.f32 %v952, %v1233
      %v1306 = vadd.f32 %v953, %v1236
      %v1307 = vadd.f32 %v954, %v1241
      %v1308 = vadd.f32 %v955, %v1244
      %v1309 = vadd.f32 %v956, %v1249
      %v1310 = vadd.f32 %v957, %v1252
      %v1311 = vadd.f32 %v958, %v1257
      %v1312 = vadd.f32 %v959, %v1260
      %v1313 = vadd.f32 %v960, %v1265
      %v1314 = vadd.f32 %v961, %v1268
      %v1315 = vadd.f32 %v962, %v1273
      %v1316 = vadd.f32 %v963, %v1276
      %v1317 = vadd.f32 %v964, %v1281
      %v1318 = vadd.f32 %v965, %v1284
      %1319 = vst [vmem:[#allocation3] sm:$0xff] %v1287
      %1320 = vst [vmem:[#allocation3 + $0x8] sm:$0xff] %v1288
      %1321 = vst [vmem:[#allocation3 + $0x10] sm:$0xff] %v1289
      %1322 = vst [vmem:[#allocation3 + $0x18] sm:$0xff] %v1290
      %1323 = vst [vmem:[#allocation3 + $0x20] sm:$0xff] %v1291
      %1324 = vst [vmem:[#allocation3 + $0x28] sm:$0xff] %v1292
      %1325 = vst [vmem:[#allocation3 + $0x30] sm:$0xff] %v1293
      %1326 = vst [vmem:[#allocation3 + $0x38] sm:$0xff] %v1294
      %1327 = vst [vmem:[#allocation3 + $0x40] sm:$0xff] %v1295
      %1328 = vst [vmem:[#allocation3 + $0x48] sm:$0xff] %v1296
      %1329 = vst [vmem:[#allocation3 + $0x50] sm:$0xff] %v1297
      %1330 = vst [vmem:[#allocation3 + $0x58] sm:$0xff] %v1298
      %1331 = vst [vmem:[#allocation3 + $0x60] sm:$0xff] %v1299
      %1332 = vst [vmem:[#allocation3 + $0x68] sm:$0xff] %v1300
      %1333 = vst [vmem:[#allocation3 + $0x70] sm:$0xff] %v1301
      %1334 = vst [vmem:[#allocation3 + $0x78] sm:$0xff] %v1302
      %1335 = vst [vmem:[#allocation3 + $0x80] sm:$0xff] %v1303
      %1336 = vst [vmem:[#allocation3 + $0x88] sm:$0xff] %v1304
      %1337 = vst [vmem:[#allocation3 + $0x90] sm:$0xff] %v1305
      %1338 = vst [vmem:[#allocation3 + $0x98] sm:$0xff] %v1306
      %1339 = vst [vmem:[#allocation3 + $0xa0] sm:$0xff] %v1307
      %1340 = vst [vmem:[#allocation3 + $0xa8] sm:$0xff] %v1308
      %1341 = vst [vmem:[#allocation3 + $0xb0] sm:$0xff] %v1309
      %1342 = vst [vmem:[#allocation3 + $0xb8] sm:$0xff] %v1310
      %1343 = vst [vmem:[#allocation3 + $0xc0] sm:$0xff] %v1311
      %1344 = vst [vmem:[#allocation3 + $0xc8] sm:$0xff] %v1312
      %1345 = vst [vmem:[#allocation3 + $0xd0] sm:$0xff] %v1313
      %1346 = vst [vmem:[#allocation3 + $0xd8] sm:$0xff] %v1314
      %1347 = vst [vmem:[#allocation3 + $0xe0] sm:$0xff] %v1315
      %1348 = vst [vmem:[#allocation3 + $0xe8] sm:$0xff] %v1316
      %1349 = vst [vmem:[#allocation3 + $0xf0] sm:$0xff] %v1317
      %1350 = vst [vmem:[#allocation3 + $0xf8] sm:$0xff] %v1318
      %v1351 = vld [vmem:[#allocation2] sm:$0xf]
      %v1352 = vld [vmem:[#allocation2 + $0x4] sm:$0xf]
      %v1353 = vld [vmem:[#allocation2 + $0x8] sm:$0x1]
      %v1354 = vld [vmem:[#allocation2 + $0xc] sm:$0xf]
      %v1355 = vld [vmem:[#allocation2 + $0x10] sm:$0xf]
      %v1356 = vld [vmem:[#allocation2 + $0x14] sm:$0x1]
      %v1357 = vld [vmem:[#allocation2 + $0x18] sm:$0xf]
      %v1358 = vld [vmem:[#allocation2 + $0x1c] sm:$0xf]
      %v1359 = vld [vmem:[#allocation2 + $0x20] sm:$0x1]
      %v1360 = vld [vmem:[#allocation2 + $0x24] sm:$0xf]
      %v1361 = vld [vmem:[#allocation2 + $0x28] sm:$0xf]
      %v1362 = vld [vmem:[#allocation2 + $0x2c] sm:$0x1]
      %v1363 = vld [vmem:[#allocation2 + $0x30] sm:$0xf]
      %v1364 = vld [vmem:[#allocation2 + $0x34] sm:$0xf]
      %v1365 = vld [vmem:[#allocation2 + $0x38] sm:$0x1]
      %v1366 = vld [vmem:[#allocation2 + $0x3c] sm:$0xf]
      %v1367 = vld [vmem:[#allocation2 + $0x40] sm:$0xf]
      %v1368 = vld [vmem:[#allocation2 + $0x44] sm:$0x1]
      %v1369 = vld [vmem:[#allocation2 + $0x48] sm:$0xf]
      %v1370 = vld [vmem:[#allocation2 + $0x4c] sm:$0xf]
      %v1371 = vld [vmem:[#allocation2 + $0x50] sm:$0x1]
      %v1372 = vld [vmem:[#allocation2 + $0x54] sm:$0xf]
      %v1373 = vld [vmem:[#allocation2 + $0x58] sm:$0xf]
      %v1374 = vld [vmem:[#allocation2 + $0x5c] sm:$0x1]
      %v1375 = vld [vmem:[#allocation2 + $0x60] sm:$0xf]
      %v1376 = vld [vmem:[#allocation2 + $0x64] sm:$0xf]
      %v1377 = vld [vmem:[#allocation2 + $0x68] sm:$0x1]
      %v1378 = vld [vmem:[#allocation2 + $0x6c] sm:$0xf]
      %v1379 = vld [vmem:[#allocation2 + $0x70] sm:$0xf]
      %v1380 = vld [vmem:[#allocation2 + $0x74] sm:$0x1]
      %v1381 = vld [vmem:[#allocation2 + $0x78] sm:$0xf]
      %v1382 = vld [vmem:[#allocation2 + $0x7c] sm:$0xf]
      %v1383 = vld [vmem:[#allocation2 + $0x80] sm:$0x1]
      %v1384 = vld [vmem:[#allocation2 + $0x84] sm:$0xf]
      %v1385 = vld [vmem:[#allocation2 + $0x88] sm:$0xf]
      %v1386 = vld [vmem:[#allocation2 + $0x8c] sm:$0x1]
      %v1387 = vld [vmem:[#allocation2 + $0x90] sm:$0xf]
      %v1388 = vld [vmem:[#allocation2 + $0x94] sm:$0xf]
      %v1389 = vld [vmem:[#allocation2 + $0x98] sm:$0x1]
      %v1390 = vld [vmem:[#allocation2 + $0x9c] sm:$0xf]
      %v1391 = vld [vmem:[#allocation2 + $0xa0] sm:$0xf]
      %v1392 = vld [vmem:[#allocation2 + $0xa4] sm:$0x1]
      %v1393 = vld [vmem:[#allocation2 + $0xa8] sm:$0xf]
      %v1394 = vld [vmem:[#allocation2 + $0xac] sm:$0xf]
      %v1395 = vld [vmem:[#allocation2 + $0xb0] sm:$0x1]
      %v1396 = vld [vmem:[#allocation2 + $0xb4] sm:$0xf]
      %v1397 = vld [vmem:[#allocation2 + $0xb8] sm:$0xf]
      %v1398 = vld [vmem:[#allocation2 + $0xbc] sm:$0x1]
      %v1399 = vld [vmem:[#allocation3] sm:$0xff]
      %v1400 = vld [vmem:[#allocation3 + $0x8] sm:$0xff]
      %v1401 = vld [vmem:[#allocation3 + $0x10] sm:$0xff]
      %v1402 = vld [vmem:[#allocation3 + $0x18] sm:$0xff]
      %v1403 = vld [vmem:[#allocation3 + $0x20] sm:$0xff]
      %v1404 = vld [vmem:[#allocation3 + $0x28] sm:$0xff]
      %v1405 = vld [vmem:[#allocation3 + $0x30] sm:$0xff]
      %v1406 = vld [vmem:[#allocation3 + $0x38] sm:$0xff]
      %v1407 = vld [vmem:[#allocation3 + $0x40] sm:$0xff]
      %v1408 = vld [vmem:[#allocation3 + $0x48] sm:$0xff]
      %v1409 = vld [vmem:[#allocation3 + $0x50] sm:$0xff]
      %v1410 = vld [vmem:[#allocation3 + $0x58] sm:$0xff]
      %v1411 = vld [vmem:[#allocation3 + $0x60] sm:$0xff]
      %v1412 = vld [vmem:[#allocation3 + $0x68] sm:$0xff]
      %v1413 = vld [vmem:[#allocation3 + $0x70] sm:$0xff]
      %v1414 = vld [vmem:[#allocation3 + $0x78] sm:$0xff]
      %v1415 = vld [vmem:[#allocation3 + $0x80] sm:$0xff]
      %v1416 = vld [vmem:[#allocation3 + $0x88] sm:$0xff]
      %v1417 = vld [vmem:[#allocation3 + $0x90] sm:$0xff]
      %v1418 = vld [vmem:[#allocation3 + $0x98] sm:$0xff]
      %v1419 = vld [vmem:[#allocation3 + $0xa0] sm:$0xff]
      %v1420 = vld [vmem:[#allocation3 + $0xa8] sm:$0xff]
      %v1421 = vld [vmem:[#allocation3 + $0xb0] sm:$0xff]
      %v1422 = vld [vmem:[#allocation3 + $0xb8] sm:$0xff]
      %v1423 = vld [vmem:[#allocation3 + $0xc0] sm:$0xff]
      %v1424 = vld [vmem:[#allocation3 + $0xc8] sm:$0xff]
      %v1425 = vld [vmem:[#allocation3 + $0xd0] sm:$0xff]
      %v1426 = vld [vmem:[#allocation3 + $0xd8] sm:$0xff]
      %v1427 = vld [vmem:[#allocation3 + $0xe0] sm:$0xff]
      %v1428 = vld [vmem:[#allocation3 + $0xe8] sm:$0xff]
      %v1429 = vld [vmem:[#allocation3 + $0xf0] sm:$0xff]
      %v1430 = vld [vmem:[#allocation3 + $0xf8] sm:$0xff]
      %vm1431 = vsmask.f32 3328
      %vm1432 = vsmask.f32 7440
      %vm1433 = vmor %vm1431, %vm1432
      %v1435 = vshrl.u32 %v1351, 16
      %v1437 = vrot.slane %v1435, 4
      %v1438 = vshll.u32 %v1351, 16
      %v1440 = vrot.slane %v1438, 5
      %v1441 = vor.u32 %v1437, %v1440
      %v1442 = vrot.slane %v1441, 4
      %v1444 = vshll.u32 %v1352, 16
      %v1446 = vrot.slane %v1444, 5
      %v1447 = vsel %vm1433, %v1442, %v1446
      %v1448 = vshrl.u32 %v1352, 16
      %v1450 = vrot.slane %v1448, 4
      %v1451 = vor.u32 %v1450, %v1446
      %v1452 = vrot.slane %v1451, 4
      %v1454 = vshll.u32 %v1353, 16
      %v1456 = vrot.slane %v1454, 5
      %v1457 = vsel %vm1433, %v1452, %v1456
      %v1459 = vshrl.u32 %v1354, 16
      %v1461 = vrot.slane %v1459, 4
      %v1462 = vshll.u32 %v1354, 16
      %v1464 = vrot.slane %v1462, 5
      %v1465 = vor.u32 %v1461, %v1464
      %v1466 = vrot.slane %v1465, 4
      %v1468 = vshll.u32 %v1355, 16
      %v1470 = vrot.slane %v1468, 5
      %v1471 = vsel %vm1433, %v1466, %v1470
      %v1472 = vshrl.u32 %v1355, 16
      %v1474 = vrot.slane %v1472, 4
      %v1475 = vor.u32 %v1474, %v1470
      %v1476 = vrot.slane %v1475, 4
      %v1478 = vshll.u32 %v1356, 16
      %v1480 = vrot.slane %v1478, 5
      %v1481 = vsel %vm1433, %v1476, %v1480
      %v1483 = vshrl.u32 %v1357, 16
      %v1485 = vrot.slane %v1483, 4
      %v1486 = vshll.u32 %v1357, 16
      %v1488 = vrot.slane %v1486, 5
      %v1489 = vor.u32 %v1485, %v1488
      %v1490 = vrot.slane %v1489, 4
      %v1492 = vshll.u32 %v1358, 16
      %v1494 = vrot.slane %v1492, 5
      %v1495 = vsel %vm1433, %v1490, %v1494
      %v1496 = vshrl.u32 %v1358, 16
      %v1498 = vrot.slane %v1496, 4
      %v1499 = vor.u32 %v1498, %v1494
      %v1500 = vrot.slane %v1499, 4
      %v1502 = vshll.u32 %v1359, 16
      %v1504 = vrot.slane %v1502, 5
      %v1505 = vsel %vm1433, %v1500, %v1504
      %v1507 = vshrl.u32 %v1360, 16
      %v1509 = vrot.slane %v1507, 4
      %v1510 = vshll.u32 %v1360, 16
      %v1512 = vrot.slane %v1510, 5
      %v1513 = vor.u32 %v1509, %v1512
      %v1514 = vrot.slane %v1513, 4
      %v1516 = vshll.u32 %v1361, 16
      %v1518 = vrot.slane %v1516, 5
      %v1519 = vsel %vm1433, %v1514, %v1518
      %v1520 = vshrl.u32 %v1361, 16
      %v1522 = vrot.slane %v1520, 4
      %v1523 = vor.u32 %v1522, %v1518
      %v1524 = vrot.slane %v1523, 4
      %v1526 = vshll.u32 %v1362, 16
      %v1528 = vrot.slane %v1526, 5
      %v1529 = vsel %vm1433, %v1524, %v1528
      %v1531 = vshrl.u32 %v1363, 16
      %v1533 = vrot.slane %v1531, 4
      %v1534 = vshll.u32 %v1363, 16
      %v1536 = vrot.slane %v1534, 5
      %v1537 = vor.u32 %v1533, %v1536
      %v1538 = vrot.slane %v1537, 4
      %v1540 = vshll.u32 %v1364, 16
      %v1542 = vrot.slane %v1540, 5
      %v1543 = vsel %vm1433, %v1538, %v1542
      %v1544 = vshrl.u32 %v1364, 16
      %v1546 = vrot.slane %v1544, 4
      %v1547 = vor.u32 %v1546, %v1542
      %v1548 = vrot.slane %v1547, 4
      %v1550 = vshll.u32 %v1365, 16
      %v1552 = vrot.slane %v1550, 5
      %v1553 = vsel %vm1433, %v1548, %v1552
      %v1555 = vshrl.u32 %v1366, 16
      %v1557 = vrot.slane %v1555, 4
      %v1558 = vshll.u32 %v1366, 16
      %v1560 = vrot.slane %v1558, 5
      %v1561 = vor.u32 %v1557, %v1560
      %v1562 = vrot.slane %v1561, 4
      %v1564 = vshll.u32 %v1367, 16
      %v1566 = vrot.slane %v1564, 5
      %v1567 = vsel %vm1433, %v1562, %v1566
      %v1568 = vshrl.u32 %v1367, 16
      %v1570 = vrot.slane %v1568, 4
      %v1571 = vor.u32 %v1570, %v1566
      %v1572 = vrot.slane %v1571, 4
      %v1574 = vshll.u32 %v1368, 16
      %v1576 = vrot.slane %v1574, 5
      %v1577 = vsel %vm1433, %v1572, %v1576
      %v1579 = vshrl.u32 %v1369, 16
      %v1581 = vrot.slane %v1579, 4
      %v1582 = vshll.u32 %v1369, 16
      %v1584 = vrot.slane %v1582, 5
      %v1585 = vor.u32 %v1581, %v1584
      %v1586 = vrot.slane %v1585, 4
      %v1588 = vshll.u32 %v1370, 16
      %v1590 = vrot.slane %v1588, 5
      %v1591 = vsel %vm1433, %v1586, %v1590
      %v1592 = vshrl.u32 %v1370, 16
      %v1594 = vrot.slane %v1592, 4
      %v1595 = vor.u32 %v1594, %v1590
      %v1596 = vrot.slane %v1595, 4
      %v1598 = vshll.u32 %v1371, 16
      %v1600 = vrot.slane %v1598, 5
      %v1601 = vsel %vm1433, %v1596, %v1600
      %v1603 = vshrl.u32 %v1372, 16
      %v1605 = vrot.slane %v1603, 4
      %v1606 = vshll.u32 %v1372, 16
      %v1608 = vrot.slane %v1606, 5
      %v1609 = vor.u32 %v1605, %v1608
      %v1610 = vrot.slane %v1609, 4
      %v1612 = vshll.u32 %v1373, 16
      %v1614 = vrot.slane %v1612, 5
      %v1615 = vsel %vm1433, %v1610, %v1614
      %v1616 = vshrl.u32 %v1373, 16
      %v1618 = vrot.slane %v1616, 4
      %v1619 = vor.u32 %v1618, %v1614
      %v1620 = vrot.slane %v1619, 4
      %v1622 = vshll.u32 %v1374, 16
      %v1624 = vrot.slane %v1622, 5
      %v1625 = vsel %vm1433, %v1620, %v1624
      %v1627 = vshrl.u32 %v1375, 16
      %v1629 = vrot.slane %v1627, 4
      %v1630 = vshll.u32 %v1375, 16
      %v1632 = vrot.slane %v1630, 5
      %v1633 = vor.u32 %v1629, %v1632
      %v1634 = vrot.slane %v1633, 4
      %v1636 = vshll.u32 %v1376, 16
      %v1638 = vrot.slane %v1636, 5
      %v1639 = vsel %vm1433, %v1634, %v1638
      %v1640 = vshrl.u32 %v1376, 16
      %v1642 = vrot.slane %v1640, 4
      %v1643 = vor.u32 %v1642, %v1638
      %v1644 = vrot.slane %v1643, 4
      %v1646 = vshll.u32 %v1377, 16
      %v1648 = vrot.slane %v1646, 5
      %v1649 = vsel %vm1433, %v1644, %v1648
      %v1651 = vshrl.u32 %v1378, 16
      %v1653 = vrot.slane %v1651, 4
      %v1654 = vshll.u32 %v1378, 16
      %v1656 = vrot.slane %v1654, 5
      %v1657 = vor.u32 %v1653, %v1656
      %v1658 = vrot.slane %v1657, 4
      %v1660 = vshll.u32 %v1379, 16
      %v1662 = vrot.slane %v1660, 5
      %v1663 = vsel %vm1433, %v1658, %v1662
      %v1664 = vshrl.u32 %v1379, 16
      %v1666 = vrot.slane %v1664, 4
      %v1667 = vor.u32 %v1666, %v1662
      %v1668 = vrot.slane %v1667, 4
      %v1670 = vshll.u32 %v1380, 16
      %v1672 = vrot.slane %v1670, 5
      %v1673 = vsel %vm1433, %v1668, %v1672
      %v1675 = vshrl.u32 %v1381, 16
      %v1677 = vrot.slane %v1675, 4
      %v1678 = vshll.u32 %v1381, 16
      %v1680 = vrot.slane %v1678, 5
      %v1681 = vor.u32 %v1677, %v1680
      %v1682 = vrot.slane %v1681, 4
      %v1684 = vshll.u32 %v1382, 16
      %v1686 = vrot.slane %v1684, 5
      %v1687 = vsel %vm1433, %v1682, %v1686
      %v1688 = vshrl.u32 %v1382, 16
      %v1690 = vrot.slane %v1688, 4
      %v1691 = vor.u32 %v1690, %v1686
      %v1692 = vrot.slane %v1691, 4
      %v1694 = vshll.u32 %v1383, 16
      %v1696 = vrot.slane %v1694, 5
      %v1697 = vsel %vm1433, %v1692, %v1696
      %v1699 = vshrl.u32 %v1384, 16
      %v1701 = vrot.slane %v1699, 4
      %v1702 = vshll.u32 %v1384, 16
      %v1704 = vrot.slane %v1702, 5
      %v1705 = vor.u32 %v1701, %v1704
      %v1706 = vrot.slane %v1705, 4
      %v1708 = vshll.u32 %v1385, 16
      %v1710 = vrot.slane %v1708, 5
      %v1711 = vsel %vm1433, %v1706, %v1710
      %v1712 = vshrl.u32 %v1385, 16
      %v1714 = vrot.slane %v1712, 4
      %v1715 = vor.u32 %v1714, %v1710
      %v1716 = vrot.slane %v1715, 4
      %v1718 = vshll.u32 %v1386, 16
      %v1720 = vrot.slane %v1718, 5
      %v1721 = vsel %vm1433, %v1716, %v1720
      %v1723 = vshrl.u32 %v1387, 16
      %v1725 = vrot.slane %v1723, 4
      %v1726 = vshll.u32 %v1387, 16
      %v1728 = vrot.slane %v1726, 5
      %v1729 = vor.u32 %v1725, %v1728
      %v1730 = vrot.slane %v1729, 4
      %v1732 = vshll.u32 %v1388, 16
      %v1734 = vrot.slane %v1732, 5
      %v1735 = vsel %vm1433, %v1730, %v1734
      %v1736 = vshrl.u32 %v1388, 16
      %v1738 = vrot.slane %v1736, 4
      %v1739 = vor.u32 %v1738, %v1734
      %v1740 = vrot.slane %v1739, 4
      %v1742 = vshll.u32 %v1389, 16
      %v1744 = vrot.slane %v1742, 5
      %v1745 = vsel %vm1433, %v1740, %v1744
      %v1747 = vshrl.u32 %v1390, 16
      %v1749 = vrot.slane %v1747, 4
      %v1750 = vshll.u32 %v1390, 16
      %v1752 = vrot.slane %v1750, 5
      %v1753 = vor.u32 %v1749, %v1752
      %v1754 = vrot.slane %v1753, 4
      %v1756 = vshll.u32 %v1391, 16
      %v1758 = vrot.slane %v1756, 5
      %v1759 = vsel %vm1433, %v1754, %v1758
      %v1760 = vshrl.u32 %v1391, 16
      %v1762 = vrot.slane %v1760, 4
      %v1763 = vor.u32 %v1762, %v1758
      %v1764 = vrot.slane %v1763, 4
      %v1766 = vshll.u32 %v1392, 16
      %v1768 = vrot.slane %v1766, 5
      %v1769 = vsel %vm1433, %v1764, %v1768
      %v1771 = vshrl.u32 %v1393, 16
      %v1773 = vrot.slane %v1771, 4
      %v1774 = vshll.u32 %v1393, 16
      %v1776 = vrot.slane %v1774, 5
      %v1777 = vor.u32 %v1773, %v1776
      %v1778 = vrot.slane %v1777, 4
      %v1780 = vshll.u32 %v1394, 16
      %v1782 = vrot.slane %v1780, 5
      %v1783 = vsel %vm1433, %v1778, %v1782
      %v1784 = vshrl.u32 %v1394, 16
      %v1786 = vrot.slane %v1784, 4
      %v1787 = vor.u32 %v1786, %v1782
      %v1788 = vrot.slane %v1787, 4
      %v1790 = vshll.u32 %v1395, 16
      %v1792 = vrot.slane %v1790, 5
      %v1793 = vsel %vm1433, %v1788, %v1792
      %v1795 = vshrl.u32 %v1396, 16
      %v1797 = vrot.slane %v1795, 4
      %v1798 = vshll.u32 %v1396, 16
      %v1800 = vrot.slane %v1798, 5
      %v1801 = vor.u32 %v1797, %v1800
      %v1802 = vrot.slane %v1801, 4
      %v1804 = vshll.u32 %v1397, 16
      %v1806 = vrot.slane %v1804, 5
      %v1807 = vsel %vm1433, %v1802, %v1806
      %v1808 = vshrl.u32 %v1397, 16
      %v1810 = vrot.slane %v1808, 4
      %v1811 = vor.u32 %v1810, %v1806
      %v1812 = vrot.slane %v1811, 4
      %v1814 = vshll.u32 %v1398, 16
      %v1816 = vrot.slane %v1814, 5
      %v1817 = vsel %vm1433, %v1812, %v1816
      %s1818 = scalar_lea.vmem %s1, 64
      %v1819 = vld [vmem:[%s1818] sm:$0xf]
      %v1820 = vld [vmem:[%s1818 + $0x4] sm:$0xf]
      %v1821 = vld [vmem:[%s1818 + $0x8] sm:$0xf]
      %v1822 = vld [vmem:[%s1818 + $0xc] sm:$0xf]
      %v1823 = vld [vmem:[%s1818 + $0x10] sm:$0xf]
      %v1824 = vld [vmem:[%s1818 + $0x14] sm:$0xf]
      %v1825 = vld [vmem:[%s1818 + $0x18] sm:$0xf]
      %v1826 = vld [vmem:[%s1818 + $0x1c] sm:$0xf]
      %v1827 = vld [vmem:[%s1818 + $0x20] sm:$0xf]
      %v1828 = vld [vmem:[%s1818 + $0x24] sm:$0xf]
      %v1829 = vld [vmem:[%s1818 + $0x28] sm:$0xf]
      %v1830 = vld [vmem:[%s1818 + $0x2c] sm:$0xf]
      %v1831 = vld [vmem:[%s1818 + $0x30] sm:$0xf]
      %v1832 = vld [vmem:[%s1818 + $0x34] sm:$0xf]
      %v1833 = vld [vmem:[%s1818 + $0x38] sm:$0xf]
      %v1834 = vld [vmem:[%s1818 + $0x3c] sm:$0xf]
      %v1835 = vunpack.c.l.b16 %v1447
      %v1836 = vunpack.c.l.b16 %v1457
      %v1837 = vunpack.c.l.b16 %v1471
      %v1838 = vunpack.c.l.b16 %v1481
      %v1839 = vunpack.c.l.b16 %v1495
      %v1840 = vunpack.c.l.b16 %v1505
      %v1841 = vunpack.c.l.b16 %v1519
      %v1842 = vunpack.c.l.b16 %v1529
      %v1843 = vunpack.c.l.b16 %v1543
      %v1844 = vunpack.c.l.b16 %v1553
      %v1845 = vunpack.c.l.b16 %v1567
      %v1846 = vunpack.c.l.b16 %v1577
      %v1847 = vunpack.c.l.b16 %v1591
      %v1848 = vunpack.c.l.b16 %v1601
      %v1849 = vunpack.c.l.b16 %v1615
      %v1850 = vunpack.c.l.b16 %v1625
      %v1851 = vunpack.c.l.b16 %v1639
      %v1852 = vunpack.c.l.b16 %v1649
      %v1853 = vunpack.c.l.b16 %v1663
      %v1854 = vunpack.c.l.b16 %v1673
      %v1855 = vunpack.c.l.b16 %v1687
      %v1856 = vunpack.c.l.b16 %v1697
      %v1857 = vunpack.c.l.b16 %v1711
      %v1858 = vunpack.c.l.b16 %v1721
      %v1859 = vunpack.c.l.b16 %v1735
      %v1860 = vunpack.c.l.b16 %v1745
      %v1861 = vunpack.c.l.b16 %v1759
      %v1862 = vunpack.c.l.b16 %v1769
      %v1863 = vunpack.c.l.b16 %v1783
      %v1864 = vunpack.c.l.b16 %v1793
      %v1865 = vunpack.c.l.b16 %v1807
      %v1866 = vunpack.c.l.b16 %v1817
      %v1867 = vpack.c.b16 %v1836, %v1835
      %v1868 = vpack.c.b16 %v1838, %v1837
      %v1869 = vpack.c.b16 %v1840, %v1839
      %v1870 = vpack.c.b16 %v1842, %v1841
      %v1871 = vpack.c.b16 %v1844, %v1843
      %v1872 = vpack.c.b16 %v1846, %v1845
      %v1873 = vpack.c.b16 %v1848, %v1847
      %v1874 = vpack.c.b16 %v1850, %v1849
      %v1875 = vpack.c.b16 %v1852, %v1851
      %v1876 = vpack.c.b16 %v1854, %v1853
      %v1877 = vpack.c.b16 %v1856, %v1855
      %v1878 = vpack.c.b16 %v1858, %v1857
      %v1879 = vpack.c.b16 %v1860, %v1859
      %v1880 = vpack.c.b16 %v1862, %v1861
      %v1881 = vpack.c.b16 %v1864, %v1863
      %v1882 = vpack.c.b16 %v1866, %v1865
      %v1915 = vunpack.c.l.b16 %v1819
      %v1916 = vunpack.c.l.b16 %v1820
      %v1917 = vunpack.c.l.b16 %v1821
      %v1918 = vunpack.c.l.b16 %v1822
      %v1919 = vunpack.c.l.b16 %v1823
      %v1920 = vunpack.c.l.b16 %v1824
      %v1921 = vunpack.c.l.b16 %v1825
      %v1922 = vunpack.c.l.b16 %v1826
      %v1923 = vunpack.c.l.b16 %v1827
      %v1924 = vunpack.c.l.b16 %v1828
      %v1925 = vunpack.c.l.b16 %v1829
      %v1926 = vunpack.c.l.b16 %v1830
      %v1927 = vunpack.c.l.b16 %v1831
      %v1928 = vunpack.c.l.b16 %v1832
      %v1929 = vunpack.c.l.b16 %v1833
      %v1930 = vunpack.c.l.b16 %v1834
      %v1931 = vpack.c.b16 %v1916, %v1915
      %v1932 = vpack.c.b16 %v1918, %v1917
      %v1933 = vpack.c.b16 %v1920, %v1919
      %v1934 = vpack.c.b16 %v1922, %v1921
      %v1935 = vpack.c.b16 %v1924, %v1923
      %v1936 = vpack.c.b16 %v1926, %v1925
      %v1937 = vpack.c.b16 %v1928, %v1927
      %v1938 = vpack.c.b16 %v1930, %v1929
      %1947 = vmatprep.subr.bf16.mxu0 0
      %1948 = vmatpush1.bf16.msra.mxu0 %v1931
      %1949 = vmatprep.subr.bf16.mxu0 0
      %1950 = vmatpush1.bf16.msra.mxu0 %v1932
      %1951 = vmatprep.subr.bf16.mxu0 0
      %1952 = vmatpush1.bf16.msra.mxu0 %v1933
      %1953 = vmatprep.subr.bf16.mxu0 0
      %1954 = vmatpush1.bf16.msra.mxu0 %v1934
      %1955 = vmatprep.subr.bf16.mxu0 0
      %1956 = vmatpush1.bf16.msra.mxu0 %v1935
      %1957 = vmatprep.subr.bf16.mxu0 0
      %1958 = vmatpush1.bf16.msra.mxu0 %v1936
      %1959 = vmatprep.subr.bf16.mxu0 0
      %1960 = vmatpush1.bf16.msra.mxu0 %v1937
      %1961 = vmatprep.subr.bf16.mxu0 0
      %1962 = vmatpush1.bf16.msra.mxu0 %v1938
      %1963 = vmatprep.subr.bf16.mxu0 0
      %1964 = vmatpush1.bf16.msra.mxu0 0
      %1965 = vmatprep.subr.bf16.mxu0 0
      %1966 = vmatpush1.bf16.msra.mxu0 0
      %1967 = vmatprep.subr.bf16.mxu0 0
      %1968 = vmatpush1.bf16.msra.mxu0 0
      %1969 = vmatprep.subr.bf16.mxu0 0
      %1970 = vmatpush1.bf16.msra.mxu0 0
      %1971 = vmatprep.subr.bf16.mxu0 0
      %1972 = vmatpush1.bf16.msra.mxu0 0
      %1973 = vmatprep.subr.bf16.mxu0 0
      %1974 = vmatpush1.bf16.msra.mxu0 0
      %1975 = vmatprep.subr.bf16.mxu0 0
      %1976 = vmatpush1.bf16.msra.mxu0 0
      %1977 = vmatprep.subr.bf16.mxu0 0
      %1978 = vmatpush1.bf16.msra.mxu0 0
      %1979 = vmatprep.mubr.bf16.mxu0 0
      %1980 = vmatmul.mubr.bf16.gmra.mrb[0].mxu0 %v1867
      %v1981 = vpop.f32.mrb[0].mxu0
      %v1982 = vadd.f32 0.0, %v1981
      %v1983 = vpop.f32.mrb[0].mxu0
      %v1984 = vpop.f32.mrb[0].mxu0
      %v1985 = vadd.f32 0.0, %v1984
      %v1986 = vpop.f32.mrb[0].mxu0
      %1987 = vmatprep.mubr.bf16.mxu0 0
      %1988 = vmatmul.mubr.bf16.gmra.mrb[0].mxu0 %v1868
      %v1989 = vpop.f32.mrb[0].mxu0
      %v1990 = vadd.f32 0.0, %v1989
      %v1991 = vpop.f32.mrb[0].mxu0
      %v1992 = vpop.f32.mrb[0].mxu0
      %v1993 = vadd.f32 0.0, %v1992
      %v1994 = vpop.f32.mrb[0].mxu0
      %1995 = vmatprep.mubr.bf16.mxu0 0
      %1996 = vmatmul.mubr.bf16.gmra.mrb[0].mxu0 %v1869
      %v1997 = vpop.f32.mrb[0].mxu0
      %v1998 = vadd.f32 0.0, %v1997
      %v1999 = vpop.f32.mrb[0].mxu0
      %v2000 = vpop.f32.mrb[0].mxu0
      %v2001 = vadd.f32 0.0, %v2000
      %v2002 = vpop.f32.mrb[0].mxu0
      %2003 = vmatprep.mubr.bf16.mxu0 0
      %2004 = vmatmul.mubr.bf16.gmra.mrb[0].mxu0 %v1870
      %v2005 = vpop.f32.mrb[0].mxu0
      %v2006 = vadd.f32 0.0, %v2005
      %v2007 = vpop.f32.mrb[0].mxu0
      %v2008 = vpop.f32.mrb[0].mxu0
      %v2009 = vadd.f32 0.0, %v2008
      %v2010 = vpop.f32.mrb[0].mxu0
      %2011 = vmatprep.mubr.bf16.mxu0 0
      %2012 = vmatmul.mubr.bf16.gmra.mrb[0].mxu0 %v1871
      %v2013 = vpop.f32.mrb[0].mxu0
      %v2014 = vadd.f32 0.0, %v2013
      %v2015 = vpop.f32.mrb[0].mxu0
      %v2016 = vpop.f32.mrb[0].mxu0
      %v2017 = vadd.f32 0.0, %v2016
      %v2018 = vpop.f32.mrb[0].mxu0
      %2019 = vmatprep.mubr.bf16.mxu0 0
      %2020 = vmatmul.mubr.bf16.gmra.mrb[0].mxu0 %v1872
      %v2021 = vpop.f32.mrb[0].mxu0
      %v2022 = vadd.f32 0.0, %v2021
      %v2023 = vpop.f32.mrb[0].mxu0
      %v2024 = vpop.f32.mrb[0].mxu0
      %v2025 = vadd.f32 0.0, %v2024
      %v2026 = vpop.f32.mrb[0].mxu0
      %2027 = vmatprep.mubr.bf16.mxu0 0
      %2028 = vmatmul.mubr.bf16.gmra.mrb[0].mxu0 %v1873
      %v2029 = vpop.f32.mrb[0].mxu0
      %v2030 = vadd.f32 0.0, %v2029
      %v2031 = vpop.f32.mrb[0].mxu0
      %v2032 = vpop.f32.mrb[0].mxu0
      %v2033 = vadd.f32 0.0, %v2032
      %v2034 = vpop.f32.mrb[0].mxu0
      %2035 = vmatprep.mubr.bf16.mxu0 0
      %2036 = vmatmul.mubr.bf16.gmra.mrb[0].mxu0 %v1874
      %v2037 = vpop.f32.mrb[0].mxu0
      %v2038 = vadd.f32 0.0, %v2037
      %v2039 = vpop.f32.mrb[0].mxu0
      %v2040 = vpop.f32.mrb[0].mxu0
      %v2041 = vadd.f32 0.0, %v2040
      %v2042 = vpop.f32.mrb[0].mxu0
      %2043 = vmatprep.mubr.bf16.mxu0 0
      %2044 = vmatmul.mubr.bf16.gmra.mrb[0].mxu0 %v1875
      %v2045 = vpop.f32.mrb[0].mxu0
      %v2046 = vadd.f32 0.0, %v2045
      %v2047 = vpop.f32.mrb[0].mxu0
      %v2048 = vpop.f32.mrb[0].mxu0
      %v2049 = vadd.f32 0.0, %v2048
      %v2050 = vpop.f32.mrb[0].mxu0
      %2051 = vmatprep.mubr.bf16.mxu0 0
      %2052 = vmatmul.mubr.bf16.gmra.mrb[0].mxu0 %v1876
      %v2053 = vpop.f32.mrb[0].mxu0
      %v2054 = vadd.f32 0.0, %v2053
      %v2055 = vpop.f32.mrb[0].mxu0
      %v2056 = vpop.f32.mrb[0].mxu0
      %v2057 = vadd.f32 0.0, %v2056
      %v2058 = vpop.f32.mrb[0].mxu0
      %2059 = vmatprep.mubr.bf16.mxu0 0
      %2060 = vmatmul.mubr.bf16.gmra.mrb[0].mxu0 %v1877
      %v2061 = vpop.f32.mrb[0].mxu0
      %v2062 = vadd.f32 0.0, %v2061
      %v2063 = vpop.f32.mrb[0].mxu0
      %v2064 = vpop.f32.mrb[0].mxu0
      %v2065 = vadd.f32 0.0, %v2064
      %v2066 = vpop.f32.mrb[0].mxu0
      %2067 = vmatprep.mubr.bf16.mxu0 0
      %2068 = vmatmul.mubr.bf16.gmra.mrb[0].mxu0 %v1878
      %v2069 = vpop.f32.mrb[0].mxu0
      %v2070 = vadd.f32 0.0, %v2069
      %v2071 = vpop.f32.mrb[0].mxu0
      %v2072 = vpop.f32.mrb[0].mxu0
      %v2073 = vadd.f32 0.0, %v2072
      %v2074 = vpop.f32.mrb[0].mxu0
      %2075 = vmatprep.mubr.bf16.mxu0 0
      %2076 = vmatmul.mubr.bf16.gmra.mrb[0].mxu0 %v1879
      %v2077 = vpop.f32.mrb[0].mxu0
      %v2078 = vadd.f32 0.0, %v2077
      %v2079 = vpop.f32.mrb[0].mxu0
      %v2080 = vpop.f32.mrb[0].mxu0
      %v2081 = vadd.f32 0.0, %v2080
      %v2082 = vpop.f32.mrb[0].mxu0
      %2083 = vmatprep.mubr.bf16.mxu0 0
      %2084 = vmatmul.mubr.bf16.gmra.mrb[0].mxu0 %v1880
      %v2085 = vpop.f32.mrb[0].mxu0
      %v2086 = vadd.f32 0.0, %v2085
      %v2087 = vpop.f32.mrb[0].mxu0
      %v2088 = vpop.f32.mrb[0].mxu0
      %v2089 = vadd.f32 0.0, %v2088
      %v2090 = vpop.f32.mrb[0].mxu0
      %2091 = vmatprep.mubr.bf16.mxu0 0
      %2092 = vmatmul.mubr.bf16.gmra.mrb[0].mxu0 %v1881
      %v2093 = vpop.f32.mrb[0].mxu0
      %v2094 = vadd.f32 0.0, %v2093
      %v2095 = vpop.f32.mrb[0].mxu0
      %v2096 = vpop.f32.mrb[0].mxu0
      %v2097 = vadd.f32 0.0, %v2096
      %v2098 = vpop.f32.mrb[0].mxu0
      %2099 = vmatprep.mubr.bf16.mxu0 0
      %2100 = vmatmul.mubr.bf16.gmra.mrb[0].mxu0 %v1882
      %v2101 = vpop.f32.mrb[0].mxu0
      %v2102 = vadd.f32 0.0, %v2101
      %v2103 = vpop.f32.mrb[0].mxu0
      %v2104 = vpop.f32.mrb[0].mxu0
      %v2105 = vadd.f32 0.0, %v2104
      %v2106 = vpop.f32.mrb[0].mxu0
      %2107 = vdwg.mxu0
      %v2108 = vadd.f32 %v1399, %v1982
      %v2109 = vadd.f32 %v1400, %v1985
      %v2110 = vadd.f32 %v1401, %v1990
      %v2111 = vadd.f32 %v1402, %v1993
      %v2112 = vadd.f32 %v1403, %v1998
      %v2113 = vadd.f32 %v1404, %v2001
      %v2114 = vadd.f32 %v1405, %v2006
      %v2115 = vadd.f32 %v1406, %v2009
      %v2116 = vadd.f32 %v1407, %v2014
      %v2117 = vadd.f32 %v1408, %v2017
      %v2118 = vadd.f32 %v1409, %v2022
      %v2119 = vadd.f32 %v1410, %v2025
      %v2120 = vadd.f32 %v1411, %v2030
      %v2121 = vadd.f32 %v1412, %v2033
      %v2122 = vadd.f32 %v1413, %v2038
      %v2123 = vadd.f32 %v1414, %v2041
      %v2124 = vadd.f32 %v1415, %v2046
      %v2125 = vadd.f32 %v1416, %v2049
      %v2126 = vadd.f32 %v1417, %v2054
      %v2127 = vadd.f32 %v1418, %v2057
      %v2128 = vadd.f32 %v1419, %v2062
      %v2129 = vadd.f32 %v1420, %v2065
      %v2130 = vadd.f32 %v1421, %v2070
      %v2131 = vadd.f32 %v1422, %v2073
      %v2132 = vadd.f32 %v1423, %v2078
      %v2133 = vadd.f32 %v1424, %v2081
      %v2134 = vadd.f32 %v1425, %v2086
      %v2135 = vadd.f32 %v1426, %v2089
      %v2136 = vadd.f32 %v1427, %v2094
      %v2137 = vadd.f32 %v1428, %v2097
      %v2138 = vadd.f32 %v1429, %v2102
      %v2139 = vadd.f32 %v1430, %v2105
      %2140 = vst [vmem:[#allocation3] sm:$0xff] %v2108
      %2141 = vst [vmem:[#allocation3 + $0x8] sm:$0xff] %v2109
      %2142 = vst [vmem:[#allocation3 + $0x10] sm:$0xff] %v2110
      %2143 = vst [vmem:[#allocation3 + $0x18] sm:$0xff] %v2111
      %2144 = vst [vmem:[#allocation3 + $0x20] sm:$0xff] %v2112
      %2145 = vst [vmem:[#allocation3 + $0x28] sm:$0xff] %v2113
      %2146 = vst [vmem:[#allocation3 + $0x30] sm:$0xff] %v2114
      %2147 = vst [vmem:[#allocation3 + $0x38] sm:$0xff] %v2115
      %2148 = vst [vmem:[#allocation3 + $0x40] sm:$0xff] %v2116
      %2149 = vst [vmem:[#allocation3 + $0x48] sm:$0xff] %v2117
      %2150 = vst [vmem:[#allocation3 + $0x50] sm:$0xff] %v2118
      %2151 = vst [vmem:[#allocation3 + $0x58] sm:$0xff] %v2119
      %2152 = vst [vmem:[#allocation3 + $0x60] sm:$0xff] %v2120
      %2153 = vst [vmem:[#allocation3 + $0x68] sm:$0xff] %v2121
      %2154 = vst [vmem:[#allocation3 + $0x70] sm:$0xff] %v2122
      %2155 = vst [vmem:[#allocation3 + $0x78] sm:$0xff] %v2123
      %2156 = vst [vmem:[#allocation3 + $0x80] sm:$0xff] %v2124
      %2157 = vst [vmem:[#allocation3 + $0x88] sm:$0xff] %v2125
      %2158 = vst [vmem:[#allocation3 + $0x90] sm:$0xff] %v2126
      %2159 = vst [vmem:[#allocation3 + $0x98] sm:$0xff] %v2127
      %2160 = vst [vmem:[#allocation3 + $0xa0] sm:$0xff] %v2128
      %2161 = vst [vmem:[#allocation3 + $0xa8] sm:$0xff] %v2129
      %2162 = vst [vmem:[#allocation3 + $0xb0] sm:$0xff] %v2130
      %2163 = vst [vmem:[#allocation3 + $0xb8] sm:$0xff] %v2131
      %2164 = vst [vmem:[#allocation3 + $0xc0] sm:$0xff] %v2132
      %2165 = vst [vmem:[#allocation3 + $0xc8] sm:$0xff] %v2133
      %2166 = vst [vmem:[#allocation3 + $0xd0] sm:$0xff] %v2134
      %2167 = vst [vmem:[#allocation3 + $0xd8] sm:$0xff] %v2135
      %2168 = vst [vmem:[#allocation3 + $0xe0] sm:$0xff] %v2136
      %2169 = vst [vmem:[#allocation3 + $0xe8] sm:$0xff] %v2137
      %2170 = vst [vmem:[#allocation3 + $0xf0] sm:$0xff] %v2138
      %2171 = vst [vmem:[#allocation3 + $0xf8] sm:$0xff] %v2139
      %v2172 = vld [vmem:[#allocation2] sm:$0xe]
      %v2173 = vld [vmem:[#allocation2 + $0x4] sm:$0xf]
      %v2174 = vld [vmem:[#allocation2 + $0x8] sm:$0x1]
      %v2175 = vld [vmem:[#allocation2 + $0xc] sm:$0xe]
      %v2176 = vld [vmem:[#allocation2 + $0x10] sm:$0xf]
      %v2177 = vld [vmem:[#allocation2 + $0x14] sm:$0x1]
      %v2178 = vld [vmem:[#allocation2 + $0x18] sm:$0xe]
      %v2179 = vld [vmem:[#allocation2 + $0x1c] sm:$0xf]
      %v2180 = vld [vmem:[#allocation2 + $0x20] sm:$0x1]
      %v2181 = vld [vmem:[#allocation2 + $0x24] sm:$0xe]
      %v2182 = vld [vmem:[#allocation2 + $0x28] sm:$0xf]
      %v2183 = vld [vmem:[#allocation2 + $0x2c] sm:$0x1]
      %v2184 = vld [vmem:[#allocation2 + $0x30] sm:$0xe]
      %v2185 = vld [vmem:[#allocation2 + $0x34] sm:$0xf]
      %v2186 = vld [vmem:[#allocation2 + $0x38] sm:$0x1]
      %v2187 = vld [vmem:[#allocation2 + $0x3c] sm:$0xe]
      %v2188 = vld [vmem:[#allocation2 + $0x40] sm:$0xf]
      %v2189 = vld [vmem:[#allocation2 + $0x44] sm:$0x1]
      %v2190 = vld [vmem:[#allocation2 + $0x48] sm:$0xe]
      %v2191 = vld [vmem:[#allocation2 + $0x4c] sm:$0xf]
      %v2192 = vld [vmem:[#allocation2 + $0x50] sm:$0x1]
      %v2193 = vld [vmem:[#allocation2 + $0x54] sm:$0xe]
      %v2194 = vld [vmem:[#allocation2 + $0x58] sm:$0xf]
      %v2195 = vld [vmem:[#allocation2 + $0x5c] sm:$0x1]
      %v2196 = vld [vmem:[#allocation2 + $0x60] sm:$0xe]
      %v2197 = vld [vmem:[#allocation2 + $0x64] sm:$0xf]
      %v2198 = vld [vmem:[#allocation2 + $0x68] sm:$0x1]
      %v2199 = vld [vmem:[#allocation2 + $0x6c] sm:$0xe]
      %v2200 = vld [vmem:[#allocation2 + $0x70] sm:$0xf]
      %v2201 = vld [vmem:[#allocation2 + $0x74] sm:$0x1]
      %v2202 = vld [vmem:[#allocation2 + $0x78] sm:$0xe]
      %v2203 = vld [vmem:[#allocation2 + $0x7c] sm:$0xf]
      %v2204 = vld [vmem:[#allocation2 + $0x80] sm:$0x1]
      %v2205 = vld [vmem:[#allocation2 + $0x84] sm:$0xe]
      %v2206 = vld [vmem:[#allocation2 + $0x88] sm:$0xf]
      %v2207 = vld [vmem:[#allocation2 + $0x8c] sm:$0x1]
      %v2208 = vld [vmem:[#allocation2 + $0x90] sm:$0xe]
      %v2209 = vld [vmem:[#allocation2 + $0x94] sm:$0xf]
      %v2210 = vld [vmem:[#allocation2 + $0x98] sm:$0x1]
      %v2211 = vld [vmem:[#allocation2 + $0x9c] sm:$0xe]
      %v2212 = vld [vmem:[#allocation2 + $0xa0] sm:$0xf]
      %v2213 = vld [vmem:[#allocation2 + $0xa4] sm:$0x1]
      %v2214 = vld [vmem:[#allocation2 + $0xa8] sm:$0xe]
      %v2215 = vld [vmem:[#allocation2 + $0xac] sm:$0xf]
      %v2216 = vld [vmem:[#allocation2 + $0xb0] sm:$0x1]
      %v2217 = vld [vmem:[#allocation2 + $0xb4] sm:$0xe]
      %v2218 = vld [vmem:[#allocation2 + $0xb8] sm:$0xf]
      %v2219 = vld [vmem:[#allocation2 + $0xbc] sm:$0x1]
      %v2220 = vld [vmem:[#allocation3] sm:$0xff]
      %v2221 = vld [vmem:[#allocation3 + $0x8] sm:$0xff]
      %v2222 = vld [vmem:[#allocation3 + $0x10] sm:$0xff]
      %v2223 = vld [vmem:[#allocation3 + $0x18] sm:$0xff]
      %v2224 = vld [vmem:[#allocation3 + $0x20] sm:$0xff]
      %v2225 = vld [vmem:[#allocation3 + $0x28] sm:$0xff]
      %v2226 = vld [vmem:[#allocation3 + $0x30] sm:$0xff]
      %v2227 = vld [vmem:[#allocation3 + $0x38] sm:$0xff]
      %v2228 = vld [vmem:[#allocation3 + $0x40] sm:$0xff]
      %v2229 = vld [vmem:[#allocation3 + $0x48] sm:$0xff]
      %v2230 = vld [vmem:[#allocation3 + $0x50] sm:$0xff]
      %v2231 = vld [vmem:[#allocation3 + $0x58] sm:$0xff]
      %v2232 = vld [vmem:[#allocation3 + $0x60] sm:$0xff]
      %v2233 = vld [vmem:[#allocation3 + $0x68] sm:$0xff]
      %v2234 = vld [vmem:[#allocation3 + $0x70] sm:$0xff]
      %v2235 = vld [vmem:[#allocation3 + $0x78] sm:$0xff]
      %v2236 = vld [vmem:[#allocation3 + $0x80] sm:$0xff]
      %v2237 = vld [vmem:[#allocation3 + $0x88] sm:$0xff]
      %v2238 = vld [vmem:[#allocation3 + $0x90] sm:$0xff]
      %v2239 = vld [vmem:[#allocation3 + $0x98] sm:$0xff]
      %v2240 = vld [vmem:[#allocation3 + $0xa0] sm:$0xff]
      %v2241 = vld [vmem:[#allocation3 + $0xa8] sm:$0xff]
      %v2242 = vld [vmem:[#allocation3 + $0xb0] sm:$0xff]
      %v2243 = vld [vmem:[#allocation3 + $0xb8] sm:$0xff]
      %v2244 = vld [vmem:[#allocation3 + $0xc0] sm:$0xff]
      %v2245 = vld [vmem:[#allocation3 + $0xc8] sm:$0xff]
      %v2246 = vld [vmem:[#allocation3 + $0xd0] sm:$0xff]
      %v2247 = vld [vmem:[#allocation3 + $0xd8] sm:$0xff]
      %v2248 = vld [vmem:[#allocation3 + $0xe0] sm:$0xff]
      %v2249 = vld [vmem:[#allocation3 + $0xe8] sm:$0xff]
      %v2250 = vld [vmem:[#allocation3 + $0xf0] sm:$0xff]
      %v2251 = vld [vmem:[#allocation3 + $0xf8] sm:$0xff]
      %vm2300 = vcmask 1042432
      %vm2301 = vcmask 1046532
      %vm2302 = vmor %vm2300, %vm2301
      %v2303 = vrot.slane %v2172, 5
      %v2304 = vrot.slane %v2303, 4
      %v2305 = vrot.slane %v2173, 5
      %v2306 = vsel %vm2302, %v2304, %v2305
      %v2307 = vrot.slane %v2305, 4
      %v2308 = vrot.slane %v2174, 5
      %v2309 = vsel %vm2302, %v2307, %v2308
      %v2310 = vrot.slane %v2175, 5
      %v2311 = vrot.slane %v2310, 4
      %v2312 = vrot.slane %v2176, 5
      %v2313 = vsel %vm2302, %v2311, %v2312
      %v2314 = vrot.slane %v2312, 4
      %v2315 = vrot.slane %v2177, 5
      %v2316 = vsel %vm2302, %v2314, %v2315
      %v2317 = vrot.slane %v2178, 5
      %v2318 = vrot.slane %v2317, 4
      %v2319 = vrot.slane %v2179, 5
      %v2320 = vsel %vm2302, %v2318, %v2319
      %v2321 = vrot.slane %v2319, 4
      %v2322 = vrot.slane %v2180, 5
      %v2323 = vsel %vm2302, %v2321, %v2322
      %v2324 = vrot.slane %v2181, 5
      %v2325 = vrot.slane %v2324, 4
      %v2326 = vrot.slane %v2182, 5
      %v2327 = vsel %vm2302, %v2325, %v2326
      %v2328 = vrot.slane %v2326, 4
      %v2329 = vrot.slane %v2183, 5
      %v2330 = vsel %vm2302, %v2328, %v2329
      %v2331 = vrot.slane %v2184, 5
      %v2332 = vrot.slane %v2331, 4
      %v2333 = vrot.slane %v2185, 5
      %v2334 = vsel %vm2302, %v2332, %v2333
      %v2335 = vrot.slane %v2333, 4
      %v2336 = vrot.slane %v2186, 5
      %v2337 = vsel %vm2302, %v2335, %v2336
      %v2338 = vrot.slane %v2187, 5
      %v2339 = vrot.slane %v2338, 4
      %v2340 = vrot.slane %v2188, 5
      %v2341 = vsel %vm2302, %v2339, %v2340
      %v2342 = vrot.slane %v2340, 4
      %v2343 = vrot.slane %v2189, 5
      %v2344 = vsel %vm2302, %v2342, %v2343
      %v2345 = vrot.slane %v2190, 5
      %v2346 = vrot.slane %v2345, 4
      %v2347 = vrot.slane %v2191, 5
      %v2348 = vsel %vm2302, %v2346, %v2347
      %v2349 = vrot.slane %v2347, 4
      %v2350 = vrot.slane %v2192, 5
      %v2351 = vsel %vm2302, %v2349, %v2350
      %v2352 = vrot.slane %v2193, 5
      %v2353 = vrot.slane %v2352, 4
      %v2354 = vrot.slane %v2194, 5
      %v2355 = vsel %vm2302, %v2353, %v2354
      %v2356 = vrot.slane %v2354, 4
      %v2357 = vrot.slane %v2195, 5
      %v2358 = vsel %vm2302, %v2356, %v2357
      %v2359 = vrot.slane %v2196, 5
      %v2360 = vrot.slane %v2359, 4
      %v2361 = vrot.slane %v2197, 5
      %v2362 = vsel %vm2302, %v2360, %v2361
      %v2363 = vrot.slane %v2361, 4
      %v2364 = vrot.slane %v2198, 5
      %v2365 = vsel %vm2302, %v2363, %v2364
      %v2366 = vrot.slane %v2199, 5
      %v2367 = vrot.slane %v2366, 4
      %v2368 = vrot.slane %v2200, 5
      %v2369 = vsel %vm2302, %v2367, %v2368
      %v2370 = vrot.slane %v2368, 4
      %v2371 = vrot.slane %v2201, 5
      %v2372 = vsel %vm2302, %v2370, %v2371
      %v2373 = vrot.slane %v2202, 5
      %v2374 = vrot.slane %v2373, 4
      %v2375 = vrot.slane %v2203, 5
      %v2376 = vsel %vm2302, %v2374, %v2375
      %v2377 = vrot.slane %v2375, 4
      %v2378 = vrot.slane %v2204, 5
      %v2379 = vsel %vm2302, %v2377, %v2378
      %v2380 = vrot.slane %v2205, 5
      %v2381 = vrot.slane %v2380, 4
      %v2382 = vrot.slane %v2206, 5
      %v2383 = vsel %vm2302, %v2381, %v2382
      %v2384 = vrot.slane %v2382, 4
      %v2385 = vrot.slane %v2207, 5
      %v2386 = vsel %vm2302, %v2384, %v2385
      %v2387 = vrot.slane %v2208, 5
      %v2388 = vrot.slane %v2387, 4
      %v2389 = vrot.slane %v2209, 5
      %v2390 = vsel %vm2302, %v2388, %v2389
      %v2391 = vrot.slane %v2389, 4
      %v2392 = vrot.slane %v2210, 5
      %v2393 = vsel %vm2302, %v2391, %v2392
      %v2394 = vrot.slane %v2211, 5
      %v2395 = vrot.slane %v2394, 4
      %v2396 = vrot.slane %v2212, 5
      %v2397 = vsel %vm2302, %v2395, %v2396
      %v2398 = vrot.slane %v2396, 4
      %v2399 = vrot.slane %v2213, 5
      %v2400 = vsel %vm2302, %v2398, %v2399
      %v2401 = vrot.slane %v2214, 5
      %v2402 = vrot.slane %v2401, 4
      %v2403 = vrot.slane %v2215, 5
      %v2404 = vsel %vm2302, %v2402, %v2403
      %v2405 = vrot.slane %v2403, 4
      %v2406 = vrot.slane %v2216, 5
      %v2407 = vsel %vm2302, %v2405, %v2406
      %v2408 = vrot.slane %v2217, 5
      %v2409 = vrot.slane %v2408, 4
      %v2410 = vrot.slane %v2218, 5
      %v2411 = vsel %vm2302, %v2409, %v2410
      %v2412 = vrot.slane %v2410, 4
      %v2413 = vrot.slane %v2219, 5
      %v2414 = vsel %vm2302, %v2412, %v2413
      %s2415 = scalar_lea.vmem %s1, 128
      %v2416 = vld [vmem:[%s2415] sm:$0xf]
      %v2417 = vld [vmem:[%s2415 + $0x4] sm:$0xf]
      %v2418 = vld [vmem:[%s2415 + $0x8] sm:$0xf]
      %v2419 = vld [vmem:[%s2415 + $0xc] sm:$0xf]
      %v2420 = vld [vmem:[%s2415 + $0x10] sm:$0xf]
      %v2421 = vld [vmem:[%s2415 + $0x14] sm:$0xf]
      %v2422 = vld [vmem:[%s2415 + $0x18] sm:$0xf]
      %v2423 = vld [vmem:[%s2415 + $0x1c] sm:$0xf]
      %v2424 = vld [vmem:[%s2415 + $0x20] sm:$0xf]
      %v2425 = vld [vmem:[%s2415 + $0x24] sm:$0xf]
      %v2426 = vld [vmem:[%s2415 + $0x28] sm:$0xf]
      %v2427 = vld [vmem:[%s2415 + $0x2c] sm:$0xf]
      %v2428 = vld [vmem:[%s2415 + $0x30] sm:$0xf]
      %v2429 = vld [vmem:[%s2415 + $0x34] sm:$0xf]
      %v2430 = vld [vmem:[%s2415 + $0x38] sm:$0xf]
      %v2431 = vld [vmem:[%s2415 + $0x3c] sm:$0xf]
      %v2432 = vunpack.c.l.b16 %v2306
      %v2433 = vunpack.c.l.b16 %v2309
      %v2434 = vunpack.c.l.b16 %v2313
      %v2435 = vunpack.c.l.b16 %v2316
      %v2436 = vunpack.c.l.b16 %v2320
      %v2437 = vunpack.c.l.b16 %v2323
      %v2438 = vunpack.c.l.b16 %v2327
      %v2439 = vunpack.c.l.b16 %v2330
      %v2440 = vunpack.c.l.b16 %v2334
      %v2441 = vunpack.c.l.b16 %v2337
      %v2442 = vunpack.c.l.b16 %v2341
      %v2443 = vunpack.c.l.b16 %v2344
      %v2444 = vunpack.c.l.b16 %v2348
      %v2445 = vunpack.c.l.b16 %v2351
      %v2446 = vunpack.c.l.b16 %v2355
      %v2447 = vunpack.c.l.b16 %v2358
      %v2448 = vunpack.c.l.b16 %v2362
      %v2449 = vunpack.c.l.b16 %v2365
      %v2450 = vunpack.c.l.b16 %v2369
      %v2451 = vunpack.c.l.b16 %v2372
      %v2452 = vunpack.c.l.b16 %v2376
      %v2453 = vunpack.c.l.b16 %v2379
      %v2454 = vunpack.c.l.b16 %v2383
      %v2455 = vunpack.c.l.b16 %v2386
      %v2456 = vunpack.c.l.b16 %v2390
      %v2457 = vunpack.c.l.b16 %v2393
      %v2458 = vunpack.c.l.b16 %v2397
      %v2459 = vunpack.c.l.b16 %v2400
      %v2460 = vunpack.c.l.b16 %v2404
      %v2461 = vunpack.c.l.b16 %v2407
      %v2462 = vunpack.c.l.b16 %v2411
      %v2463 = vunpack.c.l.b16 %v2414
      %v2464 = vpack.c.b16 %v2433, %v2432
      %v2465 = vpack.c.b16 %v2435, %v2434
      %v2466 = vpack.c.b16 %v2437, %v2436
      %v2467 = vpack.c.b16 %v2439, %v2438
      %v2468 = vpack.c.b16 %v2441, %v2440
      %v2469 = vpack.c.b16 %v2443, %v2442
      %v2470 = vpack.c.b16 %v2445, %v2444
      %v2471 = vpack.c.b16 %v2447, %v2446
      %v2472 = vpack.c.b16 %v2449, %v2448
      %v2473 = vpack.c.b16 %v2451, %v2450
      %v2474 = vpack.c.b16 %v2453, %v2452
      %v2475 = vpack.c.b16 %v2455, %v2454
      %v2476 = vpack.c.b16 %v2457, %v2456
      %v2477 = vpack.c.b16 %v2459, %v2458
      %v2478 = vpack.c.b16 %v2461, %v2460
      %v2479 = vpack.c.b16 %v2463, %v2462
      %v2512 = vunpack.c.l.b16 %v2416
      %v2513 = vunpack.c.l.b16 %v2417
      %v2514 = vunpack.c.l.b16 %v2418
      %v2515 = vunpack.c.l.b16 %v2419
      %v2516 = vunpack.c.l.b16 %v2420
      %v2517 = vunpack.c.l.b16 %v2421
      %v2518 = vunpack.c.l.b16 %v2422
      %v2519 = vunpack.c.l.b16 %v2423
      %v2520 = vunpack.c.l.b16 %v2424
      %v2521 = vunpack.c.l.b16 %v2425
      %v2522 = vunpack.c.l.b16 %v2426
      %v2523 = vunpack.c.l.b16 %v2427
      %v2524 = vunpack.c.l.b16 %v2428
      %v2525 = vunpack.c.l.b16 %v2429
      %v2526 = vunpack.c.l.b16 %v2430
      %v2527 = vunpack.c.l.b16 %v2431
      %v2528 = vpack.c.b16 %v2513, %v2512
      %v2529 = vpack.c.b16 %v2515, %v2514
      %v2530 = vpack.c.b16 %v2517, %v2516
      %v2531 = vpack.c.b16 %v2519, %v2518
      %v2532 = vpack.c.b16 %v2521, %v2520
      %v2533 = vpack.c.b16 %v2523, %v2522
      %v2534 = vpack.c.b16 %v2525, %v2524
      %v2535 = vpack.c.b16 %v2527, %v2526
      %2544 = vmatprep.subr.bf16.mxu0 0
      %2545 = vmatpush1.bf16.msra.mxu0 %v2528
      %2546 = vmatprep.subr.bf16.mxu0 0
      %2547 = vmatpush1.bf16.msra.mxu0 %v2529
      %2548 = vmatprep.subr.bf16.mxu0 0
      %2549 = vmatpush1.bf16.msra.mxu0 %v2530
      %2550 = vmatprep.subr.bf16.mxu0 0
      %2551 = vmatpush1.bf16.msra.mxu0 %v2531
      %2552 = vmatprep.subr.bf16.mxu0 0
      %2553 = vmatpush1.bf16.msra.mxu0 %v2532
      %2554 = vmatprep.subr.bf16.mxu0 0
      %2555 = vmatpush1.bf16.msra.mxu0 %v2533
      %2556 = vmatprep.subr.bf16.mxu0 0
      %2557 = vmatpush1.bf16.msra.mxu0 %v2534
      %2558 = vmatprep.subr.bf16.mxu0 0
      %2559 = vmatpush1.bf16.msra.mxu0 %v2535
      %2560 = vmatprep.subr.bf16.mxu0 0
      %2561 = vmatpush1.bf16.msra.mxu0 0
      %2562 = vmatprep.subr.bf16.mxu0 0
      %2563 = vmatpush1.bf16.msra.mxu0 0
      %2564 = vmatprep.subr.bf16.mxu0 0
      %2565 = vmatpush1.bf16.msra.mxu0 0
      %2566 = vmatprep.subr.bf16.mxu0 0
      %2567 = vmatpush1.bf16.msra.mxu0 0
      %2568 = vmatprep.subr.bf16.mxu0 0
      %2569 = vmatpush1.bf16.msra.mxu0 0
      %2570 = vmatprep.subr.bf16.mxu0 0
      %2571 = vmatpush1.bf16.msra.mxu0 0
      %2572 = vmatprep.subr.bf16.mxu0 0
      %2573 = vmatpush1.bf16.msra.mxu0 0
      %2574 = vmatprep.subr.bf16.mxu0 0
      %2575 = vmatpush1.bf16.msra.mxu0 0
      %2576 = vmatprep.mubr.bf16.mxu0 0
      %2577 = vmatmul.mubr.bf16.gmra.mrb[0].mxu0 %v2464
      %v2578 = vpop.f32.mrb[0].mxu0
      %v2579 = vadd.f32 0.0, %v2578
      %v2580 = vpop.f32.mrb[0].mxu0
      %v2581 = vpop.f32.mrb[0].mxu0
      %v2582 = vadd.f32 0.0, %v2581
      %v2583 = vpop.f32.mrb[0].mxu0
      %2584 = vmatprep.mubr.bf16.mxu0 0
      %2585 = vmatmul.mubr.bf16.gmra.mrb[0].mxu0 %v2465
      %v2586 = vpop.f32.mrb[0].mxu0
      %v2587 = vadd.f32 0.0, %v2586
      %v2588 = vpop.f32.mrb[0].mxu0
      %v2589 = vpop.f32.mrb[0].mxu0
      %v2590 = vadd.f32 0.0, %v2589
      %v2591 = vpop.f32.mrb[0].mxu0
      %2592 = vmatprep.mubr.bf16.mxu0 0
      %2593 = vmatmul.mubr.bf16.gmra.mrb[0].mxu0 %v2466
      %v2594 = vpop.f32.mrb[0].mxu0
      %v2595 = vadd.f32 0.0, %v2594
      %v2596 = vpop.f32.mrb[0].mxu0
      %v2597 = vpop.f32.mrb[0].mxu0
      %v2598 = vadd.f32 0.0, %v2597
      %v2599 = vpop.f32.mrb[0].mxu0
      %2600 = vmatprep.mubr.bf16.mxu0 0
      %2601 = vmatmul.mubr.bf16.gmra.mrb[0].mxu0 %v2467
      %v2602 = vpop.f32.mrb[0].mxu0
      %v2603 = vadd.f32 0.0, %v2602
      %v2604 = vpop.f32.mrb[0].mxu0
      %v2605 = vpop.f32.mrb[0].mxu0
      %v2606 = vadd.f32 0.0, %v2605
      %v2607 = vpop.f32.mrb[0].mxu0
      %2608 = vmatprep.mubr.bf16.mxu0 0
      %2609 = vmatmul.mubr.bf16.gmra.mrb[0].mxu0 %v2468
      %v2610 = vpop.f32.mrb[0].mxu0
      %v2611 = vadd.f32 0.0, %v2610
      %v2612 = vpop.f32.mrb[0].mxu0
      %v2613 = vpop.f32.mrb[0].mxu0
      %v2614 = vadd.f32 0.0, %v2613
      %v2615 = vpop.f32.mrb[0].mxu0
      %2616 = vmatprep.mubr.bf16.mxu0 0
      %2617 = vmatmul.mubr.bf16.gmra.mrb[0].mxu0 %v2469
      %v2618 = vpop.f32.mrb[0].mxu0
      %v2619 = vadd.f32 0.0, %v2618
      %v2620 = vpop.f32.mrb[0].mxu0
      %v2621 = vpop.f32.mrb[0].mxu0
      %v2622 = vadd.f32 0.0, %v2621
      %v2623 = vpop.f32.mrb[0].mxu0
      %2624 = vmatprep.mubr.bf16.mxu0 0
      %2625 = vmatmul.mubr.bf16.gmra.mrb[0].mxu0 %v2470
      %v2626 = vpop.f32.mrb[0].mxu0
      %v2627 = vadd.f32 0.0, %v2626
      %v2628 = vpop.f32.mrb[0].mxu0
      %v2629 = vpop.f32.mrb[0].mxu0
      %v2630 = vadd.f32 0.0, %v2629
      %v2631 = vpop.f32.mrb[0].mxu0
      %2632 = vmatprep.mubr.bf16.mxu0 0
      %2633 = vmatmul.mubr.bf16.gmra.mrb[0].mxu0 %v2471
      %v2634 = vpop.f32.mrb[0].mxu0
      %v2635 = vadd.f32 0.0, %v2634
      %v2636 = vpop.f32.mrb[0].mxu0
      %v2637 = vpop.f32.mrb[0].mxu0
      %v2638 = vadd.f32 0.0, %v2637
      %v2639 = vpop.f32.mrb[0].mxu0
      %2640 = vmatprep.mubr.bf16.mxu0 0
      %2641 = vmatmul.mubr.bf16.gmra.mrb[0].mxu0 %v2472
      %v2642 = vpop.f32.mrb[0].mxu0
      %v2643 = vadd.f32 0.0, %v2642
      %v2644 = vpop.f32.mrb[0].mxu0
      %v2645 = vpop.f32.mrb[0].mxu0
      %v2646 = vadd.f32 0.0, %v2645
      %v2647 = vpop.f32.mrb[0].mxu0
      %2648 = vmatprep.mubr.bf16.mxu0 0
      %2649 = vmatmul.mubr.bf16.gmra.mrb[0].mxu0 %v2473
      %v2650 = vpop.f32.mrb[0].mxu0
      %v2651 = vadd.f32 0.0, %v2650
      %v2652 = vpop.f32.mrb[0].mxu0
      %v2653 = vpop.f32.mrb[0].mxu0
      %v2654 = vadd.f32 0.0, %v2653
      %v2655 = vpop.f32.mrb[0].mxu0
      %2656 = vmatprep.mubr.bf16.mxu0 0
      %2657 = vmatmul.mubr.bf16.gmra.mrb[0].mxu0 %v2474
      %v2658 = vpop.f32.mrb[0].mxu0
      %v2659 = vadd.f32 0.0, %v2658
      %v2660 = vpop.f32.mrb[0].mxu0
      %v2661 = vpop.f32.mrb[0].mxu0
      %v2662 = vadd.f32 0.0, %v2661
      %v2663 = vpop.f32.mrb[0].mxu0
      %2664 = vmatprep.mubr.bf16.mxu0 0
      %2665 = vmatmul.mubr.bf16.gmra.mrb[0].mxu0 %v2475
      %v2666 = vpop.f32.mrb[0].mxu0
      %v2667 = vadd.f32 0.0, %v2666
      %v2668 = vpop.f32.mrb[0].mxu0
      %v2669 = vpop.f32.mrb[0].mxu0
      %v2670 = vadd.f32 0.0, %v2669
      %v2671 = vpop.f32.mrb[0].mxu0
      %2672 = vmatprep.mubr.bf16.mxu0 0
      %2673 = vmatmul.mubr.bf16.gmra.mrb[0].mxu0 %v2476
      %v2674 = vpop.f32.mrb[0].mxu0
      %v2675 = vadd.f32 0.0, %v2674
      %v2676 = vpop.f32.mrb[0].mxu0
      %v2677 = vpop.f32.mrb[0].mxu0
      %v2678 = vadd.f32 0.0, %v2677
      %v2679 = vpop.f32.mrb[0].mxu0
      %2680 = vmatprep.mubr.bf16.mxu0 0
      %2681 = vmatmul.mubr.bf16.gmra.mrb[0].mxu0 %v2477
      %v2682 = vpop.f32.mrb[0].mxu0
      %v2683 = vadd.f32 0.0, %v2682
      %v2684 = vpop.f32.mrb[0].mxu0
      %v2685 = vpop.f32.mrb[0].mxu0
      %v2686 = vadd.f32 0.0, %v2685
      %v2687 = vpop.f32.mrb[0].mxu0
      %2688 = vmatprep.mubr.bf16.mxu0 0
      %2689 = vmatmul.mubr.bf16.gmra.mrb[0].mxu0 %v2478
      %v2690 = vpop.f32.mrb[0].mxu0
      %v2691 = vadd.f32 0.0, %v2690
      %v2692 = vpop.f32.mrb[0].mxu0
      %v2693 = vpop.f32.mrb[0].mxu0
      %v2694 = vadd.f32 0.0, %v2693
      %v2695 = vpop.f32.mrb[0].mxu0
      %2696 = vmatprep.mubr.bf16.mxu0 0
      %2697 = vmatmul.mubr.bf16.gmra.mrb[0].mxu0 %v2479
      %v2698 = vpop.f32.mrb[0].mxu0
      %v2699 = vadd.f32 0.0, %v2698
      %v2700 = vpop.f32.mrb[0].mxu0
      %v2701 = vpop.f32.mrb[0].mxu0
      %v2702 = vadd.f32 0.0, %v2701
      %v2703 = vpop.f32.mrb[0].mxu0
      %2704 = vdwg.mxu0
      %v2705 = vadd.f32 %v2220, %v2579
      %v2706 = vadd.f32 %v2221, %v2582
      %v2707 = vadd.f32 %v2222, %v2587
      %v2708 = vadd.f32 %v2223, %v2590
      %v2709 = vadd.f32 %v2224, %v2595
      %v2710 = vadd.f32 %v2225, %v2598
      %v2711 = vadd.f32 %v2226, %v2603
      %v2712 = vadd.f32 %v2227, %v2606
      %v2713 = vadd.f32 %v2228, %v2611
      %v2714 = vadd.f32 %v2229, %v2614
      %v2715 = vadd.f32 %v2230, %v2619
      %v2716 = vadd.f32 %v2231, %v2622
      %v2717 = vadd.f32 %v2232, %v2627
      %v2718 = vadd.f32 %v2233, %v2630
      %v2719 = vadd.f32 %v2234, %v2635
      %v2720 = vadd.f32 %v2235, %v2638
      %v2721 = vadd.f32 %v2236, %v2643
      %v2722 = vadd.f32 %v2237, %v2646
      %v2723 = vadd.f32 %v2238, %v2651
      %v2724 = vadd.f32 %v2239, %v2654
      %v2725 = vadd.f32 %v2240, %v2659
      %v2726 = vadd.f32 %v2241, %v2662
      %v2727 = vadd.f32 %v2242, %v2667
      %v2728 = vadd.f32 %v2243, %v2670
      %v2729 = vadd.f32 %v2244, %v2675
      %v2730 = vadd.f32 %v2245, %v2678
      %v2731 = vadd.f32 %v2246, %v2683
      %v2732 = vadd.f32 %v2247, %v2686
      %v2733 = vadd.f32 %v2248, %v2691
      %v2734 = vadd.f32 %v2249, %v2694
      %v2735 = vadd.f32 %v2250, %v2699
      %v2736 = vadd.f32 %v2251, %v2702
      %2737 = vst [vmem:[#allocation3] sm:$0xff] %v2705
      %2738 = vst [vmem:[#allocation3 + $0x8] sm:$0xff] %v2706
      %2739 = vst [vmem:[#allocation3 + $0x10] sm:$0xff] %v2707
      %2740 = vst [vmem:[#allocation3 + $0x18] sm:$0xff] %v2708
      %2741 = vst [vmem:[#allocation3 + $0x20] sm:$0xff] %v2709
      %2742 = vst [vmem:[#allocation3 + $0x28] sm:$0xff] %v2710
      %2743 = vst [vmem:[#allocation3 + $0x30] sm:$0xff] %v2711
      %2744 = vst [vmem:[#allocation3 + $0x38] sm:$0xff] %v2712
      %2745 = vst [vmem:[#allocation3 + $0x40] sm:$0xff] %v2713
      %2746 = vst [vmem:[#allocation3 + $0x48] sm:$0xff] %v2714
      %2747 = vst [vmem:[#allocation3 + $0x50] sm:$0xff] %v2715
      %2748 = vst [vmem:[#allocation3 + $0x58] sm:$0xff] %v2716
      %2749 = vst [vmem:[#allocation3 + $0x60] sm:$0xff] %v2717
      %2750 = vst [vmem:[#allocation3 + $0x68] sm:$0xff] %v2718
      %2751 = vst [vmem:[#allocation3 + $0x70] sm:$0xff] %v2719
      %2752 = vst [vmem:[#allocation3 + $0x78] sm:$0xff] %v2720
      %2753 = vst [vmem:[#allocation3 + $0x80] sm:$0xff] %v2721
      %2754 = vst [vmem:[#allocation3 + $0x88] sm:$0xff] %v2722
      %2755 = vst [vmem:[#allocation3 + $0x90] sm:$0xff] %v2723
      %2756 = vst [vmem:[#allocation3 + $0x98] sm:$0xff] %v2724
      %2757 = vst [vmem:[#allocation3 + $0xa0] sm:$0xff] %v2725
      %2758 = vst [vmem:[#allocation3 + $0xa8] sm:$0xff] %v2726
      %2759 = vst [vmem:[#allocation3 + $0xb0] sm:$0xff] %v2727
      %2760 = vst [vmem:[#allocation3 + $0xb8] sm:$0xff] %v2728
      %2761 = vst [vmem:[#allocation3 + $0xc0] sm:$0xff] %v2729
      %2762 = vst [vmem:[#allocation3 + $0xc8] sm:$0xff] %v2730
      %2763 = vst [vmem:[#allocation3 + $0xd0] sm:$0xff] %v2731
      %2764 = vst [vmem:[#allocation3 + $0xd8] sm:$0xff] %v2732
      %2765 = vst [vmem:[#allocation3 + $0xe0] sm:$0xff] %v2733
      %2766 = vst [vmem:[#allocation3 + $0xe8] sm:$0xff] %v2734
      %2767 = vst [vmem:[#allocation3 + $0xf0] sm:$0xff] %v2735
      %2768 = vst [vmem:[#allocation3 + $0xf8] sm:$0xff] %v2736
      %s2769 = scalar_lea.vmem [#allocation2], 12
      %v2770 = vld [vmem:[%s2769] sm:$0xf]
      %v2771 = vld [vmem:[%s2769 + $0x4] sm:$0xf]
      %v2772 = vld [vmem:[%s2769 + $0xc] sm:$0xf]
      %v2773 = vld [vmem:[%s2769 + $0x10] sm:$0xf]
      %v2774 = vld [vmem:[%s2769 + $0x18] sm:$0xf]
      %v2775 = vld [vmem:[%s2769 + $0x1c] sm:$0xf]
      %v2776 = vld [vmem:[%s2769 + $0x24] sm:$0xf]
      %v2777 = vld [vmem:[%s2769 + $0x28] sm:$0xf]
      %v2778 = vld [vmem:[%s2769 + $0x30] sm:$0xf]
      %v2779 = vld [vmem:[%s2769 + $0x34] sm:$0xf]
      %v2780 = vld [vmem:[%s2769 + $0x3c] sm:$0xf]
      %v2781 = vld [vmem:[%s2769 + $0x40] sm:$0xf]
      %v2782 = vld [vmem:[%s2769 + $0x48] sm:$0xf]
      %v2783 = vld [vmem:[%s2769 + $0x4c] sm:$0xf]
      %v2784 = vld [vmem:[%s2769 + $0x54] sm:$0xf]
      %v2785 = vld [vmem:[%s2769 + $0x58] sm:$0xf]
      %v2786 = vld [vmem:[%s2769 + $0x60] sm:$0xf]
      %v2787 = vld [vmem:[%s2769 + $0x64] sm:$0xf]
      %v2788 = vld [vmem:[%s2769 + $0x6c] sm:$0xf]
      %v2789 = vld [vmem:[%s2769 + $0x70] sm:$0xf]
      %v2790 = vld [vmem:[%s2769 + $0x78] sm:$0xf]
      %v2791 = vld [vmem:[%s2769 + $0x7c] sm:$0xf]
      %v2792 = vld [vmem:[%s2769 + $0x84] sm:$0xf]
      %v2793 = vld [vmem:[%s2769 + $0x88] sm:$0xf]
      %v2794 = vld [vmem:[%s2769 + $0x90] sm:$0xf]
      %v2795 = vld [vmem:[%s2769 + $0x94] sm:$0xf]
      %v2796 = vld [vmem:[%s2769 + $0x9c] sm:$0xf]
      %v2797 = vld [vmem:[%s2769 + $0xa0] sm:$0xf]
      %v2798 = vld [vmem:[%s2769 + $0xa8] sm:$0xf]
      %v2799 = vld [vmem:[%s2769 + $0xac] sm:$0xf]
      %v2800 = vld [vmem:[%s2769 + $0xb4] sm:$0xf]
      %v2801 = vld [vmem:[%s2769 + $0xb8] sm:$0xf]
      %v2802 = vld [vmem:[#allocation3] sm:$0xff]
      %v2803 = vld [vmem:[#allocation3 + $0x8] sm:$0xff]
      %v2804 = vld [vmem:[#allocation3 + $0x10] sm:$0xff]
      %v2805 = vld [vmem:[#allocation3 + $0x18] sm:$0xff]
      %v2806 = vld [vmem:[#allocation3 + $0x20] sm:$0xff]
      %v2807 = vld [vmem:[#allocation3 + $0x28] sm:$0xff]
      %v2808 = vld [vmem:[#allocation3 + $0x30] sm:$0xff]
      %v2809 = vld [vmem:[#allocation3 + $0x38] sm:$0xff]
      %v2810 = vld [vmem:[#allocation3 + $0x40] sm:$0xff]
      %v2811 = vld [vmem:[#allocation3 + $0x48] sm:$0xff]
      %v2812 = vld [vmem:[#allocation3 + $0x50] sm:$0xff]
      %v2813 = vld [vmem:[#allocation3 + $0x58] sm:$0xff]
      %v2814 = vld [vmem:[#allocation3 + $0x60] sm:$0xff]
      %v2815 = vld [vmem:[#allocation3 + $0x68] sm:$0xff]
      %v2816 = vld [vmem:[#allocation3 + $0x70] sm:$0xff]
      %v2817 = vld [vmem:[#allocation3 + $0x78] sm:$0xff]
      %v2818 = vld [vmem:[#allocation3 + $0x80] sm:$0xff]
      %v2819 = vld [vmem:[#allocation3 + $0x88] sm:$0xff]
      %v2820 = vld [vmem:[#allocation3 + $0x90] sm:$0xff]
      %v2821 = vld [vmem:[#allocation3 + $0x98] sm:$0xff]
      %v2822 = vld [vmem:[#allocation3 + $0xa0] sm:$0xff]
      %v2823 = vld [vmem:[#allocation3 + $0xa8] sm:$0xff]
      %v2824 = vld [vmem:[#allocation3 + $0xb0] sm:$0xff]
      %v2825 = vld [vmem:[#allocation3 + $0xb8] sm:$0xff]
      %v2826 = vld [vmem:[#allocation3 + $0xc0] sm:$0xff]
      %v2827 = vld [vmem:[#allocation3 + $0xc8] sm:$0xff]
      %v2828 = vld [vmem:[#allocation3 + $0xd0] sm:$0xff]
      %v2829 = vld [vmem:[#allocation3 + $0xd8] sm:$0xff]
      %v2830 = vld [vmem:[#allocation3 + $0xe0] sm:$0xff]
      %v2831 = vld [vmem:[#allocation3 + $0xe8] sm:$0xff]
      %v2832 = vld [vmem:[#allocation3 + $0xf0] sm:$0xff]
      %v2833 = vld [vmem:[#allocation3 + $0xf8] sm:$0xff]
      %s2834 = scalar_lea.vmem %s1, 192
      %v2835 = vld [vmem:[%s2834] sm:$0xf]
      %v2836 = vld [vmem:[%s2834 + $0x4] sm:$0xf]
      %v2837 = vld [vmem:[%s2834 + $0x8] sm:$0xf]
      %v2838 = vld [vmem:[%s2834 + $0xc] sm:$0xf]
      %v2839 = vld [vmem:[%s2834 + $0x10] sm:$0xf]
      %v2840 = vld [vmem:[%s2834 + $0x14] sm:$0xf]
      %v2841 = vld [vmem:[%s2834 + $0x18] sm:$0xf]
      %v2842 = vld [vmem:[%s2834 + $0x1c] sm:$0xf]
      %v2843 = vld [vmem:[%s2834 + $0x20] sm:$0xf]
      %v2844 = vld [vmem:[%s2834 + $0x24] sm:$0xf]
      %v2845 = vld [vmem:[%s2834 + $0x28] sm:$0xf]
      %v2846 = vld [vmem:[%s2834 + $0x2c] sm:$0xf]
      %v2847 = vld [vmem:[%s2834 + $0x30] sm:$0xf]
      %v2848 = vld [vmem:[%s2834 + $0x34] sm:$0xf]
      %v2849 = vld [vmem:[%s2834 + $0x38] sm:$0xf]
      %v2850 = vld [vmem:[%s2834 + $0x3c] sm:$0xf]
      %v2883 = vunpack.c.l.b16 %v2770
      %v2884 = vunpack.c.l.b16 %v2771
      %v2885 = vunpack.c.l.b16 %v2772
      %v2886 = vunpack.c.l.b16 %v2773
      %v2887 = vunpack.c.l.b16 %v2774
      %v2888 = vunpack.c.l.b16 %v2775
      %v2889 = vunpack.c.l.b16 %v2776
      %v2890 = vunpack.c.l.b16 %v2777
      %v2891 = vunpack.c.l.b16 %v2778
      %v2892 = vunpack.c.l.b16 %v2779
      %v2893 = vunpack.c.l.b16 %v2780
      %v2894 = vunpack.c.l.b16 %v2781
      %v2895 = vunpack.c.l.b16 %v2782
      %v2896 = vunpack.c.l.b16 %v2783
      %v2897 = vunpack.c.l.b16 %v2784
      %v2898 = vunpack.c.l.b16 %v2785
      %v2899 = vunpack.c.l.b16 %v2786
      %v2900 = vunpack.c.l.b16 %v2787
      %v2901 = vunpack.c.l.b16 %v2788
      %v2902 = vunpack.c.l.b16 %v2789
      %v2903 = vunpack.c.l.b16 %v2790
      %v2904 = vunpack.c.l.b16 %v2791
      %v2905 = vunpack.c.l.b16 %v2792
      %v2906 = vunpack.c.l.b16 %v2793
      %v2907 = vunpack.c.l.b16 %v2794
      %v2908 = vunpack.c.l.b16 %v2795
      %v2909 = vunpack.c.l.b16 %v2796
      %v2910 = vunpack.c.l.b16 %v2797
      %v2911 = vunpack.c.l.b16 %v2798
      %v2912 = vunpack.c.l.b16 %v2799
      %v2913 = vunpack.c.l.b16 %v2800
      %v2914 = vunpack.c.l.b16 %v2801
      %v2915 = vpack.c.b16 %v2884, %v2883
      %v2916 = vpack.c.b16 %v2886, %v2885
      %v2917 = vpack.c.b16 %v2888, %v2887
      %v2918 = vpack.c.b16 %v2890, %v2889
      %v2919 = vpack.c.b16 %v2892, %v2891
      %v2920 = vpack.c.b16 %v2894, %v2893
      %v2921 = vpack.c.b16 %v2896, %v2895
      %v2922 = vpack.c.b16 %v2898, %v2897
      %v2923 = vpack.c.b16 %v2900, %v2899
      %v2924 = vpack.c.b16 %v2902, %v2901
      %v2925 = vpack.c.b16 %v2904, %v2903
      %v2926 = vpack.c.b16 %v2906, %v2905
      %v2927 = vpack.c.b16 %v2908, %v2907
      %v2928 = vpack.c.b16 %v2910, %v2909
      %v2929 = vpack.c.b16 %v2912, %v2911
      %v2930 = vpack.c.b16 %v2914, %v2913
      %v2963 = vunpack.c.l.b16 %v2835
      %v2964 = vunpack.c.l.b16 %v2836
      %v2965 = vunpack.c.l.b16 %v2837
      %v2966 = vunpack.c.l.b16 %v2838
      %v2967 = vunpack.c.l.b16 %v2839
      %v2968 = vunpack.c.l.b16 %v2840
      %v2969 = vunpack.c.l.b16 %v2841
      %v2970 = vunpack.c.l.b16 %v2842
      %v2971 = vunpack.c.l.b16 %v2843
      %v2972 = vunpack.c.l.b16 %v2844
      %v2973 = vunpack.c.l.b16 %v2845
      %v2974 = vunpack.c.l.b16 %v2846
      %v2975 = vunpack.c.l.b16 %v2847
      %v2976 = vunpack.c.l.b16 %v2848
      %v2977 = vunpack.c.l.b16 %v2849
      %v2978 = vunpack.c.l.b16 %v2850
      %v2979 = vpack.c.b16 %v2964, %v2963
      %v2980 = vpack.c.b16 %v2966, %v2965
      %v2981 = vpack.c.b16 %v2968, %v2967
      %v2982 = vpack.c.b16 %v2970, %v2969
      %v2983 = vpack.c.b16 %v2972, %v2971
      %v2984 = vpack.c.b16 %v2974, %v2973
      %v2985 = vpack.c.b16 %v2976, %v2975
      %v2986 = vpack.c.b16 %v2978, %v2977
      %2995 = vmatprep.subr.bf16.mxu0 0
      %2996 = vmatpush1.bf16.msra.mxu0 %v2979
      %2997 = vmatprep.subr.bf16.mxu0 0
      %2998 = vmatpush1.bf16.msra.mxu0 %v2980
      %2999 = vmatprep.subr.bf16.mxu0 0
      %3000 = vmatpush1.bf16.msra.mxu0 %v2981
      %3001 = vmatprep.subr.bf16.mxu0 0
      %3002 = vmatpush1.bf16.msra.mxu0 %v2982
      %3003 = vmatprep.subr.bf16.mxu0 0
      %3004 = vmatpush1.bf16.msra.mxu0 %v2983
      %3005 = vmatprep.subr.bf16.mxu0 0
      %3006 = vmatpush1.bf16.msra.mxu0 %v2984
      %3007 = vmatprep.subr.bf16.mxu0 0
      %3008 = vmatpush1.bf16.msra.mxu0 %v2985
      %3009 = vmatprep.subr.bf16.mxu0 0
      %3010 = vmatpush1.bf16.msra.mxu0 %v2986
      %3011 = vmatprep.subr.bf16.mxu0 0
      %3012 = vmatpush1.bf16.msra.mxu0 0
      %3013 = vmatprep.subr.bf16.mxu0 0
      %3014 = vmatpush1.bf16.msra.mxu0 0
      %3015 = vmatprep.subr.bf16.mxu0 0
      %3016 = vmatpush1.bf16.msra.mxu0 0
      %3017 = vmatprep.subr.bf16.mxu0 0
      %3018 = vmatpush1.bf16.msra.mxu0 0
      %3019 = vmatprep.subr.bf16.mxu0 0
      %3020 = vmatpush1.bf16.msra.mxu0 0
      %3021 = vmatprep.subr.bf16.mxu0 0
      %3022 = vmatpush1.bf16.msra.mxu0 0
      %3023 = vmatprep.subr.bf16.mxu0 0
      %3024 = vmatpush1.bf16.msra.mxu0 0
      %3025 = vmatprep.subr.bf16.mxu0 0
      %3026 = vmatpush1.bf16.msra.mxu0 0
      %3027 = vmatprep.mubr.bf16.mxu0 0
      %3028 = vmatmul.mubr.bf16.gmra.mrb[0].mxu0 %v2915
      %v3029 = vpop.f32.mrb[0].mxu0
      %v3030 = vadd.f32 0.0, %v3029
      %v3031 = vpop.f32.mrb[0].mxu0
      %v3032 = vpop.f32.mrb[0].mxu0
      %v3033 = vadd.f32 0.0, %v3032
      %v3034 = vpop.f32.mrb[0].mxu0
      %3035 = vmatprep.mubr.bf16.mxu0 0
      %3036 = vmatmul.mubr.bf16.gmra.mrb[0].mxu0 %v2916
      %v3037 = vpop.f32.mrb[0].mxu0
      %v3038 = vadd.f32 0.0, %v3037
      %v3039 = vpop.f32.mrb[0].mxu0
      %v3040 = vpop.f32.mrb[0].mxu0
      %v3041 = vadd.f32 0.0, %v3040
      %v3042 = vpop.f32.mrb[0].mxu0
      %3043 = vmatprep.mubr.bf16.mxu0 0
      %3044 = vmatmul.mubr.bf16.gmra.mrb[0].mxu0 %v2917
      %v3045 = vpop.f32.mrb[0].mxu0
      %v3046 = vadd.f32 0.0, %v3045
      %v3047 = vpop.f32.mrb[0].mxu0
      %v3048 = vpop.f32.mrb[0].mxu0
      %v3049 = vadd.f32 0.0, %v3048
      %v3050 = vpop.f32.mrb[0].mxu0
      %3051 = vmatprep.mubr.bf16.mxu0 0
      %3052 = vmatmul.mubr.bf16.gmra.mrb[0].mxu0 %v2918
      %v3053 = vpop.f32.mrb[0].mxu0
      %v3054 = vadd.f32 0.0, %v3053
      %v3055 = vpop.f32.mrb[0].mxu0
      %v3056 = vpop.f32.mrb[0].mxu0
      %v3057 = vadd.f32 0.0, %v3056
      %v3058 = vpop.f32.mrb[0].mxu0
      %3059 = vmatprep.mubr.bf16.mxu0 0
      %3060 = vmatmul.mubr.bf16.gmra.mrb[0].mxu0 %v2919
      %v3061 = vpop.f32.mrb[0].mxu0
      %v3062 = vadd.f32 0.0, %v3061
      %v3063 = vpop.f32.mrb[0].mxu0
      %v3064 = vpop.f32.mrb[0].mxu0
      %v3065 = vadd.f32 0.0, %v3064
      %v3066 = vpop.f32.mrb[0].mxu0
      %3067 = vmatprep.mubr.bf16.mxu0 0
      %3068 = vmatmul.mubr.bf16.gmra.mrb[0].mxu0 %v2920
      %v3069 = vpop.f32.mrb[0].mxu0
      %v3070 = vadd.f32 0.0, %v3069
      %v3071 = vpop.f32.mrb[0].mxu0
      %v3072 = vpop.f32.mrb[0].mxu0
      %v3073 = vadd.f32 0.0, %v3072
      %v3074 = vpop.f32.mrb[0].mxu0
      %3075 = vmatprep.mubr.bf16.mxu0 0
      %3076 = vmatmul.mubr.bf16.gmra.mrb[0].mxu0 %v2921
      %v3077 = vpop.f32.mrb[0].mxu0
      %v3078 = vadd.f32 0.0, %v3077
      %v3079 = vpop.f32.mrb[0].mxu0
      %v3080 = vpop.f32.mrb[0].mxu0
      %v3081 = vadd.f32 0.0, %v3080
      %v3082 = vpop.f32.mrb[0].mxu0
      %3083 = vmatprep.mubr.bf16.mxu0 0
      %3084 = vmatmul.mubr.bf16.gmra.mrb[0].mxu0 %v2922
      %v3085 = vpop.f32.mrb[0].mxu0
      %v3086 = vadd.f32 0.0, %v3085
      %v3087 = vpop.f32.mrb[0].mxu0
      %v3088 = vpop.f32.mrb[0].mxu0
      %v3089 = vadd.f32 0.0, %v3088
      %v3090 = vpop.f32.mrb[0].mxu0
      %3091 = vmatprep.mubr.bf16.mxu0 0
      %3092 = vmatmul.mubr.bf16.gmra.mrb[0].mxu0 %v2923
      %v3093 = vpop.f32.mrb[0].mxu0
      %v3094 = vadd.f32 0.0, %v3093
      %v3095 = vpop.f32.mrb[0].mxu0
      %v3096 = vpop.f32.mrb[0].mxu0
      %v3097 = vadd.f32 0.0, %v3096
      %v3098 = vpop.f32.mrb[0].mxu0
      %3099 = vmatprep.mubr.bf16.mxu0 0
      %3100 = vmatmul.mubr.bf16.gmra.mrb[0].mxu0 %v2924
      %v3101 = vpop.f32.mrb[0].mxu0
      %v3102 = vadd.f32 0.0, %v3101
      %v3103 = vpop.f32.mrb[0].mxu0
      %v3104 = vpop.f32.mrb[0].mxu0
      %v3105 = vadd.f32 0.0, %v3104
      %v3106 = vpop.f32.mrb[0].mxu0
      %3107 = vmatprep.mubr.bf16.mxu0 0
      %3108 = vmatmul.mubr.bf16.gmra.mrb[0].mxu0 %v2925
      %v3109 = vpop.f32.mrb[0].mxu0
      %v3110 = vadd.f32 0.0, %v3109
      %v3111 = vpop.f32.mrb[0].mxu0
      %v3112 = vpop.f32.mrb[0].mxu0
      %v3113 = vadd.f32 0.0, %v3112
      %v3114 = vpop.f32.mrb[0].mxu0
      %3115 = vmatprep.mubr.bf16.mxu0 0
      %3116 = vmatmul.mubr.bf16.gmra.mrb[0].mxu0 %v2926
      %v3117 = vpop.f32.mrb[0].mxu0
      %v3118 = vadd.f32 0.0, %v3117
      %v3119 = vpop.f32.mrb[0].mxu0
      %v3120 = vpop.f32.mrb[0].mxu0
      %v3121 = vadd.f32 0.0, %v3120
      %v3122 = vpop.f32.mrb[0].mxu0
      %3123 = vmatprep.mubr.bf16.mxu0 0
      %3124 = vmatmul.mubr.bf16.gmra.mrb[0].mxu0 %v2927
      %v3125 = vpop.f32.mrb[0].mxu0
      %v3126 = vadd.f32 0.0, %v3125
      %v3127 = vpop.f32.mrb[0].mxu0
      %v3128 = vpop.f32.mrb[0].mxu0
      %v3129 = vadd.f32 0.0, %v3128
      %v3130 = vpop.f32.mrb[0].mxu0
      %3131 = vmatprep.mubr.bf16.mxu0 0
      %3132 = vmatmul.mubr.bf16.gmra.mrb[0].mxu0 %v2928
      %v3133 = vpop.f32.mrb[0].mxu0
      %v3134 = vadd.f32 0.0, %v3133
      %v3135 = vpop.f32.mrb[0].mxu0
      %v3136 = vpop.f32.mrb[0].mxu0
      %v3137 = vadd.f32 0.0, %v3136
      %v3138 = vpop.f32.mrb[0].mxu0
      %3139 = vmatprep.mubr.bf16.mxu0 0
      %3140 = vmatmul.mubr.bf16.gmra.mrb[0].mxu0 %v2929
      %v3141 = vpop.f32.mrb[0].mxu0
      %v3142 = vadd.f32 0.0, %v3141
      %v3143 = vpop.f32.mrb[0].mxu0
      %v3144 = vpop.f32.mrb[0].mxu0
      %v3145 = vadd.f32 0.0, %v3144
      %v3146 = vpop.f32.mrb[0].mxu0
      %3147 = vmatprep.mubr.bf16.mxu0 0
      %3148 = vmatmul.mubr.bf16.gmra.mrb[0].mxu0 %v2930
      %v3149 = vpop.f32.mrb[0].mxu0
      %v3150 = vadd.f32 0.0, %v3149
      %v3151 = vpop.f32.mrb[0].mxu0
      %v3152 = vpop.f32.mrb[0].mxu0
      %v3153 = vadd.f32 0.0, %v3152
      %v3154 = vpop.f32.mrb[0].mxu0
      %3155 = vdwg.mxu0
      %v3156 = vadd.f32 %v2802, %v3030
      %v3157 = vadd.f32 %v2803, %v3033
      %v3158 = vadd.f32 %v2804, %v3038
      %v3159 = vadd.f32 %v2805, %v3041
      %v3160 = vadd.f32 %v2806, %v3046
      %v3161 = vadd.f32 %v2807, %v3049
      %v3162 = vadd.f32 %v2808, %v3054
      %v3163 = vadd.f32 %v2809, %v3057
      %v3164 = vadd.f32 %v2810, %v3062
      %v3165 = vadd.f32 %v2811, %v3065
      %v3166 = vadd.f32 %v2812, %v3070
      %v3167 = vadd.f32 %v2813, %v3073
      %v3168 = vadd.f32 %v2814, %v3078
      %v3169 = vadd.f32 %v2815, %v3081
      %v3170 = vadd.f32 %v2816, %v3086
      %v3171 = vadd.f32 %v2817, %v3089
      %v3172 = vadd.f32 %v2818, %v3094
      %v3173 = vadd.f32 %v2819, %v3097
      %v3174 = vadd.f32 %v2820, %v3102
      %v3175 = vadd.f32 %v2821, %v3105
      %v3176 = vadd.f32 %v2822, %v3110
      %v3177 = vadd.f32 %v2823, %v3113
      %v3178 = vadd.f32 %v2824, %v3118
      %v3179 = vadd.f32 %v2825, %v3121
      %v3180 = vadd.f32 %v2826, %v3126
      %v3181 = vadd.f32 %v2827, %v3129
      %v3182 = vadd.f32 %v2828, %v3134
      %v3183 = vadd.f32 %v2829, %v3137
      %v3184 = vadd.f32 %v2830, %v3142
      %v3185 = vadd.f32 %v2831, %v3145
      %v3186 = vadd.f32 %v2832, %v3150
      %v3187 = vadd.f32 %v2833, %v3153
      %3188 = vst [vmem:[#allocation3] sm:$0xff] %v3156
      %3189 = vst [vmem:[#allocation3 + $0x8] sm:$0xff] %v3157
      %3190 = vst [vmem:[#allocation3 + $0x10] sm:$0xff] %v3158
      %3191 = vst [vmem:[#allocation3 + $0x18] sm:$0xff] %v3159
      %3192 = vst [vmem:[#allocation3 + $0x20] sm:$0xff] %v3160
      %3193 = vst [vmem:[#allocation3 + $0x28] sm:$0xff] %v3161
      %3194 = vst [vmem:[#allocation3 + $0x30] sm:$0xff] %v3162
      %3195 = vst [vmem:[#allocation3 + $0x38] sm:$0xff] %v3163
      %3196 = vst [vmem:[#allocation3 + $0x40] sm:$0xff] %v3164
      %3197 = vst [vmem:[#allocation3 + $0x48] sm:$0xff] %v3165
      %3198 = vst [vmem:[#allocation3 + $0x50] sm:$0xff] %v3166
      %3199 = vst [vmem:[#allocation3 + $0x58] sm:$0xff] %v3167
      %3200 = vst [vmem:[#allocation3 + $0x60] sm:$0xff] %v3168
      %3201 = vst [vmem:[#allocation3 + $0x68] sm:$0xff] %v3169
      %3202 = vst [vmem:[#allocation3 + $0x70] sm:$0xff] %v3170
      %3203 = vst [vmem:[#allocation3 + $0x78] sm:$0xff] %v3171
      %3204 = vst [vmem:[#allocation3 + $0x80] sm:$0xff] %v3172
      %3205 = vst [vmem:[#allocation3 + $0x88] sm:$0xff] %v3173
      %3206 = vst [vmem:[#allocation3 + $0x90] sm:$0xff] %v3174
      %3207 = vst [vmem:[#allocation3 + $0x98] sm:$0xff] %v3175
      %3208 = vst [vmem:[#allocation3 + $0xa0] sm:$0xff] %v3176
      %3209 = vst [vmem:[#allocation3 + $0xa8] sm:$0xff] %v3177
      %3210 = vst [vmem:[#allocation3 + $0xb0] sm:$0xff] %v3178
      %3211 = vst [vmem:[#allocation3 + $0xb8] sm:$0xff] %v3179
      %3212 = vst [vmem:[#allocation3 + $0xc0] sm:$0xff] %v3180
      %3213 = vst [vmem:[#allocation3 + $0xc8] sm:$0xff] %v3181
      %3214 = vst [vmem:[#allocation3 + $0xd0] sm:$0xff] %v3182
      %3215 = vst [vmem:[#allocation3 + $0xd8] sm:$0xff] %v3183
      %3216 = vst [vmem:[#allocation3 + $0xe0] sm:$0xff] %v3184
      %3217 = vst [vmem:[#allocation3 + $0xe8] sm:$0xff] %v3185
      %3218 = vst [vmem:[#allocation3 + $0xf0] sm:$0xff] %v3186
      %3219 = vst [vmem:[#allocation3 + $0xf8] sm:$0xff] %v3187
      %v3220 = vld [vmem:[%s2769] sm:$0xf]
      %v3221 = vld [vmem:[%s2769 + $0x4] sm:$0xf]
      %v3222 = vld [vmem:[%s2769 + $0x8] sm:$0x1]
      %v3223 = vld [vmem:[%s2769 + $0xc] sm:$0xf]
      %v3224 = vld [vmem:[%s2769 + $0x10] sm:$0xf]
      %v3225 = vld [vmem:[%s2769 + $0x14] sm:$0x1]
      %v3226 = vld [vmem:[%s2769 + $0x18] sm:$0xf]
      %v3227 = vld [vmem:[%s2769 + $0x1c] sm:$0xf]
      %v3228 = vld [vmem:[%s2769 + $0x20] sm:$0x1]
      %v3229 = vld [vmem:[%s2769 + $0x24] sm:$0xf]
      %v3230 = vld [vmem:[%s2769 + $0x28] sm:$0xf]
      %v3231 = vld [vmem:[%s2769 + $0x2c] sm:$0x1]
      %v3232 = vld [vmem:[%s2769 + $0x30] sm:$0xf]
      %v3233 = vld [vmem:[%s2769 + $0x34] sm:$0xf]
      %v3234 = vld [vmem:[%s2769 + $0x38] sm:$0x1]
      %v3235 = vld [vmem:[%s2769 + $0x3c] sm:$0xf]
      %v3236 = vld [vmem:[%s2769 + $0x40] sm:$0xf]
      %v3237 = vld [vmem:[%s2769 + $0x44] sm:$0x1]
      %v3238 = vld [vmem:[%s2769 + $0x48] sm:$0xf]
      %v3239 = vld [vmem:[%s2769 + $0x4c] sm:$0xf]
      %v3240 = vld [vmem:[%s2769 + $0x50] sm:$0x1]
      %v3241 = vld [vmem:[%s2769 + $0x54] sm:$0xf]
      %v3242 = vld [vmem:[%s2769 + $0x58] sm:$0xf]
      %v3243 = vld [vmem:[%s2769 + $0x5c] sm:$0x1]
      %v3244 = vld [vmem:[%s2769 + $0x60] sm:$0xf]
      %v3245 = vld [vmem:[%s2769 + $0x64] sm:$0xf]
      %v3246 = vld [vmem:[%s2769 + $0x68] sm:$0x1]
      %v3247 = vld [vmem:[%s2769 + $0x6c] sm:$0xf]
      %v3248 = vld [vmem:[%s2769 + $0x70] sm:$0xf]
      %v3249 = vld [vmem:[%s2769 + $0x74] sm:$0x1]
      %v3250 = vld [vmem:[%s2769 + $0x78] sm:$0xf]
      %v3251 = vld [vmem:[%s2769 + $0x7c] sm:$0xf]
      %v3252 = vld [vmem:[%s2769 + $0x80] sm:$0x1]
      %v3253 = vld [vmem:[%s2769 + $0x84] sm:$0xf]
      %v3254 = vld [vmem:[%s2769 + $0x88] sm:$0xf]
      %v3255 = vld [vmem:[%s2769 + $0x8c] sm:$0x1]
      %v3256 = vld [vmem:[%s2769 + $0x90] sm:$0xf]
      %v3257 = vld [vmem:[%s2769 + $0x94] sm:$0xf]
      %v3258 = vld [vmem:[%s2769 + $0x98] sm:$0x1]
      %v3259 = vld [vmem:[%s2769 + $0x9c] sm:$0xf]
      %v3260 = vld [vmem:[%s2769 + $0xa0] sm:$0xf]
      %v3261 = vld [vmem:[%s2769 + $0xa4] sm:$0x1]
      %v3262 = vld [vmem:[%s2769 + $0xa8] sm:$0xf]
      %v3263 = vld [vmem:[%s2769 + $0xac] sm:$0xf]
      %v3264 = vld [vmem:[%s2769 + $0xb0] sm:$0x1]
      %v3265 = vld [vmem:[%s2769 + $0xb4] sm:$0xf]
      %v3266 = vld [vmem:[%s2769 + $0xb8] sm:$0xf]
      %v3267 = vld [vmem:[%s2769 + $0xbc] sm:$0x1]
      %v3268 = vld [vmem:[#allocation3] sm:$0xff]
      %v3269 = vld [vmem:[#allocation3 + $0x8] sm:$0xff]
      %v3270 = vld [vmem:[#allocation3 + $0x10] sm:$0xff]
      %v3271 = vld [vmem:[#allocation3 + $0x18] sm:$0xff]
      %v3272 = vld [vmem:[#allocation3 + $0x20] sm:$0xff]
      %v3273 = vld [vmem:[#allocation3 + $0x28] sm:$0xff]
      %v3274 = vld [vmem:[#allocation3 + $0x30] sm:$0xff]
      %v3275 = vld [vmem:[#allocation3 + $0x38] sm:$0xff]
      %v3276 = vld [vmem:[#allocation3 + $0x40] sm:$0xff]
      %v3277 = vld [vmem:[#allocation3 + $0x48] sm:$0xff]
      %v3278 = vld [vmem:[#allocation3 + $0x50] sm:$0xff]
      %v3279 = vld [vmem:[#allocation3 + $0x58] sm:$0xff]
      %v3280 = vld [vmem:[#allocation3 + $0x60] sm:$0xff]
      %v3281 = vld [vmem:[#allocation3 + $0x68] sm:$0xff]
      %v3282 = vld [vmem:[#allocation3 + $0x70] sm:$0xff]
      %v3283 = vld [vmem:[#allocation3 + $0x78] sm:$0xff]
      %v3284 = vld [vmem:[#allocation3 + $0x80] sm:$0xff]
      %v3285 = vld [vmem:[#allocation3 + $0x88] sm:$0xff]
      %v3286 = vld [vmem:[#allocation3 + $0x90] sm:$0xff]
      %v3287 = vld [vmem:[#allocation3 + $0x98] sm:$0xff]
      %v3288 = vld [vmem:[#allocation3 + $0xa0] sm:$0xff]
      %v3289 = vld [vmem:[#allocation3 + $0xa8] sm:$0xff]
      %v3290 = vld [vmem:[#allocation3 + $0xb0] sm:$0xff]
      %v3291 = vld [vmem:[#allocation3 + $0xb8] sm:$0xff]
      %v3292 = vld [vmem:[#allocation3 + $0xc0] sm:$0xff]
      %v3293 = vld [vmem:[#allocation3 + $0xc8] sm:$0xff]
      %v3294 = vld [vmem:[#allocation3 + $0xd0] sm:$0xff]
      %v3295 = vld [vmem:[#allocation3 + $0xd8] sm:$0xff]
      %v3296 = vld [vmem:[#allocation3 + $0xe0] sm:$0xff]
      %v3297 = vld [vmem:[#allocation3 + $0xe8] sm:$0xff]
      %v3298 = vld [vmem:[#allocation3 + $0xf0] sm:$0xff]
      %v3299 = vld [vmem:[#allocation3 + $0xf8] sm:$0xff]
      %v3301 = vshrl.u32 %v3220, 16
      %v3303 = vrot.slane %v3301, 4
      %v3304 = vshll.u32 %v3220, 16
      %v3306 = vrot.slane %v3304, 5
      %v3307 = vor.u32 %v3303, %v3306
      %v3308 = vrot.slane %v3307, 4
      %v3310 = vshll.u32 %v3221, 16
      %v3312 = vrot.slane %v3310, 5
      %v3313 = vsel %vm1433, %v3308, %v3312
      %v3314 = vshrl.u32 %v3221, 16
      %v3316 = vrot.slane %v3314, 4
      %v3317 = vor.u32 %v3316, %v3312
      %v3318 = vrot.slane %v3317, 4
      %v3320 = vshll.u32 %v3222, 16
      %v3322 = vrot.slane %v3320, 5
      %v3323 = vsel %vm1433, %v3318, %v3322
      %v3325 = vshrl.u32 %v3223, 16
      %v3327 = vrot.slane %v3325, 4
      %v3328 = vshll.u32 %v3223, 16
      %v3330 = vrot.slane %v3328, 5
      %v3331 = vor.u32 %v3327, %v3330
      %v3332 = vrot.slane %v3331, 4
      %v3334 = vshll.u32 %v3224, 16
      %v3336 = vrot.slane %v3334, 5
      %v3337 = vsel %vm1433, %v3332, %v3336
      %v3338 = vshrl.u32 %v3224, 16
      %v3340 = vrot.slane %v3338, 4
      %v3341 = vor.u32 %v3340, %v3336
      %v3342 = vrot.slane %v3341, 4
      %v3344 = vshll.u32 %v3225, 16
      %v3346 = vrot.slane %v3344, 5
      %v3347 = vsel %vm1433, %v3342, %v3346
      %v3349 = vshrl.u32 %v3226, 16
      %v3351 = vrot.slane %v3349, 4
      %v3352 = vshll.u32 %v3226, 16
      %v3354 = vrot.slane %v3352, 5
      %v3355 = vor.u32 %v3351, %v3354
      %v3356 = vrot.slane %v3355, 4
      %v3358 = vshll.u32 %v3227, 16
      %v3360 = vrot.slane %v3358, 5
      %v3361 = vsel %vm1433, %v3356, %v3360
      %v3362 = vshrl.u32 %v3227, 16
      %v3364 = vrot.slane %v3362, 4
      %v3365 = vor.u32 %v3364, %v3360
      %v3366 = vrot.slane %v3365, 4
      %v3368 = vshll.u32 %v3228, 16
      %v3370 = vrot.slane %v3368, 5
      %v3371 = vsel %vm1433, %v3366, %v3370
      %v3373 = vshrl.u32 %v3229, 16
      %v3375 = vrot.slane %v3373, 4
      %v3376 = vshll.u32 %v3229, 16
      %v3378 = vrot.slane %v3376, 5
      %v3379 = vor.u32 %v3375, %v3378
      %v3380 = vrot.slane %v3379, 4
      %v3382 = vshll.u32 %v3230, 16
      %v3384 = vrot.slane %v3382, 5
      %v3385 = vsel %vm1433, %v3380, %v3384
      %v3386 = vshrl.u32 %v3230, 16
      %v3388 = vrot.slane %v3386, 4
      %v3389 = vor.u32 %v3388, %v3384
      %v3390 = vrot.slane %v3389, 4
      %v3392 = vshll.u32 %v3231, 16
      %v3394 = vrot.slane %v3392, 5
      %v3395 = vsel %vm1433, %v3390, %v3394
      %v3397 = vshrl.u32 %v3232, 16
      %v3399 = vrot.slane %v3397, 4
      %v3400 = vshll.u32 %v3232, 16
      %v3402 = vrot.slane %v3400, 5
      %v3403 = vor.u32 %v3399, %v3402
      %v3404 = vrot.slane %v3403, 4
      %v3406 = vshll.u32 %v3233, 16
      %v3408 = vrot.slane %v3406, 5
      %v3409 = vsel %vm1433, %v3404, %v3408
      %v3410 = vshrl.u32 %v3233, 16
      %v3412 = vrot.slane %v3410, 4
      %v3413 = vor.u32 %v3412, %v3408
      %v3414 = vrot.slane %v3413, 4
      %v3416 = vshll.u32 %v3234, 16
      %v3418 = vrot.slane %v3416, 5
      %v3419 = vsel %vm1433, %v3414, %v3418
      %v3421 = vshrl.u32 %v3235, 16
      %v3423 = vrot.slane %v3421, 4
      %v3424 = vshll.u32 %v3235, 16
      %v3426 = vrot.slane %v3424, 5
      %v3427 = vor.u32 %v3423, %v3426
      %v3428 = vrot.slane %v3427, 4
      %v3430 = vshll.u32 %v3236, 16
      %v3432 = vrot.slane %v3430, 5
      %v3433 = vsel %vm1433, %v3428, %v3432
      %v3434 = vshrl.u32 %v3236, 16
      %v3436 = vrot.slane %v3434, 4
      %v3437 = vor.u32 %v3436, %v3432
      %v3438 = vrot.slane %v3437, 4
      %v3440 = vshll.u32 %v3237, 16
      %v3442 = vrot.slane %v3440, 5
      %v3443 = vsel %vm1433, %v3438, %v3442
      %v3445 = vshrl.u32 %v3238, 16
      %v3447 = vrot.slane %v3445, 4
      %v3448 = vshll.u32 %v3238, 16
      %v3450 = vrot.slane %v3448, 5
      %v3451 = vor.u32 %v3447, %v3450
      %v3452 = vrot.slane %v3451, 4
      %v3454 = vshll.u32 %v3239, 16
      %v3456 = vrot.slane %v3454, 5
      %v3457 = vsel %vm1433, %v3452, %v3456
      %v3458 = vshrl.u32 %v3239, 16
      %v3460 = vrot.slane %v3458, 4
      %v3461 = vor.u32 %v3460, %v3456
      %v3462 = vrot.slane %v3461, 4
      %v3464 = vshll.u32 %v3240, 16
      %v3466 = vrot.slane %v3464, 5
      %v3467 = vsel %vm1433, %v3462, %v3466
      %v3469 = vshrl.u32 %v3241, 16
      %v3471 = vrot.slane %v3469, 4
      %v3472 = vshll.u32 %v3241, 16
      %v3474 = vrot.slane %v3472, 5
      %v3475 = vor.u32 %v3471, %v3474
      %v3476 = vrot.slane %v3475, 4
      %v3478 = vshll.u32 %v3242, 16
      %v3480 = vrot.slane %v3478, 5
      %v3481 = vsel %vm1433, %v3476, %v3480
      %v3482 = vshrl.u32 %v3242, 16
      %v3484 = vrot.slane %v3482, 4
      %v3485 = vor.u32 %v3484, %v3480
      %v3486 = vrot.slane %v3485, 4
      %v3488 = vshll.u32 %v3243, 16
      %v3490 = vrot.slane %v3488, 5
      %v3491 = vsel %vm1433, %v3486, %v3490
      %v3493 = vshrl.u32 %v3244, 16
      %v3495 = vrot.slane %v3493, 4
      %v3496 = vshll.u32 %v3244, 16
      %v3498 = vrot.slane %v3496, 5
      %v3499 = vor.u32 %v3495, %v3498
      %v3500 = vrot.slane %v3499, 4
      %v3502 = vshll.u32 %v3245, 16
      %v3504 = vrot.slane %v3502, 5
      %v3505 = vsel %vm1433, %v3500, %v3504
      %v3506 = vshrl.u32 %v3245, 16
      %v3508 = vrot.slane %v3506, 4
      %v3509 = vor.u32 %v3508, %v3504
      %v3510 = vrot.slane %v3509, 4
      %v3512 = vshll.u32 %v3246, 16
      %v3514 = vrot.slane %v3512, 5
      %v3515 = vsel %vm1433, %v3510, %v3514
      %v3517 = vshrl.u32 %v3247, 16
      %v3519 = vrot.slane %v3517, 4
      %v3520 = vshll.u32 %v3247, 16
      %v3522 = vrot.slane %v3520, 5
      %v3523 = vor.u32 %v3519, %v3522
      %v3524 = vrot.slane %v3523, 4
      %v3526 = vshll.u32 %v3248, 16
      %v3528 = vrot.slane %v3526, 5
      %v3529 = vsel %vm1433, %v3524, %v3528
      %v3530 = vshrl.u32 %v3248, 16
      %v3532 = vrot.slane %v3530, 4
      %v3533 = vor.u32 %v3532, %v3528
      %v3534 = vrot.slane %v3533, 4
      %v3536 = vshll.u32 %v3249, 16
      %v3538 = vrot.slane %v3536, 5
      %v3539 = vsel %vm1433, %v3534, %v3538
      %v3541 = vshrl.u32 %v3250, 16
      %v3543 = vrot.slane %v3541, 4
      %v3544 = vshll.u32 %v3250, 16
      %v3546 = vrot.slane %v3544, 5
      %v3547 = vor.u32 %v3543, %v3546
      %v3548 = vrot.slane %v3547, 4
      %v3550 = vshll.u32 %v3251, 16
      %v3552 = vrot.slane %v3550, 5
      %v3553 = vsel %vm1433, %v3548, %v3552
      %v3554 = vshrl.u32 %v3251, 16
      %v3556 = vrot.slane %v3554, 4
      %v3557 = vor.u32 %v3556, %v3552
      %v3558 = vrot.slane %v3557, 4
      %v3560 = vshll.u32 %v3252, 16
      %v3562 = vrot.slane %v3560, 5
      %v3563 = vsel %vm1433, %v3558, %v3562
      %v3565 = vshrl.u32 %v3253, 16
      %v3567 = vrot.slane %v3565, 4
      %v3568 = vshll.u32 %v3253, 16
      %v3570 = vrot.slane %v3568, 5
      %v3571 = vor.u32 %v3567, %v3570
      %v3572 = vrot.slane %v3571, 4
      %v3574 = vshll.u32 %v3254, 16
      %v3576 = vrot.slane %v3574, 5
      %v3577 = vsel %vm1433, %v3572, %v3576
      %v3578 = vshrl.u32 %v3254, 16
      %v3580 = vrot.slane %v3578, 4
      %v3581 = vor.u32 %v3580, %v3576
      %v3582 = vrot.slane %v3581, 4
      %v3584 = vshll.u32 %v3255, 16
      %v3586 = vrot.slane %v3584, 5
      %v3587 = vsel %vm1433, %v3582, %v3586
      %v3589 = vshrl.u32 %v3256, 16
      %v3591 = vrot.slane %v3589, 4
      %v3592 = vshll.u32 %v3256, 16
      %v3594 = vrot.slane %v3592, 5
      %v3595 = vor.u32 %v3591, %v3594
      %v3596 = vrot.slane %v3595, 4
      %v3598 = vshll.u32 %v3257, 16
      %v3600 = vrot.slane %v3598, 5
      %v3601 = vsel %vm1433, %v3596, %v3600
      %v3602 = vshrl.u32 %v3257, 16
      %v3604 = vrot.slane %v3602, 4
      %v3605 = vor.u32 %v3604, %v3600
      %v3606 = vrot.slane %v3605, 4
      %v3608 = vshll.u32 %v3258, 16
      %v3610 = vrot.slane %v3608, 5
      %v3611 = vsel %vm1433, %v3606, %v3610
      %v3613 = vshrl.u32 %v3259, 16
      %v3615 = vrot.slane %v3613, 4
      %v3616 = vshll.u32 %v3259, 16
      %v3618 = vrot.slane %v3616, 5
      %v3619 = vor.u32 %v3615, %v3618
      %v3620 = vrot.slane %v3619, 4
      %v3622 = vshll.u32 %v3260, 16
      %v3624 = vrot.slane %v3622, 5
      %v3625 = vsel %vm1433, %v3620, %v3624
      %v3626 = vshrl.u32 %v3260, 16
      %v3628 = vrot.slane %v3626, 4
      %v3629 = vor.u32 %v3628, %v3624
      %v3630 = vrot.slane %v3629, 4
      %v3632 = vshll.u32 %v3261, 16
      %v3634 = vrot.slane %v3632, 5
      %v3635 = vsel %vm1433, %v3630, %v3634
      %v3637 = vshrl.u32 %v3262, 16
      %v3639 = vrot.slane %v3637, 4
      %v3640 = vshll.u32 %v3262, 16
      %v3642 = vrot.slane %v3640, 5
      %v3643 = vor.u32 %v3639, %v3642
      %v3644 = vrot.slane %v3643, 4
      %v3646 = vshll.u32 %v3263, 16
      %v3648 = vrot.slane %v3646, 5
      %v3649 = vsel %vm1433, %v3644, %v3648
      %v3650 = vshrl.u32 %v3263, 16
      %v3652 = vrot.slane %v3650, 4
      %v3653 = vor.u32 %v3652, %v3648
      %v3654 = vrot.slane %v3653, 4
      %v3656 = vshll.u32 %v3264, 16
      %v3658 = vrot.slane %v3656, 5
      %v3659 = vsel %vm1433, %v3654, %v3658
      %v3661 = vshrl.u32 %v3265, 16
      %v3663 = vrot.slane %v3661, 4
      %v3664 = vshll.u32 %v3265, 16
      %v3666 = vrot.slane %v3664, 5
      %v3667 = vor.u32 %v3663, %v3666
      %v3668 = vrot.slane %v3667, 4
      %v3670 = vshll.u32 %v3266, 16
      %v3672 = vrot.slane %v3670, 5
      %v3673 = vsel %vm1433, %v3668, %v3672
      %v3674 = vshrl.u32 %v3266, 16
      %v3676 = vrot.slane %v3674, 4
      %v3677 = vor.u32 %v3676, %v3672
      %v3678 = vrot.slane %v3677, 4
      %v3680 = vshll.u32 %v3267, 16
      %v3682 = vrot.slane %v3680, 5
      %v3683 = vsel %vm1433, %v3678, %v3682
      %s3684 = scalar_lea.vmem %s1, 256
      %v3685 = vld [vmem:[%s3684] sm:$0xf]
      %v3686 = vld [vmem:[%s3684 + $0x4] sm:$0xf]
      %v3687 = vld [vmem:[%s3684 + $0x8] sm:$0xf]
      %v3688 = vld [vmem:[%s3684 + $0xc] sm:$0xf]
      %v3689 = vld [vmem:[%s3684 + $0x10] sm:$0xf]
      %v3690 = vld [vmem:[%s3684 + $0x14] sm:$0xf]
      %v3691 = vld [vmem:[%s3684 + $0x18] sm:$0xf]
      %v3692 = vld [vmem:[%s3684 + $0x1c] sm:$0xf]
      %v3693 = vld [vmem:[%s3684 + $0x20] sm:$0xf]
      %v3694 = vld [vmem:[%s3684 + $0x24] sm:$0xf]
      %v3695 = vld [vmem:[%s3684 + $0x28] sm:$0xf]
      %v3696 = vld [vmem:[%s3684 + $0x2c] sm:$0xf]
      %v3697 = vld [vmem:[%s3684 + $0x30] sm:$0xf]
      %v3698 = vld [vmem:[%s3684 + $0x34] sm:$0xf]
      %v3699 = vld [vmem:[%s3684 + $0x38] sm:$0xf]
      %v3700 = vld [vmem:[%s3684 + $0x3c] sm:$0xf]
      %v3701 = vunpack.c.l.b16 %v3313
      %v3702 = vunpack.c.l.b16 %v3323
      %v3703 = vunpack.c.l.b16 %v3337
      %v3704 = vunpack.c.l.b16 %v3347
      %v3705 = vunpack.c.l.b16 %v3361
      %v3706 = vunpack.c.l.b16 %v3371
      %v3707 = vunpack.c.l.b16 %v3385
      %v3708 = vunpack.c.l.b16 %v3395
      %v3709 = vunpack.c.l.b16 %v3409
      %v3710 = vunpack.c.l.b16 %v3419
      %v3711 = vunpack.c.l.b16 %v3433
      %v3712 = vunpack.c.l.b16 %v3443
      %v3713 = vunpack.c.l.b16 %v3457
      %v3714 = vunpack.c.l.b16 %v3467
      %v3715 = vunpack.c.l.b16 %v3481
      %v3716 = vunpack.c.l.b16 %v3491
      %v3717 = vunpack.c.l.b16 %v3505
      %v3718 = vunpack.c.l.b16 %v3515
      %v3719 = vunpack.c.l.b16 %v3529
      %v3720 = vunpack.c.l.b16 %v3539
      %v3721 = vunpack.c.l.b16 %v3553
      %v3722 = vunpack.c.l.b16 %v3563
      %v3723 = vunpack.c.l.b16 %v3577
      %v3724 = vunpack.c.l.b16 %v3587
      %v3725 = vunpack.c.l.b16 %v3601
      %v3726 = vunpack.c.l.b16 %v3611
      %v3727 = vunpack.c.l.b16 %v3625
      %v3728 = vunpack.c.l.b16 %v3635
      %v3729 = vunpack.c.l.b16 %v3649
      %v3730 = vunpack.c.l.b16 %v3659
      %v3731 = vunpack.c.l.b16 %v3673
      %v3732 = vunpack.c.l.b16 %v3683
      %v3733 = vpack.c.b16 %v3702, %v3701
      %v3734 = vpack.c.b16 %v3704, %v3703
      %v3735 = vpack.c.b16 %v3706, %v3705
      %v3736 = vpack.c.b16 %v3708, %v3707
      %v3737 = vpack.c.b16 %v3710, %v3709
      %v3738 = vpack.c.b16 %v3712, %v3711
      %v3739 = vpack.c.b16 %v3714, %v3713
      %v3740 = vpack.c.b16 %v3716, %v3715
      %v3741 = vpack.c.b16 %v3718, %v3717
      %v3742 = vpack.c.b16 %v3720, %v3719
      %v3743 = vpack.c.b16 %v3722, %v3721
      %v3744 = vpack.c.b16 %v3724, %v3723
      %v3745 = vpack.c.b16 %v3726, %v3725
      %v3746 = vpack.c.b16 %v3728, %v3727
      %v3747 = vpack.c.b16 %v3730, %v3729
      %v3748 = vpack.c.b16 %v3732, %v3731
      %v3781 = vunpack.c.l.b16 %v3685
      %v3782 = vunpack.c.l.b16 %v3686
      %v3783 = vunpack.c.l.b16 %v3687
      %v3784 = vunpack.c.l.b16 %v3688
      %v3785 = vunpack.c.l.b16 %v3689
      %v3786 = vunpack.c.l.b16 %v3690
      %v3787 = vunpack.c.l.b16 %v3691
      %v3788 = vunpack.c.l.b16 %v3692
      %v3789 = vunpack.c.l.b16 %v3693
      %v3790 = vunpack.c.l.b16 %v3694
      %v3791 = vunpack.c.l.b16 %v3695
      %v3792 = vunpack.c.l.b16 %v3696
      %v3793 = vunpack.c.l.b16 %v3697
      %v3794 = vunpack.c.l.b16 %v3698
      %v3795 = vunpack.c.l.b16 %v3699
      %v3796 = vunpack.c.l.b16 %v3700
      %v3797 = vpack.c.b16 %v3782, %v3781
      %v3798 = vpack.c.b16 %v3784, %v3783
      %v3799 = vpack.c.b16 %v3786, %v3785
      %v3800 = vpack.c.b16 %v3788, %v3787
      %v3801 = vpack.c.b16 %v3790, %v3789
      %v3802 = vpack.c.b16 %v3792, %v3791
      %v3803 = vpack.c.b16 %v3794, %v3793
      %v3804 = vpack.c.b16 %v3796, %v3795
      %3813 = vmatprep.subr.bf16.mxu0 0
      %3814 = vmatpush1.bf16.msra.mxu0 %v3797
      %3815 = vmatprep.subr.bf16.mxu0 0
      %3816 = vmatpush1.bf16.msra.mxu0 %v3798
      %3817 = vmatprep.subr.bf16.mxu0 0
      %3818 = vmatpush1.bf16.msra.mxu0 %v3799
      %3819 = vmatprep.subr.bf16.mxu0 0
      %3820 = vmatpush1.bf16.msra.mxu0 %v3800
      %3821 = vmatprep.subr.bf16.mxu0 0
      %3822 = vmatpush1.bf16.msra.mxu0 %v3801
      %3823 = vmatprep.subr.bf16.mxu0 0
      %3824 = vmatpush1.bf16.msra.mxu0 %v3802
      %3825 = vmatprep.subr.bf16.mxu0 0
      %3826 = vmatpush1.bf16.msra.mxu0 %v3803
      %3827 = vmatprep.subr.bf16.mxu0 0
      %3828 = vmatpush1.bf16.msra.mxu0 %v3804
      %3829 = vmatprep.subr.bf16.mxu0 0
      %3830 = vmatpush1.bf16.msra.mxu0 0
      %3831 = vmatprep.subr.bf16.mxu0 0
      %3832 = vmatpush1.bf16.msra.mxu0 0
      %3833 = vmatprep.subr.bf16.mxu0 0
      %3834 = vmatpush1.bf16.msra.mxu0 0
      %3835 = vmatprep.subr.bf16.mxu0 0
      %3836 = vmatpush1.bf16.msra.mxu0 0
      %3837 = vmatprep.subr.bf16.mxu0 0
      %3838 = vmatpush1.bf16.msra.mxu0 0
      %3839 = vmatprep.subr.bf16.mxu0 0
      %3840 = vmatpush1.bf16.msra.mxu0 0
      %3841 = vmatprep.subr.bf16.mxu0 0
      %3842 = vmatpush1.bf16.msra.mxu0 0
      %3843 = vmatprep.subr.bf16.mxu0 0
      %3844 = vmatpush1.bf16.msra.mxu0 0
      %3845 = vmatprep.mubr.bf16.mxu0 0
      %3846 = vmatmul.mubr.bf16.gmra.mrb[0].mxu0 %v3733
      %v3847 = vpop.f32.mrb[0].mxu0
      %v3848 = vadd.f32 0.0, %v3847
      %v3849 = vpop.f32.mrb[0].mxu0
      %v3850 = vpop.f32.mrb[0].mxu0
      %v3851 = vadd.f32 0.0, %v3850
      %v3852 = vpop.f32.mrb[0].mxu0
      %3853 = vmatprep.mubr.bf16.mxu0 0
      %3854 = vmatmul.mubr.bf16.gmra.mrb[0].mxu0 %v3734
      %v3855 = vpop.f32.mrb[0].mxu0
      %v3856 = vadd.f32 0.0, %v3855
      %v3857 = vpop.f32.mrb[0].mxu0
      %v3858 = vpop.f32.mrb[0].mxu0
      %v3859 = vadd.f32 0.0, %v3858
      %v3860 = vpop.f32.mrb[0].mxu0
      %3861 = vmatprep.mubr.bf16.mxu0 0
      %3862 = vmatmul.mubr.bf16.gmra.mrb[0].mxu0 %v3735
      %v3863 = vpop.f32.mrb[0].mxu0
      %v3864 = vadd.f32 0.0, %v3863
      %v3865 = vpop.f32.mrb[0].mxu0
      %v3866 = vpop.f32.mrb[0].mxu0
      %v3867 = vadd.f32 0.0, %v3866
      %v3868 = vpop.f32.mrb[0].mxu0
      %3869 = vmatprep.mubr.bf16.mxu0 0
      %3870 = vmatmul.mubr.bf16.gmra.mrb[0].mxu0 %v3736
      %v3871 = vpop.f32.mrb[0].mxu0
      %v3872 = vadd.f32 0.0, %v3871
      %v3873 = vpop.f32.mrb[0].mxu0
      %v3874 = vpop.f32.mrb[0].mxu0
      %v3875 = vadd.f32 0.0, %v3874
      %v3876 = vpop.f32.mrb[0].mxu0
      %3877 = vmatprep.mubr.bf16.mxu0 0
      %3878 = vmatmul.mubr.bf16.gmra.mrb[0].mxu0 %v3737
      %v3879 = vpop.f32.mrb[0].mxu0
      %v3880 = vadd.f32 0.0, %v3879
      %v3881 = vpop.f32.mrb[0].mxu0
      %v3882 = vpop.f32.mrb[0].mxu0
      %v3883 = vadd.f32 0.0, %v3882
      %v3884 = vpop.f32.mrb[0].mxu0
      %3885 = vmatprep.mubr.bf16.mxu0 0
      %3886 = vmatmul.mubr.bf16.gmra.mrb[0].mxu0 %v3738
      %v3887 = vpop.f32.mrb[0].mxu0
      %v3888 = vadd.f32 0.0, %v3887
      %v3889 = vpop.f32.mrb[0].mxu0
      %v3890 = vpop.f32.mrb[0].mxu0
      %v3891 = vadd.f32 0.0, %v3890
      %v3892 = vpop.f32.mrb[0].mxu0
      %3893 = vmatprep.mubr.bf16.mxu0 0
      %3894 = vmatmul.mubr.bf16.gmra.mrb[0].mxu0 %v3739
      %v3895 = vpop.f32.mrb[0].mxu0
      %v3896 = vadd.f32 0.0, %v3895
      %v3897 = vpop.f32.mrb[0].mxu0
      %v3898 = vpop.f32.mrb[0].mxu0
      %v3899 = vadd.f32 0.0, %v3898
      %v3900 = vpop.f32.mrb[0].mxu0
      %3901 = vmatprep.mubr.bf16.mxu0 0
      %3902 = vmatmul.mubr.bf16.gmra.mrb[0].mxu0 %v3740
      %v3903 = vpop.f32.mrb[0].mxu0
      %v3904 = vadd.f32 0.0, %v3903
      %v3905 = vpop.f32.mrb[0].mxu0
      %v3906 = vpop.f32.mrb[0].mxu0
      %v3907 = vadd.f32 0.0, %v3906
      %v3908 = vpop.f32.mrb[0].mxu0
      %3909 = vmatprep.mubr.bf16.mxu0 0
      %3910 = vmatmul.mubr.bf16.gmra.mrb[0].mxu0 %v3741
      %v3911 = vpop.f32.mrb[0].mxu0
      %v3912 = vadd.f32 0.0, %v3911
      %v3913 = vpop.f32.mrb[0].mxu0
      %v3914 = vpop.f32.mrb[0].mxu0
      %v3915 = vadd.f32 0.0, %v3914
      %v3916 = vpop.f32.mrb[0].mxu0
      %3917 = vmatprep.mubr.bf16.mxu0 0
      %3918 = vmatmul.mubr.bf16.gmra.mrb[0].mxu0 %v3742
      %v3919 = vpop.f32.mrb[0].mxu0
      %v3920 = vadd.f32 0.0, %v3919
      %v3921 = vpop.f32.mrb[0].mxu0
      %v3922 = vpop.f32.mrb[0].mxu0
      %v3923 = vadd.f32 0.0, %v3922
      %v3924 = vpop.f32.mrb[0].mxu0
      %3925 = vmatprep.mubr.bf16.mxu0 0
      %3926 = vmatmul.mubr.bf16.gmra.mrb[0].mxu0 %v3743
      %v3927 = vpop.f32.mrb[0].mxu0
      %v3928 = vadd.f32 0.0, %v3927
      %v3929 = vpop.f32.mrb[0].mxu0
      %v3930 = vpop.f32.mrb[0].mxu0
      %v3931 = vadd.f32 0.0, %v3930
      %v3932 = vpop.f32.mrb[0].mxu0
      %3933 = vmatprep.mubr.bf16.mxu0 0
      %3934 = vmatmul.mubr.bf16.gmra.mrb[0].mxu0 %v3744
      %v3935 = vpop.f32.mrb[0].mxu0
      %v3936 = vadd.f32 0.0, %v3935
      %v3937 = vpop.f32.mrb[0].mxu0
      %v3938 = vpop.f32.mrb[0].mxu0
      %v3939 = vadd.f32 0.0, %v3938
      %v3940 = vpop.f32.mrb[0].mxu0
      %3941 = vmatprep.mubr.bf16.mxu0 0
      %3942 = vmatmul.mubr.bf16.gmra.mrb[0].mxu0 %v3745
      %v3943 = vpop.f32.mrb[0].mxu0
      %v3944 = vadd.f32 0.0, %v3943
      %v3945 = vpop.f32.mrb[0].mxu0
      %v3946 = vpop.f32.mrb[0].mxu0
      %v3947 = vadd.f32 0.0, %v3946
      %v3948 = vpop.f32.mrb[0].mxu0
      %3949 = vmatprep.mubr.bf16.mxu0 0
      %3950 = vmatmul.mubr.bf16.gmra.mrb[0].mxu0 %v3746
      %v3951 = vpop.f32.mrb[0].mxu0
      %v3952 = vadd.f32 0.0, %v3951
      %v3953 = vpop.f32.mrb[0].mxu0
      %v3954 = vpop.f32.mrb[0].mxu0
      %v3955 = vadd.f32 0.0, %v3954
      %v3956 = vpop.f32.mrb[0].mxu0
      %3957 = vmatprep.mubr.bf16.mxu0 0
      %3958 = vmatmul.mubr.bf16.gmra.mrb[0].mxu0 %v3747
      %v3959 = vpop.f32.mrb[0].mxu0
      %v3960 = vadd.f32 0.0, %v3959
      %v3961 = vpop.f32.mrb[0].mxu0
      %v3962 = vpop.f32.mrb[0].mxu0
      %v3963 = vadd.f32 0.0, %v3962
      %v3964 = vpop.f32.mrb[0].mxu0
      %3965 = vmatprep.mubr.bf16.mxu0 0
      %3966 = vmatmul.mubr.bf16.gmra.mrb[0].mxu0 %v3748
      %v3967 = vpop.f32.mrb[0].mxu0
      %v3968 = vadd.f32 0.0, %v3967
      %v3969 = vpop.f32.mrb[0].mxu0
      %v3970 = vpop.f32.mrb[0].mxu0
      %v3971 = vadd.f32 0.0, %v3970
      %v3972 = vpop.f32.mrb[0].mxu0
      %3973 = vdwg.mxu0
      %v3974 = vadd.f32 %v3268, %v3848
      %v3975 = vadd.f32 %v3269, %v3851
      %v3976 = vadd.f32 %v3270, %v3856
      %v3977 = vadd.f32 %v3271, %v3859
      %v3978 = vadd.f32 %v3272, %v3864
      %v3979 = vadd.f32 %v3273, %v3867
      %v3980 = vadd.f32 %v3274, %v3872
      %v3981 = vadd.f32 %v3275, %v3875
      %v3982 = vadd.f32 %v3276, %v3880
      %v3983 = vadd.f32 %v3277, %v3883
      %v3984 = vadd.f32 %v3278, %v3888
      %v3985 = vadd.f32 %v3279, %v3891
      %v3986 = vadd.f32 %v3280, %v3896
      %v3987 = vadd.f32 %v3281, %v3899
      %v3988 = vadd.f32 %v3282, %v3904
      %v3989 = vadd.f32 %v3283, %v3907
      %v3990 = vadd.f32 %v3284, %v3912
      %v3991 = vadd.f32 %v3285, %v3915
      %v3992 = vadd.f32 %v3286, %v3920
      %v3993 = vadd.f32 %v3287, %v3923
      %v3994 = vadd.f32 %v3288, %v3928
      %v3995 = vadd.f32 %v3289, %v3931
      %v3996 = vadd.f32 %v3290, %v3936
      %v3997 = vadd.f32 %v3291, %v3939
      %v3998 = vadd.f32 %v3292, %v3944
      %v3999 = vadd.f32 %v3293, %v3947
      %v4000 = vadd.f32 %v3294, %v3952
      %v4001 = vadd.f32 %v3295, %v3955
      %v4002 = vadd.f32 %v3296, %v3960
      %v4003 = vadd.f32 %v3297, %v3963
      %v4004 = vadd.f32 %v3298, %v3968
      %v4005 = vadd.f32 %v3299, %v3971
      %4006 = vst [vmem:[#allocation3] sm:$0xff] %v3974
      %4007 = vst [vmem:[#allocation3 + $0x8] sm:$0xff] %v3975
      %4008 = vst [vmem:[#allocation3 + $0x10] sm:$0xff] %v3976
      %4009 = vst [vmem:[#allocation3 + $0x18] sm:$0xff] %v3977
      %4010 = vst [vmem:[#allocation3 + $0x20] sm:$0xff] %v3978
      %4011 = vst [vmem:[#allocation3 + $0x28] sm:$0xff] %v3979
      %4012 = vst [vmem:[#allocation3 + $0x30] sm:$0xff] %v3980
      %4013 = vst [vmem:[#allocation3 + $0x38] sm:$0xff] %v3981
      %4014 = vst [vmem:[#allocation3 + $0x40] sm:$0xff] %v3982
      %4015 = vst [vmem:[#allocation3 + $0x48] sm:$0xff] %v3983
      %4016 = vst [vmem:[#allocation3 + $0x50] sm:$0xff] %v3984
      %4017 = vst [vmem:[#allocation3 + $0x58] sm:$0xff] %v3985
      %4018 = vst [vmem:[#allocation3 + $0x60] sm:$0xff] %v3986
      %4019 = vst [vmem:[#allocation3 + $0x68] sm:$0xff] %v3987
      %4020 = vst [vmem:[#allocation3 + $0x70] sm:$0xff] %v3988
      %4021 = vst [vmem:[#allocation3 + $0x78] sm:$0xff] %v3989
      %4022 = vst [vmem:[#allocation3 + $0x80] sm:$0xff] %v3990
      %4023 = vst [vmem:[#allocation3 + $0x88] sm:$0xff] %v3991
      %4024 = vst [vmem:[#allocation3 + $0x90] sm:$0xff] %v3992
      %4025 = vst [vmem:[#allocation3 + $0x98] sm:$0xff] %v3993
      %4026 = vst [vmem:[#allocation3 + $0xa0] sm:$0xff] %v3994
      %4027 = vst [vmem:[#allocation3 + $0xa8] sm:$0xff] %v3995
      %4028 = vst [vmem:[#allocation3 + $0xb0] sm:$0xff] %v3996
      %4029 = vst [vmem:[#allocation3 + $0xb8] sm:$0xff] %v3997
      %4030 = vst [vmem:[#allocation3 + $0xc0] sm:$0xff] %v3998
      %4031 = vst [vmem:[#allocation3 + $0xc8] sm:$0xff] %v3999
      %4032 = vst [vmem:[#allocation3 + $0xd0] sm:$0xff] %v4000
      %4033 = vst [vmem:[#allocation3 + $0xd8] sm:$0xff] %v4001
      %4034 = vst [vmem:[#allocation3 + $0xe0] sm:$0xff] %v4002
      %4035 = vst [vmem:[#allocation3 + $0xe8] sm:$0xff] %v4003
      %4036 = vst [vmem:[#allocation3 + $0xf0] sm:$0xff] %v4004
      %4037 = vst [vmem:[#allocation3 + $0xf8] sm:$0xff] %v4005
      %v4038 = vld [vmem:[%s2769] sm:$0xe]
      %v4039 = vld [vmem:[%s2769 + $0x4] sm:$0xf]
      %v4040 = vld [vmem:[%s2769 + $0x8] sm:$0x1]
      %v4041 = vld [vmem:[%s2769 + $0xc] sm:$0xe]
      %v4042 = vld [vmem:[%s2769 + $0x10] sm:$0xf]
      %v4043 = vld [vmem:[%s2769 + $0x14] sm:$0x1]
      %v4044 = vld [vmem:[%s2769 + $0x18] sm:$0xe]
      %v4045 = vld [vmem:[%s2769 + $0x1c] sm:$0xf]
      %v4046 = vld [vmem:[%s2769 + $0x20] sm:$0x1]
      %v4047 = vld [vmem:[%s2769 + $0x24] sm:$0xe]
      %v4048 = vld [vmem:[%s2769 + $0x28] sm:$0xf]
      %v4049 = vld [vmem:[%s2769 + $0x2c] sm:$0x1]
      %v4050 = vld [vmem:[%s2769 + $0x30] sm:$0xe]
      %v4051 = vld [vmem:[%s2769 + $0x34] sm:$0xf]
      %v4052 = vld [vmem:[%s2769 + $0x38] sm:$0x1]
      %v4053 = vld [vmem:[%s2769 + $0x3c] sm:$0xe]
      %v4054 = vld [vmem:[%s2769 + $0x40] sm:$0xf]
      %v4055 = vld [vmem:[%s2769 + $0x44] sm:$0x1]
      %v4056 = vld [vmem:[%s2769 + $0x48] sm:$0xe]
      %v4057 = vld [vmem:[%s2769 + $0x4c] sm:$0xf]
      %v4058 = vld [vmem:[%s2769 + $0x50] sm:$0x1]
      %v4059 = vld [vmem:[%s2769 + $0x54] sm:$0xe]
      %v4060 = vld [vmem:[%s2769 + $0x58] sm:$0xf]
      %v4061 = vld [vmem:[%s2769 + $0x5c] sm:$0x1]
      %v4062 = vld [vmem:[%s2769 + $0x60] sm:$0xe]
      %v4063 = vld [vmem:[%s2769 + $0x64] sm:$0xf]
      %v4064 = vld [vmem:[%s2769 + $0x68] sm:$0x1]
      %v4065 = vld [vmem:[%s2769 + $0x6c] sm:$0xe]
      %v4066 = vld [vmem:[%s2769 + $0x70] sm:$0xf]
      %v4067 = vld [vmem:[%s2769 + $0x74] sm:$0x1]
      %v4068 = vld [vmem:[%s2769 + $0x78] sm:$0xe]
      %v4069 = vld [vmem:[%s2769 + $0x7c] sm:$0xf]
      %v4070 = vld [vmem:[%s2769 + $0x80] sm:$0x1]
      %v4071 = vld [vmem:[%s2769 + $0x84] sm:$0xe]
      %v4072 = vld [vmem:[%s2769 + $0x88] sm:$0xf]
      %v4073 = vld [vmem:[%s2769 + $0x8c] sm:$0x1]
      %v4074 = vld [vmem:[%s2769 + $0x90] sm:$0xe]
      %v4075 = vld [vmem:[%s2769 + $0x94] sm:$0xf]
      %v4076 = vld [vmem:[%s2769 + $0x98] sm:$0x1]
      %v4077 = vld [vmem:[%s2769 + $0x9c] sm:$0xe]
      %v4078 = vld [vmem:[%s2769 + $0xa0] sm:$0xf]
      %v4079 = vld [vmem:[%s2769 + $0xa4] sm:$0x1]
      %v4080 = vld [vmem:[%s2769 + $0xa8] sm:$0xe]
      %v4081 = vld [vmem:[%s2769 + $0xac] sm:$0xf]
      %v4082 = vld [vmem:[%s2769 + $0xb0] sm:$0x1]
      %v4083 = vld [vmem:[%s2769 + $0xb4] sm:$0xe]
      %v4084 = vld [vmem:[%s2769 + $0xb8] sm:$0xf]
      %v4085 = vld [vmem:[%s2769 + $0xbc] sm:$0x1]
      %v4086 = vld [vmem:[#allocation3] sm:$0xff]
      %v4087 = vld [vmem:[#allocation3 + $0x8] sm:$0xff]
      %v4088 = vld [vmem:[#allocation3 + $0x10] sm:$0xff]
      %v4089 = vld [vmem:[#allocation3 + $0x18] sm:$0xff]
      %v4090 = vld [vmem:[#allocation3 + $0x20] sm:$0xff]
      %v4091 = vld [vmem:[#allocation3 + $0x28] sm:$0xff]
      %v4092 = vld [vmem:[#allocation3 + $0x30] sm:$0xff]
      %v4093 = vld [vmem:[#allocation3 + $0x38] sm:$0xff]
      %v4094 = vld [vmem:[#allocation3 + $0x40] sm:$0xff]
      %v4095 = vld [vmem:[#allocation3 + $0x48] sm:$0xff]
      %v4096 = vld [vmem:[#allocation3 + $0x50] sm:$0xff]
      %v4097 = vld [vmem:[#allocation3 + $0x58] sm:$0xff]
      %v4098 = vld [vmem:[#allocation3 + $0x60] sm:$0xff]
      %v4099 = vld [vmem:[#allocation3 + $0x68] sm:$0xff]
      %v4100 = vld [vmem:[#allocation3 + $0x70] sm:$0xff]
      %v4101 = vld [vmem:[#allocation3 + $0x78] sm:$0xff]
      %v4102 = vld [vmem:[#allocation3 + $0x80] sm:$0xff]
      %v4103 = vld [vmem:[#allocation3 + $0x88] sm:$0xff]
      %v4104 = vld [vmem:[#allocation3 + $0x90] sm:$0xff]
      %v4105 = vld [vmem:[#allocation3 + $0x98] sm:$0xff]
      %v4106 = vld [vmem:[#allocation3 + $0xa0] sm:$0xff]
      %v4107 = vld [vmem:[#allocation3 + $0xa8] sm:$0xff]
      %v4108 = vld [vmem:[#allocation3 + $0xb0] sm:$0xff]
      %v4109 = vld [vmem:[#allocation3 + $0xb8] sm:$0xff]
      %v4110 = vld [vmem:[#allocation3 + $0xc0] sm:$0xff]
      %v4111 = vld [vmem:[#allocation3 + $0xc8] sm:$0xff]
      %v4112 = vld [vmem:[#allocation3 + $0xd0] sm:$0xff]
      %v4113 = vld [vmem:[#allocation3 + $0xd8] sm:$0xff]
      %v4114 = vld [vmem:[#allocation3 + $0xe0] sm:$0xff]
      %v4115 = vld [vmem:[#allocation3 + $0xe8] sm:$0xff]
      %v4116 = vld [vmem:[#allocation3 + $0xf0] sm:$0xff]
      %v4117 = vld [vmem:[#allocation3 + $0xf8] sm:$0xff]
      %v4166 = vrot.slane %v4038, 5
      %v4167 = vrot.slane %v4166, 4
      %v4168 = vrot.slane %v4039, 5
      %v4169 = vsel %vm2302, %v4167, %v4168
      %v4170 = vrot.slane %v4168, 4
      %v4171 = vrot.slane %v4040, 5
      %v4172 = vsel %vm2302, %v4170, %v4171
      %v4173 = vrot.slane %v4041, 5
      %v4174 = vrot.slane %v4173, 4
      %v4175 = vrot.slane %v4042, 5
      %v4176 = vsel %vm2302, %v4174, %v4175
      %v4177 = vrot.slane %v4175, 4
      %v4178 = vrot.slane %v4043, 5
      %v4179 = vsel %vm2302, %v4177, %v4178
      %v4180 = vrot.slane %v4044, 5
      %v4181 = vrot.slane %v4180, 4
      %v4182 = vrot.slane %v4045, 5
      %v4183 = vsel %vm2302, %v4181, %v4182
      %v4184 = vrot.slane %v4182, 4
      %v4185 = vrot.slane %v4046, 5
      %v4186 = vsel %vm2302, %v4184, %v4185
      %v4187 = vrot.slane %v4047, 5
      %v4188 = vrot.slane %v4187, 4
      %v4189 = vrot.slane %v4048, 5
      %v4190 = vsel %vm2302, %v4188, %v4189
      %v4191 = vrot.slane %v4189, 4
      %v4192 = vrot.slane %v4049, 5
      %v4193 = vsel %vm2302, %v4191, %v4192
      %v4194 = vrot.slane %v4050, 5
      %v4195 = vrot.slane %v4194, 4
      %v4196 = vrot.slane %v4051, 5
      %v4197 = vsel %vm2302, %v4195, %v4196
      %v4198 = vrot.slane %v4196, 4
      %v4199 = vrot.slane %v4052, 5
      %v4200 = vsel %vm2302, %v4198, %v4199
      %v4201 = vrot.slane %v4053, 5
      %v4202 = vrot.slane %v4201, 4
      %v4203 = vrot.slane %v4054, 5
      %v4204 = vsel %vm2302, %v4202, %v4203
      %v4205 = vrot.slane %v4203, 4
      %v4206 = vrot.slane %v4055, 5
      %v4207 = vsel %vm2302, %v4205, %v4206
      %v4208 = vrot.slane %v4056, 5
      %v4209 = vrot.slane %v4208, 4
      %v4210 = vrot.slane %v4057, 5
      %v4211 = vsel %vm2302, %v4209, %v4210
      %v4212 = vrot.slane %v4210, 4
      %v4213 = vrot.slane %v4058, 5
      %v4214 = vsel %vm2302, %v4212, %v4213
      %v4215 = vrot.slane %v4059, 5
      %v4216 = vrot.slane %v4215, 4
      %v4217 = vrot.slane %v4060, 5
      %v4218 = vsel %vm2302, %v4216, %v4217
      %v4219 = vrot.slane %v4217, 4
      %v4220 = vrot.slane %v4061, 5
      %v4221 = vsel %vm2302, %v4219, %v4220
      %v4222 = vrot.slane %v4062, 5
      %v4223 = vrot.slane %v4222, 4
      %v4224 = vrot.slane %v4063, 5
      %v4225 = vsel %vm2302, %v4223, %v4224
      %v4226 = vrot.slane %v4224, 4
      %v4227 = vrot.slane %v4064, 5
      %v4228 = vsel %vm2302, %v4226, %v4227
      %v4229 = vrot.slane %v4065, 5
      %v4230 = vrot.slane %v4229, 4
      %v4231 = vrot.slane %v4066, 5
      %v4232 = vsel %vm2302, %v4230, %v4231
      %v4233 = vrot.slane %v4231, 4
      %v4234 = vrot.slane %v4067, 5
      %v4235 = vsel %vm2302, %v4233, %v4234
      %v4236 = vrot.slane %v4068, 5
      %v4237 = vrot.slane %v4236, 4
      %v4238 = vrot.slane %v4069, 5
      %v4239 = vsel %vm2302, %v4237, %v4238
      %v4240 = vrot.slane %v4238, 4
      %v4241 = vrot.slane %v4070, 5
      %v4242 = vsel %vm2302, %v4240, %v4241
      %v4243 = vrot.slane %v4071, 5
      %v4244 = vrot.slane %v4243, 4
      %v4245 = vrot.slane %v4072, 5
      %v4246 = vsel %vm2302, %v4244, %v4245
      %v4247 = vrot.slane %v4245, 4
      %v4248 = vrot.slane %v4073, 5
      %v4249 = vsel %vm2302, %v4247, %v4248
      %v4250 = vrot.slane %v4074, 5
      %v4251 = vrot.slane %v4250, 4
      %v4252 = vrot.slane %v4075, 5
      %v4253 = vsel %vm2302, %v4251, %v4252
      %v4254 = vrot.slane %v4252, 4
      %v4255 = vrot.slane %v4076, 5
      %v4256 = vsel %vm2302, %v4254, %v4255
      %v4257 = vrot.slane %v4077, 5
      %v4258 = vrot.slane %v4257, 4
      %v4259 = vrot.slane %v4078, 5
      %v4260 = vsel %vm2302, %v4258, %v4259
      %v4261 = vrot.slane %v4259, 4
      %v4262 = vrot.slane %v4079, 5
      %v4263 = vsel %vm2302, %v4261, %v4262
      %v4264 = vrot.slane %v4080, 5
      %v4265 = vrot.slane %v4264, 4
      %v4266 = vrot.slane %v4081, 5
      %v4267 = vsel %vm2302, %v4265, %v4266
      %v4268 = vrot.slane %v4266, 4
      %v4269 = vrot.slane %v4082, 5
      %v4270 = vsel %vm2302, %v4268, %v4269
      %v4271 = vrot.slane %v4083, 5
      %v4272 = vrot.slane %v4271, 4
      %v4273 = vrot.slane %v4084, 5
      %v4274 = vsel %vm2302, %v4272, %v4273
      %v4275 = vrot.slane %v4273, 4
      %v4276 = vrot.slane %v4085, 5
      %v4277 = vsel %vm2302, %v4275, %v4276
      %s4278 = scalar_lea.vmem %s1, 320
      %v4279 = vld [vmem:[%s4278] sm:$0xf]
      %v4280 = vld [vmem:[%s4278 + $0x4] sm:$0xf]
      %v4281 = vld [vmem:[%s4278 + $0x8] sm:$0xf]
      %v4282 = vld [vmem:[%s4278 + $0xc] sm:$0xf]
      %v4283 = vld [vmem:[%s4278 + $0x10] sm:$0xf]
      %v4284 = vld [vmem:[%s4278 + $0x14] sm:$0xf]
      %v4285 = vld [vmem:[%s4278 + $0x18] sm:$0xf]
      %v4286 = vld [vmem:[%s4278 + $0x1c] sm:$0xf]
      %v4287 = vld [vmem:[%s4278 + $0x20] sm:$0xf]
      %v4288 = vld [vmem:[%s4278 + $0x24] sm:$0xf]
      %v4289 = vld [vmem:[%s4278 + $0x28] sm:$0xf]
      %v4290 = vld [vmem:[%s4278 + $0x2c] sm:$0xf]
      %v4291 = vld [vmem:[%s4278 + $0x30] sm:$0xf]
      %v4292 = vld [vmem:[%s4278 + $0x34] sm:$0xf]
      %v4293 = vld [vmem:[%s4278 + $0x38] sm:$0xf]
      %v4294 = vld [vmem:[%s4278 + $0x3c] sm:$0xf]
      %v4295 = vunpack.c.l.b16 %v4169
      %v4296 = vunpack.c.l.b16 %v4172
      %v4297 = vunpack.c.l.b16 %v4176
      %v4298 = vunpack.c.l.b16 %v4179
      %v4299 = vunpack.c.l.b16 %v4183
      %v4300 = vunpack.c.l.b16 %v4186
      %v4301 = vunpack.c.l.b16 %v4190
      %v4302 = vunpack.c.l.b16 %v4193
      %v4303 = vunpack.c.l.b16 %v4197
      %v4304 = vunpack.c.l.b16 %v4200
      %v4305 = vunpack.c.l.b16 %v4204
      %v4306 = vunpack.c.l.b16 %v4207
      %v4307 = vunpack.c.l.b16 %v4211
      %v4308 = vunpack.c.l.b16 %v4214
      %v4309 = vunpack.c.l.b16 %v4218
      %v4310 = vunpack.c.l.b16 %v4221
      %v4311 = vunpack.c.l.b16 %v4225
      %v4312 = vunpack.c.l.b16 %v4228
      %v4313 = vunpack.c.l.b16 %v4232
      %v4314 = vunpack.c.l.b16 %v4235
      %v4315 = vunpack.c.l.b16 %v4239
      %v4316 = vunpack.c.l.b16 %v4242
      %v4317 = vunpack.c.l.b16 %v4246
      %v4318 = vunpack.c.l.b16 %v4249
      %v4319 = vunpack.c.l.b16 %v4253
      %v4320 = vunpack.c.l.b16 %v4256
      %v4321 = vunpack.c.l.b16 %v4260
      %v4322 = vunpack.c.l.b16 %v4263
      %v4323 = vunpack.c.l.b16 %v4267
      %v4324 = vunpack.c.l.b16 %v4270
      %v4325 = vunpack.c.l.b16 %v4274
      %v4326 = vunpack.c.l.b16 %v4277
      %v4327 = vpack.c.b16 %v4296, %v4295
      %v4328 = vpack.c.b16 %v4298, %v4297
      %v4329 = vpack.c.b16 %v4300, %v4299
      %v4330 = vpack.c.b16 %v4302, %v4301
      %v4331 = vpack.c.b16 %v4304, %v4303
      %v4332 = vpack.c.b16 %v4306, %v4305
      %v4333 = vpack.c.b16 %v4308, %v4307
      %v4334 = vpack.c.b16 %v4310, %v4309
      %v4335 = vpack.c.b16 %v4312, %v4311
      %v4336 = vpack.c.b16 %v4314, %v4313
      %v4337 = vpack.c.b16 %v4316, %v4315
      %v4338 = vpack.c.b16 %v4318, %v4317
      %v4339 = vpack.c.b16 %v4320, %v4319
      %v4340 = vpack.c.b16 %v4322, %v4321
      %v4341 = vpack.c.b16 %v4324, %v4323
      %v4342 = vpack.c.b16 %v4326, %v4325
      %v4375 = vunpack.c.l.b16 %v4279
      %v4376 = vunpack.c.l.b16 %v4280
      %v4377 = vunpack.c.l.b16 %v4281
      %v4378 = vunpack.c.l.b16 %v4282
      %v4379 = vunpack.c.l.b16 %v4283
      %v4380 = vunpack.c.l.b16 %v4284
      %v4381 = vunpack.c.l.b16 %v4285
      %v4382 = vunpack.c.l.b16 %v4286
      %v4383 = vunpack.c.l.b16 %v4287
      %v4384 = vunpack.c.l.b16 %v4288
      %v4385 = vunpack.c.l.b16 %v4289
      %v4386 = vunpack.c.l.b16 %v4290
      %v4387 = vunpack.c.l.b16 %v4291
      %v4388 = vunpack.c.l.b16 %v4292
      %v4389 = vunpack.c.l.b16 %v4293
      %v4390 = vunpack.c.l.b16 %v4294
      %v4391 = vpack.c.b16 %v4376, %v4375
      %v4392 = vpack.c.b16 %v4378, %v4377
      %v4393 = vpack.c.b16 %v4380, %v4379
      %v4394 = vpack.c.b16 %v4382, %v4381
      %v4395 = vpack.c.b16 %v4384, %v4383
      %v4396 = vpack.c.b16 %v4386, %v4385
      %v4397 = vpack.c.b16 %v4388, %v4387
      %v4398 = vpack.c.b16 %v4390, %v4389
      %4407 = vmatprep.subr.bf16.mxu0 0
      %4408 = vmatpush1.bf16.msra.mxu0 %v4391
      %4409 = vmatprep.subr.bf16.mxu0 0
      %4410 = vmatpush1.bf16.msra.mxu0 %v4392
      %4411 = vmatprep.subr.bf16.mxu0 0
      %4412 = vmatpush1.bf16.msra.mxu0 %v4393
      %4413 = vmatprep.subr.bf16.mxu0 0
      %4414 = vmatpush1.bf16.msra.mxu0 %v4394
      %4415 = vmatprep.subr.bf16.mxu0 0
      %4416 = vmatpush1.bf16.msra.mxu0 %v4395
      %4417 = vmatprep.subr.bf16.mxu0 0
      %4418 = vmatpush1.bf16.msra.mxu0 %v4396
      %4419 = vmatprep.subr.bf16.mxu0 0
      %4420 = vmatpush1.bf16.msra.mxu0 %v4397
      %4421 = vmatprep.subr.bf16.mxu0 0
      %4422 = vmatpush1.bf16.msra.mxu0 %v4398
      %4423 = vmatprep.subr.bf16.mxu0 0
      %4424 = vmatpush1.bf16.msra.mxu0 0
      %4425 = vmatprep.subr.bf16.mxu0 0
      %4426 = vmatpush1.bf16.msra.mxu0 0
      %4427 = vmatprep.subr.bf16.mxu0 0
      %4428 = vmatpush1.bf16.msra.mxu0 0
      %4429 = vmatprep.subr.bf16.mxu0 0
      %4430 = vmatpush1.bf16.msra.mxu0 0
      %4431 = vmatprep.subr.bf16.mxu0 0
      %4432 = vmatpush1.bf16.msra.mxu0 0
      %4433 = vmatprep.subr.bf16.mxu0 0
      %4434 = vmatpush1.bf16.msra.mxu0 0
      %4435 = vmatprep.subr.bf16.mxu0 0
      %4436 = vmatpush1.bf16.msra.mxu0 0
      %4437 = vmatprep.subr.bf16.mxu0 0
      %4438 = vmatpush1.bf16.msra.mxu0 0
      %4439 = vmatprep.mubr.bf16.mxu0 0
      %4440 = vmatmul.mubr.bf16.gmra.mrb[0].mxu0 %v4327
      %v4441 = vpop.f32.mrb[0].mxu0
      %v4442 = vadd.f32 0.0, %v4441
      %v4443 = vpop.f32.mrb[0].mxu0
      %v4444 = vpop.f32.mrb[0].mxu0
      %v4445 = vadd.f32 0.0, %v4444
      %v4446 = vpop.f32.mrb[0].mxu0
      %4447 = vmatprep.mubr.bf16.mxu0 0
      %4448 = vmatmul.mubr.bf16.gmra.mrb[0].mxu0 %v4328
      %v4449 = vpop.f32.mrb[0].mxu0
      %v4450 = vadd.f32 0.0, %v4449
      %v4451 = vpop.f32.mrb[0].mxu0
      %v4452 = vpop.f32.mrb[0].mxu0
      %v4453 = vadd.f32 0.0, %v4452
      %v4454 = vpop.f32.mrb[0].mxu0
      %4455 = vmatprep.mubr.bf16.mxu0 0
      %4456 = vmatmul.mubr.bf16.gmra.mrb[0].mxu0 %v4329
      %v4457 = vpop.f32.mrb[0].mxu0
      %v4458 = vadd.f32 0.0, %v4457
      %v4459 = vpop.f32.mrb[0].mxu0
      %v4460 = vpop.f32.mrb[0].mxu0
      %v4461 = vadd.f32 0.0, %v4460
      %v4462 = vpop.f32.mrb[0].mxu0
      %4463 = vmatprep.mubr.bf16.mxu0 0
      %4464 = vmatmul.mubr.bf16.gmra.mrb[0].mxu0 %v4330
      %v4465 = vpop.f32.mrb[0].mxu0
      %v4466 = vadd.f32 0.0, %v4465
      %v4467 = vpop.f32.mrb[0].mxu0
      %v4468 = vpop.f32.mrb[0].mxu0
      %v4469 = vadd.f32 0.0, %v4468
      %v4470 = vpop.f32.mrb[0].mxu0
      %4471 = vmatprep.mubr.bf16.mxu0 0
      %4472 = vmatmul.mubr.bf16.gmra.mrb[0].mxu0 %v4331
      %v4473 = vpop.f32.mrb[0].mxu0
      %v4474 = vadd.f32 0.0, %v4473
      %v4475 = vpop.f32.mrb[0].mxu0
      %v4476 = vpop.f32.mrb[0].mxu0
      %v4477 = vadd.f32 0.0, %v4476
      %v4478 = vpop.f32.mrb[0].mxu0
      %4479 = vmatprep.mubr.bf16.mxu0 0
      %4480 = vmatmul.mubr.bf16.gmra.mrb[0].mxu0 %v4332
      %v4481 = vpop.f32.mrb[0].mxu0
      %v4482 = vadd.f32 0.0, %v4481
      %v4483 = vpop.f32.mrb[0].mxu0
      %v4484 = vpop.f32.mrb[0].mxu0
      %v4485 = vadd.f32 0.0, %v4484
      %v4486 = vpop.f32.mrb[0].mxu0
      %4487 = vmatprep.mubr.bf16.mxu0 0
      %4488 = vmatmul.mubr.bf16.gmra.mrb[0].mxu0 %v4333
      %v4489 = vpop.f32.mrb[0].mxu0
      %v4490 = vadd.f32 0.0, %v4489
      %v4491 = vpop.f32.mrb[0].mxu0
      %v4492 = vpop.f32.mrb[0].mxu0
      %v4493 = vadd.f32 0.0, %v4492
      %v4494 = vpop.f32.mrb[0].mxu0
      %4495 = vmatprep.mubr.bf16.mxu0 0
      %4496 = vmatmul.mubr.bf16.gmra.mrb[0].mxu0 %v4334
      %v4497 = vpop.f32.mrb[0].mxu0
      %v4498 = vadd.f32 0.0, %v4497
      %v4499 = vpop.f32.mrb[0].mxu0
      %v4500 = vpop.f32.mrb[0].mxu0
      %v4501 = vadd.f32 0.0, %v4500
      %v4502 = vpop.f32.mrb[0].mxu0
      %4503 = vmatprep.mubr.bf16.mxu0 0
      %4504 = vmatmul.mubr.bf16.gmra.mrb[0].mxu0 %v4335
      %v4505 = vpop.f32.mrb[0].mxu0
      %v4506 = vadd.f32 0.0, %v4505
      %v4507 = vpop.f32.mrb[0].mxu0
      %v4508 = vpop.f32.mrb[0].mxu0
      %v4509 = vadd.f32 0.0, %v4508
      %v4510 = vpop.f32.mrb[0].mxu0
      %4511 = vmatprep.mubr.bf16.mxu0 0
      %4512 = vmatmul.mubr.bf16.gmra.mrb[0].mxu0 %v4336
      %v4513 = vpop.f32.mrb[0].mxu0
      %v4514 = vadd.f32 0.0, %v4513
      %v4515 = vpop.f32.mrb[0].mxu0
      %v4516 = vpop.f32.mrb[0].mxu0
      %v4517 = vadd.f32 0.0, %v4516
      %v4518 = vpop.f32.mrb[0].mxu0
      %4519 = vmatprep.mubr.bf16.mxu0 0
      %4520 = vmatmul.mubr.bf16.gmra.mrb[0].mxu0 %v4337
      %v4521 = vpop.f32.mrb[0].mxu0
      %v4522 = vadd.f32 0.0, %v4521
      %v4523 = vpop.f32.mrb[0].mxu0
      %v4524 = vpop.f32.mrb[0].mxu0
      %v4525 = vadd.f32 0.0, %v4524
      %v4526 = vpop.f32.mrb[0].mxu0
      %4527 = vmatprep.mubr.bf16.mxu0 0
      %4528 = vmatmul.mubr.bf16.gmra.mrb[0].mxu0 %v4338
      %v4529 = vpop.f32.mrb[0].mxu0
      %v4530 = vadd.f32 0.0, %v4529
      %v4531 = vpop.f32.mrb[0].mxu0
      %v4532 = vpop.f32.mrb[0].mxu0
      %v4533 = vadd.f32 0.0, %v4532
      %v4534 = vpop.f32.mrb[0].mxu0
      %4535 = vmatprep.mubr.bf16.mxu0 0
      %4536 = vmatmul.mubr.bf16.gmra.mrb[0].mxu0 %v4339
      %v4537 = vpop.f32.mrb[0].mxu0
      %v4538 = vadd.f32 0.0, %v4537
      %v4539 = vpop.f32.mrb[0].mxu0
      %v4540 = vpop.f32.mrb[0].mxu0
      %v4541 = vadd.f32 0.0, %v4540
      %v4542 = vpop.f32.mrb[0].mxu0
      %4543 = vmatprep.mubr.bf16.mxu0 0
      %4544 = vmatmul.mubr.bf16.gmra.mrb[0].mxu0 %v4340
      %v4545 = vpop.f32.mrb[0].mxu0
      %v4546 = vadd.f32 0.0, %v4545
      %v4547 = vpop.f32.mrb[0].mxu0
      %v4548 = vpop.f32.mrb[0].mxu0
      %v4549 = vadd.f32 0.0, %v4548
      %v4550 = vpop.f32.mrb[0].mxu0
      %4551 = vmatprep.mubr.bf16.mxu0 0
      %4552 = vmatmul.mubr.bf16.gmra.mrb[0].mxu0 %v4341
      %v4553 = vpop.f32.mrb[0].mxu0
      %v4554 = vadd.f32 0.0, %v4553
      %v4555 = vpop.f32.mrb[0].mxu0
      %v4556 = vpop.f32.mrb[0].mxu0
      %v4557 = vadd.f32 0.0, %v4556
      %v4558 = vpop.f32.mrb[0].mxu0
      %4559 = vmatprep.mubr.bf16.mxu0 0
      %4560 = vmatmul.mubr.bf16.gmra.mrb[0].mxu0 %v4342
      %v4561 = vpop.f32.mrb[0].mxu0
      %v4562 = vadd.f32 0.0, %v4561
      %v4563 = vpop.f32.mrb[0].mxu0
      %v4564 = vpop.f32.mrb[0].mxu0
      %v4565 = vadd.f32 0.0, %v4564
      %v4566 = vpop.f32.mrb[0].mxu0
      %4567 = vdwg.mxu0
      %v4568 = vadd.f32 %v4086, %v4442
      %v4569 = vadd.f32 %v4087, %v4445
      %v4570 = vadd.f32 %v4088, %v4450
      %v4571 = vadd.f32 %v4089, %v4453
      %v4572 = vadd.f32 %v4090, %v4458
      %v4573 = vadd.f32 %v4091, %v4461
      %v4574 = vadd.f32 %v4092, %v4466
      %v4575 = vadd.f32 %v4093, %v4469
      %v4576 = vadd.f32 %v4094, %v4474
      %v4577 = vadd.f32 %v4095, %v4477
      %v4578 = vadd.f32 %v4096, %v4482
      %v4579 = vadd.f32 %v4097, %v4485
      %v4580 = vadd.f32 %v4098, %v4490
      %v4581 = vadd.f32 %v4099, %v4493
      %v4582 = vadd.f32 %v4100, %v4498
      %v4583 = vadd.f32 %v4101, %v4501
      %v4584 = vadd.f32 %v4102, %v4506
      %v4585 = vadd.f32 %v4103, %v4509
      %v4586 = vadd.f32 %v4104, %v4514
      %v4587 = vadd.f32 %v4105, %v4517
      %v4588 = vadd.f32 %v4106, %v4522
      %v4589 = vadd.f32 %v4107, %v4525
      %v4590 = vadd.f32 %v4108, %v4530
      %v4591 = vadd.f32 %v4109, %v4533
      %v4592 = vadd.f32 %v4110, %v4538
      %v4593 = vadd.f32 %v4111, %v4541
      %v4594 = vadd.f32 %v4112, %v4546
      %v4595 = vadd.f32 %v4113, %v4549
      %v4596 = vadd.f32 %v4114, %v4554
      %v4597 = vadd.f32 %v4115, %v4557
      %v4598 = vadd.f32 %v4116, %v4562
      %v4599 = vadd.f32 %v4117, %v4565
      %4600 = vst [vmem:[#allocation3] sm:$0xff] %v4568
      %4601 = vst [vmem:[#allocation3 + $0x8] sm:$0xff] %v4569
      %4602 = vst [vmem:[#allocation3 + $0x10] sm:$0xff] %v4570
      %4603 = vst [vmem:[#allocation3 + $0x18] sm:$0xff] %v4571
      %4604 = vst [vmem:[#allocation3 + $0x20] sm:$0xff] %v4572
      %4605 = vst [vmem:[#allocation3 + $0x28] sm:$0xff] %v4573
      %4606 = vst [vmem:[#allocation3 + $0x30] sm:$0xff] %v4574
      %4607 = vst [vmem:[#allocation3 + $0x38] sm:$0xff] %v4575
      %4608 = vst [vmem:[#allocation3 + $0x40] sm:$0xff] %v4576
      %4609 = vst [vmem:[#allocation3 + $0x48] sm:$0xff] %v4577
      %4610 = vst [vmem:[#allocation3 + $0x50] sm:$0xff] %v4578
      %4611 = vst [vmem:[#allocation3 + $0x58] sm:$0xff] %v4579
      %4612 = vst [vmem:[#allocation3 + $0x60] sm:$0xff] %v4580
      %4613 = vst [vmem:[#allocation3 + $0x68] sm:$0xff] %v4581
      %4614 = vst [vmem:[#allocation3 + $0x70] sm:$0xff] %v4582
      %4615 = vst [vmem:[#allocation3 + $0x78] sm:$0xff] %v4583
      %4616 = vst [vmem:[#allocation3 + $0x80] sm:$0xff] %v4584
      %4617 = vst [vmem:[#allocation3 + $0x88] sm:$0xff] %v4585
      %4618 = vst [vmem:[#allocation3 + $0x90] sm:$0xff] %v4586
      %4619 = vst [vmem:[#allocation3 + $0x98] sm:$0xff] %v4587
      %4620 = vst [vmem:[#allocation3 + $0xa0] sm:$0xff] %v4588
      %4621 = vst [vmem:[#allocation3 + $0xa8] sm:$0xff] %v4589
      %4622 = vst [vmem:[#allocation3 + $0xb0] sm:$0xff] %v4590
      %4623 = vst [vmem:[#allocation3 + $0xb8] sm:$0xff] %v4591
      %4624 = vst [vmem:[#allocation3 + $0xc0] sm:$0xff] %v4592
      %4625 = vst [vmem:[#allocation3 + $0xc8] sm:$0xff] %v4593
      %4626 = vst [vmem:[#allocation3 + $0xd0] sm:$0xff] %v4594
      %4627 = vst [vmem:[#allocation3 + $0xd8] sm:$0xff] %v4595
      %4628 = vst [vmem:[#allocation3 + $0xe0] sm:$0xff] %v4596
      %4629 = vst [vmem:[#allocation3 + $0xe8] sm:$0xff] %v4597
      %4630 = vst [vmem:[#allocation3 + $0xf0] sm:$0xff] %v4598
      %4631 = vst [vmem:[#allocation3 + $0xf8] sm:$0xff] %v4599
      %s4632 = scalar_lea.vmem [#allocation2], 24
      %v4633 = vld [vmem:[%s4632] sm:$0xf]
      %v4634 = vld [vmem:[%s4632 + $0x4] sm:$0xf]
      %v4635 = vld [vmem:[%s4632 + $0xc] sm:$0xf]
      %v4636 = vld [vmem:[%s4632 + $0x10] sm:$0xf]
      %v4637 = vld [vmem:[%s4632 + $0x18] sm:$0xf]
      %v4638 = vld [vmem:[%s4632 + $0x1c] sm:$0xf]
      %v4639 = vld [vmem:[%s4632 + $0x24] sm:$0xf]
      %v4640 = vld [vmem:[%s4632 + $0x28] sm:$0xf]
      %v4641 = vld [vmem:[%s4632 + $0x30] sm:$0xf]
      %v4642 = vld [vmem:[%s4632 + $0x34] sm:$0xf]
      %v4643 = vld [vmem:[%s4632 + $0x3c] sm:$0xf]
      %v4644 = vld [vmem:[%s4632 + $0x40] sm:$0xf]
      %v4645 = vld [vmem:[%s4632 + $0x48] sm:$0xf]
      %v4646 = vld [vmem:[%s4632 + $0x4c] sm:$0xf]
      %v4647 = vld [vmem:[%s4632 + $0x54] sm:$0xf]
      %v4648 = vld [vmem:[%s4632 + $0x58] sm:$0xf]
      %v4649 = vld [vmem:[%s4632 + $0x60] sm:$0xf]
      %v4650 = vld [vmem:[%s4632 + $0x64] sm:$0xf]
      %v4651 = vld [vmem:[%s4632 + $0x6c] sm:$0xf]
      %v4652 = vld [vmem:[%s4632 + $0x70] sm:$0xf]
      %v4653 = vld [vmem:[%s4632 + $0x78] sm:$0xf]
      %v4654 = vld [vmem:[%s4632 + $0x7c] sm:$0xf]
      %v4655 = vld [vmem:[%s4632 + $0x84] sm:$0xf]
      %v4656 = vld [vmem:[%s4632 + $0x88] sm:$0xf]
      %v4657 = vld [vmem:[%s4632 + $0x90] sm:$0xf]
      %v4658 = vld [vmem:[%s4632 + $0x94] sm:$0xf]
      %v4659 = vld [vmem:[%s4632 + $0x9c] sm:$0xf]
      %v4660 = vld [vmem:[%s4632 + $0xa0] sm:$0xf]
      %v4661 = vld [vmem:[%s4632 + $0xa8] sm:$0xf]
      %v4662 = vld [vmem:[%s4632 + $0xac] sm:$0xf]
      %v4663 = vld [vmem:[%s4632 + $0xb4] sm:$0xf]
      %v4664 = vld [vmem:[%s4632 + $0xb8] sm:$0xf]
      %v4665 = vld [vmem:[#allocation3] sm:$0xff]
      %v4666 = vld [vmem:[#allocation3 + $0x8] sm:$0xff]
      %v4667 = vld [vmem:[#allocation3 + $0x10] sm:$0xff]
      %v4668 = vld [vmem:[#allocation3 + $0x18] sm:$0xff]
      %v4669 = vld [vmem:[#allocation3 + $0x20] sm:$0xff]
      %v4670 = vld [vmem:[#allocation3 + $0x28] sm:$0xff]
      %v4671 = vld [vmem:[#allocation3 + $0x30] sm:$0xff]
      %v4672 = vld [vmem:[#allocation3 + $0x38] sm:$0xff]
      %v4673 = vld [vmem:[#allocation3 + $0x40] sm:$0xff]
      %v4674 = vld [vmem:[#allocation3 + $0x48] sm:$0xff]
      %v4675 = vld [vmem:[#allocation3 + $0x50] sm:$0xff]
      %v4676 = vld [vmem:[#allocation3 + $0x58] sm:$0xff]
      %v4677 = vld [vmem:[#allocation3 + $0x60] sm:$0xff]
      %v4678 = vld [vmem:[#allocation3 + $0x68] sm:$0xff]
      %v4679 = vld [vmem:[#allocation3 + $0x70] sm:$0xff]
      %v4680 = vld [vmem:[#allocation3 + $0x78] sm:$0xff]
      %v4681 = vld [vmem:[#allocation3 + $0x80] sm:$0xff]
      %v4682 = vld [vmem:[#allocation3 + $0x88] sm:$0xff]
      %v4683 = vld [vmem:[#allocation3 + $0x90] sm:$0xff]
      %v4684 = vld [vmem:[#allocation3 + $0x98] sm:$0xff]
      %v4685 = vld [vmem:[#allocation3 + $0xa0] sm:$0xff]
      %v4686 = vld [vmem:[#allocation3 + $0xa8] sm:$0xff]
      %v4687 = vld [vmem:[#allocation3 + $0xb0] sm:$0xff]
      %v4688 = vld [vmem:[#allocation3 + $0xb8] sm:$0xff]
      %v4689 = vld [vmem:[#allocation3 + $0xc0] sm:$0xff]
      %v4690 = vld [vmem:[#allocation3 + $0xc8] sm:$0xff]
      %v4691 = vld [vmem:[#allocation3 + $0xd0] sm:$0xff]
      %v4692 = vld [vmem:[#allocation3 + $0xd8] sm:$0xff]
      %v4693 = vld [vmem:[#allocation3 + $0xe0] sm:$0xff]
      %v4694 = vld [vmem:[#allocation3 + $0xe8] sm:$0xff]
      %v4695 = vld [vmem:[#allocation3 + $0xf0] sm:$0xff]
      %v4696 = vld [vmem:[#allocation3 + $0xf8] sm:$0xff]
      %s4697 = scalar_lea.vmem %s1, 384
      %v4698 = vld [vmem:[%s4697] sm:$0xf]
      %v4699 = vld [vmem:[%s4697 + $0x4] sm:$0xf]
      %v4700 = vld [vmem:[%s4697 + $0x8] sm:$0xf]
      %v4701 = vld [vmem:[%s4697 + $0xc] sm:$0xf]
      %v4702 = vld [vmem:[%s4697 + $0x10] sm:$0xf]
      %v4703 = vld [vmem:[%s4697 + $0x14] sm:$0xf]
      %v4704 = vld [vmem:[%s4697 + $0x18] sm:$0xf]
      %v4705 = vld [vmem:[%s4697 + $0x1c] sm:$0xf]
      %v4706 = vld [vmem:[%s4697 + $0x20] sm:$0xf]
      %v4707 = vld [vmem:[%s4697 + $0x24] sm:$0xf]
      %v4708 = vld [vmem:[%s4697 + $0x28] sm:$0xf]
      %v4709 = vld [vmem:[%s4697 + $0x2c] sm:$0xf]
      %v4710 = vld [vmem:[%s4697 + $0x30] sm:$0xf]
      %v4711 = vld [vmem:[%s4697 + $0x34] sm:$0xf]
      %v4712 = vld [vmem:[%s4697 + $0x38] sm:$0xf]
      %v4713 = vld [vmem:[%s4697 + $0x3c] sm:$0xf]
      %v4746 = vunpack.c.l.b16 %v4633
      %v4747 = vunpack.c.l.b16 %v4634
      %v4748 = vunpack.c.l.b16 %v4635
      %v4749 = vunpack.c.l.b16 %v4636
      %v4750 = vunpack.c.l.b16 %v4637
      %v4751 = vunpack.c.l.b16 %v4638
      %v4752 = vunpack.c.l.b16 %v4639
      %v4753 = vunpack.c.l.b16 %v4640
      %v4754 = vunpack.c.l.b16 %v4641
      %v4755 = vunpack.c.l.b16 %v4642
      %v4756 = vunpack.c.l.b16 %v4643
      %v4757 = vunpack.c.l.b16 %v4644
      %v4758 = vunpack.c.l.b16 %v4645
      %v4759 = vunpack.c.l.b16 %v4646
      %v4760 = vunpack.c.l.b16 %v4647
      %v4761 = vunpack.c.l.b16 %v4648
      %v4762 = vunpack.c.l.b16 %v4649
      %v4763 = vunpack.c.l.b16 %v4650
      %v4764 = vunpack.c.l.b16 %v4651
      %v4765 = vunpack.c.l.b16 %v4652
      %v4766 = vunpack.c.l.b16 %v4653
      %v4767 = vunpack.c.l.b16 %v4654
      %v4768 = vunpack.c.l.b16 %v4655
      %v4769 = vunpack.c.l.b16 %v4656
      %v4770 = vunpack.c.l.b16 %v4657
      %v4771 = vunpack.c.l.b16 %v4658
      %v4772 = vunpack.c.l.b16 %v4659
      %v4773 = vunpack.c.l.b16 %v4660
      %v4774 = vunpack.c.l.b16 %v4661
      %v4775 = vunpack.c.l.b16 %v4662
      %v4776 = vunpack.c.l.b16 %v4663
      %v4777 = vunpack.c.l.b16 %v4664
      %v4778 = vpack.c.b16 %v4747, %v4746
      %v4779 = vpack.c.b16 %v4749, %v4748
      %v4780 = vpack.c.b16 %v4751, %v4750
      %v4781 = vpack.c.b16 %v4753, %v4752
      %v4782 = vpack.c.b16 %v4755, %v4754
      %v4783 = vpack.c.b16 %v4757, %v4756
      %v4784 = vpack.c.b16 %v4759, %v4758
      %v4785 = vpack.c.b16 %v4761, %v4760
      %v4786 = vpack.c.b16 %v4763, %v4762
      %v4787 = vpack.c.b16 %v4765, %v4764
      %v4788 = vpack.c.b16 %v4767, %v4766
      %v4789 = vpack.c.b16 %v4769, %v4768
      %v4790 = vpack.c.b16 %v4771, %v4770
      %v4791 = vpack.c.b16 %v4773, %v4772
      %v4792 = vpack.c.b16 %v4775, %v4774
      %v4793 = vpack.c.b16 %v4777, %v4776
      %v4826 = vunpack.c.l.b16 %v4698
      %v4827 = vunpack.c.l.b16 %v4699
      %v4828 = vunpack.c.l.b16 %v4700
      %v4829 = vunpack.c.l.b16 %v4701
      %v4830 = vunpack.c.l.b16 %v4702
      %v4831 = vunpack.c.l.b16 %v4703
      %v4832 = vunpack.c.l.b16 %v4704
      %v4833 = vunpack.c.l.b16 %v4705
      %v4834 = vunpack.c.l.b16 %v4706
      %v4835 = vunpack.c.l.b16 %v4707
      %v4836 = vunpack.c.l.b16 %v4708
      %v4837 = vunpack.c.l.b16 %v4709
      %v4838 = vunpack.c.l.b16 %v4710
      %v4839 = vunpack.c.l.b16 %v4711
      %v4840 = vunpack.c.l.b16 %v4712
      %v4841 = vunpack.c.l.b16 %v4713
      %v4842 = vpack.c.b16 %v4827, %v4826
      %v4843 = vpack.c.b16 %v4829, %v4828
      %v4844 = vpack.c.b16 %v4831, %v4830
      %v4845 = vpack.c.b16 %v4833, %v4832
      %v4846 = vpack.c.b16 %v4835, %v4834
      %v4847 = vpack.c.b16 %v4837, %v4836
      %v4848 = vpack.c.b16 %v4839, %v4838
      %v4849 = vpack.c.b16 %v4841, %v4840
      %4858 = vmatprep.subr.bf16.mxu0 0
      %4859 = vmatpush1.bf16.msra.mxu0 %v4842
      %4860 = vmatprep.subr.bf16.mxu0 0
      %4861 = vmatpush1.bf16.msra.mxu0 %v4843
      %4862 = vmatprep.subr.bf16.mxu0 0
      %4863 = vmatpush1.bf16.msra.mxu0 %v4844
      %4864 = vmatprep.subr.bf16.mxu0 0
      %4865 = vmatpush1.bf16.msra.mxu0 %v4845
      %4866 = vmatprep.subr.bf16.mxu0 0
      %4867 = vmatpush1.bf16.msra.mxu0 %v4846
      %4868 = vmatprep.subr.bf16.mxu0 0
      %4869 = vmatpush1.bf16.msra.mxu0 %v4847
      %4870 = vmatprep.subr.bf16.mxu0 0
      %4871 = vmatpush1.bf16.msra.mxu0 %v4848
      %4872 = vmatprep.subr.bf16.mxu0 0
      %4873 = vmatpush1.bf16.msra.mxu0 %v4849
      %4874 = vmatprep.subr.bf16.mxu0 0
      %4875 = vmatpush1.bf16.msra.mxu0 0
      %4876 = vmatprep.subr.bf16.mxu0 0
      %4877 = vmatpush1.bf16.msra.mxu0 0
      %4878 = vmatprep.subr.bf16.mxu0 0
      %4879 = vmatpush1.bf16.msra.mxu0 0
      %4880 = vmatprep.subr.bf16.mxu0 0
      %4881 = vmatpush1.bf16.msra.mxu0 0
      %4882 = vmatprep.subr.bf16.mxu0 0
      %4883 = vmatpush1.bf16.msra.mxu0 0
      %4884 = vmatprep.subr.bf16.mxu0 0
      %4885 = vmatpush1.bf16.msra.mxu0 0
      %4886 = vmatprep.subr.bf16.mxu0 0
      %4887 = vmatpush1.bf16.msra.mxu0 0
      %4888 = vmatprep.subr.bf16.mxu0 0
      %4889 = vmatpush1.bf16.msra.mxu0 0
      %4890 = vmatprep.mubr.bf16.mxu0 0
      %4891 = vmatmul.mubr.bf16.gmra.mrb[0].mxu0 %v4778
      %v4892 = vpop.f32.mrb[0].mxu0
      %v4893 = vadd.f32 0.0, %v4892
      %v4894 = vpop.f32.mrb[0].mxu0
      %v4895 = vpop.f32.mrb[0].mxu0
      %v4896 = vadd.f32 0.0, %v4895
      %v4897 = vpop.f32.mrb[0].mxu0
      %4898 = vmatprep.mubr.bf16.mxu0 0
      %4899 = vmatmul.mubr.bf16.gmra.mrb[0].mxu0 %v4779
      %v4900 = vpop.f32.mrb[0].mxu0
      %v4901 = vadd.f32 0.0, %v4900
      %v4902 = vpop.f32.mrb[0].mxu0
      %v4903 = vpop.f32.mrb[0].mxu0
      %v4904 = vadd.f32 0.0, %v4903
      %v4905 = vpop.f32.mrb[0].mxu0
      %4906 = vmatprep.mubr.bf16.mxu0 0
      %4907 = vmatmul.mubr.bf16.gmra.mrb[0].mxu0 %v4780
      %v4908 = vpop.f32.mrb[0].mxu0
      %v4909 = vadd.f32 0.0, %v4908
      %v4910 = vpop.f32.mrb[0].mxu0
      %v4911 = vpop.f32.mrb[0].mxu0
      %v4912 = vadd.f32 0.0, %v4911
      %v4913 = vpop.f32.mrb[0].mxu0
      %4914 = vmatprep.mubr.bf16.mxu0 0
      %4915 = vmatmul.mubr.bf16.gmra.mrb[0].mxu0 %v4781
      %v4916 = vpop.f32.mrb[0].mxu0
      %v4917 = vadd.f32 0.0, %v4916
      %v4918 = vpop.f32.mrb[0].mxu0
      %v4919 = vpop.f32.mrb[0].mxu0
      %v4920 = vadd.f32 0.0, %v4919
      %v4921 = vpop.f32.mrb[0].mxu0
      %4922 = vmatprep.mubr.bf16.mxu0 0
      %4923 = vmatmul.mubr.bf16.gmra.mrb[0].mxu0 %v4782
      %v4924 = vpop.f32.mrb[0].mxu0
      %v4925 = vadd.f32 0.0, %v4924
      %v4926 = vpop.f32.mrb[0].mxu0
      %v4927 = vpop.f32.mrb[0].mxu0
      %v4928 = vadd.f32 0.0, %v4927
      %v4929 = vpop.f32.mrb[0].mxu0
      %4930 = vmatprep.mubr.bf16.mxu0 0
      %4931 = vmatmul.mubr.bf16.gmra.mrb[0].mxu0 %v4783
      %v4932 = vpop.f32.mrb[0].mxu0
      %v4933 = vadd.f32 0.0, %v4932
      %v4934 = vpop.f32.mrb[0].mxu0
      %v4935 = vpop.f32.mrb[0].mxu0
      %v4936 = vadd.f32 0.0, %v4935
      %v4937 = vpop.f32.mrb[0].mxu0
      %4938 = vmatprep.mubr.bf16.mxu0 0
      %4939 = vmatmul.mubr.bf16.gmra.mrb[0].mxu0 %v4784
      %v4940 = vpop.f32.mrb[0].mxu0
      %v4941 = vadd.f32 0.0, %v4940
      %v4942 = vpop.f32.mrb[0].mxu0
      %v4943 = vpop.f32.mrb[0].mxu0
      %v4944 = vadd.f32 0.0, %v4943
      %v4945 = vpop.f32.mrb[0].mxu0
      %4946 = vmatprep.mubr.bf16.mxu0 0
      %4947 = vmatmul.mubr.bf16.gmra.mrb[0].mxu0 %v4785
      %v4948 = vpop.f32.mrb[0].mxu0
      %v4949 = vadd.f32 0.0, %v4948
      %v4950 = vpop.f32.mrb[0].mxu0
      %v4951 = vpop.f32.mrb[0].mxu0
      %v4952 = vadd.f32 0.0, %v4951
      %v4953 = vpop.f32.mrb[0].mxu0
      %4954 = vmatprep.mubr.bf16.mxu0 0
      %4955 = vmatmul.mubr.bf16.gmra.mrb[0].mxu0 %v4786
      %v4956 = vpop.f32.mrb[0].mxu0
      %v4957 = vadd.f32 0.0, %v4956
      %v4958 = vpop.f32.mrb[0].mxu0
      %v4959 = vpop.f32.mrb[0].mxu0
      %v4960 = vadd.f32 0.0, %v4959
      %v4961 = vpop.f32.mrb[0].mxu0
      %4962 = vmatprep.mubr.bf16.mxu0 0
      %4963 = vmatmul.mubr.bf16.gmra.mrb[0].mxu0 %v4787
      %v4964 = vpop.f32.mrb[0].mxu0
      %v4965 = vadd.f32 0.0, %v4964
      %v4966 = vpop.f32.mrb[0].mxu0
      %v4967 = vpop.f32.mrb[0].mxu0
      %v4968 = vadd.f32 0.0, %v4967
      %v4969 = vpop.f32.mrb[0].mxu0
      %4970 = vmatprep.mubr.bf16.mxu0 0
      %4971 = vmatmul.mubr.bf16.gmra.mrb[0].mxu0 %v4788
      %v4972 = vpop.f32.mrb[0].mxu0
      %v4973 = vadd.f32 0.0, %v4972
      %v4974 = vpop.f32.mrb[0].mxu0
      %v4975 = vpop.f32.mrb[0].mxu0
      %v4976 = vadd.f32 0.0, %v4975
      %v4977 = vpop.f32.mrb[0].mxu0
      %4978 = vmatprep.mubr.bf16.mxu0 0
      %4979 = vmatmul.mubr.bf16.gmra.mrb[0].mxu0 %v4789
      %v4980 = vpop.f32.mrb[0].mxu0
      %v4981 = vadd.f32 0.0, %v4980
      %v4982 = vpop.f32.mrb[0].mxu0
      %v4983 = vpop.f32.mrb[0].mxu0
      %v4984 = vadd.f32 0.0, %v4983
      %v4985 = vpop.f32.mrb[0].mxu0
      %4986 = vmatprep.mubr.bf16.mxu0 0
      %4987 = vmatmul.mubr.bf16.gmra.mrb[0].mxu0 %v4790
      %v4988 = vpop.f32.mrb[0].mxu0
      %v4989 = vadd.f32 0.0, %v4988
      %v4990 = vpop.f32.mrb[0].mxu0
      %v4991 = vpop.f32.mrb[0].mxu0
      %v4992 = vadd.f32 0.0, %v4991
      %v4993 = vpop.f32.mrb[0].mxu0
      %4994 = vmatprep.mubr.bf16.mxu0 0
      %4995 = vmatmul.mubr.bf16.gmra.mrb[0].mxu0 %v4791
      %v4996 = vpop.f32.mrb[0].mxu0
      %v4997 = vadd.f32 0.0, %v4996
      %v4998 = vpop.f32.mrb[0].mxu0
      %v4999 = vpop.f32.mrb[0].mxu0
      %v5000 = vadd.f32 0.0, %v4999
      %v5001 = vpop.f32.mrb[0].mxu0
      %5002 = vmatprep.mubr.bf16.mxu0 0
      %5003 = vmatmul.mubr.bf16.gmra.mrb[0].mxu0 %v4792
      %v5004 = vpop.f32.mrb[0].mxu0
      %v5005 = vadd.f32 0.0, %v5004
      %v5006 = vpop.f32.mrb[0].mxu0
      %v5007 = vpop.f32.mrb[0].mxu0
      %v5008 = vadd.f32 0.0, %v5007
      %v5009 = vpop.f32.mrb[0].mxu0
      %5010 = vmatprep.mubr.bf16.mxu0 0
      %5011 = vmatmul.mubr.bf16.gmra.mrb[0].mxu0 %v4793
      %v5012 = vpop.f32.mrb[0].mxu0
      %v5013 = vadd.f32 0.0, %v5012
      %v5014 = vpop.f32.mrb[0].mxu0
      %v5015 = vpop.f32.mrb[0].mxu0
      %v5016 = vadd.f32 0.0, %v5015
      %v5017 = vpop.f32.mrb[0].mxu0
      %5018 = vdwg.mxu0
      %v5019 = vadd.f32 %v4665, %v4893
      %v5020 = vadd.f32 %v4666, %v4896
      %v5021 = vadd.f32 %v4667, %v4901
      %v5022 = vadd.f32 %v4668, %v4904
      %v5023 = vadd.f32 %v4669, %v4909
      %v5024 = vadd.f32 %v4670, %v4912
      %v5025 = vadd.f32 %v4671, %v4917
      %v5026 = vadd.f32 %v4672, %v4920
      %v5027 = vadd.f32 %v4673, %v4925
      %v5028 = vadd.f32 %v4674, %v4928
      %v5029 = vadd.f32 %v4675, %v4933
      %v5030 = vadd.f32 %v4676, %v4936
      %v5031 = vadd.f32 %v4677, %v4941
      %v5032 = vadd.f32 %v4678, %v4944
      %v5033 = vadd.f32 %v4679, %v4949
      %v5034 = vadd.f32 %v4680, %v4952
      %v5035 = vadd.f32 %v4681, %v4957
      %v5036 = vadd.f32 %v4682, %v4960
      %v5037 = vadd.f32 %v4683, %v4965
      %v5038 = vadd.f32 %v4684, %v4968
      %v5039 = vadd.f32 %v4685, %v4973
      %v5040 = vadd.f32 %v4686, %v4976
      %v5041 = vadd.f32 %v4687, %v4981
      %v5042 = vadd.f32 %v4688, %v4984
      %v5043 = vadd.f32 %v4689, %v4989
      %v5044 = vadd.f32 %v4690, %v4992
      %v5045 = vadd.f32 %v4691, %v4997
      %v5046 = vadd.f32 %v4692, %v5000
      %v5047 = vadd.f32 %v4693, %v5005
      %v5048 = vadd.f32 %v4694, %v5008
      %v5049 = vadd.f32 %v4695, %v5013
      %v5050 = vadd.f32 %v4696, %v5016
      %5051 = vst [vmem:[#allocation3] sm:$0xff] %v5019
      %5052 = vst [vmem:[#allocation3 + $0x8] sm:$0xff] %v5020
      %5053 = vst [vmem:[#allocation3 + $0x10] sm:$0xff] %v5021
      %5054 = vst [vmem:[#allocation3 + $0x18] sm:$0xff] %v5022
      %5055 = vst [vmem:[#allocation3 + $0x20] sm:$0xff] %v5023
      %5056 = vst [vmem:[#allocation3 + $0x28] sm:$0xff] %v5024
      %5057 = vst [vmem:[#allocation3 + $0x30] sm:$0xff] %v5025
      %5058 = vst [vmem:[#allocation3 + $0x38] sm:$0xff] %v5026
      %5059 = vst [vmem:[#allocation3 + $0x40] sm:$0xff] %v5027
      %5060 = vst [vmem:[#allocation3 + $0x48] sm:$0xff] %v5028
      %5061 = vst [vmem:[#allocation3 + $0x50] sm:$0xff] %v5029
      %5062 = vst [vmem:[#allocation3 + $0x58] sm:$0xff] %v5030
      %5063 = vst [vmem:[#allocation3 + $0x60] sm:$0xff] %v5031
      %5064 = vst [vmem:[#allocation3 + $0x68] sm:$0xff] %v5032
      %5065 = vst [vmem:[#allocation3 + $0x70] sm:$0xff] %v5033
      %5066 = vst [vmem:[#allocation3 + $0x78] sm:$0xff] %v5034
      %5067 = vst [vmem:[#allocation3 + $0x80] sm:$0xff] %v5035
      %5068 = vst [vmem:[#allocation3 + $0x88] sm:$0xff] %v5036
      %5069 = vst [vmem:[#allocation3 + $0x90] sm:$0xff] %v5037
      %5070 = vst [vmem:[#allocation3 + $0x98] sm:$0xff] %v5038
      %5071 = vst [vmem:[#allocation3 + $0xa0] sm:$0xff] %v5039
      %5072 = vst [vmem:[#allocation3 + $0xa8] sm:$0xff] %v5040
      %5073 = vst [vmem:[#allocation3 + $0xb0] sm:$0xff] %v5041
      %5074 = vst [vmem:[#allocation3 + $0xb8] sm:$0xff] %v5042
      %5075 = vst [vmem:[#allocation3 + $0xc0] sm:$0xff] %v5043
      %5076 = vst [vmem:[#allocation3 + $0xc8] sm:$0xff] %v5044
      %5077 = vst [vmem:[#allocation3 + $0xd0] sm:$0xff] %v5045
      %5078 = vst [vmem:[#allocation3 + $0xd8] sm:$0xff] %v5046
      %5079 = vst [vmem:[#allocation3 + $0xe0] sm:$0xff] %v5047
      %5080 = vst [vmem:[#allocation3 + $0xe8] sm:$0xff] %v5048
      %5081 = vst [vmem:[#allocation3 + $0xf0] sm:$0xff] %v5049
      %5082 = vst [vmem:[#allocation3 + $0xf8] sm:$0xff] %v5050
      %v5083 = vld [vmem:[%s4632] sm:$0xf]
      %v5084 = vld [vmem:[%s4632 + $0x4] sm:$0xf]
      %v5085 = vld [vmem:[%s4632 + $0x8] sm:$0x1]
      %v5086 = vld [vmem:[%s4632 + $0xc] sm:$0xf]
      %v5087 = vld [vmem:[%s4632 + $0x10] sm:$0xf]
      %v5088 = vld [vmem:[%s4632 + $0x14] sm:$0x1]
      %v5089 = vld [vmem:[%s4632 + $0x18] sm:$0xf]
      %v5090 = vld [vmem:[%s4632 + $0x1c] sm:$0xf]
      %v5091 = vld [vmem:[%s4632 + $0x20] sm:$0x1]
      %v5092 = vld [vmem:[%s4632 + $0x24] sm:$0xf]
      %v5093 = vld [vmem:[%s4632 + $0x28] sm:$0xf]
      %v5094 = vld [vmem:[%s4632 + $0x2c] sm:$0x1]
      %v5095 = vld [vmem:[%s4632 + $0x30] sm:$0xf]
      %v5096 = vld [vmem:[%s4632 + $0x34] sm:$0xf]
      %v5097 = vld [vmem:[%s4632 + $0x38] sm:$0x1]
      %v5098 = vld [vmem:[%s4632 + $0x3c] sm:$0xf]
      %v5099 = vld [vmem:[%s4632 + $0x40] sm:$0xf]
      %v5100 = vld [vmem:[%s4632 + $0x44] sm:$0x1]
      %v5101 = vld [vmem:[%s4632 + $0x48] sm:$0xf]
      %v5102 = vld [vmem:[%s4632 + $0x4c] sm:$0xf]
      %v5103 = vld [vmem:[%s4632 + $0x50] sm:$0x1]
      %v5104 = vld [vmem:[%s4632 + $0x54] sm:$0xf]
      %v5105 = vld [vmem:[%s4632 + $0x58] sm:$0xf]
      %v5106 = vld [vmem:[%s4632 + $0x5c] sm:$0x1]
      %v5107 = vld [vmem:[%s4632 + $0x60] sm:$0xf]
      %v5108 = vld [vmem:[%s4632 + $0x64] sm:$0xf]
      %v5109 = vld [vmem:[%s4632 + $0x68] sm:$0x1]
      %v5110 = vld [vmem:[%s4632 + $0x6c] sm:$0xf]
      %v5111 = vld [vmem:[%s4632 + $0x70] sm:$0xf]
      %v5112 = vld [vmem:[%s4632 + $0x74] sm:$0x1]
      %v5113 = vld [vmem:[%s4632 + $0x78] sm:$0xf]
      %v5114 = vld [vmem:[%s4632 + $0x7c] sm:$0xf]
      %v5115 = vld [vmem:[%s4632 + $0x80] sm:$0x1]
      %v5116 = vld [vmem:[%s4632 + $0x84] sm:$0xf]
      %v5117 = vld [vmem:[%s4632 + $0x88] sm:$0xf]
      %v5118 = vld [vmem:[%s4632 + $0x8c] sm:$0x1]
      %v5119 = vld [vmem:[%s4632 + $0x90] sm:$0xf]
      %v5120 = vld [vmem:[%s4632 + $0x94] sm:$0xf]
      %v5121 = vld [vmem:[%s4632 + $0x98] sm:$0x1]
      %v5122 = vld [vmem:[%s4632 + $0x9c] sm:$0xf]
      %v5123 = vld [vmem:[%s4632 + $0xa0] sm:$0xf]
      %v5124 = vld [vmem:[%s4632 + $0xa4] sm:$0x1]
      %v5125 = vld [vmem:[%s4632 + $0xa8] sm:$0xf]
      %v5126 = vld [vmem:[%s4632 + $0xac] sm:$0xf]
      %v5127 = vld [vmem:[%s4632 + $0xb0] sm:$0x1]
      %v5128 = vld [vmem:[%s4632 + $0xb4] sm:$0xf]
      %v5129 = vld [vmem:[%s4632 + $0xb8] sm:$0xf]
      %v5130 = vld [vmem:[%s4632 + $0xbc] sm:$0x1]
      %v5131 = vld [vmem:[#allocation3] sm:$0xff]
      %v5132 = vld [vmem:[#allocation3 + $0x8] sm:$0xff]
      %v5133 = vld [vmem:[#allocation3 + $0x10] sm:$0xff]
      %v5134 = vld [vmem:[#allocation3 + $0x18] sm:$0xff]
      %v5135 = vld [vmem:[#allocation3 + $0x20] sm:$0xff]
      %v5136 = vld [vmem:[#allocation3 + $0x28] sm:$0xff]
      %v5137 = vld [vmem:[#allocation3 + $0x30] sm:$0xff]
      %v5138 = vld [vmem:[#allocation3 + $0x38] sm:$0xff]
      %v5139 = vld [vmem:[#allocation3 + $0x40] sm:$0xff]
      %v5140 = vld [vmem:[#allocation3 + $0x48] sm:$0xff]
      %v5141 = vld [vmem:[#allocation3 + $0x50] sm:$0xff]
      %v5142 = vld [vmem:[#allocation3 + $0x58] sm:$0xff]
      %v5143 = vld [vmem:[#allocation3 + $0x60] sm:$0xff]
      %v5144 = vld [vmem:[#allocation3 + $0x68] sm:$0xff]
      %v5145 = vld [vmem:[#allocation3 + $0x70] sm:$0xff]
      %v5146 = vld [vmem:[#allocation3 + $0x78] sm:$0xff]
      %v5147 = vld [vmem:[#allocation3 + $0x80] sm:$0xff]
      %v5148 = vld [vmem:[#allocation3 + $0x88] sm:$0xff]
      %v5149 = vld [vmem:[#allocation3 + $0x90] sm:$0xff]
      %v5150 = vld [vmem:[#allocation3 + $0x98] sm:$0xff]
      %v5151 = vld [vmem:[#allocation3 + $0xa0] sm:$0xff]
      %v5152 = vld [vmem:[#allocation3 + $0xa8] sm:$0xff]
      %v5153 = vld [vmem:[#allocation3 + $0xb0] sm:$0xff]
      %v5154 = vld [vmem:[#allocation3 + $0xb8] sm:$0xff]
      %v5155 = vld [vmem:[#allocation3 + $0xc0] sm:$0xff]
      %v5156 = vld [vmem:[#allocation3 + $0xc8] sm:$0xff]
      %v5157 = vld [vmem:[#allocation3 + $0xd0] sm:$0xff]
      %v5158 = vld [vmem:[#allocation3 + $0xd8] sm:$0xff]
      %v5159 = vld [vmem:[#allocation3 + $0xe0] sm:$0xff]
      %v5160 = vld [vmem:[#allocation3 + $0xe8] sm:$0xff]
      %v5161 = vld [vmem:[#allocation3 + $0xf0] sm:$0xff]
      %v5162 = vld [vmem:[#allocation3 + $0xf8] sm:$0xff]
      %v5164 = vshrl.u32 %v5083, 16
      %v5166 = vrot.slane %v5164, 4
      %v5167 = vshll.u32 %v5083, 16
      %v5169 = vrot.slane %v5167, 5
      %v5170 = vor.u32 %v5166, %v5169
      %v5171 = vrot.slane %v5170, 4
      %v5173 = vshll.u32 %v5084, 16
      %v5175 = vrot.slane %v5173, 5
      %v5176 = vsel %vm1433, %v5171, %v5175
      %v5177 = vshrl.u32 %v5084, 16
      %v5179 = vrot.slane %v5177, 4
      %v5180 = vor.u32 %v5179, %v5175
      %v5181 = vrot.slane %v5180, 4
      %v5183 = vshll.u32 %v5085, 16
      %v5185 = vrot.slane %v5183, 5
      %v5186 = vsel %vm1433, %v5181, %v5185
      %v5188 = vshrl.u32 %v5086, 16
      %v5190 = vrot.slane %v5188, 4
      %v5191 = vshll.u32 %v5086, 16
      %v5193 = vrot.slane %v5191, 5
      %v5194 = vor.u32 %v5190, %v5193
      %v5195 = vrot.slane %v5194, 4
      %v5197 = vshll.u32 %v5087, 16
      %v5199 = vrot.slane %v5197, 5
      %v5200 = vsel %vm1433, %v5195, %v5199
      %v5201 = vshrl.u32 %v5087, 16
      %v5203 = vrot.slane %v5201, 4
      %v5204 = vor.u32 %v5203, %v5199
      %v5205 = vrot.slane %v5204, 4
      %v5207 = vshll.u32 %v5088, 16
      %v5209 = vrot.slane %v5207, 5
      %v5210 = vsel %vm1433, %v5205, %v5209
      %v5212 = vshrl.u32 %v5089, 16
      %v5214 = vrot.slane %v5212, 4
      %v5215 = vshll.u32 %v5089, 16
      %v5217 = vrot.slane %v5215, 5
      %v5218 = vor.u32 %v5214, %v5217
      %v5219 = vrot.slane %v5218, 4
      %v5221 = vshll.u32 %v5090, 16
      %v5223 = vrot.slane %v5221, 5
      %v5224 = vsel %vm1433, %v5219, %v5223
      %v5225 = vshrl.u32 %v5090, 16
      %v5227 = vrot.slane %v5225, 4
      %v5228 = vor.u32 %v5227, %v5223
      %v5229 = vrot.slane %v5228, 4
      %v5231 = vshll.u32 %v5091, 16
      %v5233 = vrot.slane %v5231, 5
      %v5234 = vsel %vm1433, %v5229, %v5233
      %v5236 = vshrl.u32 %v5092, 16
      %v5238 = vrot.slane %v5236, 4
      %v5239 = vshll.u32 %v5092, 16
      %v5241 = vrot.slane %v5239, 5
      %v5242 = vor.u32 %v5238, %v5241
      %v5243 = vrot.slane %v5242, 4
      %v5245 = vshll.u32 %v5093, 16
      %v5247 = vrot.slane %v5245, 5
      %v5248 = vsel %vm1433, %v5243, %v5247
      %v5249 = vshrl.u32 %v5093, 16
      %v5251 = vrot.slane %v5249, 4
      %v5252 = vor.u32 %v5251, %v5247
      %v5253 = vrot.slane %v5252, 4
      %v5255 = vshll.u32 %v5094, 16
      %v5257 = vrot.slane %v5255, 5
      %v5258 = vsel %vm1433, %v5253, %v5257
      %v5260 = vshrl.u32 %v5095, 16
      %v5262 = vrot.slane %v5260, 4
      %v5263 = vshll.u32 %v5095, 16
      %v5265 = vrot.slane %v5263, 5
      %v5266 = vor.u32 %v5262, %v5265
      %v5267 = vrot.slane %v5266, 4
      %v5269 = vshll.u32 %v5096, 16
      %v5271 = vrot.slane %v5269, 5
      %v5272 = vsel %vm1433, %v5267, %v5271
      %v5273 = vshrl.u32 %v5096, 16
      %v5275 = vrot.slane %v5273, 4
      %v5276 = vor.u32 %v5275, %v5271
      %v5277 = vrot.slane %v5276, 4
      %v5279 = vshll.u32 %v5097, 16
      %v5281 = vrot.slane %v5279, 5
      %v5282 = vsel %vm1433, %v5277, %v5281
      %v5284 = vshrl.u32 %v5098, 16
      %v5286 = vrot.slane %v5284, 4
      %v5287 = vshll.u32 %v5098, 16
      %v5289 = vrot.slane %v5287, 5
      %v5290 = vor.u32 %v5286, %v5289
      %v5291 = vrot.slane %v5290, 4
      %v5293 = vshll.u32 %v5099, 16
      %v5295 = vrot.slane %v5293, 5
      %v5296 = vsel %vm1433, %v5291, %v5295
      %v5297 = vshrl.u32 %v5099, 16
      %v5299 = vrot.slane %v5297, 4
      %v5300 = vor.u32 %v5299, %v5295
      %v5301 = vrot.slane %v5300, 4
      %v5303 = vshll.u32 %v5100, 16
      %v5305 = vrot.slane %v5303, 5
      %v5306 = vsel %vm1433, %v5301, %v5305
      %v5308 = vshrl.u32 %v5101, 16
      %v5310 = vrot.slane %v5308, 4
      %v5311 = vshll.u32 %v5101, 16
      %v5313 = vrot.slane %v5311, 5
      %v5314 = vor.u32 %v5310, %v5313
      %v5315 = vrot.slane %v5314, 4
      %v5317 = vshll.u32 %v5102, 16
      %v5319 = vrot.slane %v5317, 5
      %v5320 = vsel %vm1433, %v5315, %v5319
      %v5321 = vshrl.u32 %v5102, 16
      %v5323 = vrot.slane %v5321, 4
      %v5324 = vor.u32 %v5323, %v5319
      %v5325 = vrot.slane %v5324, 4
      %v5327 = vshll.u32 %v5103, 16
      %v5329 = vrot.slane %v5327, 5
      %v5330 = vsel %vm1433, %v5325, %v5329
      %v5332 = vshrl.u32 %v5104, 16
      %v5334 = vrot.slane %v5332, 4
      %v5335 = vshll.u32 %v5104, 16
      %v5337 = vrot.slane %v5335, 5
      %v5338 = vor.u32 %v5334, %v5337
      %v5339 = vrot.slane %v5338, 4
      %v5341 = vshll.u32 %v5105, 16
      %v5343 = vrot.slane %v5341, 5
      %v5344 = vsel %vm1433, %v5339, %v5343
      %v5345 = vshrl.u32 %v5105, 16
      %v5347 = vrot.slane %v5345, 4
      %v5348 = vor.u32 %v5347, %v5343
      %v5349 = vrot.slane %v5348, 4
      %v5351 = vshll.u32 %v5106, 16
      %v5353 = vrot.slane %v5351, 5
      %v5354 = vsel %vm1433, %v5349, %v5353
      %v5356 = vshrl.u32 %v5107, 16
      %v5358 = vrot.slane %v5356, 4
      %v5359 = vshll.u32 %v5107, 16
      %v5361 = vrot.slane %v5359, 5
      %v5362 = vor.u32 %v5358, %v5361
      %v5363 = vrot.slane %v5362, 4
      %v5365 = vshll.u32 %v5108, 16
      %v5367 = vrot.slane %v5365, 5
      %v5368 = vsel %vm1433, %v5363, %v5367
      %v5369 = vshrl.u32 %v5108, 16
      %v5371 = vrot.slane %v5369, 4
      %v5372 = vor.u32 %v5371, %v5367
      %v5373 = vrot.slane %v5372, 4
      %v5375 = vshll.u32 %v5109, 16
      %v5377 = vrot.slane %v5375, 5
      %v5378 = vsel %vm1433, %v5373, %v5377
      %v5380 = vshrl.u32 %v5110, 16
      %v5382 = vrot.slane %v5380, 4
      %v5383 = vshll.u32 %v5110, 16
      %v5385 = vrot.slane %v5383, 5
      %v5386 = vor.u32 %v5382, %v5385
      %v5387 = vrot.slane %v5386, 4
      %v5389 = vshll.u32 %v5111, 16
      %v5391 = vrot.slane %v5389, 5
      %v5392 = vsel %vm1433, %v5387, %v5391
      %v5393 = vshrl.u32 %v5111, 16
      %v5395 = vrot.slane %v5393, 4
      %v5396 = vor.u32 %v5395, %v5391
      %v5397 = vrot.slane %v5396, 4
      %v5399 = vshll.u32 %v5112, 16
      %v5401 = vrot.slane %v5399, 5
      %v5402 = vsel %vm1433, %v5397, %v5401
      %v5404 = vshrl.u32 %v5113, 16
      %v5406 = vrot.slane %v5404, 4
      %v5407 = vshll.u32 %v5113, 16
      %v5409 = vrot.slane %v5407, 5
      %v5410 = vor.u32 %v5406, %v5409
      %v5411 = vrot.slane %v5410, 4
      %v5413 = vshll.u32 %v5114, 16
      %v5415 = vrot.slane %v5413, 5
      %v5416 = vsel %vm1433, %v5411, %v5415
      %v5417 = vshrl.u32 %v5114, 16
      %v5419 = vrot.slane %v5417, 4
      %v5420 = vor.u32 %v5419, %v5415
      %v5421 = vrot.slane %v5420, 4
      %v5423 = vshll.u32 %v5115, 16
      %v5425 = vrot.slane %v5423, 5
      %v5426 = vsel %vm1433, %v5421, %v5425
      %v5428 = vshrl.u32 %v5116, 16
      %v5430 = vrot.slane %v5428, 4
      %v5431 = vshll.u32 %v5116, 16
      %v5433 = vrot.slane %v5431, 5
      %v5434 = vor.u32 %v5430, %v5433
      %v5435 = vrot.slane %v5434, 4
      %v5437 = vshll.u32 %v5117, 16
      %v5439 = vrot.slane %v5437, 5
      %v5440 = vsel %vm1433, %v5435, %v5439
      %v5441 = vshrl.u32 %v5117, 16
      %v5443 = vrot.slane %v5441, 4
      %v5444 = vor.u32 %v5443, %v5439
      %v5445 = vrot.slane %v5444, 4
      %v5447 = vshll.u32 %v5118, 16
      %v5449 = vrot.slane %v5447, 5
      %v5450 = vsel %vm1433, %v5445, %v5449
      %v5452 = vshrl.u32 %v5119, 16
      %v5454 = vrot.slane %v5452, 4
      %v5455 = vshll.u32 %v5119, 16
      %v5457 = vrot.slane %v5455, 5
      %v5458 = vor.u32 %v5454, %v5457
      %v5459 = vrot.slane %v5458, 4
      %v5461 = vshll.u32 %v5120, 16
      %v5463 = vrot.slane %v5461, 5
      %v5464 = vsel %vm1433, %v5459, %v5463
      %v5465 = vshrl.u32 %v5120, 16
      %v5467 = vrot.slane %v5465, 4
      %v5468 = vor.u32 %v5467, %v5463
      %v5469 = vrot.slane %v5468, 4
      %v5471 = vshll.u32 %v5121, 16
      %v5473 = vrot.slane %v5471, 5
      %v5474 = vsel %vm1433, %v5469, %v5473
      %v5476 = vshrl.u32 %v5122, 16
      %v5478 = vrot.slane %v5476, 4
      %v5479 = vshll.u32 %v5122, 16
      %v5481 = vrot.slane %v5479, 5
      %v5482 = vor.u32 %v5478, %v5481
      %v5483 = vrot.slane %v5482, 4
      %v5485 = vshll.u32 %v5123, 16
      %v5487 = vrot.slane %v5485, 5
      %v5488 = vsel %vm1433, %v5483, %v5487
      %v5489 = vshrl.u32 %v5123, 16
      %v5491 = vrot.slane %v5489, 4
      %v5492 = vor.u32 %v5491, %v5487
      %v5493 = vrot.slane %v5492, 4
      %v5495 = vshll.u32 %v5124, 16
      %v5497 = vrot.slane %v5495, 5
      %v5498 = vsel %vm1433, %v5493, %v5497
      %v5500 = vshrl.u32 %v5125, 16
      %v5502 = vrot.slane %v5500, 4
      %v5503 = vshll.u32 %v5125, 16
      %v5505 = vrot.slane %v5503, 5
      %v5506 = vor.u32 %v5502, %v5505
      %v5507 = vrot.slane %v5506, 4
      %v5509 = vshll.u32 %v5126, 16
      %v5511 = vrot.slane %v5509, 5
      %v5512 = vsel %vm1433, %v5507, %v5511
      %v5513 = vshrl.u32 %v5126, 16
      %v5515 = vrot.slane %v5513, 4
      %v5516 = vor.u32 %v5515, %v5511
      %v5517 = vrot.slane %v5516, 4
      %v5519 = vshll.u32 %v5127, 16
      %v5521 = vrot.slane %v5519, 5
      %v5522 = vsel %vm1433, %v5517, %v5521
      %v5524 = vshrl.u32 %v5128, 16
      %v5526 = vrot.slane %v5524, 4
      %v5527 = vshll.u32 %v5128, 16
      %v5529 = vrot.slane %v5527, 5
      %v5530 = vor.u32 %v5526, %v5529
      %v5531 = vrot.slane %v5530, 4
      %v5533 = vshll.u32 %v5129, 16
      %v5535 = vrot.slane %v5533, 5
      %v5536 = vsel %vm1433, %v5531, %v5535
      %v5537 = vshrl.u32 %v5129, 16
      %v5539 = vrot.slane %v5537, 4
      %v5540 = vor.u32 %v5539, %v5535
      %v5541 = vrot.slane %v5540, 4
      %v5543 = vshll.u32 %v5130, 16
      %v5545 = vrot.slane %v5543, 5
      %v5546 = vsel %vm1433, %v5541, %v5545
      %s5547 = scalar_lea.vmem %s1, 448
      %v5548 = vld [vmem:[%s5547] sm:$0xf]
      %v5549 = vld [vmem:[%s5547 + $0x4] sm:$0xf]
      %v5550 = vld [vmem:[%s5547 + $0x8] sm:$0xf]
      %v5551 = vld [vmem:[%s5547 + $0xc] sm:$0xf]
      %v5552 = vld [vmem:[%s5547 + $0x10] sm:$0xf]
      %v5553 = vld [vmem:[%s5547 + $0x14] sm:$0xf]
      %v5554 = vld [vmem:[%s5547 + $0x18] sm:$0xf]
      %v5555 = vld [vmem:[%s5547 + $0x1c] sm:$0xf]
      %v5556 = vld [vmem:[%s5547 + $0x20] sm:$0xf]
      %v5557 = vld [vmem:[%s5547 + $0x24] sm:$0xf]
      %v5558 = vld [vmem:[%s5547 + $0x28] sm:$0xf]
      %v5559 = vld [vmem:[%s5547 + $0x2c] sm:$0xf]
      %v5560 = vld [vmem:[%s5547 + $0x30] sm:$0xf]
      %v5561 = vld [vmem:[%s5547 + $0x34] sm:$0xf]
      %v5562 = vld [vmem:[%s5547 + $0x38] sm:$0xf]
      %v5563 = vld [vmem:[%s5547 + $0x3c] sm:$0xf]
      %v5564 = vunpack.c.l.b16 %v5176
      %v5565 = vunpack.c.l.b16 %v5186
      %v5566 = vunpack.c.l.b16 %v5200
      %v5567 = vunpack.c.l.b16 %v5210
      %v5568 = vunpack.c.l.b16 %v5224
      %v5569 = vunpack.c.l.b16 %v5234
      %v5570 = vunpack.c.l.b16 %v5248
      %v5571 = vunpack.c.l.b16 %v5258
      %v5572 = vunpack.c.l.b16 %v5272
      %v5573 = vunpack.c.l.b16 %v5282
      %v5574 = vunpack.c.l.b16 %v5296
      %v5575 = vunpack.c.l.b16 %v5306
      %v5576 = vunpack.c.l.b16 %v5320
      %v5577 = vunpack.c.l.b16 %v5330
      %v5578 = vunpack.c.l.b16 %v5344
      %v5579 = vunpack.c.l.b16 %v5354
      %v5580 = vunpack.c.l.b16 %v5368
      %v5581 = vunpack.c.l.b16 %v5378
      %v5582 = vunpack.c.l.b16 %v5392
      %v5583 = vunpack.c.l.b16 %v5402
      %v5584 = vunpack.c.l.b16 %v5416
      %v5585 = vunpack.c.l.b16 %v5426
      %v5586 = vunpack.c.l.b16 %v5440
      %v5587 = vunpack.c.l.b16 %v5450
      %v5588 = vunpack.c.l.b16 %v5464
      %v5589 = vunpack.c.l.b16 %v5474
      %v5590 = vunpack.c.l.b16 %v5488
      %v5591 = vunpack.c.l.b16 %v5498
      %v5592 = vunpack.c.l.b16 %v5512
      %v5593 = vunpack.c.l.b16 %v5522
      %v5594 = vunpack.c.l.b16 %v5536
      %v5595 = vunpack.c.l.b16 %v5546
      %v5596 = vpack.c.b16 %v5565, %v5564
      %v5597 = vpack.c.b16 %v5567, %v5566
      %v5598 = vpack.c.b16 %v5569, %v5568
      %v5599 = vpack.c.b16 %v5571, %v5570
      %v5600 = vpack.c.b16 %v5573, %v5572
      %v5601 = vpack.c.b16 %v5575, %v5574
      %v5602 = vpack.c.b16 %v5577, %v5576
      %v5603 = vpack.c.b16 %v5579, %v5578
      %v5604 = vpack.c.b16 %v5581, %v5580
      %v5605 = vpack.c.b16 %v5583, %v5582
      %v5606 = vpack.c.b16 %v5585, %v5584
      %v5607 = vpack.c.b16 %v5587, %v5586
      %v5608 = vpack.c.b16 %v5589, %v5588
      %v5609 = vpack.c.b16 %v5591, %v5590
      %v5610 = vpack.c.b16 %v5593, %v5592
      %v5611 = vpack.c.b16 %v5595, %v5594
      %v5644 = vunpack.c.l.b16 %v5548
      %v5645 = vunpack.c.l.b16 %v5549
      %v5646 = vunpack.c.l.b16 %v5550
      %v5647 = vunpack.c.l.b16 %v5551
      %v5648 = vunpack.c.l.b16 %v5552
      %v5649 = vunpack.c.l.b16 %v5553
      %v5650 = vunpack.c.l.b16 %v5554
      %v5651 = vunpack.c.l.b16 %v5555
      %v5652 = vunpack.c.l.b16 %v5556
      %v5653 = vunpack.c.l.b16 %v5557
      %v5654 = vunpack.c.l.b16 %v5558
      %v5655 = vunpack.c.l.b16 %v5559
      %v5656 = vunpack.c.l.b16 %v5560
      %v5657 = vunpack.c.l.b16 %v5561
      %v5658 = vunpack.c.l.b16 %v5562
      %v5659 = vunpack.c.l.b16 %v5563
      %v5660 = vpack.c.b16 %v5645, %v5644
      %v5661 = vpack.c.b16 %v5647, %v5646
      %v5662 = vpack.c.b16 %v5649, %v5648
      %v5663 = vpack.c.b16 %v5651, %v5650
      %v5664 = vpack.c.b16 %v5653, %v5652
      %v5665 = vpack.c.b16 %v5655, %v5654
      %v5666 = vpack.c.b16 %v5657, %v5656
      %v5667 = vpack.c.b16 %v5659, %v5658
      %5676 = vmatprep.subr.bf16.mxu0 0
      %5677 = vmatpush1.bf16.msra.mxu0 %v5660
      %5678 = vmatprep.subr.bf16.mxu0 0
      %5679 = vmatpush1.bf16.msra.mxu0 %v5661
      %5680 = vmatprep.subr.bf16.mxu0 0
      %5681 = vmatpush1.bf16.msra.mxu0 %v5662
      %5682 = vmatprep.subr.bf16.mxu0 0
      %5683 = vmatpush1.bf16.msra.mxu0 %v5663
      %5684 = vmatprep.subr.bf16.mxu0 0
      %5685 = vmatpush1.bf16.msra.mxu0 %v5664
      %5686 = vmatprep.subr.bf16.mxu0 0
      %5687 = vmatpush1.bf16.msra.mxu0 %v5665
      %5688 = vmatprep.subr.bf16.mxu0 0
      %5689 = vmatpush1.bf16.msra.mxu0 %v5666
      %5690 = vmatprep.subr.bf16.mxu0 0
      %5691 = vmatpush1.bf16.msra.mxu0 %v5667
      %5692 = vmatprep.subr.bf16.mxu0 0
      %5693 = vmatpush1.bf16.msra.mxu0 0
      %5694 = vmatprep.subr.bf16.mxu0 0
      %5695 = vmatpush1.bf16.msra.mxu0 0
      %5696 = vmatprep.subr.bf16.mxu0 0
      %5697 = vmatpush1.bf16.msra.mxu0 0
      %5698 = vmatprep.subr.bf16.mxu0 0
      %5699 = vmatpush1.bf16.msra.mxu0 0
      %5700 = vmatprep.subr.bf16.mxu0 0
      %5701 = vmatpush1.bf16.msra.mxu0 0
      %5702 = vmatprep.subr.bf16.mxu0 0
      %5703 = vmatpush1.bf16.msra.mxu0 0
      %5704 = vmatprep.subr.bf16.mxu0 0
      %5705 = vmatpush1.bf16.msra.mxu0 0
      %5706 = vmatprep.subr.bf16.mxu0 0
      %5707 = vmatpush1.bf16.msra.mxu0 0
      %5708 = vmatprep.mubr.bf16.mxu0 0
      %5709 = vmatmul.mubr.bf16.gmra.mrb[0].mxu0 %v5596
      %v5710 = vpop.f32.mrb[0].mxu0
      %v5711 = vadd.f32 0.0, %v5710
      %v5712 = vpop.f32.mrb[0].mxu0
      %v5713 = vpop.f32.mrb[0].mxu0
      %v5714 = vadd.f32 0.0, %v5713
      %v5715 = vpop.f32.mrb[0].mxu0
      %5716 = vmatprep.mubr.bf16.mxu0 0
      %5717 = vmatmul.mubr.bf16.gmra.mrb[0].mxu0 %v5597
      %v5718 = vpop.f32.mrb[0].mxu0
      %v5719 = vadd.f32 0.0, %v5718
      %v5720 = vpop.f32.mrb[0].mxu0
      %v5721 = vpop.f32.mrb[0].mxu0
      %v5722 = vadd.f32 0.0, %v5721
      %v5723 = vpop.f32.mrb[0].mxu0
      %5724 = vmatprep.mubr.bf16.mxu0 0
      %5725 = vmatmul.mubr.bf16.gmra.mrb[0].mxu0 %v5598
      %v5726 = vpop.f32.mrb[0].mxu0
      %v5727 = vadd.f32 0.0, %v5726
      %v5728 = vpop.f32.mrb[0].mxu0
      %v5729 = vpop.f32.mrb[0].mxu0
      %v5730 = vadd.f32 0.0, %v5729
      %v5731 = vpop.f32.mrb[0].mxu0
      %5732 = vmatprep.mubr.bf16.mxu0 0
      %5733 = vmatmul.mubr.bf16.gmra.mrb[0].mxu0 %v5599
      %v5734 = vpop.f32.mrb[0].mxu0
      %v5735 = vadd.f32 0.0, %v5734
      %v5736 = vpop.f32.mrb[0].mxu0
      %v5737 = vpop.f32.mrb[0].mxu0
      %v5738 = vadd.f32 0.0, %v5737
      %v5739 = vpop.f32.mrb[0].mxu0
      %5740 = vmatprep.mubr.bf16.mxu0 0
      %5741 = vmatmul.mubr.bf16.gmra.mrb[0].mxu0 %v5600
      %v5742 = vpop.f32.mrb[0].mxu0
      %v5743 = vadd.f32 0.0, %v5742
      %v5744 = vpop.f32.mrb[0].mxu0
      %v5745 = vpop.f32.mrb[0].mxu0
      %v5746 = vadd.f32 0.0, %v5745
      %v5747 = vpop.f32.mrb[0].mxu0
      %5748 = vmatprep.mubr.bf16.mxu0 0
      %5749 = vmatmul.mubr.bf16.gmra.mrb[0].mxu0 %v5601
      %v5750 = vpop.f32.mrb[0].mxu0
      %v5751 = vadd.f32 0.0, %v5750
      %v5752 = vpop.f32.mrb[0].mxu0
      %v5753 = vpop.f32.mrb[0].mxu0
      %v5754 = vadd.f32 0.0, %v5753
      %v5755 = vpop.f32.mrb[0].mxu0
      %5756 = vmatprep.mubr.bf16.mxu0 0
      %5757 = vmatmul.mubr.bf16.gmra.mrb[0].mxu0 %v5602
      %v5758 = vpop.f32.mrb[0].mxu0
      %v5759 = vadd.f32 0.0, %v5758
      %v5760 = vpop.f32.mrb[0].mxu0
      %v5761 = vpop.f32.mrb[0].mxu0
      %v5762 = vadd.f32 0.0, %v5761
      %v5763 = vpop.f32.mrb[0].mxu0
      %5764 = vmatprep.mubr.bf16.mxu0 0
      %5765 = vmatmul.mubr.bf16.gmra.mrb[0].mxu0 %v5603
      %v5766 = vpop.f32.mrb[0].mxu0
      %v5767 = vadd.f32 0.0, %v5766
      %v5768 = vpop.f32.mrb[0].mxu0
      %v5769 = vpop.f32.mrb[0].mxu0
      %v5770 = vadd.f32 0.0, %v5769
      %v5771 = vpop.f32.mrb[0].mxu0
      %5772 = vmatprep.mubr.bf16.mxu0 0
      %5773 = vmatmul.mubr.bf16.gmra.mrb[0].mxu0 %v5604
      %v5774 = vpop.f32.mrb[0].mxu0
      %v5775 = vadd.f32 0.0, %v5774
      %v5776 = vpop.f32.mrb[0].mxu0
      %v5777 = vpop.f32.mrb[0].mxu0
      %v5778 = vadd.f32 0.0, %v5777
      %v5779 = vpop.f32.mrb[0].mxu0
      %5780 = vmatprep.mubr.bf16.mxu0 0
      %5781 = vmatmul.mubr.bf16.gmra.mrb[0].mxu0 %v5605
      %v5782 = vpop.f32.mrb[0].mxu0
      %v5783 = vadd.f32 0.0, %v5782
      %v5784 = vpop.f32.mrb[0].mxu0
      %v5785 = vpop.f32.mrb[0].mxu0
      %v5786 = vadd.f32 0.0, %v5785
      %v5787 = vpop.f32.mrb[0].mxu0
      %5788 = vmatprep.mubr.bf16.mxu0 0
      %5789 = vmatmul.mubr.bf16.gmra.mrb[0].mxu0 %v5606
      %v5790 = vpop.f32.mrb[0].mxu0
      %v5791 = vadd.f32 0.0, %v5790
      %v5792 = vpop.f32.mrb[0].mxu0
      %v5793 = vpop.f32.mrb[0].mxu0
      %v5794 = vadd.f32 0.0, %v5793
      %v5795 = vpop.f32.mrb[0].mxu0
      %5796 = vmatprep.mubr.bf16.mxu0 0
      %5797 = vmatmul.mubr.bf16.gmra.mrb[0].mxu0 %v5607
      %v5798 = vpop.f32.mrb[0].mxu0
      %v5799 = vadd.f32 0.0, %v5798
      %v5800 = vpop.f32.mrb[0].mxu0
      %v5801 = vpop.f32.mrb[0].mxu0
      %v5802 = vadd.f32 0.0, %v5801
      %v5803 = vpop.f32.mrb[0].mxu0
      %5804 = vmatprep.mubr.bf16.mxu0 0
      %5805 = vmatmul.mubr.bf16.gmra.mrb[0].mxu0 %v5608
      %v5806 = vpop.f32.mrb[0].mxu0
      %v5807 = vadd.f32 0.0, %v5806
      %v5808 = vpop.f32.mrb[0].mxu0
      %v5809 = vpop.f32.mrb[0].mxu0
      %v5810 = vadd.f32 0.0, %v5809
      %v5811 = vpop.f32.mrb[0].mxu0
      %5812 = vmatprep.mubr.bf16.mxu0 0
      %5813 = vmatmul.mubr.bf16.gmra.mrb[0].mxu0 %v5609
      %v5814 = vpop.f32.mrb[0].mxu0
      %v5815 = vadd.f32 0.0, %v5814
      %v5816 = vpop.f32.mrb[0].mxu0
      %v5817 = vpop.f32.mrb[0].mxu0
      %v5818 = vadd.f32 0.0, %v5817
      %v5819 = vpop.f32.mrb[0].mxu0
      %5820 = vmatprep.mubr.bf16.mxu0 0
      %5821 = vmatmul.mubr.bf16.gmra.mrb[0].mxu0 %v5610
      %v5822 = vpop.f32.mrb[0].mxu0
      %v5823 = vadd.f32 0.0, %v5822
      %v5824 = vpop.f32.mrb[0].mxu0
      %v5825 = vpop.f32.mrb[0].mxu0
      %v5826 = vadd.f32 0.0, %v5825
      %v5827 = vpop.f32.mrb[0].mxu0
      %5828 = vmatprep.mubr.bf16.mxu0 0
      %5829 = vmatmul.mubr.bf16.gmra.mrb[0].mxu0 %v5611
      %v5830 = vpop.f32.mrb[0].mxu0
      %v5831 = vadd.f32 0.0, %v5830
      %v5832 = vpop.f32.mrb[0].mxu0
      %v5833 = vpop.f32.mrb[0].mxu0
      %v5834 = vadd.f32 0.0, %v5833
      %v5835 = vpop.f32.mrb[0].mxu0
      %5836 = vdwg.mxu0
      %v5837 = vadd.f32 %v5131, %v5711
      %v5838 = vadd.f32 %v5132, %v5714
      %v5839 = vadd.f32 %v5133, %v5719
      %v5840 = vadd.f32 %v5134, %v5722
      %v5841 = vadd.f32 %v5135, %v5727
      %v5842 = vadd.f32 %v5136, %v5730
      %v5843 = vadd.f32 %v5137, %v5735
      %v5844 = vadd.f32 %v5138, %v5738
      %v5845 = vadd.f32 %v5139, %v5743
      %v5846 = vadd.f32 %v5140, %v5746
      %v5847 = vadd.f32 %v5141, %v5751
      %v5848 = vadd.f32 %v5142, %v5754
      %v5849 = vadd.f32 %v5143, %v5759
      %v5850 = vadd.f32 %v5144, %v5762
      %v5851 = vadd.f32 %v5145, %v5767
      %v5852 = vadd.f32 %v5146, %v5770
      %v5853 = vadd.f32 %v5147, %v5775
      %v5854 = vadd.f32 %v5148, %v5778
      %v5855 = vadd.f32 %v5149, %v5783
      %v5856 = vadd.f32 %v5150, %v5786
      %v5857 = vadd.f32 %v5151, %v5791
      %v5858 = vadd.f32 %v5152, %v5794
      %v5859 = vadd.f32 %v5153, %v5799
      %v5860 = vadd.f32 %v5154, %v5802
      %v5861 = vadd.f32 %v5155, %v5807
      %v5862 = vadd.f32 %v5156, %v5810
      %v5863 = vadd.f32 %v5157, %v5815
      %v5864 = vadd.f32 %v5158, %v5818
      %v5865 = vadd.f32 %v5159, %v5823
      %v5866 = vadd.f32 %v5160, %v5826
      %v5867 = vadd.f32 %v5161, %v5831
      %v5868 = vadd.f32 %v5162, %v5834
      %5869 = vst [vmem:[#allocation3] sm:$0xff] %v5837
      %5870 = vst [vmem:[#allocation3 + $0x8] sm:$0xff] %v5838
      %5871 = vst [vmem:[#allocation3 + $0x10] sm:$0xff] %v5839
      %5872 = vst [vmem:[#allocation3 + $0x18] sm:$0xff] %v5840
      %5873 = vst [vmem:[#allocation3 + $0x20] sm:$0xff] %v5841
      %5874 = vst [vmem:[#allocation3 + $0x28] sm:$0xff] %v5842
      %5875 = vst [vmem:[#allocation3 + $0x30] sm:$0xff] %v5843
      %5876 = vst [vmem:[#allocation3 + $0x38] sm:$0xff] %v5844
      %5877 = vst [vmem:[#allocation3 + $0x40] sm:$0xff] %v5845
      %5878 = vst [vmem:[#allocation3 + $0x48] sm:$0xff] %v5846
      %5879 = vst [vmem:[#allocation3 + $0x50] sm:$0xff] %v5847
      %5880 = vst [vmem:[#allocation3 + $0x58] sm:$0xff] %v5848
      %5881 = vst [vmem:[#allocation3 + $0x60] sm:$0xff] %v5849
      %5882 = vst [vmem:[#allocation3 + $0x68] sm:$0xff] %v5850
      %5883 = vst [vmem:[#allocation3 + $0x70] sm:$0xff] %v5851
      %5884 = vst [vmem:[#allocation3 + $0x78] sm:$0xff] %v5852
      %5885 = vst [vmem:[#allocation3 + $0x80] sm:$0xff] %v5853
      %5886 = vst [vmem:[#allocation3 + $0x88] sm:$0xff] %v5854
      %5887 = vst [vmem:[#allocation3 + $0x90] sm:$0xff] %v5855
      %5888 = vst [vmem:[#allocation3 + $0x98] sm:$0xff] %v5856
      %5889 = vst [vmem:[#allocation3 + $0xa0] sm:$0xff] %v5857
      %5890 = vst [vmem:[#allocation3 + $0xa8] sm:$0xff] %v5858
      %5891 = vst [vmem:[#allocation3 + $0xb0] sm:$0xff] %v5859
      %5892 = vst [vmem:[#allocation3 + $0xb8] sm:$0xff] %v5860
      %5893 = vst [vmem:[#allocation3 + $0xc0] sm:$0xff] %v5861
      %5894 = vst [vmem:[#allocation3 + $0xc8] sm:$0xff] %v5862
      %5895 = vst [vmem:[#allocation3 + $0xd0] sm:$0xff] %v5863
      %5896 = vst [vmem:[#allocation3 + $0xd8] sm:$0xff] %v5864
      %5897 = vst [vmem:[#allocation3 + $0xe0] sm:$0xff] %v5865
      %5898 = vst [vmem:[#allocation3 + $0xe8] sm:$0xff] %v5866
      %5899 = vst [vmem:[#allocation3 + $0xf0] sm:$0xff] %v5867
      %5900 = vst [vmem:[#allocation3 + $0xf8] sm:$0xff] %v5868
      %v5901 = vld [vmem:[%s4632] sm:$0xe]
      %v5902 = vld [vmem:[%s4632 + $0x4] sm:$0xf]
      %v5903 = vld [vmem:[%s4632 + $0x8] sm:$0x1]
      %v5904 = vld [vmem:[%s4632 + $0xc] sm:$0xe]
      %v5905 = vld [vmem:[%s4632 + $0x10] sm:$0xf]
      %v5906 = vld [vmem:[%s4632 + $0x14] sm:$0x1]
      %v5907 = vld [vmem:[%s4632 + $0x18] sm:$0xe]
      %v5908 = vld [vmem:[%s4632 + $0x1c] sm:$0xf]
      %v5909 = vld [vmem:[%s4632 + $0x20] sm:$0x1]
      %v5910 = vld [vmem:[%s4632 + $0x24] sm:$0xe]
      %v5911 = vld [vmem:[%s4632 + $0x28] sm:$0xf]
      %v5912 = vld [vmem:[%s4632 + $0x2c] sm:$0x1]
      %v5913 = vld [vmem:[%s4632 + $0x30] sm:$0xe]
      %v5914 = vld [vmem:[%s4632 + $0x34] sm:$0xf]
      %v5915 = vld [vmem:[%s4632 + $0x38] sm:$0x1]
      %v5916 = vld [vmem:[%s4632 + $0x3c] sm:$0xe]
      %v5917 = vld [vmem:[%s4632 + $0x40] sm:$0xf]
      %v5918 = vld [vmem:[%s4632 + $0x44] sm:$0x1]
      %v5919 = vld [vmem:[%s4632 + $0x48] sm:$0xe]
      %v5920 = vld [vmem:[%s4632 + $0x4c] sm:$0xf]
      %v5921 = vld [vmem:[%s4632 + $0x50] sm:$0x1]
      %v5922 = vld [vmem:[%s4632 + $0x54] sm:$0xe]
      %v5923 = vld [vmem:[%s4632 + $0x58] sm:$0xf]
      %v5924 = vld [vmem:[%s4632 + $0x5c] sm:$0x1]
      %v5925 = vld [vmem:[%s4632 + $0x60] sm:$0xe]
      %v5926 = vld [vmem:[%s4632 + $0x64] sm:$0xf]
      %v5927 = vld [vmem:[%s4632 + $0x68] sm:$0x1]
      %v5928 = vld [vmem:[%s4632 + $0x6c] sm:$0xe]
      %v5929 = vld [vmem:[%s4632 + $0x70] sm:$0xf]
      %v5930 = vld [vmem:[%s4632 + $0x74] sm:$0x1]
      %v5931 = vld [vmem:[%s4632 + $0x78] sm:$0xe]
      %v5932 = vld [vmem:[%s4632 + $0x7c] sm:$0xf]
      %v5933 = vld [vmem:[%s4632 + $0x80] sm:$0x1]
      %v5934 = vld [vmem:[%s4632 + $0x84] sm:$0xe]
      %v5935 = vld [vmem:[%s4632 + $0x88] sm:$0xf]
      %v5936 = vld [vmem:[%s4632 + $0x8c] sm:$0x1]
      %v5937 = vld [vmem:[%s4632 + $0x90] sm:$0xe]
      %v5938 = vld [vmem:[%s4632 + $0x94] sm:$0xf]
      %v5939 = vld [vmem:[%s4632 + $0x98] sm:$0x1]
      %v5940 = vld [vmem:[%s4632 + $0x9c] sm:$0xe]
      %v5941 = vld [vmem:[%s4632 + $0xa0] sm:$0xf]
      %v5942 = vld [vmem:[%s4632 + $0xa4] sm:$0x1]
      %v5943 = vld [vmem:[%s4632 + $0xa8] sm:$0xe]
      %v5944 = vld [vmem:[%s4632 + $0xac] sm:$0xf]
      %v5945 = vld [vmem:[%s4632 + $0xb0] sm:$0x1]
      %v5946 = vld [vmem:[%s4632 + $0xb4] sm:$0xe]
      %v5947 = vld [vmem:[%s4632 + $0xb8] sm:$0xf]
      %v5948 = vld [vmem:[%s4632 + $0xbc] sm:$0x1]
      %v5949 = vld [vmem:[#allocation3] sm:$0xff]
      %v5950 = vld [vmem:[#allocation3 + $0x8] sm:$0xff]
      %v5951 = vld [vmem:[#allocation3 + $0x10] sm:$0xff]
      %v5952 = vld [vmem:[#allocation3 + $0x18] sm:$0xff]
      %v5953 = vld [vmem:[#allocation3 + $0x20] sm:$0xff]
      %v5954 = vld [vmem:[#allocation3 + $0x28] sm:$0xff]
      %v5955 = vld [vmem:[#allocation3 + $0x30] sm:$0xff]
      %v5956 = vld [vmem:[#allocation3 + $0x38] sm:$0xff]
      %v5957 = vld [vmem:[#allocation3 + $0x40] sm:$0xff]
      %v5958 = vld [vmem:[#allocation3 + $0x48] sm:$0xff]
      %v5959 = vld [vmem:[#allocation3 + $0x50] sm:$0xff]
      %v5960 = vld [vmem:[#allocation3 + $0x58] sm:$0xff]
      %v5961 = vld [vmem:[#allocation3 + $0x60] sm:$0xff]
      %v5962 = vld [vmem:[#allocation3 + $0x68] sm:$0xff]
      %v5963 = vld [vmem:[#allocation3 + $0x70] sm:$0xff]
      %v5964 = vld [vmem:[#allocation3 + $0x78] sm:$0xff]
      %v5965 = vld [vmem:[#allocation3 + $0x80] sm:$0xff]
      %v5966 = vld [vmem:[#allocation3 + $0x88] sm:$0xff]
      %v5967 = vld [vmem:[#allocation3 + $0x90] sm:$0xff]
      %v5968 = vld [vmem:[#allocation3 + $0x98] sm:$0xff]
      %v5969 = vld [vmem:[#allocation3 + $0xa0] sm:$0xff]
      %v5970 = vld [vmem:[#allocation3 + $0xa8] sm:$0xff]
      %v5971 = vld [vmem:[#allocation3 + $0xb0] sm:$0xff]
      %v5972 = vld [vmem:[#allocation3 + $0xb8] sm:$0xff]
      %v5973 = vld [vmem:[#allocation3 + $0xc0] sm:$0xff]
      %v5974 = vld [vmem:[#allocation3 + $0xc8] sm:$0xff]
      %v5975 = vld [vmem:[#allocation3 + $0xd0] sm:$0xff]
      %v5976 = vld [vmem:[#allocation3 + $0xd8] sm:$0xff]
      %v5977 = vld [vmem:[#allocation3 + $0xe0] sm:$0xff]
      %v5978 = vld [vmem:[#allocation3 + $0xe8] sm:$0xff]
      %v5979 = vld [vmem:[#allocation3 + $0xf0] sm:$0xff]
      %v5980 = vld [vmem:[#allocation3 + $0xf8] sm:$0xff]
      %v6029 = vrot.slane %v5901, 5
      %v6030 = vrot.slane %v6029, 4
      %v6031 = vrot.slane %v5902, 5
      %v6032 = vsel %vm2302, %v6030, %v6031
      %v6033 = vrot.slane %v6031, 4
      %v6034 = vrot.slane %v5903, 5
      %v6035 = vsel %vm2302, %v6033, %v6034
      %v6036 = vrot.slane %v5904, 5
      %v6037 = vrot.slane %v6036, 4
      %v6038 = vrot.slane %v5905, 5
      %v6039 = vsel %vm2302, %v6037, %v6038
      %v6040 = vrot.slane %v6038, 4
      %v6041 = vrot.slane %v5906, 5
      %v6042 = vsel %vm2302, %v6040, %v6041
      %v6043 = vrot.slane %v5907, 5
      %v6044 = vrot.slane %v6043, 4
      %v6045 = vrot.slane %v5908, 5
      %v6046 = vsel %vm2302, %v6044, %v6045
      %v6047 = vrot.slane %v6045, 4
      %v6048 = vrot.slane %v5909, 5
      %v6049 = vsel %vm2302, %v6047, %v6048
      %v6050 = vrot.slane %v5910, 5
      %v6051 = vrot.slane %v6050, 4
      %v6052 = vrot.slane %v5911, 5
      %v6053 = vsel %vm2302, %v6051, %v6052
      %v6054 = vrot.slane %v6052, 4
      %v6055 = vrot.slane %v5912, 5
      %v6056 = vsel %vm2302, %v6054, %v6055
      %v6057 = vrot.slane %v5913, 5
      %v6058 = vrot.slane %v6057, 4
      %v6059 = vrot.slane %v5914, 5
      %v6060 = vsel %vm2302, %v6058, %v6059
      %v6061 = vrot.slane %v6059, 4
      %v6062 = vrot.slane %v5915, 5
      %v6063 = vsel %vm2302, %v6061, %v6062
      %v6064 = vrot.slane %v5916, 5
      %v6065 = vrot.slane %v6064, 4
      %v6066 = vrot.slane %v5917, 5
      %v6067 = vsel %vm2302, %v6065, %v6066
      %v6068 = vrot.slane %v6066, 4
      %v6069 = vrot.slane %v5918, 5
      %v6070 = vsel %vm2302, %v6068, %v6069
      %v6071 = vrot.slane %v5919, 5
      %v6072 = vrot.slane %v6071, 4
      %v6073 = vrot.slane %v5920, 5
      %v6074 = vsel %vm2302, %v6072, %v6073
      %v6075 = vrot.slane %v6073, 4
      %v6076 = vrot.slane %v5921, 5
      %v6077 = vsel %vm2302, %v6075, %v6076
      %v6078 = vrot.slane %v5922, 5
      %v6079 = vrot.slane %v6078, 4
      %v6080 = vrot.slane %v5923, 5
      %v6081 = vsel %vm2302, %v6079, %v6080
      %v6082 = vrot.slane %v6080, 4
      %v6083 = vrot.slane %v5924, 5
      %v6084 = vsel %vm2302, %v6082, %v6083
      %v6085 = vrot.slane %v5925, 5
      %v6086 = vrot.slane %v6085, 4
      %v6087 = vrot.slane %v5926, 5
      %v6088 = vsel %vm2302, %v6086, %v6087
      %v6089 = vrot.slane %v6087, 4
      %v6090 = vrot.slane %v5927, 5
      %v6091 = vsel %vm2302, %v6089, %v6090
      %v6092 = vrot.slane %v5928, 5
      %v6093 = vrot.slane %v6092, 4
      %v6094 = vrot.slane %v5929, 5
      %v6095 = vsel %vm2302, %v6093, %v6094
      %v6096 = vrot.slane %v6094, 4
      %v6097 = vrot.slane %v5930, 5
      %v6098 = vsel %vm2302, %v6096, %v6097
      %v6099 = vrot.slane %v5931, 5
      %v6100 = vrot.slane %v6099, 4
      %v6101 = vrot.slane %v5932, 5
      %v6102 = vsel %vm2302, %v6100, %v6101
      %v6103 = vrot.slane %v6101, 4
      %v6104 = vrot.slane %v5933, 5
      %v6105 = vsel %vm2302, %v6103, %v6104
      %v6106 = vrot.slane %v5934, 5
      %v6107 = vrot.slane %v6106, 4
      %v6108 = vrot.slane %v5935, 5
      %v6109 = vsel %vm2302, %v6107, %v6108
      %v6110 = vrot.slane %v6108, 4
      %v6111 = vrot.slane %v5936, 5
      %v6112 = vsel %vm2302, %v6110, %v6111
      %v6113 = vrot.slane %v5937, 5
      %v6114 = vrot.slane %v6113, 4
      %v6115 = vrot.slane %v5938, 5
      %v6116 = vsel %vm2302, %v6114, %v6115
      %v6117 = vrot.slane %v6115, 4
      %v6118 = vrot.slane %v5939, 5
      %v6119 = vsel %vm2302, %v6117, %v6118
      %v6120 = vrot.slane %v5940, 5
      %v6121 = vrot.slane %v6120, 4
      %v6122 = vrot.slane %v5941, 5
      %v6123 = vsel %vm2302, %v6121, %v6122
      %v6124 = vrot.slane %v6122, 4
      %v6125 = vrot.slane %v5942, 5
      %v6126 = vsel %vm2302, %v6124, %v6125
      %v6127 = vrot.slane %v5943, 5
      %v6128 = vrot.slane %v6127, 4
      %v6129 = vrot.slane %v5944, 5
      %v6130 = vsel %vm2302, %v6128, %v6129
      %v6131 = vrot.slane %v6129, 4
      %v6132 = vrot.slane %v5945, 5
      %v6133 = vsel %vm2302, %v6131, %v6132
      %v6134 = vrot.slane %v5946, 5
      %v6135 = vrot.slane %v6134, 4
      %v6136 = vrot.slane %v5947, 5
      %v6137 = vsel %vm2302, %v6135, %v6136
      %v6138 = vrot.slane %v6136, 4
      %v6139 = vrot.slane %v5948, 5
      %v6140 = vsel %vm2302, %v6138, %v6139
      %s6141 = scalar_lea.vmem %s1, 512
      %v6142 = vld [vmem:[%s6141] sm:$0xf]
      %v6143 = vld [vmem:[%s6141 + $0x4] sm:$0xf]
      %v6144 = vld [vmem:[%s6141 + $0x8] sm:$0xf]
      %v6145 = vld [vmem:[%s6141 + $0xc] sm:$0xf]
      %v6146 = vld [vmem:[%s6141 + $0x10] sm:$0xf]
      %v6147 = vld [vmem:[%s6141 + $0x14] sm:$0xf]
      %v6148 = vld [vmem:[%s6141 + $0x18] sm:$0xf]
      %v6149 = vld [vmem:[%s6141 + $0x1c] sm:$0xf]
      %v6150 = vld [vmem:[%s6141 + $0x20] sm:$0xf]
      %v6151 = vld [vmem:[%s6141 + $0x24] sm:$0xf]
      %v6152 = vld [vmem:[%s6141 + $0x28] sm:$0xf]
      %v6153 = vld [vmem:[%s6141 + $0x2c] sm:$0xf]
      %v6154 = vld [vmem:[%s6141 + $0x30] sm:$0xf]
      %v6155 = vld [vmem:[%s6141 + $0x34] sm:$0xf]
      %v6156 = vld [vmem:[%s6141 + $0x38] sm:$0xf]
      %v6157 = vld [vmem:[%s6141 + $0x3c] sm:$0xf]
      %v6158 = vunpack.c.l.b16 %v6032
      %v6159 = vunpack.c.l.b16 %v6035
      %v6160 = vunpack.c.l.b16 %v6039
      %v6161 = vunpack.c.l.b16 %v6042
      %v6162 = vunpack.c.l.b16 %v6046
      %v6163 = vunpack.c.l.b16 %v6049
      %v6164 = vunpack.c.l.b16 %v6053
      %v6165 = vunpack.c.l.b16 %v6056
      %v6166 = vunpack.c.l.b16 %v6060
      %v6167 = vunpack.c.l.b16 %v6063
      %v6168 = vunpack.c.l.b16 %v6067
      %v6169 = vunpack.c.l.b16 %v6070
      %v6170 = vunpack.c.l.b16 %v6074
      %v6171 = vunpack.c.l.b16 %v6077
      %v6172 = vunpack.c.l.b16 %v6081
      %v6173 = vunpack.c.l.b16 %v6084
      %v6174 = vunpack.c.l.b16 %v6088
      %v6175 = vunpack.c.l.b16 %v6091
      %v6176 = vunpack.c.l.b16 %v6095
      %v6177 = vunpack.c.l.b16 %v6098
      %v6178 = vunpack.c.l.b16 %v6102
      %v6179 = vunpack.c.l.b16 %v6105
      %v6180 = vunpack.c.l.b16 %v6109
      %v6181 = vunpack.c.l.b16 %v6112
      %v6182 = vunpack.c.l.b16 %v6116
      %v6183 = vunpack.c.l.b16 %v6119
      %v6184 = vunpack.c.l.b16 %v6123
      %v6185 = vunpack.c.l.b16 %v6126
      %v6186 = vunpack.c.l.b16 %v6130
      %v6187 = vunpack.c.l.b16 %v6133
      %v6188 = vunpack.c.l.b16 %v6137
      %v6189 = vunpack.c.l.b16 %v6140
      %v6190 = vpack.c.b16 %v6159, %v6158
      %v6191 = vpack.c.b16 %v6161, %v6160
      %v6192 = vpack.c.b16 %v6163, %v6162
      %v6193 = vpack.c.b16 %v6165, %v6164
      %v6194 = vpack.c.b16 %v6167, %v6166
      %v6195 = vpack.c.b16 %v6169, %v6168
      %v6196 = vpack.c.b16 %v6171, %v6170
      %v6197 = vpack.c.b16 %v6173, %v6172
      %v6198 = vpack.c.b16 %v6175, %v6174
      %v6199 = vpack.c.b16 %v6177, %v6176
      %v6200 = vpack.c.b16 %v6179, %v6178
      %v6201 = vpack.c.b16 %v6181, %v6180
      %v6202 = vpack.c.b16 %v6183, %v6182
      %v6203 = vpack.c.b16 %v6185, %v6184
      %v6204 = vpack.c.b16 %v6187, %v6186
      %v6205 = vpack.c.b16 %v6189, %v6188
      %v6238 = vunpack.c.l.b16 %v6142
      %v6239 = vunpack.c.l.b16 %v6143
      %v6240 = vunpack.c.l.b16 %v6144
      %v6241 = vunpack.c.l.b16 %v6145
      %v6242 = vunpack.c.l.b16 %v6146
      %v6243 = vunpack.c.l.b16 %v6147
      %v6244 = vunpack.c.l.b16 %v6148
      %v6245 = vunpack.c.l.b16 %v6149
      %v6246 = vunpack.c.l.b16 %v6150
      %v6247 = vunpack.c.l.b16 %v6151
      %v6248 = vunpack.c.l.b16 %v6152
      %v6249 = vunpack.c.l.b16 %v6153
      %v6250 = vunpack.c.l.b16 %v6154
      %v6251 = vunpack.c.l.b16 %v6155
      %v6252 = vunpack.c.l.b16 %v6156
      %v6253 = vunpack.c.l.b16 %v6157
      %v6254 = vpack.c.b16 %v6239, %v6238
      %v6255 = vpack.c.b16 %v6241, %v6240
      %v6256 = vpack.c.b16 %v6243, %v6242
      %v6257 = vpack.c.b16 %v6245, %v6244
      %v6258 = vpack.c.b16 %v6247, %v6246
      %v6259 = vpack.c.b16 %v6249, %v6248
      %v6260 = vpack.c.b16 %v6251, %v6250
      %v6261 = vpack.c.b16 %v6253, %v6252
      %6270 = vmatprep.subr.bf16.mxu0 0
      %6271 = vmatpush1.bf16.msra.mxu0 %v6254
      %6272 = vmatprep.subr.bf16.mxu0 0
      %6273 = vmatpush1.bf16.msra.mxu0 %v6255
      %6274 = vmatprep.subr.bf16.mxu0 0
      %6275 = vmatpush1.bf16.msra.mxu0 %v6256
      %6276 = vmatprep.subr.bf16.mxu0 0
      %6277 = vmatpush1.bf16.msra.mxu0 %v6257
      %6278 = vmatprep.subr.bf16.mxu0 0
      %6279 = vmatpush1.bf16.msra.mxu0 %v6258
      %6280 = vmatprep.subr.bf16.mxu0 0
      %6281 = vmatpush1.bf16.msra.mxu0 %v6259
      %6282 = vmatprep.subr.bf16.mxu0 0
      %6283 = vmatpush1.bf16.msra.mxu0 %v6260
      %6284 = vmatprep.subr.bf16.mxu0 0
      %6285 = vmatpush1.bf16.msra.mxu0 %v6261
      %6286 = vmatprep.subr.bf16.mxu0 0
      %6287 = vmatpush1.bf16.msra.mxu0 0
      %6288 = vmatprep.subr.bf16.mxu0 0
      %6289 = vmatpush1.bf16.msra.mxu0 0
      %6290 = vmatprep.subr.bf16.mxu0 0
      %6291 = vmatpush1.bf16.msra.mxu0 0
      %6292 = vmatprep.subr.bf16.mxu0 0
      %6293 = vmatpush1.bf16.msra.mxu0 0
      %6294 = vmatprep.subr.bf16.mxu0 0
      %6295 = vmatpush1.bf16.msra.mxu0 0
      %6296 = vmatprep.subr.bf16.mxu0 0
      %6297 = vmatpush1.bf16.msra.mxu0 0
      %6298 = vmatprep.subr.bf16.mxu0 0
      %6299 = vmatpush1.bf16.msra.mxu0 0
      %6300 = vmatprep.subr.bf16.mxu0 0
      %6301 = vmatpush1.bf16.msra.mxu0 0
      %6302 = vmatprep.mubr.bf16.mxu0 0
      %6303 = vmatmul.mubr.bf16.gmra.mrb[0].mxu0 %v6190
      %v6304 = vpop.f32.mrb[0].mxu0
      %v6305 = vadd.f32 0.0, %v6304
      %v6306 = vpop.f32.mrb[0].mxu0
      %v6307 = vpop.f32.mrb[0].mxu0
      %v6308 = vadd.f32 0.0, %v6307
      %v6309 = vpop.f32.mrb[0].mxu0
      %6310 = vmatprep.mubr.bf16.mxu0 0
      %6311 = vmatmul.mubr.bf16.gmra.mrb[0].mxu0 %v6191
      %v6312 = vpop.f32.mrb[0].mxu0
      %v6313 = vadd.f32 0.0, %v6312
      %v6314 = vpop.f32.mrb[0].mxu0
      %v6315 = vpop.f32.mrb[0].mxu0
      %v6316 = vadd.f32 0.0, %v6315
      %v6317 = vpop.f32.mrb[0].mxu0
      %6318 = vmatprep.mubr.bf16.mxu0 0
      %6319 = vmatmul.mubr.bf16.gmra.mrb[0].mxu0 %v6192
      %v6320 = vpop.f32.mrb[0].mxu0
      %v6321 = vadd.f32 0.0, %v6320
      %v6322 = vpop.f32.mrb[0].mxu0
      %v6323 = vpop.f32.mrb[0].mxu0
      %v6324 = vadd.f32 0.0, %v6323
      %v6325 = vpop.f32.mrb[0].mxu0
      %6326 = vmatprep.mubr.bf16.mxu0 0
      %6327 = vmatmul.mubr.bf16.gmra.mrb[0].mxu0 %v6193
      %v6328 = vpop.f32.mrb[0].mxu0
      %v6329 = vadd.f32 0.0, %v6328
      %v6330 = vpop.f32.mrb[0].mxu0
      %v6331 = vpop.f32.mrb[0].mxu0
      %v6332 = vadd.f32 0.0, %v6331
      %v6333 = vpop.f32.mrb[0].mxu0
      %6334 = vmatprep.mubr.bf16.mxu0 0
      %6335 = vmatmul.mubr.bf16.gmra.mrb[0].mxu0 %v6194
      %v6336 = vpop.f32.mrb[0].mxu0
      %v6337 = vadd.f32 0.0, %v6336
      %v6338 = vpop.f32.mrb[0].mxu0
      %v6339 = vpop.f32.mrb[0].mxu0
      %v6340 = vadd.f32 0.0, %v6339
      %v6341 = vpop.f32.mrb[0].mxu0
      %6342 = vmatprep.mubr.bf16.mxu0 0
      %6343 = vmatmul.mubr.bf16.gmra.mrb[0].mxu0 %v6195
      %v6344 = vpop.f32.mrb[0].mxu0
      %v6345 = vadd.f32 0.0, %v6344
      %v6346 = vpop.f32.mrb[0].mxu0
      %v6347 = vpop.f32.mrb[0].mxu0
      %v6348 = vadd.f32 0.0, %v6347
      %v6349 = vpop.f32.mrb[0].mxu0
      %6350 = vmatprep.mubr.bf16.mxu0 0
      %6351 = vmatmul.mubr.bf16.gmra.mrb[0].mxu0 %v6196
      %v6352 = vpop.f32.mrb[0].mxu0
      %v6353 = vadd.f32 0.0, %v6352
      %v6354 = vpop.f32.mrb[0].mxu0
      %v6355 = vpop.f32.mrb[0].mxu0
      %v6356 = vadd.f32 0.0, %v6355
      %v6357 = vpop.f32.mrb[0].mxu0
      %6358 = vmatprep.mubr.bf16.mxu0 0
      %6359 = vmatmul.mubr.bf16.gmra.mrb[0].mxu0 %v6197
      %v6360 = vpop.f32.mrb[0].mxu0
      %v6361 = vadd.f32 0.0, %v6360
      %v6362 = vpop.f32.mrb[0].mxu0
      %v6363 = vpop.f32.mrb[0].mxu0
      %v6364 = vadd.f32 0.0, %v6363
      %v6365 = vpop.f32.mrb[0].mxu0
      %6366 = vmatprep.mubr.bf16.mxu0 0
      %6367 = vmatmul.mubr.bf16.gmra.mrb[0].mxu0 %v6198
      %v6368 = vpop.f32.mrb[0].mxu0
      %v6369 = vadd.f32 0.0, %v6368
      %v6370 = vpop.f32.mrb[0].mxu0
      %v6371 = vpop.f32.mrb[0].mxu0
      %v6372 = vadd.f32 0.0, %v6371
      %v6373 = vpop.f32.mrb[0].mxu0
      %6374 = vmatprep.mubr.bf16.mxu0 0
      %6375 = vmatmul.mubr.bf16.gmra.mrb[0].mxu0 %v6199
      %v6376 = vpop.f32.mrb[0].mxu0
      %v6377 = vadd.f32 0.0, %v6376
      %v6378 = vpop.f32.mrb[0].mxu0
      %v6379 = vpop.f32.mrb[0].mxu0
      %v6380 = vadd.f32 0.0, %v6379
      %v6381 = vpop.f32.mrb[0].mxu0
      %6382 = vmatprep.mubr.bf16.mxu0 0
      %6383 = vmatmul.mubr.bf16.gmra.mrb[0].mxu0 %v6200
      %v6384 = vpop.f32.mrb[0].mxu0
      %v6385 = vadd.f32 0.0, %v6384
      %v6386 = vpop.f32.mrb[0].mxu0
      %v6387 = vpop.f32.mrb[0].mxu0
      %v6388 = vadd.f32 0.0, %v6387
      %v6389 = vpop.f32.mrb[0].mxu0
      %6390 = vmatprep.mubr.bf16.mxu0 0
      %6391 = vmatmul.mubr.bf16.gmra.mrb[0].mxu0 %v6201
      %v6392 = vpop.f32.mrb[0].mxu0
      %v6393 = vadd.f32 0.0, %v6392
      %v6394 = vpop.f32.mrb[0].mxu0
      %v6395 = vpop.f32.mrb[0].mxu0
      %v6396 = vadd.f32 0.0, %v6395
      %v6397 = vpop.f32.mrb[0].mxu0
      %6398 = vmatprep.mubr.bf16.mxu0 0
      %6399 = vmatmul.mubr.bf16.gmra.mrb[0].mxu0 %v6202
      %v6400 = vpop.f32.mrb[0].mxu0
      %v6401 = vadd.f32 0.0, %v6400
      %v6402 = vpop.f32.mrb[0].mxu0
      %v6403 = vpop.f32.mrb[0].mxu0
      %v6404 = vadd.f32 0.0, %v6403
      %v6405 = vpop.f32.mrb[0].mxu0
      %6406 = vmatprep.mubr.bf16.mxu0 0
      %6407 = vmatmul.mubr.bf16.gmra.mrb[0].mxu0 %v6203
      %v6408 = vpop.f32.mrb[0].mxu0
      %v6409 = vadd.f32 0.0, %v6408
      %v6410 = vpop.f32.mrb[0].mxu0
      %v6411 = vpop.f32.mrb[0].mxu0
      %v6412 = vadd.f32 0.0, %v6411
      %v6413 = vpop.f32.mrb[0].mxu0
      %6414 = vmatprep.mubr.bf16.mxu0 0
      %6415 = vmatmul.mubr.bf16.gmra.mrb[0].mxu0 %v6204
      %v6416 = vpop.f32.mrb[0].mxu0
      %v6417 = vadd.f32 0.0, %v6416
      %v6418 = vpop.f32.mrb[0].mxu0
      %v6419 = vpop.f32.mrb[0].mxu0
      %v6420 = vadd.f32 0.0, %v6419
      %v6421 = vpop.f32.mrb[0].mxu0
      %6422 = vmatprep.mubr.bf16.mxu0 0
      %6423 = vmatmul.mubr.bf16.gmra.mrb[0].mxu0 %v6205
      %v6424 = vpop.f32.mrb[0].mxu0
      %v6425 = vadd.f32 0.0, %v6424
      %v6426 = vpop.f32.mrb[0].mxu0
      %v6427 = vpop.f32.mrb[0].mxu0
      %v6428 = vadd.f32 0.0, %v6427
      %v6429 = vpop.f32.mrb[0].mxu0
      %6430 = vdwg.mxu0
      %v6431 = vadd.f32 %v5949, %v6305
      %v6432 = vadd.f32 %v5950, %v6308
      %v6433 = vadd.f32 %v5951, %v6313
      %v6434 = vadd.f32 %v5952, %v6316
      %v6435 = vadd.f32 %v5953, %v6321
      %v6436 = vadd.f32 %v5954, %v6324
      %v6437 = vadd.f32 %v5955, %v6329
      %v6438 = vadd.f32 %v5956, %v6332
      %v6439 = vadd.f32 %v5957, %v6337
      %v6440 = vadd.f32 %v5958, %v6340
      %v6441 = vadd.f32 %v5959, %v6345
      %v6442 = vadd.f32 %v5960, %v6348
      %v6443 = vadd.f32 %v5961, %v6353
      %v6444 = vadd.f32 %v5962, %v6356
      %v6445 = vadd.f32 %v5963, %v6361
      %v6446 = vadd.f32 %v5964, %v6364
      %v6447 = vadd.f32 %v5965, %v6369
      %v6448 = vadd.f32 %v5966, %v6372
      %v6449 = vadd.f32 %v5967, %v6377
      %v6450 = vadd.f32 %v5968, %v6380
      %v6451 = vadd.f32 %v5969, %v6385
      %v6452 = vadd.f32 %v5970, %v6388
      %v6453 = vadd.f32 %v5971, %v6393
      %v6454 = vadd.f32 %v5972, %v6396
      %v6455 = vadd.f32 %v5973, %v6401
      %v6456 = vadd.f32 %v5974, %v6404
      %v6457 = vadd.f32 %v5975, %v6409
      %v6458 = vadd.f32 %v5976, %v6412
      %v6459 = vadd.f32 %v5977, %v6417
      %v6460 = vadd.f32 %v5978, %v6420
      %v6461 = vadd.f32 %v5979, %v6425
      %v6462 = vadd.f32 %v5980, %v6428
      %6463 = vst [vmem:[#allocation3] sm:$0xff] %v6431
      %6464 = vst [vmem:[#allocation3 + $0x8] sm:$0xff] %v6432
      %6465 = vst [vmem:[#allocation3 + $0x10] sm:$0xff] %v6433
      %6466 = vst [vmem:[#allocation3 + $0x18] sm:$0xff] %v6434
      %6467 = vst [vmem:[#allocation3 + $0x20] sm:$0xff] %v6435
      %6468 = vst [vmem:[#allocation3 + $0x28] sm:$0xff] %v6436
      %6469 = vst [vmem:[#allocation3 + $0x30] sm:$0xff] %v6437
      %6470 = vst [vmem:[#allocation3 + $0x38] sm:$0xff] %v6438
      %6471 = vst [vmem:[#allocation3 + $0x40] sm:$0xff] %v6439
      %6472 = vst [vmem:[#allocation3 + $0x48] sm:$0xff] %v6440
      %6473 = vst [vmem:[#allocation3 + $0x50] sm:$0xff] %v6441
      %6474 = vst [vmem:[#allocation3 + $0x58] sm:$0xff] %v6442
      %6475 = vst [vmem:[#allocation3 + $0x60] sm:$0xff] %v6443
      %6476 = vst [vmem:[#allocation3 + $0x68] sm:$0xff] %v6444
      %6477 = vst [vmem:[#allocation3 + $0x70] sm:$0xff] %v6445
      %6478 = vst [vmem:[#allocation3 + $0x78] sm:$0xff] %v6446
      %6479 = vst [vmem:[#allocation3 + $0x80] sm:$0xff] %v6447
      %6480 = vst [vmem:[#allocation3 + $0x88] sm:$0xff] %v6448
      %6481 = vst [vmem:[#allocation3 + $0x90] sm:$0xff] %v6449
      %6482 = vst [vmem:[#allocation3 + $0x98] sm:$0xff] %v6450
      %6483 = vst [vmem:[#allocation3 + $0xa0] sm:$0xff] %v6451
      %6484 = vst [vmem:[#allocation3 + $0xa8] sm:$0xff] %v6452
      %6485 = vst [vmem:[#allocation3 + $0xb0] sm:$0xff] %v6453
      %6486 = vst [vmem:[#allocation3 + $0xb8] sm:$0xff] %v6454
      %6487 = vst [vmem:[#allocation3 + $0xc0] sm:$0xff] %v6455
      %6488 = vst [vmem:[#allocation3 + $0xc8] sm:$0xff] %v6456
      %6489 = vst [vmem:[#allocation3 + $0xd0] sm:$0xff] %v6457
      %6490 = vst [vmem:[#allocation3 + $0xd8] sm:$0xff] %v6458
      %6491 = vst [vmem:[#allocation3 + $0xe0] sm:$0xff] %v6459
      %6492 = vst [vmem:[#allocation3 + $0xe8] sm:$0xff] %v6460
      %6493 = vst [vmem:[#allocation3 + $0xf0] sm:$0xff] %v6461
      %6494 = vst [vmem:[#allocation3 + $0xf8] sm:$0xff] %v6462
      %v6495 = vld [vmem:[#allocation3] sm:$0xff]
      %v6496 = vld [vmem:[#allocation3 + $0x8] sm:$0xff]
      %v6497 = vld [vmem:[#allocation3 + $0x10] sm:$0xff]
      %v6498 = vld [vmem:[#allocation3 + $0x18] sm:$0xff]
      %v6499 = vld [vmem:[#allocation3 + $0x20] sm:$0xff]
      %v6500 = vld [vmem:[#allocation3 + $0x28] sm:$0xff]
      %v6501 = vld [vmem:[#allocation3 + $0x30] sm:$0xff]
      %v6502 = vld [vmem:[#allocation3 + $0x38] sm:$0xff]
      %v6503 = vld [vmem:[#allocation3 + $0x40] sm:$0xff]
      %v6504 = vld [vmem:[#allocation3 + $0x48] sm:$0xff]
      %v6505 = vld [vmem:[#allocation3 + $0x50] sm:$0xff]
      %v6506 = vld [vmem:[#allocation3 + $0x58] sm:$0xff]
      %v6507 = vld [vmem:[#allocation3 + $0x60] sm:$0xff]
      %v6508 = vld [vmem:[#allocation3 + $0x68] sm:$0xff]
      %v6509 = vld [vmem:[#allocation3 + $0x70] sm:$0xff]
      %v6510 = vld [vmem:[#allocation3 + $0x78] sm:$0xff]
      %v6511 = vld [vmem:[#allocation3 + $0x80] sm:$0xff]
      %v6512 = vld [vmem:[#allocation3 + $0x88] sm:$0xff]
      %v6513 = vld [vmem:[#allocation3 + $0x90] sm:$0xff]
      %v6514 = vld [vmem:[#allocation3 + $0x98] sm:$0xff]
      %v6515 = vld [vmem:[#allocation3 + $0xa0] sm:$0xff]
      %v6516 = vld [vmem:[#allocation3 + $0xa8] sm:$0xff]
      %v6517 = vld [vmem:[#allocation3 + $0xb0] sm:$0xff]
      %v6518 = vld [vmem:[#allocation3 + $0xb8] sm:$0xff]
      %v6519 = vld [vmem:[#allocation3 + $0xc0] sm:$0xff]
      %v6520 = vld [vmem:[#allocation3 + $0xc8] sm:$0xff]
      %v6521 = vld [vmem:[#allocation3 + $0xd0] sm:$0xff]
      %v6522 = vld [vmem:[#allocation3 + $0xd8] sm:$0xff]
      %v6523 = vld [vmem:[#allocation3 + $0xe0] sm:$0xff]
      %v6524 = vld [vmem:[#allocation3 + $0xe8] sm:$0xff]
      %v6525 = vld [vmem:[#allocation3 + $0xf0] sm:$0xff]
      %v6526 = vld [vmem:[#allocation3 + $0xf8] sm:$0xff]
      %v6527 = vld [vmem:[%s2] sm:$0x1]
      %v6529 = vlaneseq
      %v6530 = vshrl.u32 %v6529, 7
      %v6531 = vsub.s32 0, %v6530
      %v6532 = vrot.slane %v6527, %v6531
      %v6534 = vadd.f32 %v6495, %v6532
      %v6535 = vadd.f32 %v6496, %v6532
      %v6536 = vadd.f32 %v6497, %v6532
      %v6537 = vadd.f32 %v6498, %v6532
      %v6538 = vadd.f32 %v6499, %v6532
      %v6539 = vadd.f32 %v6500, %v6532
      %v6540 = vadd.f32 %v6501, %v6532
      %v6541 = vadd.f32 %v6502, %v6532
      %v6542 = vadd.f32 %v6503, %v6532
      %v6543 = vadd.f32 %v6504, %v6532
      %v6544 = vadd.f32 %v6505, %v6532
      %v6545 = vadd.f32 %v6506, %v6532
      %v6546 = vadd.f32 %v6507, %v6532
      %v6547 = vadd.f32 %v6508, %v6532
      %v6548 = vadd.f32 %v6509, %v6532
      %v6549 = vadd.f32 %v6510, %v6532
      %v6550 = vadd.f32 %v6511, %v6532
      %v6551 = vadd.f32 %v6512, %v6532
      %v6552 = vadd.f32 %v6513, %v6532
      %v6553 = vadd.f32 %v6514, %v6532
      %v6554 = vadd.f32 %v6515, %v6532
      %v6555 = vadd.f32 %v6516, %v6532
      %v6556 = vadd.f32 %v6517, %v6532
      %v6557 = vadd.f32 %v6518, %v6532
      %v6558 = vadd.f32 %v6519, %v6532
      %v6559 = vadd.f32 %v6520, %v6532
      %v6560 = vadd.f32 %v6521, %v6532
      %v6561 = vadd.f32 %v6522, %v6532
      %v6562 = vadd.f32 %v6523, %v6532
      %v6563 = vadd.f32 %v6524, %v6532
      %v6564 = vadd.f32 %v6525, %v6532
      %v6565 = vadd.f32 %v6526, %v6532
      %6566 = vst [vmem:[%s258] sm:$0xff] %v6534
      %6567 = vst [vmem:[%s258 + $0x8] sm:$0xff] %v6535
      %6568 = vst [vmem:[%s258 + $0x10] sm:$0xff] %v6536
      %6569 = vst [vmem:[%s258 + $0x18] sm:$0xff] %v6537
      %6570 = vst [vmem:[%s258 + $0x20] sm:$0xff] %v6538
      %6571 = vst [vmem:[%s258 + $0x28] sm:$0xff] %v6539
      %6572 = vst [vmem:[%s258 + $0x30] sm:$0xff] %v6540
      %6573 = vst [vmem:[%s258 + $0x38] sm:$0xff] %v6541
      %6574 = vst [vmem:[%s258 + $0x40] sm:$0xff] %v6542
      %6575 = vst [vmem:[%s258 + $0x48] sm:$0xff] %v6543
      %6576 = vst [vmem:[%s258 + $0x50] sm:$0xff] %v6544
      %6577 = vst [vmem:[%s258 + $0x58] sm:$0xff] %v6545
      %6578 = vst [vmem:[%s258 + $0x60] sm:$0xff] %v6546
      %6579 = vst [vmem:[%s258 + $0x68] sm:$0xff] %v6547
      %6580 = vst [vmem:[%s258 + $0x70] sm:$0xff] %v6548
      %6581 = vst [vmem:[%s258 + $0x78] sm:$0xff] %v6549
      %6582 = vst [vmem:[%s258 + $0x80] sm:$0xff] %v6550
      %6583 = vst [vmem:[%s258 + $0x88] sm:$0xff] %v6551
      %6584 = vst [vmem:[%s258 + $0x90] sm:$0xff] %v6552
      %6585 = vst [vmem:[%s258 + $0x98] sm:$0xff] %v6553
      %6586 = vst [vmem:[%s258 + $0xa0] sm:$0xff] %v6554
      %6587 = vst [vmem:[%s258 + $0xa8] sm:$0xff] %v6555
      %6588 = vst [vmem:[%s258 + $0xb0] sm:$0xff] %v6556
      %6589 = vst [vmem:[%s258 + $0xb8] sm:$0xff] %v6557
      %6590 = vst [vmem:[%s258 + $0xc0] sm:$0xff] %v6558
      %6591 = vst [vmem:[%s258 + $0xc8] sm:$0xff] %v6559
      %6592 = vst [vmem:[%s258 + $0xd0] sm:$0xff] %v6560
      %6593 = vst [vmem:[%s258 + $0xd8] sm:$0xff] %v6561
      %6594 = vst [vmem:[%s258 + $0xe0] sm:$0xff] %v6562
      %6595 = vst [vmem:[%s258 + $0xe8] sm:$0xff] %v6563
      %6596 = vst [vmem:[%s258 + $0xf0] sm:$0xff] %v6564
      %6597 = vst [vmem:[%s258 + $0xf8] sm:$0xff] %v6565
      %v6598 = vadd.f32 %v6534, %v6535
      %v6599 = vadd.f32 %v6598, %v6536
      %v6600 = vadd.f32 %v6599, %v6537
      %v6601 = vadd.f32 %v6600, %v6538
      %v6602 = vadd.f32 %v6601, %v6539
      %v6603 = vadd.f32 %v6602, %v6540
      %v6604 = vadd.f32 %v6603, %v6541
      %v6605 = vadd.f32 %v6604, %v6542
      %v6606 = vadd.f32 %v6605, %v6543
      %v6607 = vadd.f32 %v6606, %v6544
      %v6608 = vadd.f32 %v6607, %v6545
      %v6609 = vadd.f32 %v6608, %v6546
      %v6610 = vadd.f32 %v6609, %v6547
      %v6611 = vadd.f32 %v6610, %v6548
      %v6612 = vadd.f32 %v6611, %v6549
      %v6613 = vadd.f32 %v6612, %v6550
      %v6614 = vadd.f32 %v6613, %v6551
      %v6615 = vadd.f32 %v6614, %v6552
      %v6616 = vadd.f32 %v6615, %v6553
      %v6617 = vadd.f32 %v6616, %v6554
      %v6618 = vadd.f32 %v6617, %v6555
      %v6619 = vadd.f32 %v6618, %v6556
      %v6620 = vadd.f32 %v6619, %v6557
      %v6621 = vadd.f32 %v6620, %v6558
      %v6622 = vadd.f32 %v6621, %v6559
      %v6623 = vadd.f32 %v6622, %v6560
      %v6624 = vadd.f32 %v6623, %v6561
      %v6625 = vadd.f32 %v6624, %v6562
      %v6626 = vadd.f32 %v6625, %v6563
      %v6627 = vadd.f32 %v6626, %v6564
      %v6628 = vadd.f32 %v6627, %v6565
      %v6629 = vrot.slane %v6628, 4
      %v6630 = vadd.f32 %v6628, %v6629
      %v6631 = vrot.slane %v6630, 2
      %v6632 = vadd.f32 %v6630, %v6631
      %v6633 = vrot.slane %v6632, 1
      %v6634 = vadd.f32 %v6632, %v6633
      %v6635 = vmul.f32 %v6534, %v6534
      %v6636 = vmul.f32 %v6535, %v6535
      %v6637 = vmul.f32 %v6536, %v6536
      %v6638 = vmul.f32 %v6537, %v6537
      %v6639 = vmul.f32 %v6538, %v6538
      %v6640 = vmul.f32 %v6539, %v6539
      %v6641 = vmul.f32 %v6540, %v6540
      %v6642 = vmul.f32 %v6541, %v6541
      %v6643 = vmul.f32 %v6542, %v6542
      %v6644 = vmul.f32 %v6543, %v6543
      %v6645 = vmul.f32 %v6544, %v6544
      %v6646 = vmul.f32 %v6545, %v6545
      %v6647 = vmul.f32 %v6546, %v6546
      %v6648 = vmul.f32 %v6547, %v6547
      %v6649 = vmul.f32 %v6548, %v6548
      %v6650 = vmul.f32 %v6549, %v6549
      %v6651 = vmul.f32 %v6550, %v6550
      %v6652 = vmul.f32 %v6551, %v6551
      %v6653 = vmul.f32 %v6552, %v6552
      %v6654 = vmul.f32 %v6553, %v6553
      %v6655 = vmul.f32 %v6554, %v6554
      %v6656 = vmul.f32 %v6555, %v6555
      %v6657 = vmul.f32 %v6556, %v6556
      %v6658 = vmul.f32 %v6557, %v6557
      %v6659 = vmul.f32 %v6558, %v6558
      %v6660 = vmul.f32 %v6559, %v6559
      %v6661 = vmul.f32 %v6560, %v6560
      %v6662 = vmul.f32 %v6561, %v6561
      %v6663 = vmul.f32 %v6562, %v6562
      %v6664 = vmul.f32 %v6563, %v6563
      %v6665 = vmul.f32 %v6564, %v6564
      %v6666 = vmul.f32 %v6565, %v6565
      %v6667 = vadd.f32 %v6635, %v6636
      %v6668 = vadd.f32 %v6667, %v6637
      %v6669 = vadd.f32 %v6668, %v6638
      %v6670 = vadd.f32 %v6669, %v6639
      %v6671 = vadd.f32 %v6670, %v6640
      %v6672 = vadd.f32 %v6671, %v6641
      %v6673 = vadd.f32 %v6672, %v6642
      %v6674 = vadd.f32 %v6673, %v6643
      %v6675 = vadd.f32 %v6674, %v6644
      %v6676 = vadd.f32 %v6675, %v6645
      %v6677 = vadd.f32 %v6676, %v6646
      %v6678 = vadd.f32 %v6677, %v6647
      %v6679 = vadd.f32 %v6678, %v6648
      %v6680 = vadd.f32 %v6679, %v6649
      %v6681 = vadd.f32 %v6680, %v6650
      %v6682 = vadd.f32 %v6681, %v6651
      %v6683 = vadd.f32 %v6682, %v6652
      %v6684 = vadd.f32 %v6683, %v6653
      %v6685 = vadd.f32 %v6684, %v6654
      %v6686 = vadd.f32 %v6685, %v6655
      %v6687 = vadd.f32 %v6686, %v6656
      %v6688 = vadd.f32 %v6687, %v6657
      %v6689 = vadd.f32 %v6688, %v6658
      %v6690 = vadd.f32 %v6689, %v6659
      %v6691 = vadd.f32 %v6690, %v6660
      %v6692 = vadd.f32 %v6691, %v6661
      %v6693 = vadd.f32 %v6692, %v6662
      %v6694 = vadd.f32 %v6693, %v6663
      %v6695 = vadd.f32 %v6694, %v6664
      %v6696 = vadd.f32 %v6695, %v6665
      %v6697 = vadd.f32 %v6696, %v6666
      %v6698 = vrot.slane %v6697, 4
      %v6699 = vadd.f32 %v6697, %v6698
      %v6700 = vrot.slane %v6699, 2
      %v6701 = vadd.f32 %v6699, %v6700
      %v6702 = vrot.slane %v6701, 1
      %v6703 = vadd.f32 %v6701, %v6702
      %vm6704 = vcmask 1040384
      %v6705 = vsel %vm6704, %v6634, %v6703
      %vm6706 = vcmask 1041408
      %v6707 = vsel %vm6706, %v6705, 0.0
      %6708 = vst [vmem:[%s262] sm:$0xff] %v6707
      %p6709 = scmp.lt.s32.totalorder %s18, 1
      %s6710 = scalar_select %p6709, %s18, 1
      %s6711 = smul.addr %s6710, 32
      %s6712 = smul.addr %s6711, 8
      %s6713 = scalar_lea.vmem %s5, %s6712
      %p6714 = scmp.lt.s32.totalorder %s18, 1
      %s6715 = scalar_select %p6714, %s18, 1
      %s6716 = smul.addr %s6715, 8
      %s6717 = scalar_lea.vmem %s6, %s6716
      // Predicated region
      $region41: #{bottleneck_forward.6} parent=39 // pred_check
        %p6718 = pneg %p146
      $region42: #{bottleneck_forward.6} parent=39 // pred_check_branch
        %6720 = sbr.rel (%p6718) target = $region44
      $region43: #{bottleneck_forward.6} parent=39 // pred_region
        _
      $region44: #{bottleneck_forward.6} parent=39 // pred_fallthru
        _
      // Predicated region
      $region45: #{bottleneck_forward.6} parent=39 // pred_check
        %p6721 = pneg %p172
      $region46: #{bottleneck_forward.6} parent=39 // pred_check_branch
        %6723 = sbr.rel (%p6721) target = $region48
      $region47: #{bottleneck_forward.6} parent=39 // pred_region
        _
      $region48: #{bottleneck_forward.6} parent=39 // pred_fallthru
        _
    $region40: #{bottleneck_forward.6} parent=5 // pred_fallthru
      _
    %p6724 = scmp.le.s32.totalorder 2, %s13
    // Predicated region
    $region49: #{bottleneck_forward.6} parent=5 // pred_check
      %p6725 = pneg %p6724
    $region50: #{bottleneck_forward.6} parent=5 // pred_check_branch
      %6727 = sbr.rel (%p6725) target = $region52
    $region51: #{bottleneck_forward.6} parent=5 // pred_region
      %s6728 = ssub.s32 %s13, 2
      // Predicated region
      $region53: #{bottleneck_forward.6} parent=51 // pred_check
        %p6729 = pneg %p152
      $region54: #{bottleneck_forward.6} parent=51 // pred_check_branch
        %6731 = sbr.rel (%p6729) target = $region56
      $region55: #{bottleneck_forward.6} parent=51 // pred_region
        %p6732 = scmp.lt.s32.totalorder %s19, 1
        %s6733 = scalar_select %p6732, %s19, 1
        %s6734 = smul.addr %s6733, 32
        %s6735 = smul.addr %s6734, 8
        %s6736 = scalar_lea.vmem %s5, %s6735
      $region56: #{bottleneck_forward.6} parent=51 // pred_fallthru
        _
      // Predicated region
      $region57: #{bottleneck_forward.6} parent=51 // pred_check
        %p6737 = pneg %p178
      $region58: #{bottleneck_forward.6} parent=51 // pred_check_branch
        %6739 = sbr.rel (%p6737) target = $region60
      $region59: #{bottleneck_forward.6} parent=51 // pred_region
        %p6740 = scmp.lt.s32.totalorder %s19, 1
        %s6741 = scalar_select %p6740, %s19, 1
        %s6742 = smul.addr %s6741, 8
        %s6743 = scalar_lea.vmem %s6, %s6742
      $region60: #{bottleneck_forward.6} parent=51 // pred_fallthru
        _
    $region52: #{bottleneck_forward.6} parent=5 // pred_fallthru
      _
  $region6: #{bottleneck_forward.6} parent=0 // loop_footer
    %s17 = sadd.s32 1, %s13
  $region7: #{bottleneck_forward.6} parent=0 // loop_footer_branch
    %12 = sbr.rel target = $region3
  $region8: #{bottleneck_forward.6} parent=0 // loop_exit
    _

</llo_original>
